<compile_context>
chip_gen: v7x
topology: tpu7x:2x2x1
jax: 0.10.0
libtpu: 0.0.40
codegen_flags: <defaults>
</compile_context>

<pallas_src>
import numpy as np
import jax
import jax.numpy as jnp
from jax.experimental import pallas as pl
from jax.experimental.pallas import tpu as pltpu


def _round_up(x, m):
    return ((x + m - 1) // m) * m


# ----------------------------------------------------------------------------
# Fused spatial + temporal ST-GCN block kernel
# ----------------------------------------------------------------------------
def make_st_block(N, T, V, C_in, C_out, K, gamma, stride, pad):
    """One fused ST-GCN block: y = A^T (x W_sp + b_sp), then temporal conv
    (gamma, 1) with stride + bias + ReLU.  Intermediate stays in VMEM."""
    T_pad = T + 2 * pad
    T_out = (T_pad - gamma) // stride + 1
    T_scr = _round_up(T_pad, stride)          # scratch time length (stride-aligned)

    def kernel(x_ref, wsp_ref, bsp_ref, at_ref, wt_ref, bt_ref, o_ref, y_scr):
        # ---------------- spatial: 1x1 conv + graph aggregation --------------
        x2d = x_ref[0].reshape(T * V, C_in)                       # bf16, big-M matmul
        acc = None
        for k in range(K):                                        # K tiny & static
            yk = jnp.dot(x2d, wsp_ref[k],
                         preferred_element_type=jnp.float32)      # (T*V, C_out) f32
            yk = yk + bsp_ref[k]                                  # bias (f32)
            yk3 = yk.reshape(T, V, C_out)
            # a_ref holds A[k].T so out[w] = sum_v A[k, v, w] * yk[v]
            at_b = jnp.broadcast_to(at_ref[k], (T, V, V))         # batched MXU matmul
            zk = jnp.einsum('twv,tvc->twc', at_b, yk3,
                            preferred_element_type=jnp.float32)
            acc = zk if acc is None else acc + zk

        # ------------- write into time-padded VMEM scratch --------------------
        if pad > 0:
            y_scr[pl.ds(0, pad)] = jnp.zeros((pad, V, C_out), y_scr.dtype)
        tail = T_scr - (pad + T)
        if tail > 0:
            y_scr[pl.ds(pad + T, tail)] = jnp.zeros((tail, V, C_out), y_scr.dtype)
        y_scr[pl.ds(pad, T)] = acc.astype(y_scr.dtype)            # bf16 intermediate

        # ------------- temporal conv: gamma shifted big matmuls ---------------
        tacc = None
        if stride == 1:
            for tau in range(gamma):
                xt = y_scr[pl.ds(tau, T_out)].reshape(T_out * V, C_out)
                d = jnp.dot(xt, wt_ref[tau],
                            preferred_element_type=jnp.float32)
                tacc = d if tacc is None else tacc + d
        else:
            # strided taps via a stride-split view (unit-stride slices only)
            ys = y_scr[...].reshape(T_scr // stride, stride, V, C_out)
            for tau in range(gamma):
                q, r = tau // stride, tau % stride
                xt = ys[q:q + T_out, r].reshape(T_out * V, C_out)
                d = jnp.dot(xt, wt_ref[tau],
                            preferred_element_type=jnp.float32)
                tacc = d if tacc is None else tacc + d

        out = jnp.maximum(tacc + bt_ref[...], 0.0)                # bias + ReLU (f32)
        o_ref[0] = out.reshape(T_out, V, C_out).astype(o_ref.dtype)

    def apply(x, wsp, bsp, at, wt, bt):
        out = pl.pallas_call(
            kernel,
            out_shape=jax.ShapeDtypeStruct((N, T_out, V, C_out), jnp.bfloat16),
            grid=(N,),
            in_specs=[
                pl.BlockSpec((1, T, V, C_in), lambda n: (n, 0, 0, 0)),
                pl.BlockSpec((K, C_in, C_out), lambda n: (0, 0, 0)),
                pl.BlockSpec((K, 1, C_out), lambda n: (0, 0, 0)),
                pl.BlockSpec((K, V, V), lambda n: (0, 0, 0)),
                pl.BlockSpec((gamma, C_out, C_out), lambda n: (0, 0, 0)),
                pl.BlockSpec((1, C_out), lambda n: (0, 0)),
            ],
            out_specs=pl.BlockSpec((1, T_out, V, C_out), lambda n: (n, 0, 0, 0)),
            scratch_shapes=[pltpu.VMEM((T_scr, V, C_out), jnp.bfloat16)],
            compiler_params=pltpu.CompilerParams(
                dimension_semantics=("parallel",),
                vmem_limit_bytes=48 * 1024 * 1024),
        )(x, wsp, bsp, at, wt, bt)
        return out, T_out

    return apply


# ----------------------------------------------------------------------------
# Head: global avg-pool over (T, V), Linear(C -> n_cls), Softmax(dim=1)
# ----------------------------------------------------------------------------
def make_head(N, T, V, C, n_cls):
    inv = 1.0 / float(T * V)

    def kernel(x_ref, w_ref, b_ref, o_ref):
        x = x_ref[0].astype(jnp.float32)                          # (T, V, C)
        pooled = jnp.sum(jnp.sum(x, axis=0), axis=0, keepdims=True) * inv  # (1, C)
        logits = jnp.dot(pooled, w_ref[...],
                         preferred_element_type=jnp.float32) + b_ref[...]
        m = jnp.max(logits, axis=1, keepdims=True)
        e = jnp.exp(logits - m)
        o_ref[0] = e / jnp.sum(e, axis=1, keepdims=True)

    # TODO(synk): for very large T, add a grid axis over T with a running-sum
    # VMEM accumulator finalized under pl.when (keeps the tile small on v7x).
    def apply(x, w, b):
        out = pl.pallas_call(
            kernel,
            out_shape=jax.ShapeDtypeStruct((N, 1, n_cls), jnp.float32),
            grid=(N,),
            in_specs=[
                pl.BlockSpec((1, T, V, C), lambda n: (n, 0, 0, 0)),
                pl.BlockSpec((C, n_cls), lambda n: (0, 0)),
                pl.BlockSpec((1, n_cls), lambda n: (0, 0)),
            ],
            out_specs=pl.BlockSpec((1, 1, n_cls), lambda n: (n, 0, 0)),
            compiler_params=pltpu.CompilerParams(
                dimension_semantics=("parallel",),
                vmem_limit_bytes=48 * 1024 * 1024),
        )(x, w, b)
        return out.reshape(N, n_cls)

    return apply


# ----------------------------------------------------------------------------
# Parameter / adjacency setup (plain JAX glue)
# ----------------------------------------------------------------------------
BLOCK_CFGS = [  # (C_in, C_out, temporal stride) — as in STGCN.__init__
    (None, 64, 1), (64, 64, 1), (64, 64, 1), (64, 64, 1), (64, 128, 2),
    (128, 128, 1), (128, 128, 1), (128, 256, 2), (256, 256, 1), (256, 256, 1),
]


def build_adjacency(V):
    """Synthetic UNI_LABELING (K=1) normalized adjacency for a chain graph."""
    A = np.zeros((V, V), np.float32)
    for i in range(V - 1):
        A[i, i + 1] = 1.0
        A[i + 1, i] = 1.0
    A = A + np.eye(V, dtype=np.float32)            # self-loops
    d_inv = 1.0 / A.sum(axis=1)
    An = (A * d_inv[:, None]).astype(np.float32)   # D^-1 (A + I)
    return jnp.asarray(An[None])                   # (K=1, V, V)


def init_params(key, C_in, V, K, gamma, nr_classes):
    params = []
    for (ci, co, s) in BLOCK_CFGS:
        ci = C_in if ci is None else ci
        key, k1, k2, k3, k4 = jax.random.split(key, 5)
        params.append(dict(
            ci=ci, co=co, stride=s,
            wsp=(jax.random.normal(k1, (K, ci, co), jnp.float32)
                 / np.sqrt(ci)).astype(jnp.bfloat16),
            bsp=jax.random.normal(k2, (K, 1, co), jnp.float32) * 0.01,
            wt=(jax.random.normal(k3, (gamma, co, co), jnp.float32)
                / np.sqrt(co * gamma)).astype(jnp.bfloat16),
            bt=jax.random.normal(k4, (1, co), jnp.float32) * 0.01,
            mask=jnp.ones((K, V, V), jnp.float32),   # edge-importance (init=1)
        ))
    key, k1, k2 = jax.random.split(key, 3)
    wfc = jax.random.normal(k1, (256, nr_classes), jnp.float32) / np.sqrt(256)
    bfc = jax.random.normal(k2, (1, nr_classes), jnp.float32) * 0.01
    return params, wfc, bfc


def stgcn_forward(x, A, params, wfc, bfc, gamma):
    """x: (N, T, V, C_in) -> softmax class probabilities (N, nr_classes)."""
    pad = (gamma - 1) // 2
    N, T, V, _ = x.shape
    K = A.shape[0]
    h = x.astype(jnp.bfloat16)
    for p in params:
        At = jnp.transpose(A * p["mask"], (0, 2, 1))   # pre-transposed adjacency
        block = make_st_block(N, T, V, p["ci"], p["co"], K,
                              gamma, p["stride"], pad)
        h, T = block(h, p["wsp"], p["bsp"], At, p["wt"], p["bt"])
    head = make_head(N, T, V, 256, wfc.shape[1])
    return head(h, wfc, bfc)


# ----------------------------------------------------------------------------
if __name__ == "__main__":
    N, T, V = 2, 8, 16
    C_in, gamma, nr_classes, K = 4, 3, 8, 1

    key = jax.random.PRNGKey(0)
    key, kx, kp = jax.random.split(key, 3)

    A = build_adjacency(V)
    params, wfc, bfc = init_params(kp, C_in, V, K, gamma, nr_classes)
    x = jax.random.normal(kx, (N, T, V, C_in), jnp.float32)

    fwd = jax.jit(lambda inp: stgcn_forward(inp, A, params, wfc, bfc, gamma))
    out = jax.block_until_ready(fwd(x))

    assert out.shape == (N, nr_classes)
    assert bool(jnp.all(jnp.isfinite(out)))
    assert bool(jnp.allclose(jnp.sum(out, axis=1), 1.0, atol=1e-4))
    print("KERNEL_OK")
</pallas_src>

<mosaic_0001>
module attributes {stable_mosaic.version = 11 : i64} {
  func.func @kernel(%arg0: i32, %arg1: memref<1x8x16x64xbf16, #tpu.memory_space<vmem>>, %arg2: memref<1x64x64xbf16, #tpu.memory_space<vmem>>, %arg3: memref<1x1x64xf32, #tpu.memory_space<vmem>>, %arg4: memref<1x16x16xf32, #tpu.memory_space<vmem>>, %arg5: memref<3x64x64xbf16, #tpu.memory_space<vmem>>, %arg6: memref<1x64xf32, #tpu.memory_space<vmem>>, %arg7: memref<1x8x16x64xbf16, #tpu.memory_space<vmem>>, %arg8: memref<10x16x64xbf16, #tpu.memory_space<vmem>>) attributes {dimension_semantics = [#tpu.dimension_semantics<parallel>], iteration_bounds = array<i64: 2>, scalar_prefetch = 0 : i64, scratch_operands = 1 : i64, tpu.core_type = #tpu.core_type<tc>, window_params = [{transform_indices = @transform_0, window_bounds = array<i64: 1, 8, 16, 64>}, {pipeline_mode = #tpu.pipeline_mode<synchronous>, transform_indices = @transform_1, window_bounds = array<i64: 1, 64, 64>}, {pipeline_mode = #tpu.pipeline_mode<synchronous>, transform_indices = @transform_2, window_bounds = array<i64: 1, 1, 64>}, {pipeline_mode = #tpu.pipeline_mode<synchronous>, transform_indices = @transform_3, window_bounds = array<i64: 1, 16, 16>}, {pipeline_mode = #tpu.pipeline_mode<synchronous>, transform_indices = @transform_4, window_bounds = array<i64: 3, 64, 64>}, {pipeline_mode = #tpu.pipeline_mode<synchronous>, transform_indices = @transform_5, window_bounds = array<i64: 1, 64>}, {transform_indices = @transform_6, window_bounds = array<i64: 1, 8, 16, 64>}]} {
    %c0 = arith.constant 0 : index
    %c0_0 = arith.constant 0 : index
    %c0_1 = arith.constant 0 : index
    %c0_2 = arith.constant 0 : index
    %0 = vector.load %arg1[%c0, %c0_0, %c0_1, %c0_2] : memref<1x8x16x64xbf16, #tpu.memory_space<vmem>>, vector<1x8x16x64xbf16>
    %1 = vector.shape_cast %0 : vector<1x8x16x64xbf16> to vector<8x16x64xbf16>
    %2 = vector.shape_cast %1 : vector<8x16x64xbf16> to vector<128x64xbf16>
    %c0_3 = arith.constant 0 : index
    %c0_4 = arith.constant 0 : index
    %c0_5 = arith.constant 0 : index
    %3 = vector.load %arg2[%c0_3, %c0_4, %c0_5] : memref<1x64x64xbf16, #tpu.memory_space<vmem>>, vector<1x64x64xbf16>
    %4 = vector.shape_cast %3 : vector<1x64x64xbf16> to vector<64x64xbf16>
    %cst = arith.constant dense<0.000000e+00> : vector<128x64xf32>
    %5 = tpu.matmul %2, %4, %cst {dimension_numbers = #tpu.dot_dimension_numbers<[1], [0], [0], [1], [0, 0, 1, 1], [], []>} : vector<128x64xbf16>, vector<64x64xbf16>, vector<128x64xf32> -> vector<128x64xf32>
    %c0_6 = arith.constant 0 : index
    %c0_7 = arith.constant 0 : index
    %c0_8 = arith.constant 0 : index
    %6 = vector.load %arg3[%c0_6, %c0_7, %c0_8] : memref<1x1x64xf32, #tpu.memory_space<vmem>>, vector<1x1x64xf32>
    %7 = vector.shape_cast %6 : vector<1x1x64xf32> to vector<1x64xf32>
    %8 = vector.broadcast %7 : vector<1x64xf32> to vector<128x64xf32>
    %9 = arith.addf %5, %8 : vector<128x64xf32>
    %10 = vector.shape_cast %9 : vector<128x64xf32> to vector<8x16x64xf32>
    %c0_9 = arith.constant 0 : index
    %c0_10 = arith.constant 0 : index
    %c0_11 = arith.constant 0 : index
    %11 = vector.load %arg4[%c0_9, %c0_10, %c0_11] : memref<1x16x16xf32, #tpu.memory_space<vmem>>, vector<1x16x16xf32>
    %12 = vector.shape_cast %11 : vector<1x16x16xf32> to vector<16x16xf32>
    %13 = vector.shape_cast %12 : vector<16x16xf32> to vector<1x16x16xf32>
    %14 = vector.broadcast %13 : vector<1x16x16xf32> to vector<8x16x16xf32>
    "tpu.trace_start"() <{level = 10 : i32, message = "twv,tvc->twc"}> : () -> ()
    %cst_12 = arith.constant dense<0.000000e+00> : vector<8x16x64xf32>
    %15 = tpu.matmul %14, %10, %cst_12 {dimension_numbers = #tpu.dot_dimension_numbers<[2], [1], [1], [2], [0, 0, 0, 1, 1, 2], [0], [0]>} : vector<8x16x16xf32>, vector<8x16x64xf32>, vector<8x16x64xf32> -> vector<8x16x64xf32>
    %cst_13 = arith.constant 0.000000e+00 : bf16
    "tpu.trace_stop"() : () -> ()
    %16 = vector.broadcast %cst_13 : bf16 to vector<1x16x64xbf16>
    %c0_14 = arith.constant 0 : index
    %c0_15 = arith.constant 0 : index
    %c0_16 = arith.constant 0 : index
    %17 = vector.load %arg8[%c0_14, %c0_15, %c0_16] : memref<10x16x64xbf16, #tpu.memory_space<vmem>>, vector<1x16x64xbf16>
    tpu.vector_store %arg8[%c0_14, %c0_15, %c0_16], %16 {strides = array<i32>} : memref<10x16x64xbf16, #tpu.memory_space<vmem>>, vector<1x16x64xbf16>,
    %cst_17 = arith.constant 0.000000e+00 : bf16
    %18 = vector.broadcast %cst_17 : bf16 to vector<1x16x64xbf16>
    %c9 = arith.constant 9 : index
    %c0_18 = arith.constant 0 : index
    %c0_19 = arith.constant 0 : index
    %19 = vector.load %arg8[%c9, %c0_18, %c0_19] : memref<10x16x64xbf16, #tpu.memory_space<vmem>>, vector<1x16x64xbf16>
    tpu.vector_store %arg8[%c9, %c0_18, %c0_19], %18 {strides = array<i32>} : memref<10x16x64xbf16, #tpu.memory_space<vmem>>, vector<1x16x64xbf16>,
    %20 = arith.truncf %15 : vector<8x16x64xf32> to vector<8x16x64xbf16>
    %c1 = arith.constant 1 : index
    %c0_20 = arith.constant 0 : index
    %c0_21 = arith.constant 0 : index
    %21 = vector.load %arg8[%c1, %c0_20, %c0_21] : memref<10x16x64xbf16, #tpu.memory_space<vmem>>, vector<8x16x64xbf16>
    tpu.vector_store %arg8[%c1, %c0_20, %c0_21], %20 {strides = array<i32>} : memref<10x16x64xbf16, #tpu.memory_space<vmem>>, vector<8x16x64xbf16>,
    %c0_22 = arith.constant 0 : index
    %c0_23 = arith.constant 0 : index
    %c0_24 = arith.constant 0 : index
    %22 = vector.load %arg8[%c0_22, %c0_23, %c0_24] : memref<10x16x64xbf16, #tpu.memory_space<vmem>>, vector<8x16x64xbf16>
    %23 = vector.shape_cast %22 : vector<8x16x64xbf16> to vector<128x64xbf16>
    %c0_25 = arith.constant 0 : index
    %c0_26 = arith.constant 0 : index
    %c0_27 = arith.constant 0 : index
    %24 = vector.load %arg5[%c0_25, %c0_26, %c0_27] : memref<3x64x64xbf16, #tpu.memory_space<vmem>>, vector<1x64x64xbf16>
    %25 = vector.shape_cast %24 : vector<1x64x64xbf16> to vector<64x64xbf16>
    %cst_28 = arith.constant dense<0.000000e+00> : vector<128x64xf32>
    %26 = tpu.matmul %23, %25, %cst_28 {dimension_numbers = #tpu.dot_dimension_numbers<[1], [0], [0], [1], [0, 0, 1, 1], [], []>} : vector<128x64xbf16>, vector<64x64xbf16>, vector<128x64xf32> -> vector<128x64xf32>
    %c1_29 = arith.constant 1 : index
    %c0_30 = arith.constant 0 : index
    %c0_31 = arith.constant 0 : index
    %27 = vector.load %arg8[%c1_29, %c0_30, %c0_31] : memref<10x16x64xbf16, #tpu.memory_space<vmem>>, vector<8x16x64xbf16>
    %28 = vector.shape_cast %27 : vector<8x16x64xbf16> to vector<128x64xbf16>
    %c1_32 = arith.constant 1 : index
    %c0_33 = arith.constant 0 : index
    %c0_34 = arith.constant 0 : index
    %29 = vector.load %arg5[%c1_32, %c0_33, %c0_34] : memref<3x64x64xbf16, #tpu.memory_space<vmem>>, vector<1x64x64xbf16>
    %30 = vector.shape_cast %29 : vector<1x64x64xbf16> to vector<64x64xbf16>
    %cst_35 = arith.constant dense<0.000000e+00> : vector<128x64xf32>
    %31 = tpu.matmul %28, %30, %cst_35 {dimension_numbers = #tpu.dot_dimension_numbers<[1], [0], [0], [1], [0, 0, 1, 1], [], []>} : vector<128x64xbf16>, vector<64x64xbf16>, vector<128x64xf32> -> vector<128x64xf32>
    %32 = arith.addf %26, %31 : vector<128x64xf32>
    %c2 = arith.constant 2 : index
    %c0_36 = arith.constant 0 : index
    %c0_37 = arith.constant 0 : index
    %33 = vector.load %arg8[%c2, %c0_36, %c0_37] : memref<10x16x64xbf16, #tpu.memory_space<vmem>>, vector<8x16x64xbf16>
    %34 = vector.shape_cast %33 : vector<8x16x64xbf16> to vector<128x64xbf16>
    %c2_38 = arith.constant 2 : index
    %c0_39 = arith.constant 0 : index
    %c0_40 = arith.constant 0 : index
    %35 = vector.load %arg5[%c2_38, %c0_39, %c0_40] : memref<3x64x64xbf16, #tpu.memory_space<vmem>>, vector<1x64x64xbf16>
    %36 = vector.shape_cast %35 : vector<1x64x64xbf16> to vector<64x64xbf16>
    %cst_41 = arith.constant dense<0.000000e+00> : vector<128x64xf32>
    %37 = tpu.matmul %34, %36, %cst_41 {dimension_numbers = #tpu.dot_dimension_numbers<[1], [0], [0], [1], [0, 0, 1, 1], [], []>} : vector<128x64xbf16>, vector<64x64xbf16>, vector<128x64xf32> -> vector<128x64xf32>
    %38 = arith.addf %32, %37 : vector<128x64xf32>
    %c0_42 = arith.constant 0 : index
    %c0_43 = arith.constant 0 : index
    %39 = vector.load %arg6[%c0_42, %c0_43] : memref<1x64xf32, #tpu.memory_space<vmem>>, vector<1x64xf32>
    %40 = vector.broadcast %39 : vector<1x64xf32> to vector<128x64xf32>
    %41 = arith.addf %38, %40 : vector<128x64xf32>
    %cst_44 = arith.constant 0.000000e+00 : f32
    %42 = vector.broadcast %cst_44 : f32 to vector<128x64xf32>
    %43 = arith.maximumf %41, %42 : vector<128x64xf32>
    %44 = vector.shape_cast %43 : vector<128x64xf32> to vector<8x16x64xf32>
    %45 = arith.truncf %44 : vector<8x16x64xf32> to vector<8x16x64xbf16>
    %c0_45 = arith.constant 0 : index
    %c0_46 = arith.constant 0 : index
    %c0_47 = arith.constant 0 : index
    %c0_48 = arith.constant 0 : index
    %46 = vector.load %arg7[%c0_45, %c0_46, %c0_47, %c0_48] : memref<1x8x16x64xbf16, #tpu.memory_space<vmem>>, vector<1x8x16x64xbf16>
    %47 = vector.shape_cast %46 : vector<1x8x16x64xbf16> to vector<8x16x64xbf16>
    %48 = vector.shape_cast %45 : vector<8x16x64xbf16> to vector<1x8x16x64xbf16>
    tpu.vector_store %arg7[%c0_45, %c0_46, %c0_47, %c0_48], %48 {strides = array<i32>} : memref<1x8x16x64xbf16, #tpu.memory_space<vmem>>, vector<1x8x16x64xbf16>,
    return
  }
  func.func @transform_0(%arg0: i32) -> (i32, i32, i32, i32) {
    %c0_i32 = arith.constant 0 : i32
    %c0_i32_0 = arith.constant 0 : i32
    %c0_i32_1 = arith.constant 0 : i32
    %c0_i32_2 = arith.constant 0 : i32
    return %arg0, %c0_i32, %c0_i32_0, %c0_i32_1 : i32, i32, i32, i32
  }
  func.func @transform_1(%arg0: i32) -> (i32, i32, i32) {
    %c0_i32 = arith.constant 0 : i32
    %c0_i32_0 = arith.constant 0 : i32
    %c0_i32_1 = arith.constant 0 : i32
    %c0_i32_2 = arith.constant 0 : i32
    return %c0_i32, %c0_i32_0, %c0_i32_1 : i32, i32, i32
  }
  func.func @transform_2(%arg0: i32) -> (i32, i32, i32) {
    %c0_i32 = arith.constant 0 : i32
    %c0_i32_0 = arith.constant 0 : i32
    %c0_i32_1 = arith.constant 0 : i32
    %c0_i32_2 = arith.constant 0 : i32
    return %c0_i32, %c0_i32_0, %c0_i32_1 : i32, i32, i32
  }
  func.func @transform_3(%arg0: i32) -> (i32, i32, i32) {
    %c0_i32 = arith.constant 0 : i32
    %c0_i32_0 = arith.constant 0 : i32
    %c0_i32_1 = arith.constant 0 : i32
    %c0_i32_2 = arith.constant 0 : i32
    return %c0_i32, %c0_i32_0, %c0_i32_1 : i32, i32, i32
  }
  func.func @transform_4(%arg0: i32) -> (i32, i32, i32) {
    %c0_i32 = arith.constant 0 : i32
    %c0_i32_0 = arith.constant 0 : i32
    %c0_i32_1 = arith.constant 0 : i32
    %c0_i32_2 = arith.constant 0 : i32
    return %c0_i32, %c0_i32_0, %c0_i32_1 : i32, i32, i32
  }
  func.func @transform_5(%arg0: i32) -> (i32, i32) {
    %c0_i32 = arith.constant 0 : i32
    %c0_i32_0 = arith.constant 0 : i32
    %c0_i32_1 = arith.constant 0 : i32
    return %c0_i32, %c0_i32_0 : i32, i32
  }
  func.func @transform_6(%arg0: i32) -> (i32, i32, i32, i32) {
    %c0_i32 = arith.constant 0 : i32
    %c0_i32_0 = arith.constant 0 : i32
    %c0_i32_1 = arith.constant 0 : i32
    %c0_i32_2 = arith.constant 0 : i32
    return %arg0, %c0_i32, %c0_i32_0, %c0_i32_1 : i32, i32, i32, i32
  }
}

module attributes {stable_mosaic.version = 11 : i64} {
  func.func @kernel(%arg0: i32, %arg1: memref<1x8x16x4xbf16, #tpu.memory_space<vmem>>, %arg2: memref<1x4x64xbf16, #tpu.memory_space<vmem>>, %arg3: memref<1x1x64xf32, #tpu.memory_space<vmem>>, %arg4: memref<1x16x16xf32, #tpu.memory_space<vmem>>, %arg5: memref<3x64x64xbf16, #tpu.memory_space<vmem>>, %arg6: memref<1x64xf32, #tpu.memory_space<vmem>>, %arg7: memref<1x8x16x64xbf16, #tpu.memory_space<vmem>>, %arg8: memref<10x16x64xbf16, #tpu.memory_space<vmem>>) attributes {dimension_semantics = [#tpu.dimension_semantics<parallel>], iteration_bounds = array<i64: 2>, scalar_prefetch = 0 : i64, scratch_operands = 1 : i64, tpu.core_type = #tpu.core_type<tc>, window_params = [{transform_indices = @transform_0, window_bounds = array<i64: 1, 8, 16, 4>}, {pipeline_mode = #tpu.pipeline_mode<synchronous>, transform_indices = @transform_1, window_bounds = array<i64: 1, 4, 64>}, {pipeline_mode = #tpu.pipeline_mode<synchronous>, transform_indices = @transform_2, window_bounds = array<i64: 1, 1, 64>}, {pipeline_mode = #tpu.pipeline_mode<synchronous>, transform_indices = @transform_3, window_bounds = array<i64: 1, 16, 16>}, {pipeline_mode = #tpu.pipeline_mode<synchronous>, transform_indices = @transform_4, window_bounds = array<i64: 3, 64, 64>}, {pipeline_mode = #tpu.pipeline_mode<synchronous>, transform_indices = @transform_5, window_bounds = array<i64: 1, 64>}, {transform_indices = @transform_6, window_bounds = array<i64: 1, 8, 16, 64>}]} {
    %c0 = arith.constant 0 : index
    %c0_0 = arith.constant 0 : index
    %c0_1 = arith.constant 0 : index
    %c0_2 = arith.constant 0 : index
    %0 = vector.load %arg1[%c0, %c0_0, %c0_1, %c0_2] : memref<1x8x16x4xbf16, #tpu.memory_space<vmem>>, vector<1x8x16x4xbf16>
    %1 = vector.shape_cast %0 : vector<1x8x16x4xbf16> to vector<8x16x4xbf16>
    %2 = vector.shape_cast %1 : vector<8x16x4xbf16> to vector<128x4xbf16>
    %c0_3 = arith.constant 0 : index
    %c0_4 = arith.constant 0 : index
    %c0_5 = arith.constant 0 : index
    %3 = vector.load %arg2[%c0_3, %c0_4, %c0_5] : memref<1x4x64xbf16, #tpu.memory_space<vmem>>, vector<1x4x64xbf16>
    %4 = vector.shape_cast %3 : vector<1x4x64xbf16> to vector<4x64xbf16>
    %cst = arith.constant dense<0.000000e+00> : vector<128x64xf32>
    %5 = tpu.matmul %2, %4, %cst {dimension_numbers = #tpu.dot_dimension_numbers<[1], [0], [0], [1], [0, 0, 1, 1], [], []>} : vector<128x4xbf16>, vector<4x64xbf16>, vector<128x64xf32> -> vector<128x64xf32>
    %c0_6 = arith.constant 0 : index
    %c0_7 = arith.constant 0 : index
    %c0_8 = arith.constant 0 : index
    %6 = vector.load %arg3[%c0_6, %c0_7, %c0_8] : memref<1x1x64xf32, #tpu.memory_space<vmem>>, vector<1x1x64xf32>
    %7 = vector.shape_cast %6 : vector<1x1x64xf32> to vector<1x64xf32>
    %8 = vector.broadcast %7 : vector<1x64xf32> to vector<128x64xf32>
    %9 = arith.addf %5, %8 : vector<128x64xf32>
    %10 = vector.shape_cast %9 : vector<128x64xf32> to vector<8x16x64xf32>
    %c0_9 = arith.constant 0 : index
    %c0_10 = arith.constant 0 : index
    %c0_11 = arith.constant 0 : index
    %11 = vector.load %arg4[%c0_9, %c0_10, %c0_11] : memref<1x16x16xf32, #tpu.memory_space<vmem>>, vector<1x16x16xf32>
    %12 = vector.shape_cast %11 : vector<1x16x16xf32> to vector<16x16xf32>
    %13 = vector.shape_cast %12 : vector<16x16xf32> to vector<1x16x16xf32>
    %14 = vector.broadcast %13 : vector<1x16x16xf32> to vector<8x16x16xf32>
    "tpu.trace_start"() <{level = 10 : i32, message = "twv,tvc->twc"}> : () -> ()
    %cst_12 = arith.constant dense<0.000000e+00> : vector<8x16x64xf32>
    %15 = tpu.matmul %14, %10, %cst_12 {dimension_numbers = #tpu.dot_dimension_numbers<[2], [1], [1], [2], [0, 0, 0, 1, 1, 2], [0], [0]>} : vector<8x16x16xf32>, vector<8x16x64xf32>, vector<8x16x64xf32> -> vector<8x16x64xf32>
    %cst_13 = arith.constant 0.000000e+00 : bf16
    "tpu.trace_stop"() : () -> ()
    %16 = vector.broadcast %cst_13 : bf16 to vector<1x16x64xbf16>
    %c0_14 = arith.constant 0 : index
    %c0_15 = arith.constant 0 : index
    %c0_16 = arith.constant 0 : index
    %17 = vector.load %arg8[%c0_14, %c0_15, %c0_16] : memref<10x16x64xbf16, #tpu.memory_space<vmem>>, vector<1x16x64xbf16>
    tpu.vector_store %arg8[%c0_14, %c0_15, %c0_16], %16 {strides = array<i32>} : memref<10x16x64xbf16, #tpu.memory_space<vmem>>, vector<1x16x64xbf16>,
    %cst_17 = arith.constant 0.000000e+00 : bf16
    %18 = vector.broadcast %cst_17 : bf16 to vector<1x16x64xbf16>
    %c9 = arith.constant 9 : index
    %c0_18 = arith.constant 0 : index
    %c0_19 = arith.constant 0 : index
    %19 = vector.load %arg8[%c9, %c0_18, %c0_19] : memref<10x16x64xbf16, #tpu.memory_space<vmem>>, vector<1x16x64xbf16>
    tpu.vector_store %arg8[%c9, %c0_18, %c0_19], %18 {strides = array<i32>} : memref<10x16x64xbf16, #tpu.memory_space<vmem>>, vector<1x16x64xbf16>,
    %20 = arith.truncf %15 : vector<8x16x64xf32> to vector<8x16x64xbf16>
    %c1 = arith.constant 1 : index
    %c0_20 = arith.constant 0 : index
    %c0_21 = arith.constant 0 : index
    %21 = vector.load %arg8[%c1, %c0_20, %c0_21] : memref<10x16x64xbf16, #tpu.memory_space<vmem>>, vector<8x16x64xbf16>
    tpu.vector_store %arg8[%c1, %c0_20, %c0_21], %20 {strides = array<i32>} : memref<10x16x64xbf16, #tpu.memory_space<vmem>>, vector<8x16x64xbf16>,
    %c0_22 = arith.constant 0 : index
    %c0_23 = arith.constant 0 : index
    %c0_24 = arith.constant 0 : index
    %22 = vector.load %arg8[%c0_22, %c0_23, %c0_24] : memref<10x16x64xbf16, #tpu.memory_space<vmem>>, vector<8x16x64xbf16>
    %23 = vector.shape_cast %22 : vector<8x16x64xbf16> to vector<128x64xbf16>
    %c0_25 = arith.constant 0 : index
    %c0_26 = arith.constant 0 : index
    %c0_27 = arith.constant 0 : index
    %24 = vector.load %arg5[%c0_25, %c0_26, %c0_27] : memref<3x64x64xbf16, #tpu.memory_space<vmem>>, vector<1x64x64xbf16>
    %25 = vector.shape_cast %24 : vector<1x64x64xbf16> to vector<64x64xbf16>
    %cst_28 = arith.constant dense<0.000000e+00> : vector<128x64xf32>
    %26 = tpu.matmul %23, %25, %cst_28 {dimension_numbers = #tpu.dot_dimension_numbers<[1], [0], [0], [1], [0, 0, 1, 1], [], []>} : vector<128x64xbf16>, vector<64x64xbf16>, vector<128x64xf32> -> vector<128x64xf32>
    %c1_29 = arith.constant 1 : index
    %c0_30 = arith.constant 0 : index
    %c0_31 = arith.constant 0 : index
    %27 = vector.load %arg8[%c1_29, %c0_30, %c0_31] : memref<10x16x64xbf16, #tpu.memory_space<vmem>>, vector<8x16x64xbf16>
    %28 = vector.shape_cast %27 : vector<8x16x64xbf16> to vector<128x64xbf16>
    %c1_32 = arith.constant 1 : index
    %c0_33 = arith.constant 0 : index
    %c0_34 = arith.constant 0 : index
    %29 = vector.load %arg5[%c1_32, %c0_33, %c0_34] : memref<3x64x64xbf16, #tpu.memory_space<vmem>>, vector<1x64x64xbf16>
    %30 = vector.shape_cast %29 : vector<1x64x64xbf16> to vector<64x64xbf16>
    %cst_35 = arith.constant dense<0.000000e+00> : vector<128x64xf32>
    %31 = tpu.matmul %28, %30, %cst_35 {dimension_numbers = #tpu.dot_dimension_numbers<[1], [0], [0], [1], [0, 0, 1, 1], [], []>} : vector<128x64xbf16>, vector<64x64xbf16>, vector<128x64xf32> -> vector<128x64xf32>
    %32 = arith.addf %26, %31 : vector<128x64xf32>
    %c2 = arith.constant 2 : index
    %c0_36 = arith.constant 0 : index
    %c0_37 = arith.constant 0 : index
    %33 = vector.load %arg8[%c2, %c0_36, %c0_37] : memref<10x16x64xbf16, #tpu.memory_space<vmem>>, vector<8x16x64xbf16>
    %34 = vector.shape_cast %33 : vector<8x16x64xbf16> to vector<128x64xbf16>
    %c2_38 = arith.constant 2 : index
    %c0_39 = arith.constant 0 : index
    %c0_40 = arith.constant 0 : index
    %35 = vector.load %arg5[%c2_38, %c0_39, %c0_40] : memref<3x64x64xbf16, #tpu.memory_space<vmem>>, vector<1x64x64xbf16>
    %36 = vector.shape_cast %35 : vector<1x64x64xbf16> to vector<64x64xbf16>
    %cst_41 = arith.constant dense<0.000000e+00> : vector<128x64xf32>
    %37 = tpu.matmul %34, %36, %cst_41 {dimension_numbers = #tpu.dot_dimension_numbers<[1], [0], [0], [1], [0, 0, 1, 1], [], []>} : vector<128x64xbf16>, vector<64x64xbf16>, vector<128x64xf32> -> vector<128x64xf32>
    %38 = arith.addf %32, %37 : vector<128x64xf32>
    %c0_42 = arith.constant 0 : index
    %c0_43 = arith.constant 0 : index
    %39 = vector.load %arg6[%c0_42, %c0_43] : memref<1x64xf32, #tpu.memory_space<vmem>>, vector<1x64xf32>
    %40 = vector.broadcast %39 : vector<1x64xf32> to vector<128x64xf32>
    %41 = arith.addf %38, %40 : vector<128x64xf32>
    %cst_44 = arith.constant 0.000000e+00 : f32
    %42 = vector.broadcast %cst_44 : f32 to vector<128x64xf32>
    %43 = arith.maximumf %41, %42 : vector<128x64xf32>
    %44 = vector.shape_cast %43 : vector<128x64xf32> to vector<8x16x64xf32>
    %45 = arith.truncf %44 : vector<8x16x64xf32> to vector<8x16x64xbf16>
    %c0_45 = arith.constant 0 : index
    %c0_46 = arith.constant 0 : index
    %c0_47 = arith.constant 0 : index
    %c0_48 = arith.constant 0 : index
    %46 = vector.load %arg7[%c0_45, %c0_46, %c0_47, %c0_48] : memref<1x8x16x64xbf16, #tpu.memory_space<vmem>>, vector<1x8x16x64xbf16>
    %47 = vector.shape_cast %46 : vector<1x8x16x64xbf16> to vector<8x16x64xbf16>
    %48 = vector.shape_cast %45 : vector<8x16x64xbf16> to vector<1x8x16x64xbf16>
    tpu.vector_store %arg7[%c0_45, %c0_46, %c0_47, %c0_48], %48 {strides = array<i32>} : memref<1x8x16x64xbf16, #tpu.memory_space<vmem>>, vector<1x8x16x64xbf16>,
    return
  }
  func.func @transform_0(%arg0: i32) -> (i32, i32, i32, i32) {
    %c0_i32 = arith.constant 0 : i32
    %c0_i32_0 = arith.constant 0 : i32
    %c0_i32_1 = arith.constant 0 : i32
    %c0_i32_2 = arith.constant 0 : i32
    return %arg0, %c0_i32, %c0_i32_0, %c0_i32_1 : i32, i32, i32, i32
  }
  func.func @transform_1(%arg0: i32) -> (i32, i32, i32) {
    %c0_i32 = arith.constant 0 : i32
    %c0_i32_0 = arith.constant 0 : i32
    %c0_i32_1 = arith.constant 0 : i32
    %c0_i32_2 = arith.constant 0 : i32
    return %c0_i32, %c0_i32_0, %c0_i32_1 : i32, i32, i32
  }
  func.func @transform_2(%arg0: i32) -> (i32, i32, i32) {
    %c0_i32 = arith.constant 0 : i32
    %c0_i32_0 = arith.constant 0 : i32
    %c0_i32_1 = arith.constant 0 : i32
    %c0_i32_2 = arith.constant 0 : i32
    return %c0_i32, %c0_i32_0, %c0_i32_1 : i32, i32, i32
  }
  func.func @transform_3(%arg0: i32) -> (i32, i32, i32) {
    %c0_i32 = arith.constant 0 : i32
    %c0_i32_0 = arith.constant 0 : i32
    %c0_i32_1 = arith.constant 0 : i32
    %c0_i32_2 = arith.constant 0 : i32
    return %c0_i32, %c0_i32_0, %c0_i32_1 : i32, i32, i32
  }
  func.func @transform_4(%arg0: i32) -> (i32, i32, i32) {
    %c0_i32 = arith.constant 0 : i32
    %c0_i32_0 = arith.constant 0 : i32
    %c0_i32_1 = arith.constant 0 : i32
    %c0_i32_2 = arith.constant 0 : i32
    return %c0_i32, %c0_i32_0, %c0_i32_1 : i32, i32, i32
  }
  func.func @transform_5(%arg0: i32) -> (i32, i32) {
    %c0_i32 = arith.constant 0 : i32
    %c0_i32_0 = arith.constant 0 : i32
    %c0_i32_1 = arith.constant 0 : i32
    return %c0_i32, %c0_i32_0 : i32, i32
  }
  func.func @transform_6(%arg0: i32) -> (i32, i32, i32, i32) {
    %c0_i32 = arith.constant 0 : i32
    %c0_i32_0 = arith.constant 0 : i32
    %c0_i32_1 = arith.constant 0 : i32
    %c0_i32_2 = arith.constant 0 : i32
    return %arg0, %c0_i32, %c0_i32_0, %c0_i32_1 : i32, i32, i32, i32
  }
}

module attributes {stable_mosaic.version = 11 : i64} {
  func.func @kernel(%arg0: i32, %arg1: memref<1x8x16x64xbf16, #tpu.memory_space<vmem>>, %arg2: memref<1x64x128xbf16, #tpu.memory_space<vmem>>, %arg3: memref<1x1x128xf32, #tpu.memory_space<vmem>>, %arg4: memref<1x16x16xf32, #tpu.memory_space<vmem>>, %arg5: memref<3x128x128xbf16, #tpu.memory_space<vmem>>, %arg6: memref<1x128xf32, #tpu.memory_space<vmem>>, %arg7: memref<1x4x16x128xbf16, #tpu.memory_space<vmem>>, %arg8: memref<10x16x128xbf16, #tpu.memory_space<vmem>>) attributes {dimension_semantics = [#tpu.dimension_semantics<parallel>], iteration_bounds = array<i64: 2>, scalar_prefetch = 0 : i64, scratch_operands = 1 : i64, tpu.core_type = #tpu.core_type<tc>, window_params = [{transform_indices = @transform_0, window_bounds = array<i64: 1, 8, 16, 64>}, {pipeline_mode = #tpu.pipeline_mode<synchronous>, transform_indices = @transform_1, window_bounds = array<i64: 1, 64, 128>}, {pipeline_mode = #tpu.pipeline_mode<synchronous>, transform_indices = @transform_2, window_bounds = array<i64: 1, 1, 128>}, {pipeline_mode = #tpu.pipeline_mode<synchronous>, transform_indices = @transform_3, window_bounds = array<i64: 1, 16, 16>}, {pipeline_mode = #tpu.pipeline_mode<synchronous>, transform_indices = @transform_4, window_bounds = array<i64: 3, 128, 128>}, {pipeline_mode = #tpu.pipeline_mode<synchronous>, transform_indices = @transform_5, window_bounds = array<i64: 1, 128>}, {transform_indices = @transform_6, window_bounds = array<i64: 1, 4, 16, 128>}]} {
    %c0 = arith.constant 0 : index
    %c0_0 = arith.constant 0 : index
    %c0_1 = arith.constant 0 : index
    %c0_2 = arith.constant 0 : index
    %0 = vector.load %arg1[%c0, %c0_0, %c0_1, %c0_2] : memref<1x8x16x64xbf16, #tpu.memory_space<vmem>>, vector<1x8x16x64xbf16>
    %1 = vector.shape_cast %0 : vector<1x8x16x64xbf16> to vector<8x16x64xbf16>
    %2 = vector.shape_cast %1 : vector<8x16x64xbf16> to vector<128x64xbf16>
    %c0_3 = arith.constant 0 : index
    %c0_4 = arith.constant 0 : index
    %c0_5 = arith.constant 0 : index
    %3 = vector.load %arg2[%c0_3, %c0_4, %c0_5] : memref<1x64x128xbf16, #tpu.memory_space<vmem>>, vector<1x64x128xbf16>
    %4 = vector.shape_cast %3 : vector<1x64x128xbf16> to vector<64x128xbf16>
    %cst = arith.constant dense<0.000000e+00> : vector<128x128xf32>
    %5 = tpu.matmul %2, %4, %cst {dimension_numbers = #tpu.dot_dimension_numbers<[1], [0], [0], [1], [0, 0, 1, 1], [], []>} : vector<128x64xbf16>, vector<64x128xbf16>, vector<128x128xf32> -> vector<128x128xf32>
    %c0_6 = arith.constant 0 : index
    %c0_7 = arith.constant 0 : index
    %c0_8 = arith.constant 0 : index
    %6 = vector.load %arg3[%c0_6, %c0_7, %c0_8] : memref<1x1x128xf32, #tpu.memory_space<vmem>>, vector<1x1x128xf32>
    %7 = vector.shape_cast %6 : vector<1x1x128xf32> to vector<1x128xf32>
    %8 = vector.broadcast %7 : vector<1x128xf32> to vector<128x128xf32>
    %9 = arith.addf %5, %8 : vector<128x128xf32>
    %10 = vector.shape_cast %9 : vector<128x128xf32> to vector<8x16x128xf32>
    %c0_9 = arith.constant 0 : index
    %c0_10 = arith.constant 0 : index
    %c0_11 = arith.constant 0 : index
    %11 = vector.load %arg4[%c0_9, %c0_10, %c0_11] : memref<1x16x16xf32, #tpu.memory_space<vmem>>, vector<1x16x16xf32>
    %12 = vector.shape_cast %11 : vector<1x16x16xf32> to vector<16x16xf32>
    %13 = vector.shape_cast %12 : vector<16x16xf32> to vector<1x16x16xf32>
    %14 = vector.broadcast %13 : vector<1x16x16xf32> to vector<8x16x16xf32>
    "tpu.trace_start"() <{level = 10 : i32, message = "twv,tvc->twc"}> : () -> ()
    %cst_12 = arith.constant dense<0.000000e+00> : vector<8x16x128xf32>
    %15 = tpu.matmul %14, %10, %cst_12 {dimension_numbers = #tpu.dot_dimension_numbers<[2], [1], [1], [2], [0, 0, 0, 1, 1, 2], [0], [0]>} : vector<8x16x16xf32>, vector<8x16x128xf32>, vector<8x16x128xf32> -> vector<8x16x128xf32>
    %cst_13 = arith.constant 0.000000e+00 : bf16
    "tpu.trace_stop"() : () -> ()
    %16 = vector.broadcast %cst_13 : bf16 to vector<1x16x128xbf16>
    %c0_14 = arith.constant 0 : index
    %c0_15 = arith.constant 0 : index
    %c0_16 = arith.constant 0 : index
    %17 = vector.load %arg8[%c0_14, %c0_15, %c0_16] : memref<10x16x128xbf16, #tpu.memory_space<vmem>>, vector<1x16x128xbf16>
    tpu.vector_store %arg8[%c0_14, %c0_15, %c0_16], %16 {strides = array<i32>} : memref<10x16x128xbf16, #tpu.memory_space<vmem>>, vector<1x16x128xbf16>,
    %cst_17 = arith.constant 0.000000e+00 : bf16
    %18 = vector.broadcast %cst_17 : bf16 to vector<1x16x128xbf16>
    %c9 = arith.constant 9 : index
    %c0_18 = arith.constant 0 : index
    %c0_19 = arith.constant 0 : index
    %19 = vector.load %arg8[%c9, %c0_18, %c0_19] : memref<10x16x128xbf16, #tpu.memory_space<vmem>>, vector<1x16x128xbf16>
    tpu.vector_store %arg8[%c9, %c0_18, %c0_19], %18 {strides = array<i32>} : memref<10x16x128xbf16, #tpu.memory_space<vmem>>, vector<1x16x128xbf16>,
    %20 = arith.truncf %15 : vector<8x16x128xf32> to vector<8x16x128xbf16>
    %c1 = arith.constant 1 : index
    %c0_20 = arith.constant 0 : index
    %c0_21 = arith.constant 0 : index
    %21 = vector.load %arg8[%c1, %c0_20, %c0_21] : memref<10x16x128xbf16, #tpu.memory_space<vmem>>, vector<8x16x128xbf16>
    tpu.vector_store %arg8[%c1, %c0_20, %c0_21], %20 {strides = array<i32>} : memref<10x16x128xbf16, #tpu.memory_space<vmem>>, vector<8x16x128xbf16>,
    %c0_22 = arith.constant 0 : index
    %c0_23 = arith.constant 0 : index
    %c0_24 = arith.constant 0 : index
    %22 = vector.load %arg8[%c0_22, %c0_23, %c0_24] : memref<10x16x128xbf16, #tpu.memory_space<vmem>>, vector<10x16x128xbf16>
    %23 = vector.shape_cast %22 : vector<10x16x128xbf16> to vector<5x2x16x128xbf16>
    %24 = vector.extract_strided_slice %23 {offsets = [0, 0, 0, 0], sizes = [4, 1, 16, 128], strides = [1, 1, 1, 1]} : vector<5x2x16x128xbf16> to vector<4x1x16x128xbf16>
    %25 = vector.shape_cast %24 : vector<4x1x16x128xbf16> to vector<4x16x128xbf16>
    %26 = vector.shape_cast %25 : vector<4x16x128xbf16> to vector<64x128xbf16>
    %c0_25 = arith.constant 0 : index
    %c0_26 = arith.constant 0 : index
    %c0_27 = arith.constant 0 : index
    %27 = vector.load %arg5[%c0_25, %c0_26, %c0_27] : memref<3x128x128xbf16, #tpu.memory_space<vmem>>, vector<1x128x128xbf16>
    %28 = vector.shape_cast %27 : vector<1x128x128xbf16> to vector<128x128xbf16>
    %cst_28 = arith.constant dense<0.000000e+00> : vector<64x128xf32>
    %29 = tpu.matmul %26, %28, %cst_28 {dimension_numbers = #tpu.dot_dimension_numbers<[1], [0], [0], [1], [0, 0, 1, 1], [], []>} : vector<64x128xbf16>, vector<128x128xbf16>, vector<64x128xf32> -> vector<64x128xf32>
    %30 = vector.extract_strided_slice %23 {offsets = [0, 1, 0, 0], sizes = [4, 1, 16, 128], strides = [1, 1, 1, 1]} : vector<5x2x16x128xbf16> to vector<4x1x16x128xbf16>
    %31 = vector.shape_cast %30 : vector<4x1x16x128xbf16> to vector<4x16x128xbf16>
    %32 = vector.shape_cast %31 : vector<4x16x128xbf16> to vector<64x128xbf16>
    %c1_29 = arith.constant 1 : index
    %c0_30 = arith.constant 0 : index
    %c0_31 = arith.constant 0 : index
    %33 = vector.load %arg5[%c1_29, %c0_30, %c0_31] : memref<3x128x128xbf16, #tpu.memory_space<vmem>>, vector<1x128x128xbf16>
    %34 = vector.shape_cast %33 : vector<1x128x128xbf16> to vector<128x128xbf16>
    %cst_32 = arith.constant dense<0.000000e+00> : vector<64x128xf32>
    %35 = tpu.matmul %32, %34, %cst_32 {dimension_numbers = #tpu.dot_dimension_numbers<[1], [0], [0], [1], [0, 0, 1, 1], [], []>} : vector<64x128xbf16>, vector<128x128xbf16>, vector<64x128xf32> -> vector<64x128xf32>
    %36 = arith.addf %29, %35 : vector<64x128xf32>
    %37 = vector.extract_strided_slice %23 {offsets = [1, 0, 0, 0], sizes = [4, 1, 16, 128], strides = [1, 1, 1, 1]} : vector<5x2x16x128xbf16> to vector<4x1x16x128xbf16>
    %38 = vector.shape_cast %37 : vector<4x1x16x128xbf16> to vector<4x16x128xbf16>
    %39 = vector.shape_cast %38 : vector<4x16x128xbf16> to vector<64x128xbf16>
    %c2 = arith.constant 2 : index
    %c0_33 = arith.constant 0 : index
    %c0_34 = arith.constant 0 : index
    %40 = vector.load %arg5[%c2, %c0_33, %c0_34] : memref<3x128x128xbf16, #tpu.memory_space<vmem>>, vector<1x128x128xbf16>
    %41 = vector.shape_cast %40 : vector<1x128x128xbf16> to vector<128x128xbf16>
    %cst_35 = arith.constant dense<0.000000e+00> : vector<64x128xf32>
    %42 = tpu.matmul %39, %41, %cst_35 {dimension_numbers = #tpu.dot_dimension_numbers<[1], [0], [0], [1], [0, 0, 1, 1], [], []>} : vector<64x128xbf16>, vector<128x128xbf16>, vector<64x128xf32> -> vector<64x128xf32>
    %43 = arith.addf %36, %42 : vector<64x128xf32>
    %c0_36 = arith.constant 0 : index
    %c0_37 = arith.constant 0 : index
    %44 = vector.load %arg6[%c0_36, %c0_37] : memref<1x128xf32, #tpu.memory_space<vmem>>, vector<1x128xf32>
    %45 = vector.broadcast %44 : vector<1x128xf32> to vector<64x128xf32>
    %46 = arith.addf %43, %45 : vector<64x128xf32>
    %cst_38 = arith.constant 0.000000e+00 : f32
    %47 = vector.broadcast %cst_38 : f32 to vector<64x128xf32>
    %48 = arith.maximumf %46, %47 : vector<64x128xf32>
    %49 = vector.shape_cast %48 : vector<64x128xf32> to vector<4x16x128xf32>
    %50 = arith.truncf %49 : vector<4x16x128xf32> to vector<4x16x128xbf16>
    %c0_39 = arith.constant 0 : index
    %c0_40 = arith.constant 0 : index
    %c0_41 = arith.constant 0 : index
    %c0_42 = arith.constant 0 : index
    %51 = vector.load %arg7[%c0_39, %c0_40, %c0_41, %c0_42] : memref<1x4x16x128xbf16, #tpu.memory_space<vmem>>, vector<1x4x16x128xbf16>
    %52 = vector.shape_cast %51 : vector<1x4x16x128xbf16> to vector<4x16x128xbf16>
    %53 = vector.shape_cast %50 : vector<4x16x128xbf16> to vector<1x4x16x128xbf16>
    tpu.vector_store %arg7[%c0_39, %c0_40, %c0_41, %c0_42], %53 {strides = array<i32>} : memref<1x4x16x128xbf16, #tpu.memory_space<vmem>>, vector<1x4x16x128xbf16>,
    return
  }
  func.func @transform_0(%arg0: i32) -> (i32, i32, i32, i32) {
    %c0_i32 = arith.constant 0 : i32
    %c0_i32_0 = arith.constant 0 : i32
    %c0_i32_1 = arith.constant 0 : i32
    %c0_i32_2 = arith.constant 0 : i32
    return %arg0, %c0_i32, %c0_i32_0, %c0_i32_1 : i32, i32, i32, i32
  }
  func.func @transform_1(%arg0: i32) -> (i32, i32, i32) {
    %c0_i32 = arith.constant 0 : i32
    %c0_i32_0 = arith.constant 0 : i32
    %c0_i32_1 = arith.constant 0 : i32
    %c0_i32_2 = arith.constant 0 : i32
    return %c0_i32, %c0_i32_0, %c0_i32_1 : i32, i32, i32
  }
  func.func @transform_2(%arg0: i32) -> (i32, i32, i32) {
    %c0_i32 = arith.constant 0 : i32
    %c0_i32_0 = arith.constant 0 : i32
    %c0_i32_1 = arith.constant 0 : i32
    %c0_i32_2 = arith.constant 0 : i32
    return %c0_i32, %c0_i32_0, %c0_i32_1 : i32, i32, i32
  }
  func.func @transform_3(%arg0: i32) -> (i32, i32, i32) {
    %c0_i32 = arith.constant 0 : i32
    %c0_i32_0 = arith.constant 0 : i32
    %c0_i32_1 = arith.constant 0 : i32
    %c0_i32_2 = arith.constant 0 : i32
    return %c0_i32, %c0_i32_0, %c0_i32_1 : i32, i32, i32
  }
  func.func @transform_4(%arg0: i32) -> (i32, i32, i32) {
    %c0_i32 = arith.constant 0 : i32
    %c0_i32_0 = arith.constant 0 : i32
    %c0_i32_1 = arith.constant 0 : i32
    %c0_i32_2 = arith.constant 0 : i32
    return %c0_i32, %c0_i32_0, %c0_i32_1 : i32, i32, i32
  }
  func.func @transform_5(%arg0: i32) -> (i32, i32) {
    %c0_i32 = arith.constant 0 : i32
    %c0_i32_0 = arith.constant 0 : i32
    %c0_i32_1 = arith.constant 0 : i32
    return %c0_i32, %c0_i32_0 : i32, i32
  }
  func.func @transform_6(%arg0: i32) -> (i32, i32, i32, i32) {
    %c0_i32 = arith.constant 0 : i32
    %c0_i32_0 = arith.constant 0 : i32
    %c0_i32_1 = arith.constant 0 : i32
    %c0_i32_2 = arith.constant 0 : i32
    return %arg0, %c0_i32, %c0_i32_0, %c0_i32_1 : i32, i32, i32, i32
  }
}

module attributes {stable_mosaic.version = 11 : i64} {
  func.func @kernel(%arg0: i32, %arg1: memref<1x4x16x128xbf16, #tpu.memory_space<vmem>>, %arg2: memref<1x128x128xbf16, #tpu.memory_space<vmem>>, %arg3: memref<1x1x128xf32, #tpu.memory_space<vmem>>, %arg4: memref<1x16x16xf32, #tpu.memory_space<vmem>>, %arg5: memref<3x128x128xbf16, #tpu.memory_space<vmem>>, %arg6: memref<1x128xf32, #tpu.memory_space<vmem>>, %arg7: memref<1x4x16x128xbf16, #tpu.memory_space<vmem>>, %arg8: memref<6x16x128xbf16, #tpu.memory_space<vmem>>) attributes {dimension_semantics = [#tpu.dimension_semantics<parallel>], iteration_bounds = array<i64: 2>, scalar_prefetch = 0 : i64, scratch_operands = 1 : i64, tpu.core_type = #tpu.core_type<tc>, window_params = [{transform_indices = @transform_0, window_bounds = array<i64: 1, 4, 16, 128>}, {pipeline_mode = #tpu.pipeline_mode<synchronous>, transform_indices = @transform_1, window_bounds = array<i64: 1, 128, 128>}, {pipeline_mode = #tpu.pipeline_mode<synchronous>, transform_indices = @transform_2, window_bounds = array<i64: 1, 1, 128>}, {pipeline_mode = #tpu.pipeline_mode<synchronous>, transform_indices = @transform_3, window_bounds = array<i64: 1, 16, 16>}, {pipeline_mode = #tpu.pipeline_mode<synchronous>, transform_indices = @transform_4, window_bounds = array<i64: 3, 128, 128>}, {pipeline_mode = #tpu.pipeline_mode<synchronous>, transform_indices = @transform_5, window_bounds = array<i64: 1, 128>}, {transform_indices = @transform_6, window_bounds = array<i64: 1, 4, 16, 128>}]} {
    %c0 = arith.constant 0 : index
    %c0_0 = arith.constant 0 : index
    %c0_1 = arith.constant 0 : index
    %c0_2 = arith.constant 0 : index
    %0 = vector.load %arg1[%c0, %c0_0, %c0_1, %c0_2] : memref<1x4x16x128xbf16, #tpu.memory_space<vmem>>, vector<1x4x16x128xbf16>
    %1 = vector.shape_cast %0 : vector<1x4x16x128xbf16> to vector<4x16x128xbf16>
    %2 = vector.shape_cast %1 : vector<4x16x128xbf16> to vector<64x128xbf16>
    %c0_3 = arith.constant 0 : index
    %c0_4 = arith.constant 0 : index
    %c0_5 = arith.constant 0 : index
    %3 = vector.load %arg2[%c0_3, %c0_4, %c0_5] : memref<1x128x128xbf16, #tpu.memory_space<vmem>>, vector<1x128x128xbf16>
    %4 = vector.shape_cast %3 : vector<1x128x128xbf16> to vector<128x128xbf16>
    %cst = arith.constant dense<0.000000e+00> : vector<64x128xf32>
    %5 = tpu.matmul %2, %4, %cst {dimension_numbers = #tpu.dot_dimension_numbers<[1], [0], [0], [1], [0, 0, 1, 1], [], []>} : vector<64x128xbf16>, vector<128x128xbf16>, vector<64x128xf32> -> vector<64x128xf32>
    %c0_6 = arith.constant 0 : index
    %c0_7 = arith.constant 0 : index
    %c0_8 = arith.constant 0 : index
    %6 = vector.load %arg3[%c0_6, %c0_7, %c0_8] : memref<1x1x128xf32, #tpu.memory_space<vmem>>, vector<1x1x128xf32>
    %7 = vector.shape_cast %6 : vector<1x1x128xf32> to vector<1x128xf32>
    %8 = vector.broadcast %7 : vector<1x128xf32> to vector<64x128xf32>
    %9 = arith.addf %5, %8 : vector<64x128xf32>
    %10 = vector.shape_cast %9 : vector<64x128xf32> to vector<4x16x128xf32>
    %c0_9 = arith.constant 0 : index
    %c0_10 = arith.constant 0 : index
    %c0_11 = arith.constant 0 : index
    %11 = vector.load %arg4[%c0_9, %c0_10, %c0_11] : memref<1x16x16xf32, #tpu.memory_space<vmem>>, vector<1x16x16xf32>
    %12 = vector.shape_cast %11 : vector<1x16x16xf32> to vector<16x16xf32>
    %13 = vector.shape_cast %12 : vector<16x16xf32> to vector<1x16x16xf32>
    %14 = vector.broadcast %13 : vector<1x16x16xf32> to vector<4x16x16xf32>
    "tpu.trace_start"() <{level = 10 : i32, message = "twv,tvc->twc"}> : () -> ()
    %cst_12 = arith.constant dense<0.000000e+00> : vector<4x16x128xf32>
    %15 = tpu.matmul %14, %10, %cst_12 {dimension_numbers = #tpu.dot_dimension_numbers<[2], [1], [1], [2], [0, 0, 0, 1, 1, 2], [0], [0]>} : vector<4x16x16xf32>, vector<4x16x128xf32>, vector<4x16x128xf32> -> vector<4x16x128xf32>
    %cst_13 = arith.constant 0.000000e+00 : bf16
    "tpu.trace_stop"() : () -> ()
    %16 = vector.broadcast %cst_13 : bf16 to vector<1x16x128xbf16>
    %c0_14 = arith.constant 0 : index
    %c0_15 = arith.constant 0 : index
    %c0_16 = arith.constant 0 : index
    %17 = vector.load %arg8[%c0_14, %c0_15, %c0_16] : memref<6x16x128xbf16, #tpu.memory_space<vmem>>, vector<1x16x128xbf16>
    tpu.vector_store %arg8[%c0_14, %c0_15, %c0_16], %16 {strides = array<i32>} : memref<6x16x128xbf16, #tpu.memory_space<vmem>>, vector<1x16x128xbf16>,
    %cst_17 = arith.constant 0.000000e+00 : bf16
    %18 = vector.broadcast %cst_17 : bf16 to vector<1x16x128xbf16>
    %c5 = arith.constant 5 : index
    %c0_18 = arith.constant 0 : index
    %c0_19 = arith.constant 0 : index
    %19 = vector.load %arg8[%c5, %c0_18, %c0_19] : memref<6x16x128xbf16, #tpu.memory_space<vmem>>, vector<1x16x128xbf16>
    tpu.vector_store %arg8[%c5, %c0_18, %c0_19], %18 {strides = array<i32>} : memref<6x16x128xbf16, #tpu.memory_space<vmem>>, vector<1x16x128xbf16>,
    %20 = arith.truncf %15 : vector<4x16x128xf32> to vector<4x16x128xbf16>
    %c1 = arith.constant 1 : index
    %c0_20 = arith.constant 0 : index
    %c0_21 = arith.constant 0 : index
    %21 = vector.load %arg8[%c1, %c0_20, %c0_21] : memref<6x16x128xbf16, #tpu.memory_space<vmem>>, vector<4x16x128xbf16>
    tpu.vector_store %arg8[%c1, %c0_20, %c0_21], %20 {strides = array<i32>} : memref<6x16x128xbf16, #tpu.memory_space<vmem>>, vector<4x16x128xbf16>,
    %c0_22 = arith.constant 0 : index
    %c0_23 = arith.constant 0 : index
    %c0_24 = arith.constant 0 : index
    %22 = vector.load %arg8[%c0_22, %c0_23, %c0_24] : memref<6x16x128xbf16, #tpu.memory_space<vmem>>, vector<4x16x128xbf16>
    %23 = vector.shape_cast %22 : vector<4x16x128xbf16> to vector<64x128xbf16>
    %c0_25 = arith.constant 0 : index
    %c0_26 = arith.constant 0 : index
    %c0_27 = arith.constant 0 : index
    %24 = vector.load %arg5[%c0_25, %c0_26, %c0_27] : memref<3x128x128xbf16, #tpu.memory_space<vmem>>, vector<1x128x128xbf16>
    %25 = vector.shape_cast %24 : vector<1x128x128xbf16> to vector<128x128xbf16>
    %cst_28 = arith.constant dense<0.000000e+00> : vector<64x128xf32>
    %26 = tpu.matmul %23, %25, %cst_28 {dimension_numbers = #tpu.dot_dimension_numbers<[1], [0], [0], [1], [0, 0, 1, 1], [], []>} : vector<64x128xbf16>, vector<128x128xbf16>, vector<64x128xf32> -> vector<64x128xf32>
    %c1_29 = arith.constant 1 : index
    %c0_30 = arith.constant 0 : index
    %c0_31 = arith.constant 0 : index
    %27 = vector.load %arg8[%c1_29, %c0_30, %c0_31] : memref<6x16x128xbf16, #tpu.memory_space<vmem>>, vector<4x16x128xbf16>
    %28 = vector.shape_cast %27 : vector<4x16x128xbf16> to vector<64x128xbf16>
    %c1_32 = arith.constant 1 : index
    %c0_33 = arith.constant 0 : index
    %c0_34 = arith.constant 0 : index
    %29 = vector.load %arg5[%c1_32, %c0_33, %c0_34] : memref<3x128x128xbf16, #tpu.memory_space<vmem>>, vector<1x128x128xbf16>
    %30 = vector.shape_cast %29 : vector<1x128x128xbf16> to vector<128x128xbf16>
    %cst_35 = arith.constant dense<0.000000e+00> : vector<64x128xf32>
    %31 = tpu.matmul %28, %30, %cst_35 {dimension_numbers = #tpu.dot_dimension_numbers<[1], [0], [0], [1], [0, 0, 1, 1], [], []>} : vector<64x128xbf16>, vector<128x128xbf16>, vector<64x128xf32> -> vector<64x128xf32>
    %32 = arith.addf %26, %31 : vector<64x128xf32>
    %c2 = arith.constant 2 : index
    %c0_36 = arith.constant 0 : index
    %c0_37 = arith.constant 0 : index
    %33 = vector.load %arg8[%c2, %c0_36, %c0_37] : memref<6x16x128xbf16, #tpu.memory_space<vmem>>, vector<4x16x128xbf16>
    %34 = vector.shape_cast %33 : vector<4x16x128xbf16> to vector<64x128xbf16>
    %c2_38 = arith.constant 2 : index
    %c0_39 = arith.constant 0 : index
    %c0_40 = arith.constant 0 : index
    %35 = vector.load %arg5[%c2_38, %c0_39, %c0_40] : memref<3x128x128xbf16, #tpu.memory_space<vmem>>, vector<1x128x128xbf16>
    %36 = vector.shape_cast %35 : vector<1x128x128xbf16> to vector<128x128xbf16>
    %cst_41 = arith.constant dense<0.000000e+00> : vector<64x128xf32>
    %37 = tpu.matmul %34, %36, %cst_41 {dimension_numbers = #tpu.dot_dimension_numbers<[1], [0], [0], [1], [0, 0, 1, 1], [], []>} : vector<64x128xbf16>, vector<128x128xbf16>, vector<64x128xf32> -> vector<64x128xf32>
    %38 = arith.addf %32, %37 : vector<64x128xf32>
    %c0_42 = arith.constant 0 : index
    %c0_43 = arith.constant 0 : index
    %39 = vector.load %arg6[%c0_42, %c0_43] : memref<1x128xf32, #tpu.memory_space<vmem>>, vector<1x128xf32>
    %40 = vector.broadcast %39 : vector<1x128xf32> to vector<64x128xf32>
    %41 = arith.addf %38, %40 : vector<64x128xf32>
    %cst_44 = arith.constant 0.000000e+00 : f32
    %42 = vector.broadcast %cst_44 : f32 to vector<64x128xf32>
    %43 = arith.maximumf %41, %42 : vector<64x128xf32>
    %44 = vector.shape_cast %43 : vector<64x128xf32> to vector<4x16x128xf32>
    %45 = arith.truncf %44 : vector<4x16x128xf32> to vector<4x16x128xbf16>
    %c0_45 = arith.constant 0 : index
    %c0_46 = arith.constant 0 : index
    %c0_47 = arith.constant 0 : index
    %c0_48 = arith.constant 0 : index
    %46 = vector.load %arg7[%c0_45, %c0_46, %c0_47, %c0_48] : memref<1x4x16x128xbf16, #tpu.memory_space<vmem>>, vector<1x4x16x128xbf16>
    %47 = vector.shape_cast %46 : vector<1x4x16x128xbf16> to vector<4x16x128xbf16>
    %48 = vector.shape_cast %45 : vector<4x16x128xbf16> to vector<1x4x16x128xbf16>
    tpu.vector_store %arg7[%c0_45, %c0_46, %c0_47, %c0_48], %48 {strides = array<i32>} : memref<1x4x16x128xbf16, #tpu.memory_space<vmem>>, vector<1x4x16x128xbf16>,
    return
  }
  func.func @transform_0(%arg0: i32) -> (i32, i32, i32, i32) {
    %c0_i32 = arith.constant 0 : i32
    %c0_i32_0 = arith.constant 0 : i32
    %c0_i32_1 = arith.constant 0 : i32
    %c0_i32_2 = arith.constant 0 : i32
    return %arg0, %c0_i32, %c0_i32_0, %c0_i32_1 : i32, i32, i32, i32
  }
  func.func @transform_1(%arg0: i32) -> (i32, i32, i32) {
    %c0_i32 = arith.constant 0 : i32
    %c0_i32_0 = arith.constant 0 : i32
    %c0_i32_1 = arith.constant 0 : i32
    %c0_i32_2 = arith.constant 0 : i32
    return %c0_i32, %c0_i32_0, %c0_i32_1 : i32, i32, i32
  }
  func.func @transform_2(%arg0: i32) -> (i32, i32, i32) {
    %c0_i32 = arith.constant 0 : i32
    %c0_i32_0 = arith.constant 0 : i32
    %c0_i32_1 = arith.constant 0 : i32
    %c0_i32_2 = arith.constant 0 : i32
    return %c0_i32, %c0_i32_0, %c0_i32_1 : i32, i32, i32
  }
  func.func @transform_3(%arg0: i32) -> (i32, i32, i32) {
    %c0_i32 = arith.constant 0 : i32
    %c0_i32_0 = arith.constant 0 : i32
    %c0_i32_1 = arith.constant 0 : i32
    %c0_i32_2 = arith.constant 0 : i32
    return %c0_i32, %c0_i32_0, %c0_i32_1 : i32, i32, i32
  }
  func.func @transform_4(%arg0: i32) -> (i32, i32, i32) {
    %c0_i32 = arith.constant 0 : i32
    %c0_i32_0 = arith.constant 0 : i32
    %c0_i32_1 = arith.constant 0 : i32
    %c0_i32_2 = arith.constant 0 : i32
    return %c0_i32, %c0_i32_0, %c0_i32_1 : i32, i32, i32
  }
  func.func @transform_5(%arg0: i32) -> (i32, i32) {
    %c0_i32 = arith.constant 0 : i32
    %c0_i32_0 = arith.constant 0 : i32
    %c0_i32_1 = arith.constant 0 : i32
    return %c0_i32, %c0_i32_0 : i32, i32
  }
  func.func @transform_6(%arg0: i32) -> (i32, i32, i32, i32) {
    %c0_i32 = arith.constant 0 : i32
    %c0_i32_0 = arith.constant 0 : i32
    %c0_i32_1 = arith.constant 0 : i32
    %c0_i32_2 = arith.constant 0 : i32
    return %arg0, %c0_i32, %c0_i32_0, %c0_i32_1 : i32, i32, i32, i32
  }
}

module attributes {stable_mosaic.version = 11 : i64} {
  func.func @kernel(%arg0: i32, %arg1: memref<1x4x16x128xbf16, #tpu.memory_space<vmem>>, %arg2: memref<1x128x256xbf16, #tpu.memory_space<vmem>>, %arg3: memref<1x1x256xf32, #tpu.memory_space<vmem>>, %arg4: memref<1x16x16xf32, #tpu.memory_space<vmem>>, %arg5: memref<3x256x256xbf16, #tpu.memory_space<vmem>>, %arg6: memref<1x256xf32, #tpu.memory_space<vmem>>, %arg7: memref<1x2x16x256xbf16, #tpu.memory_space<vmem>>, %arg8: memref<6x16x256xbf16, #tpu.memory_space<vmem>>) attributes {dimension_semantics = [#tpu.dimension_semantics<parallel>], iteration_bounds = array<i64: 2>, scalar_prefetch = 0 : i64, scratch_operands = 1 : i64, tpu.core_type = #tpu.core_type<tc>, window_params = [{transform_indices = @transform_0, window_bounds = array<i64: 1, 4, 16, 128>}, {pipeline_mode = #tpu.pipeline_mode<synchronous>, transform_indices = @transform_1, window_bounds = array<i64: 1, 128, 256>}, {pipeline_mode = #tpu.pipeline_mode<synchronous>, transform_indices = @transform_2, window_bounds = array<i64: 1, 1, 256>}, {pipeline_mode = #tpu.pipeline_mode<synchronous>, transform_indices = @transform_3, window_bounds = array<i64: 1, 16, 16>}, {pipeline_mode = #tpu.pipeline_mode<synchronous>, transform_indices = @transform_4, window_bounds = array<i64: 3, 256, 256>}, {pipeline_mode = #tpu.pipeline_mode<synchronous>, transform_indices = @transform_5, window_bounds = array<i64: 1, 256>}, {transform_indices = @transform_6, window_bounds = array<i64: 1, 2, 16, 256>}]} {
    %c0 = arith.constant 0 : index
    %c0_0 = arith.constant 0 : index
    %c0_1 = arith.constant 0 : index
    %c0_2 = arith.constant 0 : index
    %0 = vector.load %arg1[%c0, %c0_0, %c0_1, %c0_2] : memref<1x4x16x128xbf16, #tpu.memory_space<vmem>>, vector<1x4x16x128xbf16>
    %1 = vector.shape_cast %0 : vector<1x4x16x128xbf16> to vector<4x16x128xbf16>
    %2 = vector.shape_cast %1 : vector<4x16x128xbf16> to vector<64x128xbf16>
    %c0_3 = arith.constant 0 : index
    %c0_4 = arith.constant 0 : index
    %c0_5 = arith.constant 0 : index
    %3 = vector.load %arg2[%c0_3, %c0_4, %c0_5] : memref<1x128x256xbf16, #tpu.memory_space<vmem>>, vector<1x128x256xbf16>
    %4 = vector.shape_cast %3 : vector<1x128x256xbf16> to vector<128x256xbf16>
    %cst = arith.constant dense<0.000000e+00> : vector<64x256xf32>
    %5 = tpu.matmul %2, %4, %cst {dimension_numbers = #tpu.dot_dimension_numbers<[1], [0], [0], [1], [0, 0, 1, 1], [], []>} : vector<64x128xbf16>, vector<128x256xbf16>, vector<64x256xf32> -> vector<64x256xf32>
    %c0_6 = arith.constant 0 : index
    %c0_7 = arith.constant 0 : index
    %c0_8 = arith.constant 0 : index
    %6 = vector.load %arg3[%c0_6, %c0_7, %c0_8] : memref<1x1x256xf32, #tpu.memory_space<vmem>>, vector<1x1x256xf32>
    %7 = vector.shape_cast %6 : vector<1x1x256xf32> to vector<1x256xf32>
    %8 = vector.broadcast %7 : vector<1x256xf32> to vector<64x256xf32>
    %9 = arith.addf %5, %8 : vector<64x256xf32>
    %10 = vector.shape_cast %9 : vector<64x256xf32> to vector<4x16x256xf32>
    %c0_9 = arith.constant 0 : index
    %c0_10 = arith.constant 0 : index
    %c0_11 = arith.constant 0 : index
    %11 = vector.load %arg4[%c0_9, %c0_10, %c0_11] : memref<1x16x16xf32, #tpu.memory_space<vmem>>, vector<1x16x16xf32>
    %12 = vector.shape_cast %11 : vector<1x16x16xf32> to vector<16x16xf32>
    %13 = vector.shape_cast %12 : vector<16x16xf32> to vector<1x16x16xf32>
    %14 = vector.broadcast %13 : vector<1x16x16xf32> to vector<4x16x16xf32>
    "tpu.trace_start"() <{level = 10 : i32, message = "twv,tvc->twc"}> : () -> ()
    %cst_12 = arith.constant dense<0.000000e+00> : vector<4x16x256xf32>
    %15 = tpu.matmul %14, %10, %cst_12 {dimension_numbers = #tpu.dot_dimension_numbers<[2], [1], [1], [2], [0, 0, 0, 1, 1, 2], [0], [0]>} : vector<4x16x16xf32>, vector<4x16x256xf32>, vector<4x16x256xf32> -> vector<4x16x256xf32>
    %cst_13 = arith.constant 0.000000e+00 : bf16
    "tpu.trace_stop"() : () -> ()
    %16 = vector.broadcast %cst_13 : bf16 to vector<1x16x256xbf16>
    %c0_14 = arith.constant 0 : index
    %c0_15 = arith.constant 0 : index
    %c0_16 = arith.constant 0 : index
    %17 = vector.load %arg8[%c0_14, %c0_15, %c0_16] : memref<6x16x256xbf16, #tpu.memory_space<vmem>>, vector<1x16x256xbf16>
    tpu.vector_store %arg8[%c0_14, %c0_15, %c0_16], %16 {strides = array<i32>} : memref<6x16x256xbf16, #tpu.memory_space<vmem>>, vector<1x16x256xbf16>,
    %cst_17 = arith.constant 0.000000e+00 : bf16
    %18 = vector.broadcast %cst_17 : bf16 to vector<1x16x256xbf16>
    %c5 = arith.constant 5 : index
    %c0_18 = arith.constant 0 : index
    %c0_19 = arith.constant 0 : index
    %19 = vector.load %arg8[%c5, %c0_18, %c0_19] : memref<6x16x256xbf16, #tpu.memory_space<vmem>>, vector<1x16x256xbf16>
    tpu.vector_store %arg8[%c5, %c0_18, %c0_19], %18 {strides = array<i32>} : memref<6x16x256xbf16, #tpu.memory_space<vmem>>, vector<1x16x256xbf16>,
    %20 = arith.truncf %15 : vector<4x16x256xf32> to vector<4x16x256xbf16>
    %c1 = arith.constant 1 : index
    %c0_20 = arith.constant 0 : index
    %c0_21 = arith.constant 0 : index
    %21 = vector.load %arg8[%c1, %c0_20, %c0_21] : memref<6x16x256xbf16, #tpu.memory_space<vmem>>, vector<4x16x256xbf16>
    tpu.vector_store %arg8[%c1, %c0_20, %c0_21], %20 {strides = array<i32>} : memref<6x16x256xbf16, #tpu.memory_space<vmem>>, vector<4x16x256xbf16>,
    %c0_22 = arith.constant 0 : index
    %c0_23 = arith.constant 0 : index
    %c0_24 = arith.constant 0 : index
    %22 = vector.load %arg8[%c0_22, %c0_23, %c0_24] : memref<6x16x256xbf16, #tpu.memory_space<vmem>>, vector<6x16x256xbf16>
    %23 = vector.shape_cast %22 : vector<6x16x256xbf16> to vector<3x2x16x256xbf16>
    %24 = vector.extract_strided_slice %23 {offsets = [0, 0, 0, 0], sizes = [2, 1, 16, 256], strides = [1, 1, 1, 1]} : vector<3x2x16x256xbf16> to vector<2x1x16x256xbf16>
    %25 = vector.shape_cast %24 : vector<2x1x16x256xbf16> to vector<2x16x256xbf16>
    %26 = vector.shape_cast %25 : vector<2x16x256xbf16> to vector<32x256xbf16>
    %c0_25 = arith.constant 0 : index
    %c0_26 = arith.constant 0 : index
    %c0_27 = arith.constant 0 : index
    %27 = vector.load %arg5[%c0_25, %c0_26, %c0_27] : memref<3x256x256xbf16, #tpu.memory_space<vmem>>, vector<1x256x256xbf16>
    %28 = vector.shape_cast %27 : vector<1x256x256xbf16> to vector<256x256xbf16>
    %cst_28 = arith.constant dense<0.000000e+00> : vector<32x256xf32>
    %29 = tpu.matmul %26, %28, %cst_28 {dimension_numbers = #tpu.dot_dimension_numbers<[1], [0], [0], [1], [0, 0, 1, 1], [], []>} : vector<32x256xbf16>, vector<256x256xbf16>, vector<32x256xf32> -> vector<32x256xf32>
    %30 = vector.extract_strided_slice %23 {offsets = [0, 1, 0, 0], sizes = [2, 1, 16, 256], strides = [1, 1, 1, 1]} : vector<3x2x16x256xbf16> to vector<2x1x16x256xbf16>
    %31 = vector.shape_cast %30 : vector<2x1x16x256xbf16> to vector<2x16x256xbf16>
    %32 = vector.shape_cast %31 : vector<2x16x256xbf16> to vector<32x256xbf16>
    %c1_29 = arith.constant 1 : index
    %c0_30 = arith.constant 0 : index
    %c0_31 = arith.constant 0 : index
    %33 = vector.load %arg5[%c1_29, %c0_30, %c0_31] : memref<3x256x256xbf16, #tpu.memory_space<vmem>>, vector<1x256x256xbf16>
    %34 = vector.shape_cast %33 : vector<1x256x256xbf16> to vector<256x256xbf16>
    %cst_32 = arith.constant dense<0.000000e+00> : vector<32x256xf32>
    %35 = tpu.matmul %32, %34, %cst_32 {dimension_numbers = #tpu.dot_dimension_numbers<[1], [0], [0], [1], [0, 0, 1, 1], [], []>} : vector<32x256xbf16>, vector<256x256xbf16>, vector<32x256xf32> -> vector<32x256xf32>
    %36 = arith.addf %29, %35 : vector<32x256xf32>
    %37 = vector.extract_strided_slice %23 {offsets = [1, 0, 0, 0], sizes = [2, 1, 16, 256], strides = [1, 1, 1, 1]} : vector<3x2x16x256xbf16> to vector<2x1x16x256xbf16>
    %38 = vector.shape_cast %37 : vector<2x1x16x256xbf16> to vector<2x16x256xbf16>
    %39 = vector.shape_cast %38 : vector<2x16x256xbf16> to vector<32x256xbf16>
    %c2 = arith.constant 2 : index
    %c0_33 = arith.constant 0 : index
    %c0_34 = arith.constant 0 : index
    %40 = vector.load %arg5[%c2, %c0_33, %c0_34] : memref<3x256x256xbf16, #tpu.memory_space<vmem>>, vector<1x256x256xbf16>
    %41 = vector.shape_cast %40 : vector<1x256x256xbf16> to vector<256x256xbf16>
    %cst_35 = arith.constant dense<0.000000e+00> : vector<32x256xf32>
    %42 = tpu.matmul %39, %41, %cst_35 {dimension_numbers = #tpu.dot_dimension_numbers<[1], [0], [0], [1], [0, 0, 1, 1], [], []>} : vector<32x256xbf16>, vector<256x256xbf16>, vector<32x256xf32> -> vector<32x256xf32>
    %43 = arith.addf %36, %42 : vector<32x256xf32>
    %c0_36 = arith.constant 0 : index
    %c0_37 = arith.constant 0 : index
    %44 = vector.load %arg6[%c0_36, %c0_37] : memref<1x256xf32, #tpu.memory_space<vmem>>, vector<1x256xf32>
    %45 = vector.broadcast %44 : vector<1x256xf32> to vector<32x256xf32>
    %46 = arith.addf %43, %45 : vector<32x256xf32>
    %cst_38 = arith.constant 0.000000e+00 : f32
    %47 = vector.broadcast %cst_38 : f32 to vector<32x256xf32>
    %48 = arith.maximumf %46, %47 : vector<32x256xf32>
    %49 = vector.shape_cast %48 : vector<32x256xf32> to vector<2x16x256xf32>
    %50 = arith.truncf %49 : vector<2x16x256xf32> to vector<2x16x256xbf16>
    %c0_39 = arith.constant 0 : index
    %c0_40 = arith.constant 0 : index
    %c0_41 = arith.constant 0 : index
    %c0_42 = arith.constant 0 : index
    %51 = vector.load %arg7[%c0_39, %c0_40, %c0_41, %c0_42] : memref<1x2x16x256xbf16, #tpu.memory_space<vmem>>, vector<1x2x16x256xbf16>
    %52 = vector.shape_cast %51 : vector<1x2x16x256xbf16> to vector<2x16x256xbf16>
    %53 = vector.shape_cast %50 : vector<2x16x256xbf16> to vector<1x2x16x256xbf16>
    tpu.vector_store %arg7[%c0_39, %c0_40, %c0_41, %c0_42], %53 {strides = array<i32>} : memref<1x2x16x256xbf16, #tpu.memory_space<vmem>>, vector<1x2x16x256xbf16>,
    return
  }
  func.func @transform_0(%arg0: i32) -> (i32, i32, i32, i32) {
    %c0_i32 = arith.constant 0 : i32
    %c0_i32_0 = arith.constant 0 : i32
    %c0_i32_1 = arith.constant 0 : i32
    %c0_i32_2 = arith.constant 0 : i32
    return %arg0, %c0_i32, %c0_i32_0, %c0_i32_1 : i32, i32, i32, i32
  }
  func.func @transform_1(%arg0: i32) -> (i32, i32, i32) {
    %c0_i32 = arith.constant 0 : i32
    %c0_i32_0 = arith.constant 0 : i32
    %c0_i32_1 = arith.constant 0 : i32
    %c0_i32_2 = arith.constant 0 : i32
    return %c0_i32, %c0_i32_0, %c0_i32_1 : i32, i32, i32
  }
  func.func @transform_2(%arg0: i32) -> (i32, i32, i32) {
    %c0_i32 = arith.constant 0 : i32
    %c0_i32_0 = arith.constant 0 : i32
    %c0_i32_1 = arith.constant 0 : i32
    %c0_i32_2 = arith.constant 0 : i32
    return %c0_i32, %c0_i32_0, %c0_i32_1 : i32, i32, i32
  }
  func.func @transform_3(%arg0: i32) -> (i32, i32, i32) {
    %c0_i32 = arith.constant 0 : i32
    %c0_i32_0 = arith.constant 0 : i32
    %c0_i32_1 = arith.constant 0 : i32
    %c0_i32_2 = arith.constant 0 : i32
    return %c0_i32, %c0_i32_0, %c0_i32_1 : i32, i32, i32
  }
  func.func @transform_4(%arg0: i32) -> (i32, i32, i32) {
    %c0_i32 = arith.constant 0 : i32
    %c0_i32_0 = arith.constant 0 : i32
    %c0_i32_1 = arith.constant 0 : i32
    %c0_i32_2 = arith.constant 0 : i32
    return %c0_i32, %c0_i32_0, %c0_i32_1 : i32, i32, i32
  }
  func.func @transform_5(%arg0: i32) -> (i32, i32) {
    %c0_i32 = arith.constant 0 : i32
    %c0_i32_0 = arith.constant 0 : i32
    %c0_i32_1 = arith.constant 0 : i32
    return %c0_i32, %c0_i32_0 : i32, i32
  }
  func.func @transform_6(%arg0: i32) -> (i32, i32, i32, i32) {
    %c0_i32 = arith.constant 0 : i32
    %c0_i32_0 = arith.constant 0 : i32
    %c0_i32_1 = arith.constant 0 : i32
    %c0_i32_2 = arith.constant 0 : i32
    return %arg0, %c0_i32, %c0_i32_0, %c0_i32_1 : i32, i32, i32, i32
  }
}

module attributes {stable_mosaic.version = 11 : i64} {
  func.func @kernel(%arg0: i32, %arg1: memref<1x2x16x256xbf16, #tpu.memory_space<vmem>>, %arg2: memref<1x256x256xbf16, #tpu.memory_space<vmem>>, %arg3: memref<1x1x256xf32, #tpu.memory_space<vmem>>, %arg4: memref<1x16x16xf32, #tpu.memory_space<vmem>>, %arg5: memref<3x256x256xbf16, #tpu.memory_space<vmem>>, %arg6: memref<1x256xf32, #tpu.memory_space<vmem>>, %arg7: memref<1x2x16x256xbf16, #tpu.memory_space<vmem>>, %arg8: memref<4x16x256xbf16, #tpu.memory_space<vmem>>) attributes {dimension_semantics = [#tpu.dimension_semantics<parallel>], iteration_bounds = array<i64: 2>, scalar_prefetch = 0 : i64, scratch_operands = 1 : i64, tpu.core_type = #tpu.core_type<tc>, window_params = [{transform_indices = @transform_0, window_bounds = array<i64: 1, 2, 16, 256>}, {pipeline_mode = #tpu.pipeline_mode<synchronous>, transform_indices = @transform_1, window_bounds = array<i64: 1, 256, 256>}, {pipeline_mode = #tpu.pipeline_mode<synchronous>, transform_indices = @transform_2, window_bounds = array<i64: 1, 1, 256>}, {pipeline_mode = #tpu.pipeline_mode<synchronous>, transform_indices = @transform_3, window_bounds = array<i64: 1, 16, 16>}, {pipeline_mode = #tpu.pipeline_mode<synchronous>, transform_indices = @transform_4, window_bounds = array<i64: 3, 256, 256>}, {pipeline_mode = #tpu.pipeline_mode<synchronous>, transform_indices = @transform_5, window_bounds = array<i64: 1, 256>}, {transform_indices = @transform_6, window_bounds = array<i64: 1, 2, 16, 256>}]} {
    %c0 = arith.constant 0 : index
    %c0_0 = arith.constant 0 : index
    %c0_1 = arith.constant 0 : index
    %c0_2 = arith.constant 0 : index
    %0 = vector.load %arg1[%c0, %c0_0, %c0_1, %c0_2] : memref<1x2x16x256xbf16, #tpu.memory_space<vmem>>, vector<1x2x16x256xbf16>
    %1 = vector.shape_cast %0 : vector<1x2x16x256xbf16> to vector<2x16x256xbf16>
    %2 = vector.shape_cast %1 : vector<2x16x256xbf16> to vector<32x256xbf16>
    %c0_3 = arith.constant 0 : index
    %c0_4 = arith.constant 0 : index
    %c0_5 = arith.constant 0 : index
    %3 = vector.load %arg2[%c0_3, %c0_4, %c0_5] : memref<1x256x256xbf16, #tpu.memory_space<vmem>>, vector<1x256x256xbf16>
    %4 = vector.shape_cast %3 : vector<1x256x256xbf16> to vector<256x256xbf16>
    %cst = arith.constant dense<0.000000e+00> : vector<32x256xf32>
    %5 = tpu.matmul %2, %4, %cst {dimension_numbers = #tpu.dot_dimension_numbers<[1], [0], [0], [1], [0, 0, 1, 1], [], []>} : vector<32x256xbf16>, vector<256x256xbf16>, vector<32x256xf32> -> vector<32x256xf32>
    %c0_6 = arith.constant 0 : index
    %c0_7 = arith.constant 0 : index
    %c0_8 = arith.constant 0 : index
    %6 = vector.load %arg3[%c0_6, %c0_7, %c0_8] : memref<1x1x256xf32, #tpu.memory_space<vmem>>, vector<1x1x256xf32>
    %7 = vector.shape_cast %6 : vector<1x1x256xf32> to vector<1x256xf32>
    %8 = vector.broadcast %7 : vector<1x256xf32> to vector<32x256xf32>
    %9 = arith.addf %5, %8 : vector<32x256xf32>
    %10 = vector.shape_cast %9 : vector<32x256xf32> to vector<2x16x256xf32>
    %c0_9 = arith.constant 0 : index
    %c0_10 = arith.constant 0 : index
    %c0_11 = arith.constant 0 : index
    %11 = vector.load %arg4[%c0_9, %c0_10, %c0_11] : memref<1x16x16xf32, #tpu.memory_space<vmem>>, vector<1x16x16xf32>
    %12 = vector.shape_cast %11 : vector<1x16x16xf32> to vector<16x16xf32>
    %13 = vector.shape_cast %12 : vector<16x16xf32> to vector<1x16x16xf32>
    %14 = vector.broadcast %13 : vector<1x16x16xf32> to vector<2x16x16xf32>
    "tpu.trace_start"() <{level = 10 : i32, message = "twv,tvc->twc"}> : () -> ()
    %cst_12 = arith.constant dense<0.000000e+00> : vector<2x16x256xf32>
    %15 = tpu.matmul %14, %10, %cst_12 {dimension_numbers = #tpu.dot_dimension_numbers<[2], [1], [1], [2], [0, 0, 0, 1, 1, 2], [0], [0]>} : vector<2x16x16xf32>, vector<2x16x256xf32>, vector<2x16x256xf32> -> vector<2x16x256xf32>
    %cst_13 = arith.constant 0.000000e+00 : bf16
    "tpu.trace_stop"() : () -> ()
    %16 = vector.broadcast %cst_13 : bf16 to vector<1x16x256xbf16>
    %c0_14 = arith.constant 0 : index
    %c0_15 = arith.constant 0 : index
    %c0_16 = arith.constant 0 : index
    %17 = vector.load %arg8[%c0_14, %c0_15, %c0_16] : memref<4x16x256xbf16, #tpu.memory_space<vmem>>, vector<1x16x256xbf16>
    tpu.vector_store %arg8[%c0_14, %c0_15, %c0_16], %16 {strides = array<i32>} : memref<4x16x256xbf16, #tpu.memory_space<vmem>>, vector<1x16x256xbf16>,
    %cst_17 = arith.constant 0.000000e+00 : bf16
    %18 = vector.broadcast %cst_17 : bf16 to vector<1x16x256xbf16>
    %c3 = arith.constant 3 : index
    %c0_18 = arith.constant 0 : index
    %c0_19 = arith.constant 0 : index
    %19 = vector.load %arg8[%c3, %c0_18, %c0_19] : memref<4x16x256xbf16, #tpu.memory_space<vmem>>, vector<1x16x256xbf16>
    tpu.vector_store %arg8[%c3, %c0_18, %c0_19], %18 {strides = array<i32>} : memref<4x16x256xbf16, #tpu.memory_space<vmem>>, vector<1x16x256xbf16>,
    %20 = arith.truncf %15 : vector<2x16x256xf32> to vector<2x16x256xbf16>
    %c1 = arith.constant 1 : index
    %c0_20 = arith.constant 0 : index
    %c0_21 = arith.constant 0 : index
    %21 = vector.load %arg8[%c1, %c0_20, %c0_21] : memref<4x16x256xbf16, #tpu.memory_space<vmem>>, vector<2x16x256xbf16>
    tpu.vector_store %arg8[%c1, %c0_20, %c0_21], %20 {strides = array<i32>} : memref<4x16x256xbf16, #tpu.memory_space<vmem>>, vector<2x16x256xbf16>,
    %c0_22 = arith.constant 0 : index
    %c0_23 = arith.constant 0 : index
    %c0_24 = arith.constant 0 : index
    %22 = vector.load %arg8[%c0_22, %c0_23, %c0_24] : memref<4x16x256xbf16, #tpu.memory_space<vmem>>, vector<2x16x256xbf16>
    %23 = vector.shape_cast %22 : vector<2x16x256xbf16> to vector<32x256xbf16>
    %c0_25 = arith.constant 0 : index
    %c0_26 = arith.constant 0 : index
    %c0_27 = arith.constant 0 : index
    %24 = vector.load %arg5[%c0_25, %c0_26, %c0_27] : memref<3x256x256xbf16, #tpu.memory_space<vmem>>, vector<1x256x256xbf16>
    %25 = vector.shape_cast %24 : vector<1x256x256xbf16> to vector<256x256xbf16>
    %cst_28 = arith.constant dense<0.000000e+00> : vector<32x256xf32>
    %26 = tpu.matmul %23, %25, %cst_28 {dimension_numbers = #tpu.dot_dimension_numbers<[1], [0], [0], [1], [0, 0, 1, 1], [], []>} : vector<32x256xbf16>, vector<256x256xbf16>, vector<32x256xf32> -> vector<32x256xf32>
    %c1_29 = arith.constant 1 : index
    %c0_30 = arith.constant 0 : index
    %c0_31 = arith.constant 0 : index
    %27 = vector.load %arg8[%c1_29, %c0_30, %c0_31] : memref<4x16x256xbf16, #tpu.memory_space<vmem>>, vector<2x16x256xbf16>
    %28 = vector.shape_cast %27 : vector<2x16x256xbf16> to vector<32x256xbf16>
    %c1_32 = arith.constant 1 : index
    %c0_33 = arith.constant 0 : index
    %c0_34 = arith.constant 0 : index
    %29 = vector.load %arg5[%c1_32, %c0_33, %c0_34] : memref<3x256x256xbf16, #tpu.memory_space<vmem>>, vector<1x256x256xbf16>
    %30 = vector.shape_cast %29 : vector<1x256x256xbf16> to vector<256x256xbf16>
    %cst_35 = arith.constant dense<0.000000e+00> : vector<32x256xf32>
    %31 = tpu.matmul %28, %30, %cst_35 {dimension_numbers = #tpu.dot_dimension_numbers<[1], [0], [0], [1], [0, 0, 1, 1], [], []>} : vector<32x256xbf16>, vector<256x256xbf16>, vector<32x256xf32> -> vector<32x256xf32>
    %32 = arith.addf %26, %31 : vector<32x256xf32>
    %c2 = arith.constant 2 : index
    %c0_36 = arith.constant 0 : index
    %c0_37 = arith.constant 0 : index
    %33 = vector.load %arg8[%c2, %c0_36, %c0_37] : memref<4x16x256xbf16, #tpu.memory_space<vmem>>, vector<2x16x256xbf16>
    %34 = vector.shape_cast %33 : vector<2x16x256xbf16> to vector<32x256xbf16>
    %c2_38 = arith.constant 2 : index
    %c0_39 = arith.constant 0 : index
    %c0_40 = arith.constant 0 : index
    %35 = vector.load %arg5[%c2_38, %c0_39, %c0_40] : memref<3x256x256xbf16, #tpu.memory_space<vmem>>, vector<1x256x256xbf16>
    %36 = vector.shape_cast %35 : vector<1x256x256xbf16> to vector<256x256xbf16>
    %cst_41 = arith.constant dense<0.000000e+00> : vector<32x256xf32>
    %37 = tpu.matmul %34, %36, %cst_41 {dimension_numbers = #tpu.dot_dimension_numbers<[1], [0], [0], [1], [0, 0, 1, 1], [], []>} : vector<32x256xbf16>, vector<256x256xbf16>, vector<32x256xf32> -> vector<32x256xf32>
    %38 = arith.addf %32, %37 : vector<32x256xf32>
    %c0_42 = arith.constant 0 : index
    %c0_43 = arith.constant 0 : index
    %39 = vector.load %arg6[%c0_42, %c0_43] : memref<1x256xf32, #tpu.memory_space<vmem>>, vector<1x256xf32>
    %40 = vector.broadcast %39 : vector<1x256xf32> to vector<32x256xf32>
    %41 = arith.addf %38, %40 : vector<32x256xf32>
    %cst_44 = arith.constant 0.000000e+00 : f32
    %42 = vector.broadcast %cst_44 : f32 to vector<32x256xf32>
    %43 = arith.maximumf %41, %42 : vector<32x256xf32>
    %44 = vector.shape_cast %43 : vector<32x256xf32> to vector<2x16x256xf32>
    %45 = arith.truncf %44 : vector<2x16x256xf32> to vector<2x16x256xbf16>
    %c0_45 = arith.constant 0 : index
    %c0_46 = arith.constant 0 : index
    %c0_47 = arith.constant 0 : index
    %c0_48 = arith.constant 0 : index
    %46 = vector.load %arg7[%c0_45, %c0_46, %c0_47, %c0_48] : memref<1x2x16x256xbf16, #tpu.memory_space<vmem>>, vector<1x2x16x256xbf16>
    %47 = vector.shape_cast %46 : vector<1x2x16x256xbf16> to vector<2x16x256xbf16>
    %48 = vector.shape_cast %45 : vector<2x16x256xbf16> to vector<1x2x16x256xbf16>
    tpu.vector_store %arg7[%c0_45, %c0_46, %c0_47, %c0_48], %48 {strides = array<i32>} : memref<1x2x16x256xbf16, #tpu.memory_space<vmem>>, vector<1x2x16x256xbf16>,
    return
  }
  func.func @transform_0(%arg0: i32) -> (i32, i32, i32, i32) {
    %c0_i32 = arith.constant 0 : i32
    %c0_i32_0 = arith.constant 0 : i32
    %c0_i32_1 = arith.constant 0 : i32
    %c0_i32_2 = arith.constant 0 : i32
    return %arg0, %c0_i32, %c0_i32_0, %c0_i32_1 : i32, i32, i32, i32
  }
  func.func @transform_1(%arg0: i32) -> (i32, i32, i32) {
    %c0_i32 = arith.constant 0 : i32
    %c0_i32_0 = arith.constant 0 : i32
    %c0_i32_1 = arith.constant 0 : i32
    %c0_i32_2 = arith.constant 0 : i32
    return %c0_i32, %c0_i32_0, %c0_i32_1 : i32, i32, i32
  }
  func.func @transform_2(%arg0: i32) -> (i32, i32, i32) {
    %c0_i32 = arith.constant 0 : i32
    %c0_i32_0 = arith.constant 0 : i32
    %c0_i32_1 = arith.constant 0 : i32
    %c0_i32_2 = arith.constant 0 : i32
    return %c0_i32, %c0_i32_0, %c0_i32_1 : i32, i32, i32
  }
  func.func @transform_3(%arg0: i32) -> (i32, i32, i32) {
    %c0_i32 = arith.constant 0 : i32
    %c0_i32_0 = arith.constant 0 : i32
    %c0_i32_1 = arith.constant 0 : i32
    %c0_i32_2 = arith.constant 0 : i32
    return %c0_i32, %c0_i32_0, %c0_i32_1 : i32, i32, i32
  }
  func.func @transform_4(%arg0: i32) -> (i32, i32, i32) {
    %c0_i32 = arith.constant 0 : i32
    %c0_i32_0 = arith.constant 0 : i32
    %c0_i32_1 = arith.constant 0 : i32
    %c0_i32_2 = arith.constant 0 : i32
    return %c0_i32, %c0_i32_0, %c0_i32_1 : i32, i32, i32
  }
  func.func @transform_5(%arg0: i32) -> (i32, i32) {
    %c0_i32 = arith.constant 0 : i32
    %c0_i32_0 = arith.constant 0 : i32
    %c0_i32_1 = arith.constant 0 : i32
    return %c0_i32, %c0_i32_0 : i32, i32
  }
  func.func @transform_6(%arg0: i32) -> (i32, i32, i32, i32) {
    %c0_i32 = arith.constant 0 : i32
    %c0_i32_0 = arith.constant 0 : i32
    %c0_i32_1 = arith.constant 0 : i32
    %c0_i32_2 = arith.constant 0 : i32
    return %arg0, %c0_i32, %c0_i32_0, %c0_i32_1 : i32, i32, i32, i32
  }
}

module attributes {stable_mosaic.version = 11 : i64} {
  func.func @kernel(%arg0: i32, %arg1: memref<1x2x16x256xbf16, #tpu.memory_space<vmem>>, %arg2: memref<256x8xf32, #tpu.memory_space<vmem>>, %arg3: memref<1x8xf32, #tpu.memory_space<vmem>>, %arg4: memref<1x1x8xf32, #tpu.memory_space<vmem>>) attributes {dimension_semantics = [#tpu.dimension_semantics<parallel>], iteration_bounds = array<i64: 2>, scalar_prefetch = 0 : i64, scratch_operands = 0 : i64, tpu.core_type = #tpu.core_type<tc>, window_params = [{transform_indices = @transform_0, window_bounds = array<i64: 1, 2, 16, 256>}, {pipeline_mode = #tpu.pipeline_mode<synchronous>, transform_indices = @transform_1, window_bounds = array<i64: 256, 8>}, {pipeline_mode = #tpu.pipeline_mode<synchronous>, transform_indices = @transform_2, window_bounds = array<i64: 1, 8>}, {transform_indices = @transform_3, window_bounds = array<i64: 1, 1, 8>}]} {
    %c0 = arith.constant 0 : index
    %c0_0 = arith.constant 0 : index
    %c0_1 = arith.constant 0 : index
    %c0_2 = arith.constant 0 : index
    %0 = vector.load %arg1[%c0, %c0_0, %c0_1, %c0_2] : memref<1x2x16x256xbf16, #tpu.memory_space<vmem>>, vector<1x2x16x256xbf16>
    %1 = vector.shape_cast %0 : vector<1x2x16x256xbf16> to vector<2x16x256xbf16>
    %2 = arith.extf %1 : vector<2x16x256xbf16> to vector<2x16x256xf32>
    %cst = arith.constant dense<0.000000e+00> : vector<16x256xf32>
    %3 = vector.multi_reduction <add>, %2, %cst [0] : vector<2x16x256xf32> to vector<16x256xf32>
    %cst_3 = arith.constant dense<0.000000e+00> : vector<256xf32>
    %4 = vector.multi_reduction <add>, %3, %cst_3 [0] : vector<16x256xf32> to vector<256xf32>
    %5 = vector.shape_cast %4 : vector<256xf32> to vector<1x256xf32>
    %cst_4 = arith.constant 3.125000e-02 : f32
    %6 = vector.broadcast %cst_4 : f32 to vector<1x256xf32>
    %7 = arith.mulf %5, %6 : vector<1x256xf32>
    %c0_5 = arith.constant 0 : index
    %c0_6 = arith.constant 0 : index
    %8 = vector.load %arg2[%c0_5, %c0_6] : memref<256x8xf32, #tpu.memory_space<vmem>>, vector<256x8xf32>
    %cst_7 = arith.constant dense<0.000000e+00> : vector<1x8xf32>
    %9 = tpu.matmul %7, %8, %cst_7 {dimension_numbers = #tpu.dot_dimension_numbers<[1], [0], [0], [1], [0, 0, 1, 1], [], []>} : vector<1x256xf32>, vector<256x8xf32>, vector<1x8xf32> -> vector<1x8xf32>
    %c0_8 = arith.constant 0 : index
    %c0_9 = arith.constant 0 : index
    %10 = vector.load %arg3[%c0_8, %c0_9] : memref<1x8xf32, #tpu.memory_space<vmem>>, vector<1x8xf32>
    %11 = arith.addf %9, %10 : vector<1x8xf32>
    %cst_10 = arith.constant dense<0xFF800000> : vector<1xf32>
    %12 = vector.multi_reduction <maximumf>, %11, %cst_10 [1] : vector<1x8xf32> to vector<1xf32>
    %13 = vector.shape_cast %12 : vector<1xf32> to vector<1x1xf32>
    %14 = vector.broadcast %13 : vector<1x1xf32> to vector<1x8xf32>
    %15 = arith.subf %11, %14 : vector<1x8xf32>
    %16 = math.exp %15 : vector<1x8xf32>
    %cst_11 = arith.constant dense<0.000000e+00> : vector<1xf32>
    %17 = vector.multi_reduction <add>, %16, %cst_11 [1] : vector<1x8xf32> to vector<1xf32>
    %18 = vector.shape_cast %17 : vector<1xf32> to vector<1x1xf32>
    %19 = vector.broadcast %18 : vector<1x1xf32> to vector<1x8xf32>
    %20 = arith.divf %16, %19 : vector<1x8xf32>
    %c0_12 = arith.constant 0 : index
    %c0_13 = arith.constant 0 : index
    %c0_14 = arith.constant 0 : index
    %21 = vector.load %arg4[%c0_12, %c0_13, %c0_14] : memref<1x1x8xf32, #tpu.memory_space<vmem>>, vector<1x1x8xf32>
    %22 = vector.shape_cast %21 : vector<1x1x8xf32> to vector<1x8xf32>
    %23 = vector.shape_cast %20 : vector<1x8xf32> to vector<1x1x8xf32>
    tpu.vector_store %arg4[%c0_12, %c0_13, %c0_14], %23 {strides = array<i32>} : memref<1x1x8xf32, #tpu.memory_space<vmem>>, vector<1x1x8xf32>,
    return
  }
  func.func @transform_0(%arg0: i32) -> (i32, i32, i32, i32) {
    %c0_i32 = arith.constant 0 : i32
    %c0_i32_0 = arith.constant 0 : i32
    %c0_i32_1 = arith.constant 0 : i32
    %c0_i32_2 = arith.constant 0 : i32
    return %arg0, %c0_i32, %c0_i32_0, %c0_i32_1 : i32, i32, i32, i32
  }
  func.func @transform_1(%arg0: i32) -> (i32, i32) {
    %c0_i32 = arith.constant 0 : i32
    %c0_i32_0 = arith.constant 0 : i32
    %c0_i32_1 = arith.constant 0 : i32
    return %c0_i32, %c0_i32_0 : i32, i32
  }
  func.func @transform_2(%arg0: i32) -> (i32, i32) {
    %c0_i32 = arith.constant 0 : i32
    %c0_i32_0 = arith.constant 0 : i32
    %c0_i32_1 = arith.constant 0 : i32
    return %c0_i32, %c0_i32_0 : i32, i32
  }
  func.func @transform_3(%arg0: i32) -> (i32, i32, i32) {
    %c0_i32 = arith.constant 0 : i32
    %c0_i32_0 = arith.constant 0 : i32
    %c0_i32_1 = arith.constant 0 : i32
    return %arg0, %c0_i32, %c0_i32_0 : i32, i32, i32
  }
}

</mosaic_0001>

<llo_original>
// kernel: _lambda_.11
$region0: #{_lambda_.11}
  #allocation0 [shape = 'u32[]', space=smem, size = 0x4, offset = 0x4, fixed_abs, tag = 'smem constant byte address 0x4 - core index']
  #allocation1 [shape = 'u32[144,128]{1,0:T(1,128)}', space=vmem, size = 0x12000, scoped, tag = 'internal scratch']
  #allocation2 [shape = 'bf16[10,16,64]{2,1,0:T(16,128)(2,1)}', space=vmem, size = 0xa000, scoped, tag = 'scratch operand']
  %s0 = inlined_call_operand.vmem [shape: bf16[2,8,16,4], index: 0, kind: input, shape index: {}]
  %s1 = inlined_call_operand.vmem [shape: bf16[1,4,64], index: 1, kind: input, shape index: {}]
  %s2 = inlined_call_operand.vmem [shape: f32[1,1,64], index: 2, kind: input, shape index: {}]
  %s3 = inlined_call_operand.vmem [shape: f32[1,16,16], index: 3, kind: input, shape index: {}]
  %s4 = inlined_call_operand.vmem [shape: bf16[3,64,64], index: 4, kind: input, shape index: {}]
  %s5 = inlined_call_operand.vmem [shape: f32[1,64], index: 5, kind: input, shape index: {}]
  %s6 = inlined_call_operand.vmem [shape: bf16[2,8,16,64], index: 6, kind: output, shape index: {}]
  %s7 = sld [smem:[#allocation0]]
  $region57: #{_lambda_.11} parent=0
    _
  %s9 = ssub.s32 1, %s7
  %s10 = scalar_select 0, %s9, %s7
  loop: start=0, step=1, limit=4
  $region2: #{_lambda_.11} parent=0 // loop_pre_header
    _
  $region3: #{_lambda_.11} parent=0 // loop_header
    %s12 = sphi 0, %s16
    %p13 = scmp.ge.s32.totalorder %s12, 4
    %s22 = sphi 0, %s24
    %s25 = sphi 0, %s22
    %s26 = sphi 0, %s25
    %s42 = sphi 0, %s26
    %s46 = sphi 0, %s46
    %s48 = sphi 0, %s46
    %s49 = sphi 0, %s48
    %s63 = sphi 0, %s49
    %s67 = sphi 0, %s67
    %s69 = sphi 0, %s67
    %s70 = sphi 0, %s69
    %s84 = sphi 0, %s70
    %s88 = sphi 0, %s88
    %s90 = sphi 0, %s88
    %s91 = sphi 0, %s90
    %s105 = sphi 0, %s91
    %s109 = sphi 0, %s109
    %s111 = sphi 0, %s109
    %s112 = sphi 0, %s111
    %s126 = sphi 0, %s112
    %s130 = sphi 0, %s130
    %s132 = sphi 0, %s130
    %s133 = sphi 0, %s132
    %s147 = sphi 0, %s133
    %s153 = sphi 0, %s155
    %s156 = sphi 0, %s153
    %s157 = sphi 0, %s156
    %s173 = sphi 0, %s157
  $region4: #{_lambda_.11} parent=0 // loop_header_branch
    %15 = sbr.rel (%p13) target = $region8
  $region5: #{_lambda_.11} parent=0 // loop_body
    %s17 = ssub.s32 %s12, 1
    %s18 = ssub.s32 %s12, 2
    %s19 = sadd.s32 %s12, 1
    %s20 = ssub.s32 %s12, %s19
    %p21 = scmp.eq.s32.totalorder %s20, 0
    %s23 = sadd.s32 %s22, 1
    %s24 = scalar_select %p21, %s22, %s23
    %p27 = pneg %p21
    %p28 = scmp.eq.s32.totalorder %s12, 1
    %p29 = por %p27, %p28
    %p30 = scmp.ne.s32.totalorder %s22, %s25
    %p31 = scmp.eq.s32.totalorder %s12, 0
    %p32 = por %p30, %p31
    %p33 = scmp.ne.s32.totalorder %s22, %s25
    %p34 = scmp.eq.s32.totalorder %s17, 1
    %p35 = por %p33, %p34
    %p36 = scmp.ne.s32.totalorder %s25, %s26
    %p37 = scmp.eq.s32.totalorder %s17, 0
    %p38 = por %p36, %p37
    %p39 = scmp.ne.s32.totalorder %s25, %s26
    %p40 = scmp.eq.s32.totalorder %s18, 1
    %p41 = por %p39, %p40
    %p43 = scmp.ne.s32.totalorder %s26, %s42
    %p44 = scmp.eq.s32.totalorder %s18, 0
    %p45 = por %p43, %p44
    %s47 = sadd.s32 %s46, 1
    %p50 = scmp.eq.s32.totalorder %s12, 1
    %p51 = scmp.ne.s32.totalorder %s46, %s48
    %p52 = scmp.eq.s32.totalorder %s12, 0
    %p53 = por %p51, %p52
    %p54 = scmp.ne.s32.totalorder %s46, %s48
    %p55 = scmp.eq.s32.totalorder %s17, 1
    %p56 = por %p54, %p55
    %p57 = scmp.ne.s32.totalorder %s48, %s49
    %p58 = scmp.eq.s32.totalorder %s17, 0
    %p59 = por %p57, %p58
    %p60 = scmp.ne.s32.totalorder %s48, %s49
    %p61 = scmp.eq.s32.totalorder %s18, 1
    %p62 = por %p60, %p61
    %p64 = scmp.ne.s32.totalorder %s49, %s63
    %p65 = scmp.eq.s32.totalorder %s18, 0
    %p66 = por %p64, %p65
    %s68 = sadd.s32 %s67, 1
    %p71 = scmp.eq.s32.totalorder %s12, 1
    %p72 = scmp.ne.s32.totalorder %s67, %s69
    %p73 = scmp.eq.s32.totalorder %s12, 0
    %p74 = por %p72, %p73
    %p75 = scmp.ne.s32.totalorder %s67, %s69
    %p76 = scmp.eq.s32.totalorder %s17, 1
    %p77 = por %p75, %p76
    %p78 = scmp.ne.s32.totalorder %s69, %s70
    %p79 = scmp.eq.s32.totalorder %s17, 0
    %p80 = por %p78, %p79
    %p81 = scmp.ne.s32.totalorder %s69, %s70
    %p82 = scmp.eq.s32.totalorder %s18, 1
    %p83 = por %p81, %p82
    %p85 = scmp.ne.s32.totalorder %s70, %s84
    %p86 = scmp.eq.s32.totalorder %s18, 0
    %p87 = por %p85, %p86
    %s89 = sadd.s32 %s88, 1
    %p92 = scmp.eq.s32.totalorder %s12, 1
    %p93 = scmp.ne.s32.totalorder %s88, %s90
    %p94 = scmp.eq.s32.totalorder %s12, 0
    %p95 = por %p93, %p94
    %p96 = scmp.ne.s32.totalorder %s88, %s90
    %p97 = scmp.eq.s32.totalorder %s17, 1
    %p98 = por %p96, %p97
    %p99 = scmp.ne.s32.totalorder %s90, %s91
    %p100 = scmp.eq.s32.totalorder %s17, 0
    %p101 = por %p99, %p100
    %p102 = scmp.ne.s32.totalorder %s90, %s91
    %p103 = scmp.eq.s32.totalorder %s18, 1
    %p104 = por %p102, %p103
    %p106 = scmp.ne.s32.totalorder %s91, %s105
    %p107 = scmp.eq.s32.totalorder %s18, 0
    %p108 = por %p106, %p107
    %s110 = sadd.s32 %s109, 1
    %p113 = scmp.eq.s32.totalorder %s12, 1
    %p114 = scmp.ne.s32.totalorder %s109, %s111
    %p115 = scmp.eq.s32.totalorder %s12, 0
    %p116 = por %p114, %p115
    %p117 = scmp.ne.s32.totalorder %s109, %s111
    %p118 = scmp.eq.s32.totalorder %s17, 1
    %p119 = por %p117, %p118
    %p120 = scmp.ne.s32.totalorder %s111, %s112
    %p121 = scmp.eq.s32.totalorder %s17, 0
    %p122 = por %p120, %p121
    %p123 = scmp.ne.s32.totalorder %s111, %s112
    %p124 = scmp.eq.s32.totalorder %s18, 1
    %p125 = por %p123, %p124
    %p127 = scmp.ne.s32.totalorder %s112, %s126
    %p128 = scmp.eq.s32.totalorder %s18, 0
    %p129 = por %p127, %p128
    %s131 = sadd.s32 %s130, 1
    %p134 = scmp.eq.s32.totalorder %s12, 1
    %p135 = scmp.ne.s32.totalorder %s130, %s132
    %p136 = scmp.eq.s32.totalorder %s12, 0
    %p137 = por %p135, %p136
    %p138 = scmp.ne.s32.totalorder %s130, %s132
    %p139 = scmp.eq.s32.totalorder %s17, 1
    %p140 = por %p138, %p139
    %p141 = scmp.ne.s32.totalorder %s132, %s133
    %p142 = scmp.eq.s32.totalorder %s17, 0
    %p143 = por %p141, %p142
    %p144 = scmp.ne.s32.totalorder %s132, %s133
    %p145 = scmp.eq.s32.totalorder %s18, 1
    %p146 = por %p144, %p145
    %p148 = scmp.ne.s32.totalorder %s133, %s147
    %p149 = scmp.eq.s32.totalorder %s18, 0
    %p150 = por %p148, %p149
    %s151 = ssub.s32 %s12, %s19
    %p152 = scmp.eq.s32.totalorder %s151, 0
    %s154 = sadd.s32 %s153, 1
    %s155 = scalar_select %p152, %s153, %s154
    %p158 = pneg %p152
    %p159 = scmp.eq.s32.totalorder %s12, 1
    %p160 = por %p158, %p159
    %p161 = scmp.ne.s32.totalorder %s153, %s156
    %p162 = scmp.eq.s32.totalorder %s12, 0
    %p163 = por %p161, %p162
    %p164 = scmp.ne.s32.totalorder %s153, %s156
    %p165 = scmp.eq.s32.totalorder %s17, 1
    %p166 = por %p164, %p165
    %p167 = scmp.ne.s32.totalorder %s156, %s157
    %p168 = scmp.eq.s32.totalorder %s17, 0
    %p169 = por %p167, %p168
    %p170 = scmp.ne.s32.totalorder %s156, %s157
    %p171 = scmp.eq.s32.totalorder %s18, 1
    %p172 = por %p170, %p171
    %p174 = scmp.ne.s32.totalorder %s157, %s173
    %p175 = scmp.eq.s32.totalorder %s18, 0
    %p176 = por %p174, %p175
    %p177 = scmp.le.s32.totalorder 1, %s12
    %p178 = scmp.lt.s32.totalorder %s12, 3
    %p179 = pnand %p177, %p178
    %p180 = pneg %p179
    // Predicated region
    $region9: #{_lambda_.11} parent=5 // pred_check
      _
    $region10: #{_lambda_.11} parent=5 // pred_check_branch
      %182 = sbr.rel (%p179) target = $region12
    $region11: #{_lambda_.11} parent=5 // pred_region
      %s183 = ssub.s32 %s12, 1
      // Predicated region
      $region13: #{_lambda_.11} parent=11 // pred_check
        %p184 = pneg %p59
      $region14: #{_lambda_.11} parent=11 // pred_check_branch
        %186 = sbr.rel (%p184) target = $region16
      $region15: #{_lambda_.11} parent=11 // pred_region
        _
      $region16: #{_lambda_.11} parent=11 // pred_fallthru
        _
      // Predicated region
      $region17: #{_lambda_.11} parent=11 // pred_check
        %p187 = pneg %p80
      $region18: #{_lambda_.11} parent=11 // pred_check_branch
        %189 = sbr.rel (%p187) target = $region20
      $region19: #{_lambda_.11} parent=11 // pred_region
        _
      $region20: #{_lambda_.11} parent=11 // pred_fallthru
        _
      // Predicated region
      $region21: #{_lambda_.11} parent=11 // pred_check
        %p190 = pneg %p101
      $region22: #{_lambda_.11} parent=11 // pred_check_branch
        %192 = sbr.rel (%p190) target = $region24
      $region23: #{_lambda_.11} parent=11 // pred_region
        _
      $region24: #{_lambda_.11} parent=11 // pred_fallthru
        _
      // Predicated region
      $region25: #{_lambda_.11} parent=11 // pred_check
        %p193 = pneg %p122
      $region26: #{_lambda_.11} parent=11 // pred_check_branch
        %195 = sbr.rel (%p193) target = $region28
      $region27: #{_lambda_.11} parent=11 // pred_region
        _
      $region28: #{_lambda_.11} parent=11 // pred_fallthru
        _
      // Predicated region
      $region29: #{_lambda_.11} parent=11 // pred_check
        %p196 = pneg %p143
      $region30: #{_lambda_.11} parent=11 // pred_check_branch
        %198 = sbr.rel (%p196) target = $region32
      $region31: #{_lambda_.11} parent=11 // pred_region
        _
      $region32: #{_lambda_.11} parent=11 // pred_fallthru
        _
    $region12: #{_lambda_.11} parent=5 // pred_fallthru
      _
    %p199 = scmp.lt.s32.totalorder %s12, 2
    // Predicated region
    $region33: #{_lambda_.11} parent=5 // pred_check
      %p200 = pneg %p199
    $region34: #{_lambda_.11} parent=5 // pred_check_branch
      %202 = sbr.rel (%p200) target = $region36
    $region35: #{_lambda_.11} parent=5 // pred_region
      // Predicated region
      $region37: #{_lambda_.11} parent=35 // pred_check
        %p203 = pneg %p32
      $region38: #{_lambda_.11} parent=35 // pred_check_branch
        %205 = sbr.rel (%p203) target = $region40
      $region39: #{_lambda_.11} parent=35 // pred_region
        %p206 = scmp.lt.s32.totalorder %s12, 1
        %s207 = scalar_select %p206, %s12, 1
        %s208 = smul.addr %s207, 16
        %s209 = smul.addr %s208, 4
        %s210 = scalar_lea.vmem %s0, %s209
      $region40: #{_lambda_.11} parent=35 // pred_fallthru
        _
    $region36: #{_lambda_.11} parent=5 // pred_fallthru
      _
    %p211 = scmp.le.s32.totalorder 1, %s12
    %p212 = scmp.lt.s32.totalorder %s12, 3
    %p213 = pnand %p211, %p212
    %p214 = pneg %p213
    // Predicated region
    $region41: #{_lambda_.11} parent=5 // pred_check
      _
    $region42: #{_lambda_.11} parent=5 // pred_check_branch
      %216 = sbr.rel (%p213) target = $region44
    $region43: #{_lambda_.11} parent=5 // pred_region
      %s217 = ssub.s32 %s12, 1
      %p218 = scmp.lt.s32.totalorder %s17, 1
      %s219 = scalar_select %p218, %s17, 1
      %s220 = smul.addr %s219, 16
      %s221 = smul.addr %s220, 4
      %s222 = scalar_lea.vmem %s0, %s221
      %p223 = pneg %p38
      %p224 = pneg %p35
      %p225 = pneg %p59
      %p226 = pneg %p56
      %p227 = pneg %p80
      %p228 = pneg %p77
      %p229 = pneg %p101
      %p230 = pneg %p98
      %p231 = pneg %p122
      %p232 = pneg %p119
      %p233 = pneg %p143
      %p234 = pneg %p140
      %p235 = pneg %p169
      %p236 = pneg %p166
      %p237 = scmp.lt.s32.totalorder %s17, 1
      %s238 = scalar_select %p237, %s17, 1
      %s239 = smul.addr %s238, 16
      %s240 = smul.addr %s239, 4
      %s241 = scalar_lea.vmem %s6, %s240
      %p242 = scmp.lt.s32.totalorder %s17, 1
      %s243 = scalar_select %p242, %s17, 1
      %s244 = smul.addr %s243, 16
      %s245 = smul.addr %s244, 4
      %s246 = scalar_lea.vmem %s0, %s245
      %p247 = scmp.lt.s32.totalorder %s17, 1
      %s248 = scalar_select %p247, %s17, 1
      %s249 = smul.addr %s248, 16
      %s250 = smul.addr %s249, 4
      %s251 = scalar_lea.vmem %s6, %s250
      %v253 = vld [vmem:[%s246] sm:$0xf]
      %v254 = vld [vmem:[%s246 + $0x4] sm:$0xf]
      %v255 = vld [vmem:[%s246 + $0x8] sm:$0xf]
      %v256 = vld [vmem:[%s246 + $0xc] sm:$0xf]
      %v257 = vld [vmem:[%s246 + $0x10] sm:$0xf]
      %v258 = vld [vmem:[%s246 + $0x14] sm:$0xf]
      %v259 = vld [vmem:[%s246 + $0x18] sm:$0xf]
      %v260 = vld [vmem:[%s246 + $0x1c] sm:$0xf]
      %v261 = vld [vmem:[%s246 + $0x20] sm:$0xf]
      %v262 = vld [vmem:[%s246 + $0x24] sm:$0xf]
      %v263 = vld [vmem:[%s246 + $0x28] sm:$0xf]
      %v264 = vld [vmem:[%s246 + $0x2c] sm:$0xf]
      %v265 = vld [vmem:[%s246 + $0x30] sm:$0xf]
      %v266 = vld [vmem:[%s246 + $0x34] sm:$0xf]
      %v267 = vld [vmem:[%s246 + $0x38] sm:$0xf]
      %v268 = vld [vmem:[%s246 + $0x3c] sm:$0xf]
      %v269 = vld [vmem:[%s1] sm:$0x3]
      %v270 = vld [vmem:[%s2] sm:$0x1]
      %v272 = vlaneseq
      %v273 = vshrl.u32 %v272, 7
      %v274 = vsub.s32 0, %v273
      %v275 = vrot.slane %v270, %v274
      %v293 = vunpack.c.l.b16 %v253
      %v294 = vunpack.c.l.b16 %v254
      %v295 = vunpack.c.l.b16 %v255
      %v296 = vunpack.c.l.b16 %v256
      %v297 = vunpack.c.l.b16 %v257
      %v298 = vunpack.c.l.b16 %v258
      %v299 = vunpack.c.l.b16 %v259
      %v300 = vunpack.c.l.b16 %v260
      %v301 = vunpack.c.l.b16 %v261
      %v302 = vunpack.c.l.b16 %v262
      %v303 = vunpack.c.l.b16 %v263
      %v304 = vunpack.c.l.b16 %v264
      %v305 = vunpack.c.l.b16 %v265
      %v306 = vunpack.c.l.b16 %v266
      %v307 = vunpack.c.l.b16 %v267
      %v308 = vunpack.c.l.b16 %v268
      %v309 = vpack.c.b16 %v294, %v293
      %v310 = vpack.c.b16 %v296, %v295
      %v311 = vpack.c.b16 %v298, %v297
      %v312 = vpack.c.b16 %v300, %v299
      %v313 = vpack.c.b16 %v302, %v301
      %v314 = vpack.c.b16 %v304, %v303
      %v315 = vpack.c.b16 %v306, %v305
      %v316 = vpack.c.b16 %v308, %v307
      %vm317 = vcmask 31744
      %v319 = vsel %vm317, %v309, 0
      %v322 = vsel %vm317, %v310, 0
      %v325 = vsel %vm317, %v311, 0
      %v328 = vsel %vm317, %v312, 0
      %v331 = vsel %vm317, %v313, 0
      %v334 = vsel %vm317, %v314, 0
      %v337 = vsel %vm317, %v315, 0
      %v340 = vsel %vm317, %v316, 0
      %vm342 = vcmask 1041408
      %v344 = vsel %vm342, %v269, 0
      %346 = vmatprep.subr.bf16.mxu0 0
      %347 = vmatpush1.bf16.msra.mxu0 %v344
      %348 = vmatprep.subr.bf16.mxu0 0
      %349 = vmatpush1.bf16.msra.mxu0 0
      %350 = vmatprep.subr.bf16.mxu0 0
      %351 = vmatpush1.bf16.msra.mxu0 0
      %352 = vmatprep.subr.bf16.mxu0 0
      %353 = vmatpush1.bf16.msra.mxu0 0
      %354 = vmatprep.subr.bf16.mxu0 0
      %355 = vmatpush1.bf16.msra.mxu0 0
      %356 = vmatprep.subr.bf16.mxu0 0
      %357 = vmatpush1.bf16.msra.mxu0 0
      %358 = vmatprep.subr.bf16.mxu0 0
      %359 = vmatpush1.bf16.msra.mxu0 0
      %360 = vmatprep.subr.bf16.mxu0 0
      %361 = vmatpush1.bf16.msra.mxu0 0
      %362 = vmatprep.subr.bf16.mxu0 0
      %363 = vmatpush1.bf16.msra.mxu0 0
      %364 = vmatprep.subr.bf16.mxu0 0
      %365 = vmatpush1.bf16.msra.mxu0 0
      %366 = vmatprep.subr.bf16.mxu0 0
      %367 = vmatpush1.bf16.msra.mxu0 0
      %368 = vmatprep.subr.bf16.mxu0 0
      %369 = vmatpush1.bf16.msra.mxu0 0
      %370 = vmatprep.subr.bf16.mxu0 0
      %371 = vmatpush1.bf16.msra.mxu0 0
      %372 = vmatprep.subr.bf16.mxu0 0
      %373 = vmatpush1.bf16.msra.mxu0 0
      %374 = vmatprep.subr.bf16.mxu0 0
      %375 = vmatpush1.bf16.msra.mxu0 0
      %376 = vmatprep.subr.bf16.mxu0 0
      %377 = vmatpush1.bf16.msra.mxu0 0
      %378 = vmatprep.mubr.bf16.mxu0 0
      %379 = vmatmul.mubr.bf16.gmra.mrb[0].mxu0 %v319
      %v380 = vpop.f32.mrb[0].mxu0
      %v381 = vadd.f32 %v275, %v380
      %v382 = vpop.f32.mrb[0].mxu0
      %v383 = vpop.f32.mrb[0].mxu0
      %v384 = vadd.f32 %v275, %v383
      %v385 = vpop.f32.mrb[0].mxu0
      %386 = vmatprep.mubr.bf16.mxu0 0
      %387 = vmatmul.mubr.bf16.gmra.mrb[0].mxu0 %v322
      %v388 = vpop.f32.mrb[0].mxu0
      %v389 = vadd.f32 %v275, %v388
      %v390 = vpop.f32.mrb[0].mxu0
      %v391 = vpop.f32.mrb[0].mxu0
      %v392 = vadd.f32 %v275, %v391
      %v393 = vpop.f32.mrb[0].mxu0
      %394 = vmatprep.mubr.bf16.mxu0 0
      %395 = vmatmul.mubr.bf16.gmra.mrb[0].mxu0 %v325
      %v396 = vpop.f32.mrb[0].mxu0
      %v397 = vadd.f32 %v275, %v396
      %v398 = vpop.f32.mrb[0].mxu0
      %v399 = vpop.f32.mrb[0].mxu0
      %v400 = vadd.f32 %v275, %v399
      %v401 = vpop.f32.mrb[0].mxu0
      %402 = vmatprep.mubr.bf16.mxu0 0
      %403 = vmatmul.mubr.bf16.gmra.mrb[0].mxu0 %v328
      %v404 = vpop.f32.mrb[0].mxu0
      %v405 = vadd.f32 %v275, %v404
      %v406 = vpop.f32.mrb[0].mxu0
      %v407 = vpop.f32.mrb[0].mxu0
      %v408 = vadd.f32 %v275, %v407
      %v409 = vpop.f32.mrb[0].mxu0
      %410 = vmatprep.mubr.bf16.mxu0 0
      %411 = vmatmul.mubr.bf16.gmra.mrb[0].mxu0 %v331
      %v412 = vpop.f32.mrb[0].mxu0
      %v413 = vadd.f32 %v275, %v412
      %v414 = vpop.f32.mrb[0].mxu0
      %v415 = vpop.f32.mrb[0].mxu0
      %v416 = vadd.f32 %v275, %v415
      %v417 = vpop.f32.mrb[0].mxu0
      %418 = vmatprep.mubr.bf16.mxu0 0
      %419 = vmatmul.mubr.bf16.gmra.mrb[0].mxu0 %v334
      %v420 = vpop.f32.mrb[0].mxu0
      %v421 = vadd.f32 %v275, %v420
      %v422 = vpop.f32.mrb[0].mxu0
      %v423 = vpop.f32.mrb[0].mxu0
      %v424 = vadd.f32 %v275, %v423
      %v425 = vpop.f32.mrb[0].mxu0
      %426 = vmatprep.mubr.bf16.mxu0 0
      %427 = vmatmul.mubr.bf16.gmra.mrb[0].mxu0 %v337
      %v428 = vpop.f32.mrb[0].mxu0
      %v429 = vadd.f32 %v275, %v428
      %v430 = vpop.f32.mrb[0].mxu0
      %v431 = vpop.f32.mrb[0].mxu0
      %v432 = vadd.f32 %v275, %v431
      %v433 = vpop.f32.mrb[0].mxu0
      %434 = vmatprep.mubr.bf16.mxu0 0
      %435 = vmatmul.mubr.bf16.gmra.mrb[0].mxu0 %v340
      %v436 = vpop.f32.mrb[0].mxu0
      %v437 = vadd.f32 %v275, %v436
      %v438 = vpop.f32.mrb[0].mxu0
      %v439 = vpop.f32.mrb[0].mxu0
      %v440 = vadd.f32 %v275, %v439
      %v441 = vpop.f32.mrb[0].mxu0
      %442 = vdwg.mxu0
      %v443 = vld [vmem:[%s3] sm:$0xff]
      %v444 = vld [vmem:[%s3 + $0x8] sm:$0xff]
      %vm445 = vcmask 130048
      %v447 = vsel %vm445, %v443, 0
      %v450 = vsel %vm445, %v444, 0
      %452 = vmatprep.subr.mxu0 0.0
      %453 = vmatpush1.msra.mxu0 %v381
      %454 = vmatprep.subr.mxu0 0.0
      %455 = vmatpush1.msra.mxu0 %v384
      %456 = vmatprep.subr.mxu0 0.0
      %457 = vmatpush1.msra.mxu0 0.0
      %458 = vmatprep.subr.mxu0 0.0
      %459 = vmatpush1.msra.mxu0 0.0
      %460 = vmatprep.subr.mxu0 0.0
      %461 = vmatpush1.msra.mxu0 0.0
      %462 = vmatprep.subr.mxu0 0.0
      %463 = vmatpush1.msra.mxu0 0.0
      %464 = vmatprep.subr.mxu0 0.0
      %465 = vmatpush1.msra.mxu0 0.0
      %466 = vmatprep.subr.mxu0 0.0
      %467 = vmatpush1.msra.mxu0 0.0
      %468 = vmatprep.subr.mxu0 0.0
      %469 = vmatpush1.msra.mxu0 0.0
      %470 = vmatprep.subr.mxu0 0.0
      %471 = vmatpush1.msra.mxu0 0.0
      %472 = vmatprep.subr.mxu0 0.0
      %473 = vmatpush1.msra.mxu0 0.0
      %474 = vmatprep.subr.mxu0 0.0
      %475 = vmatpush1.msra.mxu0 0.0
      %476 = vmatprep.subr.mxu0 0.0
      %477 = vmatpush1.msra.mxu0 0.0
      %478 = vmatprep.subr.mxu0 0.0
      %479 = vmatpush1.msra.mxu0 0.0
      %480 = vmatprep.subr.mxu0 0.0
      %481 = vmatpush1.msra.mxu0 0.0
      %482 = vmatprep.subr.mxu0 0.0
      %483 = vmatpush1.msra.mxu0 0.0
      %484 = vmatprep.subr.mxu0 0.0
      %485 = vmatpush1.msra.mxu0 0.0
      %486 = vmatprep.subr.mxu0 0.0
      %487 = vmatpush1.msra.mxu0 0.0
      %488 = vmatprep.subr.mxu0 0.0
      %489 = vmatpush1.msra.mxu0 0.0
      %490 = vmatprep.subr.mxu0 0.0
      %491 = vmatpush1.msra.mxu0 0.0
      %492 = vmatprep.subr.mxu0 0.0
      %493 = vmatpush1.msra.mxu0 0.0
      %494 = vmatprep.subr.mxu0 0.0
      %495 = vmatpush1.msra.mxu0 0.0
      %496 = vmatprep.subr.mxu0 0.0
      %497 = vmatpush1.msra.mxu0 0.0
      %498 = vmatprep.subr.mxu0 0.0
      %499 = vmatpush1.msra.mxu0 0.0
      %500 = vmatprep.subr.mxu0 0.0
      %501 = vmatpush1.msra.mxu0 0.0
      %502 = vmatprep.subr.mxu0 0.0
      %503 = vmatpush1.msra.mxu0 0.0
      %504 = vmatprep.subr.mxu0 0.0
      %505 = vmatpush1.msra.mxu0 0.0
      %506 = vmatprep.subr.mxu0 0.0
      %507 = vmatpush1.msra.mxu0 0.0
      %508 = vmatprep.subr.mxu0 0.0
      %509 = vmatpush1.msra.mxu0 0.0
      %510 = vmatprep.subr.mxu0 0.0
      %511 = vmatpush1.msra.mxu0 0.0
      %512 = vmatprep.subr.mxu0 0.0
      %513 = vmatpush1.msra.mxu0 0.0
      %514 = vmatprep.subr.mxu0 0.0
      %515 = vmatpush1.msra.mxu0 0.0
      %516 = vmatprep.mubr.f32.mxu0 0.0
      %517 = vmatmul.mubr.f32.gmra.mrb[0].mxu0 %v447
      %v518 = vpop.f32.mrb[0].mxu0
      %v519 = vadd.f32 0.0, %v518
      %v520 = vpop.f32.mrb[0].mxu0
      %521 = vmatprep.mubr.f32.mxu0 0.0
      %522 = vmatmul.mubr.f32.gmra.mrb[0].mxu0 %v450
      %v523 = vpop.f32.mrb[0].mxu0
      %v524 = vadd.f32 0.0, %v523
      %v525 = vpop.f32.mrb[0].mxu0
      %526 = vdwg.mxu0
      %527 = vmatprep.subr.mxu0 0.0
      %528 = vmatpush1.msra.mxu0 %v389
      %529 = vmatprep.subr.mxu0 0.0
      %530 = vmatpush1.msra.mxu0 %v392
      %531 = vmatprep.subr.mxu0 0.0
      %532 = vmatpush1.msra.mxu0 0.0
      %533 = vmatprep.subr.mxu0 0.0
      %534 = vmatpush1.msra.mxu0 0.0
      %535 = vmatprep.subr.mxu0 0.0
      %536 = vmatpush1.msra.mxu0 0.0
      %537 = vmatprep.subr.mxu0 0.0
      %538 = vmatpush1.msra.mxu0 0.0
      %539 = vmatprep.subr.mxu0 0.0
      %540 = vmatpush1.msra.mxu0 0.0
      %541 = vmatprep.subr.mxu0 0.0
      %542 = vmatpush1.msra.mxu0 0.0
      %543 = vmatprep.subr.mxu0 0.0
      %544 = vmatpush1.msra.mxu0 0.0
      %545 = vmatprep.subr.mxu0 0.0
      %546 = vmatpush1.msra.mxu0 0.0
      %547 = vmatprep.subr.mxu0 0.0
      %548 = vmatpush1.msra.mxu0 0.0
      %549 = vmatprep.subr.mxu0 0.0
      %550 = vmatpush1.msra.mxu0 0.0
      %551 = vmatprep.subr.mxu0 0.0
      %552 = vmatpush1.msra.mxu0 0.0
      %553 = vmatprep.subr.mxu0 0.0
      %554 = vmatpush1.msra.mxu0 0.0
      %555 = vmatprep.subr.mxu0 0.0
      %556 = vmatpush1.msra.mxu0 0.0
      %557 = vmatprep.subr.mxu0 0.0
      %558 = vmatpush1.msra.mxu0 0.0
      %559 = vmatprep.subr.mxu0 0.0
      %560 = vmatpush1.msra.mxu0 0.0
      %561 = vmatprep.subr.mxu0 0.0
      %562 = vmatpush1.msra.mxu0 0.0
      %563 = vmatprep.subr.mxu0 0.0
      %564 = vmatpush1.msra.mxu0 0.0
      %565 = vmatprep.subr.mxu0 0.0
      %566 = vmatpush1.msra.mxu0 0.0
      %567 = vmatprep.subr.mxu0 0.0
      %568 = vmatpush1.msra.mxu0 0.0
      %569 = vmatprep.subr.mxu0 0.0
      %570 = vmatpush1.msra.mxu0 0.0
      %571 = vmatprep.subr.mxu0 0.0
      %572 = vmatpush1.msra.mxu0 0.0
      %573 = vmatprep.subr.mxu0 0.0
      %574 = vmatpush1.msra.mxu0 0.0
      %575 = vmatprep.subr.mxu0 0.0
      %576 = vmatpush1.msra.mxu0 0.0
      %577 = vmatprep.subr.mxu0 0.0
      %578 = vmatpush1.msra.mxu0 0.0
      %579 = vmatprep.subr.mxu0 0.0
      %580 = vmatpush1.msra.mxu0 0.0
      %581 = vmatprep.subr.mxu0 0.0
      %582 = vmatpush1.msra.mxu0 0.0
      %583 = vmatprep.subr.mxu0 0.0
      %584 = vmatpush1.msra.mxu0 0.0
      %585 = vmatprep.subr.mxu0 0.0
      %586 = vmatpush1.msra.mxu0 0.0
      %587 = vmatprep.subr.mxu0 0.0
      %588 = vmatpush1.msra.mxu0 0.0
      %589 = vmatprep.subr.mxu0 0.0
      %590 = vmatpush1.msra.mxu0 0.0
      %591 = vmatprep.mubr.f32.mxu0 0.0
      %592 = vmatmul.mubr.f32.gmra.mrb[0].mxu0 %v447
      %v593 = vpop.f32.mrb[0].mxu0
      %v594 = vadd.f32 0.0, %v593
      %v595 = vpop.f32.mrb[0].mxu0
      %596 = vmatprep.mubr.f32.mxu0 0.0
      %597 = vmatmul.mubr.f32.gmra.mrb[0].mxu0 %v450
      %v598 = vpop.f32.mrb[0].mxu0
      %v599 = vadd.f32 0.0, %v598
      %v600 = vpop.f32.mrb[0].mxu0
      %601 = vdwg.mxu0
      %602 = vmatprep.subr.mxu0 0.0
      %603 = vmatpush1.msra.mxu0 %v397
      %604 = vmatprep.subr.mxu0 0.0
      %605 = vmatpush1.msra.mxu0 %v400
      %606 = vmatprep.subr.mxu0 0.0
      %607 = vmatpush1.msra.mxu0 0.0
      %608 = vmatprep.subr.mxu0 0.0
      %609 = vmatpush1.msra.mxu0 0.0
      %610 = vmatprep.subr.mxu0 0.0
      %611 = vmatpush1.msra.mxu0 0.0
      %612 = vmatprep.subr.mxu0 0.0
      %613 = vmatpush1.msra.mxu0 0.0
      %614 = vmatprep.subr.mxu0 0.0
      %615 = vmatpush1.msra.mxu0 0.0
      %616 = vmatprep.subr.mxu0 0.0
      %617 = vmatpush1.msra.mxu0 0.0
      %618 = vmatprep.subr.mxu0 0.0
      %619 = vmatpush1.msra.mxu0 0.0
      %620 = vmatprep.subr.mxu0 0.0
      %621 = vmatpush1.msra.mxu0 0.0
      %622 = vmatprep.subr.mxu0 0.0
      %623 = vmatpush1.msra.mxu0 0.0
      %624 = vmatprep.subr.mxu0 0.0
      %625 = vmatpush1.msra.mxu0 0.0
      %626 = vmatprep.subr.mxu0 0.0
      %627 = vmatpush1.msra.mxu0 0.0
      %628 = vmatprep.subr.mxu0 0.0
      %629 = vmatpush1.msra.mxu0 0.0
      %630 = vmatprep.subr.mxu0 0.0
      %631 = vmatpush1.msra.mxu0 0.0
      %632 = vmatprep.subr.mxu0 0.0
      %633 = vmatpush1.msra.mxu0 0.0
      %634 = vmatprep.subr.mxu0 0.0
      %635 = vmatpush1.msra.mxu0 0.0
      %636 = vmatprep.subr.mxu0 0.0
      %637 = vmatpush1.msra.mxu0 0.0
      %638 = vmatprep.subr.mxu0 0.0
      %639 = vmatpush1.msra.mxu0 0.0
      %640 = vmatprep.subr.mxu0 0.0
      %641 = vmatpush1.msra.mxu0 0.0
      %642 = vmatprep.subr.mxu0 0.0
      %643 = vmatpush1.msra.mxu0 0.0
      %644 = vmatprep.subr.mxu0 0.0
      %645 = vmatpush1.msra.mxu0 0.0
      %646 = vmatprep.subr.mxu0 0.0
      %647 = vmatpush1.msra.mxu0 0.0
      %648 = vmatprep.subr.mxu0 0.0
      %649 = vmatpush1.msra.mxu0 0.0
      %650 = vmatprep.subr.mxu0 0.0
      %651 = vmatpush1.msra.mxu0 0.0
      %652 = vmatprep.subr.mxu0 0.0
      %653 = vmatpush1.msra.mxu0 0.0
      %654 = vmatprep.subr.mxu0 0.0
      %655 = vmatpush1.msra.mxu0 0.0
      %656 = vmatprep.subr.mxu0 0.0
      %657 = vmatpush1.msra.mxu0 0.0
      %658 = vmatprep.subr.mxu0 0.0
      %659 = vmatpush1.msra.mxu0 0.0
      %660 = vmatprep.subr.mxu0 0.0
      %661 = vmatpush1.msra.mxu0 0.0
      %662 = vmatprep.subr.mxu0 0.0
      %663 = vmatpush1.msra.mxu0 0.0
      %664 = vmatprep.subr.mxu0 0.0
      %665 = vmatpush1.msra.mxu0 0.0
      %666 = vmatprep.mubr.f32.mxu0 0.0
      %667 = vmatmul.mubr.f32.gmra.mrb[0].mxu0 %v447
      %v668 = vpop.f32.mrb[0].mxu0
      %v669 = vadd.f32 0.0, %v668
      %v670 = vpop.f32.mrb[0].mxu0
      %671 = vmatprep.mubr.f32.mxu0 0.0
      %672 = vmatmul.mubr.f32.gmra.mrb[0].mxu0 %v450
      %v673 = vpop.f32.mrb[0].mxu0
      %v674 = vadd.f32 0.0, %v673
      %v675 = vpop.f32.mrb[0].mxu0
      %676 = vdwg.mxu0
      %677 = vmatprep.subr.mxu0 0.0
      %678 = vmatpush1.msra.mxu0 %v405
      %679 = vmatprep.subr.mxu0 0.0
      %680 = vmatpush1.msra.mxu0 %v408
      %681 = vmatprep.subr.mxu0 0.0
      %682 = vmatpush1.msra.mxu0 0.0
      %683 = vmatprep.subr.mxu0 0.0
      %684 = vmatpush1.msra.mxu0 0.0
      %685 = vmatprep.subr.mxu0 0.0
      %686 = vmatpush1.msra.mxu0 0.0
      %687 = vmatprep.subr.mxu0 0.0
      %688 = vmatpush1.msra.mxu0 0.0
      %689 = vmatprep.subr.mxu0 0.0
      %690 = vmatpush1.msra.mxu0 0.0
      %691 = vmatprep.subr.mxu0 0.0
      %692 = vmatpush1.msra.mxu0 0.0
      %693 = vmatprep.subr.mxu0 0.0
      %694 = vmatpush1.msra.mxu0 0.0
      %695 = vmatprep.subr.mxu0 0.0
      %696 = vmatpush1.msra.mxu0 0.0
      %697 = vmatprep.subr.mxu0 0.0
      %698 = vmatpush1.msra.mxu0 0.0
      %699 = vmatprep.subr.mxu0 0.0
      %700 = vmatpush1.msra.mxu0 0.0
      %701 = vmatprep.subr.mxu0 0.0
      %702 = vmatpush1.msra.mxu0 0.0
      %703 = vmatprep.subr.mxu0 0.0
      %704 = vmatpush1.msra.mxu0 0.0
      %705 = vmatprep.subr.mxu0 0.0
      %706 = vmatpush1.msra.mxu0 0.0
      %707 = vmatprep.subr.mxu0 0.0
      %708 = vmatpush1.msra.mxu0 0.0
      %709 = vmatprep.subr.mxu0 0.0
      %710 = vmatpush1.msra.mxu0 0.0
      %711 = vmatprep.subr.mxu0 0.0
      %712 = vmatpush1.msra.mxu0 0.0
      %713 = vmatprep.subr.mxu0 0.0
      %714 = vmatpush1.msra.mxu0 0.0
      %715 = vmatprep.subr.mxu0 0.0
      %716 = vmatpush1.msra.mxu0 0.0
      %717 = vmatprep.subr.mxu0 0.0
      %718 = vmatpush1.msra.mxu0 0.0
      %719 = vmatprep.subr.mxu0 0.0
      %720 = vmatpush1.msra.mxu0 0.0
      %721 = vmatprep.subr.mxu0 0.0
      %722 = vmatpush1.msra.mxu0 0.0
      %723 = vmatprep.subr.mxu0 0.0
      %724 = vmatpush1.msra.mxu0 0.0
      %725 = vmatprep.subr.mxu0 0.0
      %726 = vmatpush1.msra.mxu0 0.0
      %727 = vmatprep.subr.mxu0 0.0
      %728 = vmatpush1.msra.mxu0 0.0
      %729 = vmatprep.subr.mxu0 0.0
      %730 = vmatpush1.msra.mxu0 0.0
      %731 = vmatprep.subr.mxu0 0.0
      %732 = vmatpush1.msra.mxu0 0.0
      %733 = vmatprep.subr.mxu0 0.0
      %734 = vmatpush1.msra.mxu0 0.0
      %735 = vmatprep.subr.mxu0 0.0
      %736 = vmatpush1.msra.mxu0 0.0
      %737 = vmatprep.subr.mxu0 0.0
      %738 = vmatpush1.msra.mxu0 0.0
      %739 = vmatprep.subr.mxu0 0.0
      %740 = vmatpush1.msra.mxu0 0.0
      %741 = vmatprep.mubr.f32.mxu0 0.0
      %742 = vmatmul.mubr.f32.gmra.mrb[0].mxu0 %v447
      %v743 = vpop.f32.mrb[0].mxu0
      %v744 = vadd.f32 0.0, %v743
      %v745 = vpop.f32.mrb[0].mxu0
      %746 = vmatprep.mubr.f32.mxu0 0.0
      %747 = vmatmul.mubr.f32.gmra.mrb[0].mxu0 %v450
      %v748 = vpop.f32.mrb[0].mxu0
      %v749 = vadd.f32 0.0, %v748
      %v750 = vpop.f32.mrb[0].mxu0
      %751 = vdwg.mxu0
      %752 = vmatprep.subr.mxu0 0.0
      %753 = vmatpush1.msra.mxu0 %v413
      %754 = vmatprep.subr.mxu0 0.0
      %755 = vmatpush1.msra.mxu0 %v416
      %756 = vmatprep.subr.mxu0 0.0
      %757 = vmatpush1.msra.mxu0 0.0
      %758 = vmatprep.subr.mxu0 0.0
      %759 = vmatpush1.msra.mxu0 0.0
      %760 = vmatprep.subr.mxu0 0.0
      %761 = vmatpush1.msra.mxu0 0.0
      %762 = vmatprep.subr.mxu0 0.0
      %763 = vmatpush1.msra.mxu0 0.0
      %764 = vmatprep.subr.mxu0 0.0
      %765 = vmatpush1.msra.mxu0 0.0
      %766 = vmatprep.subr.mxu0 0.0
      %767 = vmatpush1.msra.mxu0 0.0
      %768 = vmatprep.subr.mxu0 0.0
      %769 = vmatpush1.msra.mxu0 0.0
      %770 = vmatprep.subr.mxu0 0.0
      %771 = vmatpush1.msra.mxu0 0.0
      %772 = vmatprep.subr.mxu0 0.0
      %773 = vmatpush1.msra.mxu0 0.0
      %774 = vmatprep.subr.mxu0 0.0
      %775 = vmatpush1.msra.mxu0 0.0
      %776 = vmatprep.subr.mxu0 0.0
      %777 = vmatpush1.msra.mxu0 0.0
      %778 = vmatprep.subr.mxu0 0.0
      %779 = vmatpush1.msra.mxu0 0.0
      %780 = vmatprep.subr.mxu0 0.0
      %781 = vmatpush1.msra.mxu0 0.0
      %782 = vmatprep.subr.mxu0 0.0
      %783 = vmatpush1.msra.mxu0 0.0
      %784 = vmatprep.subr.mxu0 0.0
      %785 = vmatpush1.msra.mxu0 0.0
      %786 = vmatprep.subr.mxu0 0.0
      %787 = vmatpush1.msra.mxu0 0.0
      %788 = vmatprep.subr.mxu0 0.0
      %789 = vmatpush1.msra.mxu0 0.0
      %790 = vmatprep.subr.mxu0 0.0
      %791 = vmatpush1.msra.mxu0 0.0
      %792 = vmatprep.subr.mxu0 0.0
      %793 = vmatpush1.msra.mxu0 0.0
      %794 = vmatprep.subr.mxu0 0.0
      %795 = vmatpush1.msra.mxu0 0.0
      %796 = vmatprep.subr.mxu0 0.0
      %797 = vmatpush1.msra.mxu0 0.0
      %798 = vmatprep.subr.mxu0 0.0
      %799 = vmatpush1.msra.mxu0 0.0
      %800 = vmatprep.subr.mxu0 0.0
      %801 = vmatpush1.msra.mxu0 0.0
      %802 = vmatprep.subr.mxu0 0.0
      %803 = vmatpush1.msra.mxu0 0.0
      %804 = vmatprep.subr.mxu0 0.0
      %805 = vmatpush1.msra.mxu0 0.0
      %806 = vmatprep.subr.mxu0 0.0
      %807 = vmatpush1.msra.mxu0 0.0
      %808 = vmatprep.subr.mxu0 0.0
      %809 = vmatpush1.msra.mxu0 0.0
      %810 = vmatprep.subr.mxu0 0.0
      %811 = vmatpush1.msra.mxu0 0.0
      %812 = vmatprep.subr.mxu0 0.0
      %813 = vmatpush1.msra.mxu0 0.0
      %814 = vmatprep.subr.mxu0 0.0
      %815 = vmatpush1.msra.mxu0 0.0
      %816 = vmatprep.mubr.f32.mxu0 0.0
      %817 = vmatmul.mubr.f32.gmra.mrb[0].mxu0 %v447
      %v818 = vpop.f32.mrb[0].mxu0
      %v819 = vadd.f32 0.0, %v818
      %v820 = vpop.f32.mrb[0].mxu0
      %821 = vmatprep.mubr.f32.mxu0 0.0
      %822 = vmatmul.mubr.f32.gmra.mrb[0].mxu0 %v450
      %v823 = vpop.f32.mrb[0].mxu0
      %v824 = vadd.f32 0.0, %v823
      %v825 = vpop.f32.mrb[0].mxu0
      %826 = vdwg.mxu0
      %827 = vmatprep.subr.mxu0 0.0
      %828 = vmatpush1.msra.mxu0 %v421
      %829 = vmatprep.subr.mxu0 0.0
      %830 = vmatpush1.msra.mxu0 %v424
      %831 = vmatprep.subr.mxu0 0.0
      %832 = vmatpush1.msra.mxu0 0.0
      %833 = vmatprep.subr.mxu0 0.0
      %834 = vmatpush1.msra.mxu0 0.0
      %835 = vmatprep.subr.mxu0 0.0
      %836 = vmatpush1.msra.mxu0 0.0
      %837 = vmatprep.subr.mxu0 0.0
      %838 = vmatpush1.msra.mxu0 0.0
      %839 = vmatprep.subr.mxu0 0.0
      %840 = vmatpush1.msra.mxu0 0.0
      %841 = vmatprep.subr.mxu0 0.0
      %842 = vmatpush1.msra.mxu0 0.0
      %843 = vmatprep.subr.mxu0 0.0
      %844 = vmatpush1.msra.mxu0 0.0
      %845 = vmatprep.subr.mxu0 0.0
      %846 = vmatpush1.msra.mxu0 0.0
      %847 = vmatprep.subr.mxu0 0.0
      %848 = vmatpush1.msra.mxu0 0.0
      %849 = vmatprep.subr.mxu0 0.0
      %850 = vmatpush1.msra.mxu0 0.0
      %851 = vmatprep.subr.mxu0 0.0
      %852 = vmatpush1.msra.mxu0 0.0
      %853 = vmatprep.subr.mxu0 0.0
      %854 = vmatpush1.msra.mxu0 0.0
      %855 = vmatprep.subr.mxu0 0.0
      %856 = vmatpush1.msra.mxu0 0.0
      %857 = vmatprep.subr.mxu0 0.0
      %858 = vmatpush1.msra.mxu0 0.0
      %859 = vmatprep.subr.mxu0 0.0
      %860 = vmatpush1.msra.mxu0 0.0
      %861 = vmatprep.subr.mxu0 0.0
      %862 = vmatpush1.msra.mxu0 0.0
      %863 = vmatprep.subr.mxu0 0.0
      %864 = vmatpush1.msra.mxu0 0.0
      %865 = vmatprep.subr.mxu0 0.0
      %866 = vmatpush1.msra.mxu0 0.0
      %867 = vmatprep.subr.mxu0 0.0
      %868 = vmatpush1.msra.mxu0 0.0
      %869 = vmatprep.subr.mxu0 0.0
      %870 = vmatpush1.msra.mxu0 0.0
      %871 = vmatprep.subr.mxu0 0.0
      %872 = vmatpush1.msra.mxu0 0.0
      %873 = vmatprep.subr.mxu0 0.0
      %874 = vmatpush1.msra.mxu0 0.0
      %875 = vmatprep.subr.mxu0 0.0
      %876 = vmatpush1.msra.mxu0 0.0
      %877 = vmatprep.subr.mxu0 0.0
      %878 = vmatpush1.msra.mxu0 0.0
      %879 = vmatprep.subr.mxu0 0.0
      %880 = vmatpush1.msra.mxu0 0.0
      %881 = vmatprep.subr.mxu0 0.0
      %882 = vmatpush1.msra.mxu0 0.0
      %883 = vmatprep.subr.mxu0 0.0
      %884 = vmatpush1.msra.mxu0 0.0
      %885 = vmatprep.subr.mxu0 0.0
      %886 = vmatpush1.msra.mxu0 0.0
      %887 = vmatprep.subr.mxu0 0.0
      %888 = vmatpush1.msra.mxu0 0.0
      %889 = vmatprep.subr.mxu0 0.0
      %890 = vmatpush1.msra.mxu0 0.0
      %891 = vmatprep.mubr.f32.mxu0 0.0
      %892 = vmatmul.mubr.f32.gmra.mrb[0].mxu0 %v447
      %v893 = vpop.f32.mrb[0].mxu0
      %v894 = vadd.f32 0.0, %v893
      %v895 = vpop.f32.mrb[0].mxu0
      %896 = vmatprep.mubr.f32.mxu0 0.0
      %897 = vmatmul.mubr.f32.gmra.mrb[0].mxu0 %v450
      %v898 = vpop.f32.mrb[0].mxu0
      %v899 = vadd.f32 0.0, %v898
      %v900 = vpop.f32.mrb[0].mxu0
      %901 = vdwg.mxu0
      %902 = vmatprep.subr.mxu0 0.0
      %903 = vmatpush1.msra.mxu0 %v429
      %904 = vmatprep.subr.mxu0 0.0
      %905 = vmatpush1.msra.mxu0 %v432
      %906 = vmatprep.subr.mxu0 0.0
      %907 = vmatpush1.msra.mxu0 0.0
      %908 = vmatprep.subr.mxu0 0.0
      %909 = vmatpush1.msra.mxu0 0.0
      %910 = vmatprep.subr.mxu0 0.0
      %911 = vmatpush1.msra.mxu0 0.0
      %912 = vmatprep.subr.mxu0 0.0
      %913 = vmatpush1.msra.mxu0 0.0
      %914 = vmatprep.subr.mxu0 0.0
      %915 = vmatpush1.msra.mxu0 0.0
      %916 = vmatprep.subr.mxu0 0.0
      %917 = vmatpush1.msra.mxu0 0.0
      %918 = vmatprep.subr.mxu0 0.0
      %919 = vmatpush1.msra.mxu0 0.0
      %920 = vmatprep.subr.mxu0 0.0
      %921 = vmatpush1.msra.mxu0 0.0
      %922 = vmatprep.subr.mxu0 0.0
      %923 = vmatpush1.msra.mxu0 0.0
      %924 = vmatprep.subr.mxu0 0.0
      %925 = vmatpush1.msra.mxu0 0.0
      %926 = vmatprep.subr.mxu0 0.0
      %927 = vmatpush1.msra.mxu0 0.0
      %928 = vmatprep.subr.mxu0 0.0
      %929 = vmatpush1.msra.mxu0 0.0
      %930 = vmatprep.subr.mxu0 0.0
      %931 = vmatpush1.msra.mxu0 0.0
      %932 = vmatprep.subr.mxu0 0.0
      %933 = vmatpush1.msra.mxu0 0.0
      %934 = vmatprep.subr.mxu0 0.0
      %935 = vmatpush1.msra.mxu0 0.0
      %936 = vmatprep.subr.mxu0 0.0
      %937 = vmatpush1.msra.mxu0 0.0
      %938 = vmatprep.subr.mxu0 0.0
      %939 = vmatpush1.msra.mxu0 0.0
      %940 = vmatprep.subr.mxu0 0.0
      %941 = vmatpush1.msra.mxu0 0.0
      %942 = vmatprep.subr.mxu0 0.0
      %943 = vmatpush1.msra.mxu0 0.0
      %944 = vmatprep.subr.mxu0 0.0
      %945 = vmatpush1.msra.mxu0 0.0
      %946 = vmatprep.subr.mxu0 0.0
      %947 = vmatpush1.msra.mxu0 0.0
      %948 = vmatprep.subr.mxu0 0.0
      %949 = vmatpush1.msra.mxu0 0.0
      %950 = vmatprep.subr.mxu0 0.0
      %951 = vmatpush1.msra.mxu0 0.0
      %952 = vmatprep.subr.mxu0 0.0
      %953 = vmatpush1.msra.mxu0 0.0
      %954 = vmatprep.subr.mxu0 0.0
      %955 = vmatpush1.msra.mxu0 0.0
      %956 = vmatprep.subr.mxu0 0.0
      %957 = vmatpush1.msra.mxu0 0.0
      %958 = vmatprep.subr.mxu0 0.0
      %959 = vmatpush1.msra.mxu0 0.0
      %960 = vmatprep.subr.mxu0 0.0
      %961 = vmatpush1.msra.mxu0 0.0
      %962 = vmatprep.subr.mxu0 0.0
      %963 = vmatpush1.msra.mxu0 0.0
      %964 = vmatprep.subr.mxu0 0.0
      %965 = vmatpush1.msra.mxu0 0.0
      %966 = vmatprep.mubr.f32.mxu0 0.0
      %967 = vmatmul.mubr.f32.gmra.mrb[0].mxu0 %v447
      %v968 = vpop.f32.mrb[0].mxu0
      %v969 = vadd.f32 0.0, %v968
      %v970 = vpop.f32.mrb[0].mxu0
      %971 = vmatprep.mubr.f32.mxu0 0.0
      %972 = vmatmul.mubr.f32.gmra.mrb[0].mxu0 %v450
      %v973 = vpop.f32.mrb[0].mxu0
      %v974 = vadd.f32 0.0, %v973
      %v975 = vpop.f32.mrb[0].mxu0
      %976 = vdwg.mxu0
      %977 = vmatprep.subr.mxu0 0.0
      %978 = vmatpush1.msra.mxu0 %v437
      %979 = vmatprep.subr.mxu0 0.0
      %980 = vmatpush1.msra.mxu0 %v440
      %981 = vmatprep.subr.mxu0 0.0
      %982 = vmatpush1.msra.mxu0 0.0
      %983 = vmatprep.subr.mxu0 0.0
      %984 = vmatpush1.msra.mxu0 0.0
      %985 = vmatprep.subr.mxu0 0.0
      %986 = vmatpush1.msra.mxu0 0.0
      %987 = vmatprep.subr.mxu0 0.0
      %988 = vmatpush1.msra.mxu0 0.0
      %989 = vmatprep.subr.mxu0 0.0
      %990 = vmatpush1.msra.mxu0 0.0
      %991 = vmatprep.subr.mxu0 0.0
      %992 = vmatpush1.msra.mxu0 0.0
      %993 = vmatprep.subr.mxu0 0.0
      %994 = vmatpush1.msra.mxu0 0.0
      %995 = vmatprep.subr.mxu0 0.0
      %996 = vmatpush1.msra.mxu0 0.0
      %997 = vmatprep.subr.mxu0 0.0
      %998 = vmatpush1.msra.mxu0 0.0
      %999 = vmatprep.subr.mxu0 0.0
      %1000 = vmatpush1.msra.mxu0 0.0
      %1001 = vmatprep.subr.mxu0 0.0
      %1002 = vmatpush1.msra.mxu0 0.0
      %1003 = vmatprep.subr.mxu0 0.0
      %1004 = vmatpush1.msra.mxu0 0.0
      %1005 = vmatprep.subr.mxu0 0.0
      %1006 = vmatpush1.msra.mxu0 0.0
      %1007 = vmatprep.subr.mxu0 0.0
      %1008 = vmatpush1.msra.mxu0 0.0
      %1009 = vmatprep.subr.mxu0 0.0
      %1010 = vmatpush1.msra.mxu0 0.0
      %1011 = vmatprep.subr.mxu0 0.0
      %1012 = vmatpush1.msra.mxu0 0.0
      %1013 = vmatprep.subr.mxu0 0.0
      %1014 = vmatpush1.msra.mxu0 0.0
      %1015 = vmatprep.subr.mxu0 0.0
      %1016 = vmatpush1.msra.mxu0 0.0
      %1017 = vmatprep.subr.mxu0 0.0
      %1018 = vmatpush1.msra.mxu0 0.0
      %1019 = vmatprep.subr.mxu0 0.0
      %1020 = vmatpush1.msra.mxu0 0.0
      %1021 = vmatprep.subr.mxu0 0.0
      %1022 = vmatpush1.msra.mxu0 0.0
      %1023 = vmatprep.subr.mxu0 0.0
      %1024 = vmatpush1.msra.mxu0 0.0
      %1025 = vmatprep.subr.mxu0 0.0
      %1026 = vmatpush1.msra.mxu0 0.0
      %1027 = vmatprep.subr.mxu0 0.0
      %1028 = vmatpush1.msra.mxu0 0.0
      %1029 = vmatprep.subr.mxu0 0.0
      %1030 = vmatpush1.msra.mxu0 0.0
      %1031 = vmatprep.subr.mxu0 0.0
      %1032 = vmatpush1.msra.mxu0 0.0
      %1033 = vmatprep.subr.mxu0 0.0
      %1034 = vmatpush1.msra.mxu0 0.0
      %1035 = vmatprep.subr.mxu0 0.0
      %1036 = vmatpush1.msra.mxu0 0.0
      %1037 = vmatprep.subr.mxu0 0.0
      %1038 = vmatpush1.msra.mxu0 0.0
      %1039 = vmatprep.subr.mxu0 0.0
      %1040 = vmatpush1.msra.mxu0 0.0
      %1041 = vmatprep.mubr.f32.mxu0 0.0
      %1042 = vmatmul.mubr.f32.gmra.mrb[0].mxu0 %v447
      %v1043 = vpop.f32.mrb[0].mxu0
      %v1044 = vadd.f32 0.0, %v1043
      %v1045 = vpop.f32.mrb[0].mxu0
      %1046 = vmatprep.mubr.f32.mxu0 0.0
      %1047 = vmatmul.mubr.f32.gmra.mrb[0].mxu0 %v450
      %v1048 = vpop.f32.mrb[0].mxu0
      %v1049 = vadd.f32 0.0, %v1048
      %v1050 = vpop.f32.mrb[0].mxu0
      %1051 = vdwg.mxu0
      %vm1052 = vcmask 523264
      %1053 = vst.msk [vmem:[#allocation2] sm:$0xff] %vm1052, 0
      %s1054 = scalar_lea.vmem [#allocation2], 72
      %1055 = vst.msk [vmem:[%s1054] sm:$0xff] %vm1052, 0
      %v1056 = vpack.c.bf16 %v524, %v519
      %v1057 = vpack.c.bf16 %v599, %v594
      %v1058 = vpack.c.bf16 %v674, %v669
      %v1059 = vpack.c.bf16 %v749, %v744
      %v1060 = vpack.c.bf16 %v824, %v819
      %v1061 = vpack.c.bf16 %v899, %v894
      %v1062 = vpack.c.bf16 %v974, %v969
      %v1063 = vpack.c.bf16 %v1049, %v1044
      %s1064 = scalar_lea.vmem [#allocation2], 8
      %1065 = vst.msk [vmem:[%s1064] sm:$0xff] %vm1052, %v1056
      %1066 = vst.msk [vmem:[%s1064 + $0x8] sm:$0xff] %vm1052, %v1057
      %1067 = vst.msk [vmem:[%s1064 + $0x10] sm:$0xff] %vm1052, %v1058
      %1068 = vst.msk [vmem:[%s1064 + $0x18] sm:$0xff] %vm1052, %v1059
      %1069 = vst.msk [vmem:[%s1064 + $0x20] sm:$0xff] %vm1052, %v1060
      %1070 = vst.msk [vmem:[%s1064 + $0x28] sm:$0xff] %vm1052, %v1061
      %1071 = vst.msk [vmem:[%s1064 + $0x30] sm:$0xff] %vm1052, %v1062
      %1072 = vst.msk [vmem:[%s1064 + $0x38] sm:$0xff] %vm1052, %v1063
      %v1073 = vld [vmem:[#allocation2] sm:$0xff]
      %v1074 = vld [vmem:[#allocation2 + $0x8] sm:$0xff]
      %v1075 = vld [vmem:[#allocation2 + $0x10] sm:$0xff]
      %v1076 = vld [vmem:[#allocation2 + $0x18] sm:$0xff]
      %v1077 = vld [vmem:[#allocation2 + $0x20] sm:$0xff]
      %v1078 = vld [vmem:[#allocation2 + $0x28] sm:$0xff]
      %v1079 = vld [vmem:[#allocation2 + $0x30] sm:$0xff]
      %v1080 = vld [vmem:[#allocation2 + $0x38] sm:$0xff]
      %v1081 = vld [vmem:[%s4] sm:$0xf]
      %v1082 = vld [vmem:[%s4 + $0x4] sm:$0xf]
      %v1083 = vld [vmem:[%s4 + $0x8] sm:$0xf]
      %v1084 = vld [vmem:[%s4 + $0xc] sm:$0xf]
      %v1085 = vld [vmem:[%s4 + $0x10] sm:$0xf]
      %v1086 = vld [vmem:[%s4 + $0x14] sm:$0xf]
      %v1087 = vld [vmem:[%s4 + $0x18] sm:$0xf]
      %v1088 = vld [vmem:[%s4 + $0x1c] sm:$0xf]
      %v1089 = vld [vmem:[%s1064] sm:$0xff]
      %v1090 = vld [vmem:[%s1064 + $0x8] sm:$0xff]
      %v1091 = vld [vmem:[%s1064 + $0x10] sm:$0xff]
      %v1092 = vld [vmem:[%s1064 + $0x18] sm:$0xff]
      %v1093 = vld [vmem:[%s1064 + $0x20] sm:$0xff]
      %v1094 = vld [vmem:[%s1064 + $0x28] sm:$0xff]
      %v1095 = vld [vmem:[%s1064 + $0x30] sm:$0xff]
      %v1096 = vld [vmem:[%s1064 + $0x38] sm:$0xff]
      %s1097 = scalar_lea.vmem %s4, 32
      %v1098 = vld [vmem:[%s1097] sm:$0xf]
      %v1099 = vld [vmem:[%s1097 + $0x4] sm:$0xf]
      %v1100 = vld [vmem:[%s1097 + $0x8] sm:$0xf]
      %v1101 = vld [vmem:[%s1097 + $0xc] sm:$0xf]
      %v1102 = vld [vmem:[%s1097 + $0x10] sm:$0xf]
      %v1103 = vld [vmem:[%s1097 + $0x14] sm:$0xf]
      %v1104 = vld [vmem:[%s1097 + $0x18] sm:$0xf]
      %v1105 = vld [vmem:[%s1097 + $0x1c] sm:$0xf]
      %v1114 = vunpack.c.l.b16 %v1098
      %v1115 = vunpack.c.l.b16 %v1099
      %v1116 = vunpack.c.l.b16 %v1100
      %v1117 = vunpack.c.l.b16 %v1101
      %v1118 = vunpack.c.l.b16 %v1102
      %v1119 = vunpack.c.l.b16 %v1103
      %v1120 = vunpack.c.l.b16 %v1104
      %v1121 = vunpack.c.l.b16 %v1105
      %v1122 = vpack.c.b16 %v1115, %v1114
      %v1123 = vpack.c.b16 %v1117, %v1116
      %v1124 = vpack.c.b16 %v1119, %v1118
      %v1125 = vpack.c.b16 %v1121, %v1120
      %v1131 = vsel %vm1052, %v1089, 0
      %v1134 = vsel %vm1052, %v1090, 0
      %v1137 = vsel %vm1052, %v1091, 0
      %v1140 = vsel %vm1052, %v1092, 0
      %v1143 = vsel %vm1052, %v1093, 0
      %v1146 = vsel %vm1052, %v1094, 0
      %v1149 = vsel %vm1052, %v1095, 0
      %v1152 = vsel %vm1052, %v1096, 0
      %1154 = vmatprep.subr.bf16.mxu0 0
      %1155 = vmatpush1.bf16.msra.mxu0 %v1122
      %1156 = vmatprep.subr.bf16.mxu0 0
      %1157 = vmatpush1.bf16.msra.mxu0 %v1123
      %1158 = vmatprep.subr.bf16.mxu0 0
      %1159 = vmatpush1.bf16.msra.mxu0 %v1124
      %1160 = vmatprep.subr.bf16.mxu0 0
      %1161 = vmatpush1.bf16.msra.mxu0 %v1125
      %1162 = vmatprep.subr.bf16.mxu0 0
      %1163 = vmatpush1.bf16.msra.mxu0 0
      %1164 = vmatprep.subr.bf16.mxu0 0
      %1165 = vmatpush1.bf16.msra.mxu0 0
      %1166 = vmatprep.subr.bf16.mxu0 0
      %1167 = vmatpush1.bf16.msra.mxu0 0
      %1168 = vmatprep.subr.bf16.mxu0 0
      %1169 = vmatpush1.bf16.msra.mxu0 0
      %1170 = vmatprep.subr.bf16.mxu0 0
      %1171 = vmatpush1.bf16.msra.mxu0 0
      %1172 = vmatprep.subr.bf16.mxu0 0
      %1173 = vmatpush1.bf16.msra.mxu0 0
      %1174 = vmatprep.subr.bf16.mxu0 0
      %1175 = vmatpush1.bf16.msra.mxu0 0
      %1176 = vmatprep.subr.bf16.mxu0 0
      %1177 = vmatpush1.bf16.msra.mxu0 0
      %1178 = vmatprep.subr.bf16.mxu0 0
      %1179 = vmatpush1.bf16.msra.mxu0 0
      %1180 = vmatprep.subr.bf16.mxu0 0
      %1181 = vmatpush1.bf16.msra.mxu0 0
      %1182 = vmatprep.subr.bf16.mxu0 0
      %1183 = vmatpush1.bf16.msra.mxu0 0
      %1184 = vmatprep.subr.bf16.mxu0 0
      %1185 = vmatpush1.bf16.msra.mxu0 0
      %1186 = vmatprep.mubr.bf16.mxu0 0
      %1187 = vmatmul.mubr.bf16.gmra.mrb[0].mxu0 %v1131
      %v1188 = vpop.f32.mrb[0].mxu0
      %v1189 = vadd.f32 0.0, %v1188
      %v1190 = vpop.f32.mrb[0].mxu0
      %v1191 = vpop.f32.mrb[0].mxu0
      %v1192 = vadd.f32 0.0, %v1191
      %v1193 = vpop.f32.mrb[0].mxu0
      %1194 = vmatprep.mubr.bf16.mxu0 0
      %1195 = vmatmul.mubr.bf16.gmra.mrb[0].mxu0 %v1134
      %v1196 = vpop.f32.mrb[0].mxu0
      %v1197 = vadd.f32 0.0, %v1196
      %v1198 = vpop.f32.mrb[0].mxu0
      %v1199 = vpop.f32.mrb[0].mxu0
      %v1200 = vadd.f32 0.0, %v1199
      %v1201 = vpop.f32.mrb[0].mxu0
      %1202 = vmatprep.mubr.bf16.mxu0 0
      %1203 = vmatmul.mubr.bf16.gmra.mrb[0].mxu0 %v1137
      %v1204 = vpop.f32.mrb[0].mxu0
      %v1205 = vadd.f32 0.0, %v1204
      %v1206 = vpop.f32.mrb[0].mxu0
      %v1207 = vpop.f32.mrb[0].mxu0
      %v1208 = vadd.f32 0.0, %v1207
      %v1209 = vpop.f32.mrb[0].mxu0
      %1210 = vmatprep.mubr.bf16.mxu0 0
      %1211 = vmatmul.mubr.bf16.gmra.mrb[0].mxu0 %v1140
      %v1212 = vpop.f32.mrb[0].mxu0
      %v1213 = vadd.f32 0.0, %v1212
      %v1214 = vpop.f32.mrb[0].mxu0
      %v1215 = vpop.f32.mrb[0].mxu0
      %v1216 = vadd.f32 0.0, %v1215
      %v1217 = vpop.f32.mrb[0].mxu0
      %1218 = vmatprep.mubr.bf16.mxu0 0
      %1219 = vmatmul.mubr.bf16.gmra.mrb[0].mxu0 %v1143
      %v1220 = vpop.f32.mrb[0].mxu0
      %v1221 = vadd.f32 0.0, %v1220
      %v1222 = vpop.f32.mrb[0].mxu0
      %v1223 = vpop.f32.mrb[0].mxu0
      %v1224 = vadd.f32 0.0, %v1223
      %v1225 = vpop.f32.mrb[0].mxu0
      %1226 = vmatprep.mubr.bf16.mxu0 0
      %1227 = vmatmul.mubr.bf16.gmra.mrb[0].mxu0 %v1146
      %v1228 = vpop.f32.mrb[0].mxu0
      %v1229 = vadd.f32 0.0, %v1228
      %v1230 = vpop.f32.mrb[0].mxu0
      %v1231 = vpop.f32.mrb[0].mxu0
      %v1232 = vadd.f32 0.0, %v1231
      %v1233 = vpop.f32.mrb[0].mxu0
      %1234 = vmatprep.mubr.bf16.mxu0 0
      %1235 = vmatmul.mubr.bf16.gmra.mrb[0].mxu0 %v1149
      %v1236 = vpop.f32.mrb[0].mxu0
      %v1237 = vadd.f32 0.0, %v1236
      %v1238 = vpop.f32.mrb[0].mxu0
      %v1239 = vpop.f32.mrb[0].mxu0
      %v1240 = vadd.f32 0.0, %v1239
      %v1241 = vpop.f32.mrb[0].mxu0
      %1242 = vmatprep.mubr.bf16.mxu0 0
      %1243 = vmatmul.mubr.bf16.gmra.mrb[0].mxu0 %v1152
      %v1244 = vpop.f32.mrb[0].mxu0
      %v1245 = vadd.f32 0.0, %v1244
      %v1246 = vpop.f32.mrb[0].mxu0
      %v1247 = vpop.f32.mrb[0].mxu0
      %v1248 = vadd.f32 0.0, %v1247
      %v1249 = vpop.f32.mrb[0].mxu0
      %1250 = vdwg.mxu0
      %v1259 = vunpack.c.l.b16 %v1081
      %v1260 = vunpack.c.l.b16 %v1082
      %v1261 = vunpack.c.l.b16 %v1083
      %v1262 = vunpack.c.l.b16 %v1084
      %v1263 = vunpack.c.l.b16 %v1085
      %v1264 = vunpack.c.l.b16 %v1086
      %v1265 = vunpack.c.l.b16 %v1087
      %v1266 = vunpack.c.l.b16 %v1088
      %v1267 = vpack.c.b16 %v1260, %v1259
      %v1268 = vpack.c.b16 %v1262, %v1261
      %v1269 = vpack.c.b16 %v1264, %v1263
      %v1270 = vpack.c.b16 %v1266, %v1265
      %v1276 = vsel %vm1052, %v1073, 0
      %v1279 = vsel %vm1052, %v1074, 0
      %v1282 = vsel %vm1052, %v1075, 0
      %v1285 = vsel %vm1052, %v1076, 0
      %v1288 = vsel %vm1052, %v1077, 0
      %v1291 = vsel %vm1052, %v1078, 0
      %v1294 = vsel %vm1052, %v1079, 0
      %v1297 = vsel %vm1052, %v1080, 0
      %1299 = vmatprep.subr.bf16.mxu0 0
      %1300 = vmatpush1.bf16.msra.mxu0 %v1267
      %1301 = vmatprep.subr.bf16.mxu0 0
      %1302 = vmatpush1.bf16.msra.mxu0 %v1268
      %1303 = vmatprep.subr.bf16.mxu0 0
      %1304 = vmatpush1.bf16.msra.mxu0 %v1269
      %1305 = vmatprep.subr.bf16.mxu0 0
      %1306 = vmatpush1.bf16.msra.mxu0 %v1270
      %1307 = vmatprep.subr.bf16.mxu0 0
      %1308 = vmatpush1.bf16.msra.mxu0 0
      %1309 = vmatprep.subr.bf16.mxu0 0
      %1310 = vmatpush1.bf16.msra.mxu0 0
      %1311 = vmatprep.subr.bf16.mxu0 0
      %1312 = vmatpush1.bf16.msra.mxu0 0
      %1313 = vmatprep.subr.bf16.mxu0 0
      %1314 = vmatpush1.bf16.msra.mxu0 0
      %1315 = vmatprep.subr.bf16.mxu0 0
      %1316 = vmatpush1.bf16.msra.mxu0 0
      %1317 = vmatprep.subr.bf16.mxu0 0
      %1318 = vmatpush1.bf16.msra.mxu0 0
      %1319 = vmatprep.subr.bf16.mxu0 0
      %1320 = vmatpush1.bf16.msra.mxu0 0
      %1321 = vmatprep.subr.bf16.mxu0 0
      %1322 = vmatpush1.bf16.msra.mxu0 0
      %1323 = vmatprep.subr.bf16.mxu0 0
      %1324 = vmatpush1.bf16.msra.mxu0 0
      %1325 = vmatprep.subr.bf16.mxu0 0
      %1326 = vmatpush1.bf16.msra.mxu0 0
      %1327 = vmatprep.subr.bf16.mxu0 0
      %1328 = vmatpush1.bf16.msra.mxu0 0
      %1329 = vmatprep.subr.bf16.mxu0 0
      %1330 = vmatpush1.bf16.msra.mxu0 0
      %1331 = vmatprep.mubr.bf16.mxu0 0
      %1332 = vmatmul.mubr.bf16.gmra.mrb[0].mxu0 %v1276
      %v1333 = vpop.f32.mrb[0].mxu0
      %v1334 = vadd.f32 %v1189, %v1333
      %v1335 = vpop.f32.mrb[0].mxu0
      %v1336 = vpop.f32.mrb[0].mxu0
      %v1337 = vadd.f32 %v1192, %v1336
      %v1338 = vpop.f32.mrb[0].mxu0
      %1339 = vmatprep.mubr.bf16.mxu0 0
      %1340 = vmatmul.mubr.bf16.gmra.mrb[0].mxu0 %v1279
      %v1341 = vpop.f32.mrb[0].mxu0
      %v1342 = vadd.f32 %v1197, %v1341
      %v1343 = vpop.f32.mrb[0].mxu0
      %v1344 = vpop.f32.mrb[0].mxu0
      %v1345 = vadd.f32 %v1200, %v1344
      %v1346 = vpop.f32.mrb[0].mxu0
      %1347 = vmatprep.mubr.bf16.mxu0 0
      %1348 = vmatmul.mubr.bf16.gmra.mrb[0].mxu0 %v1282
      %v1349 = vpop.f32.mrb[0].mxu0
      %v1350 = vadd.f32 %v1205, %v1349
      %v1351 = vpop.f32.mrb[0].mxu0
      %v1352 = vpop.f32.mrb[0].mxu0
      %v1353 = vadd.f32 %v1208, %v1352
      %v1354 = vpop.f32.mrb[0].mxu0
      %1355 = vmatprep.mubr.bf16.mxu0 0
      %1356 = vmatmul.mubr.bf16.gmra.mrb[0].mxu0 %v1285
      %v1357 = vpop.f32.mrb[0].mxu0
      %v1358 = vadd.f32 %v1213, %v1357
      %v1359 = vpop.f32.mrb[0].mxu0
      %v1360 = vpop.f32.mrb[0].mxu0
      %v1361 = vadd.f32 %v1216, %v1360
      %v1362 = vpop.f32.mrb[0].mxu0
      %1363 = vmatprep.mubr.bf16.mxu0 0
      %1364 = vmatmul.mubr.bf16.gmra.mrb[0].mxu0 %v1288
      %v1365 = vpop.f32.mrb[0].mxu0
      %v1366 = vadd.f32 %v1221, %v1365
      %v1367 = vpop.f32.mrb[0].mxu0
      %v1368 = vpop.f32.mrb[0].mxu0
      %v1369 = vadd.f32 %v1224, %v1368
      %v1370 = vpop.f32.mrb[0].mxu0
      %1371 = vmatprep.mubr.bf16.mxu0 0
      %1372 = vmatmul.mubr.bf16.gmra.mrb[0].mxu0 %v1291
      %v1373 = vpop.f32.mrb[0].mxu0
      %v1374 = vadd.f32 %v1229, %v1373
      %v1375 = vpop.f32.mrb[0].mxu0
      %v1376 = vpop.f32.mrb[0].mxu0
      %v1377 = vadd.f32 %v1232, %v1376
      %v1378 = vpop.f32.mrb[0].mxu0
      %1379 = vmatprep.mubr.bf16.mxu0 0
      %1380 = vmatmul.mubr.bf16.gmra.mrb[0].mxu0 %v1294
      %v1381 = vpop.f32.mrb[0].mxu0
      %v1382 = vadd.f32 %v1237, %v1381
      %v1383 = vpop.f32.mrb[0].mxu0
      %v1384 = vpop.f32.mrb[0].mxu0
      %v1385 = vadd.f32 %v1240, %v1384
      %v1386 = vpop.f32.mrb[0].mxu0
      %1387 = vmatprep.mubr.bf16.mxu0 0
      %1388 = vmatmul.mubr.bf16.gmra.mrb[0].mxu0 %v1297
      %v1389 = vpop.f32.mrb[0].mxu0
      %v1390 = vadd.f32 %v1245, %v1389
      %v1391 = vpop.f32.mrb[0].mxu0
      %v1392 = vpop.f32.mrb[0].mxu0
      %v1393 = vadd.f32 %v1248, %v1392
      %v1394 = vpop.f32.mrb[0].mxu0
      %1395 = vdwg.mxu0
      %s1396 = scalar_lea.vmem [#allocation2], 16
      %v1397 = vld [vmem:[%s1396] sm:$0xff]
      %v1398 = vld [vmem:[%s1396 + $0x8] sm:$0xff]
      %v1399 = vld [vmem:[%s1396 + $0x10] sm:$0xff]
      %v1400 = vld [vmem:[%s1396 + $0x18] sm:$0xff]
      %v1401 = vld [vmem:[%s1396 + $0x20] sm:$0xff]
      %v1402 = vld [vmem:[%s1396 + $0x28] sm:$0xff]
      %v1403 = vld [vmem:[%s1396 + $0x30] sm:$0xff]
      %v1404 = vld [vmem:[%s1396 + $0x38] sm:$0xff]
      %s1405 = scalar_lea.vmem %s4, 64
      %v1406 = vld [vmem:[%s1405] sm:$0xf]
      %v1407 = vld [vmem:[%s1405 + $0x4] sm:$0xf]
      %v1408 = vld [vmem:[%s1405 + $0x8] sm:$0xf]
      %v1409 = vld [vmem:[%s1405 + $0xc] sm:$0xf]
      %v1410 = vld [vmem:[%s1405 + $0x10] sm:$0xf]
      %v1411 = vld [vmem:[%s1405 + $0x14] sm:$0xf]
      %v1412 = vld [vmem:[%s1405 + $0x18] sm:$0xf]
      %v1413 = vld [vmem:[%s1405 + $0x1c] sm:$0xf]
      %v1422 = vunpack.c.l.b16 %v1406
      %v1423 = vunpack.c.l.b16 %v1407
      %v1424 = vunpack.c.l.b16 %v1408
      %v1425 = vunpack.c.l.b16 %v1409
      %v1426 = vunpack.c.l.b16 %v1410
      %v1427 = vunpack.c.l.b16 %v1411
      %v1428 = vunpack.c.l.b16 %v1412
      %v1429 = vunpack.c.l.b16 %v1413
      %v1430 = vpack.c.b16 %v1423, %v1422
      %v1431 = vpack.c.b16 %v1425, %v1424
      %v1432 = vpack.c.b16 %v1427, %v1426
      %v1433 = vpack.c.b16 %v1429, %v1428
      %v1439 = vsel %vm1052, %v1397, 0
      %v1442 = vsel %vm1052, %v1398, 0
      %v1445 = vsel %vm1052, %v1399, 0
      %v1448 = vsel %vm1052, %v1400, 0
      %v1451 = vsel %vm1052, %v1401, 0
      %v1454 = vsel %vm1052, %v1402, 0
      %v1457 = vsel %vm1052, %v1403, 0
      %v1460 = vsel %vm1052, %v1404, 0
      %1462 = vmatprep.subr.bf16.mxu0 0
      %1463 = vmatpush1.bf16.msra.mxu0 %v1430
      %1464 = vmatprep.subr.bf16.mxu0 0
      %1465 = vmatpush1.bf16.msra.mxu0 %v1431
      %1466 = vmatprep.subr.bf16.mxu0 0
      %1467 = vmatpush1.bf16.msra.mxu0 %v1432
      %1468 = vmatprep.subr.bf16.mxu0 0
      %1469 = vmatpush1.bf16.msra.mxu0 %v1433
      %1470 = vmatprep.subr.bf16.mxu0 0
      %1471 = vmatpush1.bf16.msra.mxu0 0
      %1472 = vmatprep.subr.bf16.mxu0 0
      %1473 = vmatpush1.bf16.msra.mxu0 0
      %1474 = vmatprep.subr.bf16.mxu0 0
      %1475 = vmatpush1.bf16.msra.mxu0 0
      %1476 = vmatprep.subr.bf16.mxu0 0
      %1477 = vmatpush1.bf16.msra.mxu0 0
      %1478 = vmatprep.subr.bf16.mxu0 0
      %1479 = vmatpush1.bf16.msra.mxu0 0
      %1480 = vmatprep.subr.bf16.mxu0 0
      %1481 = vmatpush1.bf16.msra.mxu0 0
      %1482 = vmatprep.subr.bf16.mxu0 0
      %1483 = vmatpush1.bf16.msra.mxu0 0
      %1484 = vmatprep.subr.bf16.mxu0 0
      %1485 = vmatpush1.bf16.msra.mxu0 0
      %1486 = vmatprep.subr.bf16.mxu0 0
      %1487 = vmatpush1.bf16.msra.mxu0 0
      %1488 = vmatprep.subr.bf16.mxu0 0
      %1489 = vmatpush1.bf16.msra.mxu0 0
      %1490 = vmatprep.subr.bf16.mxu0 0
      %1491 = vmatpush1.bf16.msra.mxu0 0
      %1492 = vmatprep.subr.bf16.mxu0 0
      %1493 = vmatpush1.bf16.msra.mxu0 0
      %1494 = vmatprep.mubr.bf16.mxu0 0
      %1495 = vmatmul.mubr.bf16.gmra.mrb[0].mxu0 %v1439
      %v1496 = vpop.f32.mrb[0].mxu0
      %v1497 = vadd.f32 0.0, %v1496
      %v1498 = vpop.f32.mrb[0].mxu0
      %v1499 = vpop.f32.mrb[0].mxu0
      %v1500 = vadd.f32 0.0, %v1499
      %v1501 = vpop.f32.mrb[0].mxu0
      %1502 = vmatprep.mubr.bf16.mxu0 0
      %1503 = vmatmul.mubr.bf16.gmra.mrb[0].mxu0 %v1442
      %v1504 = vpop.f32.mrb[0].mxu0
      %v1505 = vadd.f32 0.0, %v1504
      %v1506 = vpop.f32.mrb[0].mxu0
      %v1507 = vpop.f32.mrb[0].mxu0
      %v1508 = vadd.f32 0.0, %v1507
      %v1509 = vpop.f32.mrb[0].mxu0
      %1510 = vmatprep.mubr.bf16.mxu0 0
      %1511 = vmatmul.mubr.bf16.gmra.mrb[0].mxu0 %v1445
      %v1512 = vpop.f32.mrb[0].mxu0
      %v1513 = vadd.f32 0.0, %v1512
      %v1514 = vpop.f32.mrb[0].mxu0
      %v1515 = vpop.f32.mrb[0].mxu0
      %v1516 = vadd.f32 0.0, %v1515
      %v1517 = vpop.f32.mrb[0].mxu0
      %1518 = vmatprep.mubr.bf16.mxu0 0
      %1519 = vmatmul.mubr.bf16.gmra.mrb[0].mxu0 %v1448
      %v1520 = vpop.f32.mrb[0].mxu0
      %v1521 = vadd.f32 0.0, %v1520
      %v1522 = vpop.f32.mrb[0].mxu0
      %v1523 = vpop.f32.mrb[0].mxu0
      %v1524 = vadd.f32 0.0, %v1523
      %v1525 = vpop.f32.mrb[0].mxu0
      %1526 = vmatprep.mubr.bf16.mxu0 0
      %1527 = vmatmul.mubr.bf16.gmra.mrb[0].mxu0 %v1451
      %v1528 = vpop.f32.mrb[0].mxu0
      %v1529 = vadd.f32 0.0, %v1528
      %v1530 = vpop.f32.mrb[0].mxu0
      %v1531 = vpop.f32.mrb[0].mxu0
      %v1532 = vadd.f32 0.0, %v1531
      %v1533 = vpop.f32.mrb[0].mxu0
      %1534 = vmatprep.mubr.bf16.mxu0 0
      %1535 = vmatmul.mubr.bf16.gmra.mrb[0].mxu0 %v1454
      %v1536 = vpop.f32.mrb[0].mxu0
      %v1537 = vadd.f32 0.0, %v1536
      %v1538 = vpop.f32.mrb[0].mxu0
      %v1539 = vpop.f32.mrb[0].mxu0
      %v1540 = vadd.f32 0.0, %v1539
      %v1541 = vpop.f32.mrb[0].mxu0
      %1542 = vmatprep.mubr.bf16.mxu0 0
      %1543 = vmatmul.mubr.bf16.gmra.mrb[0].mxu0 %v1457
      %v1544 = vpop.f32.mrb[0].mxu0
      %v1545 = vadd.f32 0.0, %v1544
      %v1546 = vpop.f32.mrb[0].mxu0
      %v1547 = vpop.f32.mrb[0].mxu0
      %v1548 = vadd.f32 0.0, %v1547
      %v1549 = vpop.f32.mrb[0].mxu0
      %1550 = vmatprep.mubr.bf16.mxu0 0
      %1551 = vmatmul.mubr.bf16.gmra.mrb[0].mxu0 %v1460
      %v1552 = vpop.f32.mrb[0].mxu0
      %v1553 = vadd.f32 0.0, %v1552
      %v1554 = vpop.f32.mrb[0].mxu0
      %v1555 = vpop.f32.mrb[0].mxu0
      %v1556 = vadd.f32 0.0, %v1555
      %v1557 = vpop.f32.mrb[0].mxu0
      %1558 = vdwg.mxu0
      %v1559 = vadd.f32 %v1334, %v1497
      %v1560 = vadd.f32 %v1337, %v1500
      %v1561 = vadd.f32 %v1342, %v1505
      %v1562 = vadd.f32 %v1345, %v1508
      %v1563 = vadd.f32 %v1350, %v1513
      %v1564 = vadd.f32 %v1353, %v1516
      %v1565 = vadd.f32 %v1358, %v1521
      %v1566 = vadd.f32 %v1361, %v1524
      %v1567 = vadd.f32 %v1366, %v1529
      %v1568 = vadd.f32 %v1369, %v1532
      %v1569 = vadd.f32 %v1374, %v1537
      %v1570 = vadd.f32 %v1377, %v1540
      %v1571 = vadd.f32 %v1382, %v1545
      %v1572 = vadd.f32 %v1385, %v1548
      %v1573 = vadd.f32 %v1390, %v1553
      %v1574 = vadd.f32 %v1393, %v1556
      %v1575 = vld [vmem:[%s5] sm:$0x1]
      %v1577 = vlaneseq
      %v1578 = vshrl.u32 %v1577, 7
      %v1579 = vsub.s32 0, %v1578
      %v1580 = vrot.slane %v1575, %v1579
      %v1582 = vadd.f32 %v1559, %v1580
      %v1583 = vadd.f32 %v1560, %v1580
      %v1584 = vadd.f32 %v1561, %v1580
      %v1585 = vadd.f32 %v1562, %v1580
      %v1586 = vadd.f32 %v1563, %v1580
      %v1587 = vadd.f32 %v1564, %v1580
      %v1588 = vadd.f32 %v1565, %v1580
      %v1589 = vadd.f32 %v1566, %v1580
      %v1590 = vadd.f32 %v1567, %v1580
      %v1591 = vadd.f32 %v1568, %v1580
      %v1592 = vadd.f32 %v1569, %v1580
      %v1593 = vadd.f32 %v1570, %v1580
      %v1594 = vadd.f32 %v1571, %v1580
      %v1595 = vadd.f32 %v1572, %v1580
      %v1596 = vadd.f32 %v1573, %v1580
      %v1597 = vadd.f32 %v1574, %v1580
      %v1598 = vmax.f32 %v1582, 0.0
      %v1599 = vmax.f32 %v1583, 0.0
      %v1600 = vmax.f32 %v1584, 0.0
      %v1601 = vmax.f32 %v1585, 0.0
      %v1602 = vmax.f32 %v1586, 0.0
      %v1603 = vmax.f32 %v1587, 0.0
      %v1604 = vmax.f32 %v1588, 0.0
      %v1605 = vmax.f32 %v1589, 0.0
      %v1606 = vmax.f32 %v1590, 0.0
      %v1607 = vmax.f32 %v1591, 0.0
      %v1608 = vmax.f32 %v1592, 0.0
      %v1609 = vmax.f32 %v1593, 0.0
      %v1610 = vmax.f32 %v1594, 0.0
      %v1611 = vmax.f32 %v1595, 0.0
      %v1612 = vmax.f32 %v1596, 0.0
      %v1613 = vmax.f32 %v1597, 0.0
      %v1614 = vpack.c.bf16 %v1599, %v1598
      %v1615 = vpack.c.bf16 %v1601, %v1600
      %v1616 = vpack.c.bf16 %v1603, %v1602
      %v1617 = vpack.c.bf16 %v1605, %v1604
      %v1618 = vpack.c.bf16 %v1607, %v1606
      %v1619 = vpack.c.bf16 %v1609, %v1608
      %v1620 = vpack.c.bf16 %v1611, %v1610
      %v1621 = vpack.c.bf16 %v1613, %v1612
      %v1630 = vunpack.c.l.b16 %v1614
      %v1631 = vunpack.c.h.b16 %v1614
      %v1632 = vunpack.c.l.b16 %v1615
      %v1633 = vunpack.c.h.b16 %v1615
      %v1634 = vunpack.c.l.b16 %v1616
      %v1635 = vunpack.c.h.b16 %v1616
      %v1636 = vunpack.c.l.b16 %v1617
      %v1637 = vunpack.c.h.b16 %v1617
      %v1638 = vunpack.c.l.b16 %v1618
      %v1639 = vunpack.c.h.b16 %v1618
      %v1640 = vunpack.c.l.b16 %v1619
      %v1641 = vunpack.c.h.b16 %v1619
      %v1642 = vunpack.c.l.b16 %v1620
      %v1643 = vunpack.c.h.b16 %v1620
      %v1644 = vunpack.c.l.b16 %v1621
      %v1645 = vunpack.c.h.b16 %v1621
      %v1646 = vpack.c.b16 %v1630, %v1630
      %v1647 = vpack.c.b16 %v1631, %v1631
      %v1648 = vpack.c.b16 %v1632, %v1632
      %v1649 = vpack.c.b16 %v1633, %v1633
      %v1650 = vpack.c.b16 %v1634, %v1634
      %v1651 = vpack.c.b16 %v1635, %v1635
      %v1652 = vpack.c.b16 %v1636, %v1636
      %v1653 = vpack.c.b16 %v1637, %v1637
      %v1654 = vpack.c.b16 %v1638, %v1638
      %v1655 = vpack.c.b16 %v1639, %v1639
      %v1656 = vpack.c.b16 %v1640, %v1640
      %v1657 = vpack.c.b16 %v1641, %v1641
      %v1658 = vpack.c.b16 %v1642, %v1642
      %v1659 = vpack.c.b16 %v1643, %v1643
      %v1660 = vpack.c.b16 %v1644, %v1644
      %v1661 = vpack.c.b16 %v1645, %v1645
      %vm1678 = vcmask 519168
      %1679 = vst.msk [vmem:[%s251] sm:$0xf] %vm1678, %v1646
      %1680 = vst.msk [vmem:[%s251 + $0x4] sm:$0xf] %vm1678, %v1647
      %1681 = vst.msk [vmem:[%s251 + $0x8] sm:$0xf] %vm1678, %v1648
      %1682 = vst.msk [vmem:[%s251 + $0xc] sm:$0xf] %vm1678, %v1649
      %1683 = vst.msk [vmem:[%s251 + $0x10] sm:$0xf] %vm1678, %v1650
      %1684 = vst.msk [vmem:[%s251 + $0x14] sm:$0xf] %vm1678, %v1651
      %1685 = vst.msk [vmem:[%s251 + $0x18] sm:$0xf] %vm1678, %v1652
      %1686 = vst.msk [vmem:[%s251 + $0x1c] sm:$0xf] %vm1678, %v1653
      %1687 = vst.msk [vmem:[%s251 + $0x20] sm:$0xf] %vm1678, %v1654
      %1688 = vst.msk [vmem:[%s251 + $0x24] sm:$0xf] %vm1678, %v1655
      %1689 = vst.msk [vmem:[%s251 + $0x28] sm:$0xf] %vm1678, %v1656
      %1690 = vst.msk [vmem:[%s251 + $0x2c] sm:$0xf] %vm1678, %v1657
      %1691 = vst.msk [vmem:[%s251 + $0x30] sm:$0xf] %vm1678, %v1658
      %1692 = vst.msk [vmem:[%s251 + $0x34] sm:$0xf] %vm1678, %v1659
      %1693 = vst.msk [vmem:[%s251 + $0x38] sm:$0xf] %vm1678, %v1660
      %1694 = vst.msk [vmem:[%s251 + $0x3c] sm:$0xf] %vm1678, %v1661
      %p1695 = scmp.lt.s32.totalorder %s17, 1
      %s1696 = scalar_select %p1695, %s17, 1
      %s1697 = smul.addr %s1696, 16
      %s1698 = smul.addr %s1697, 4
      %s1699 = scalar_lea.vmem %s6, %s1698
      // Predicated region
      $region45: #{_lambda_.11} parent=43 // pred_check
        %p1700 = pneg %p166
      $region46: #{_lambda_.11} parent=43 // pred_check_branch
        %1702 = sbr.rel (%p1700) target = $region48
      $region47: #{_lambda_.11} parent=43 // pred_region
        _
      $region48: #{_lambda_.11} parent=43 // pred_fallthru
        _
    $region44: #{_lambda_.11} parent=5 // pred_fallthru
      _
    %p1703 = scmp.le.s32.totalorder 2, %s12
    // Predicated region
    $region49: #{_lambda_.11} parent=5 // pred_check
      %p1704 = pneg %p1703
    $region50: #{_lambda_.11} parent=5 // pred_check_branch
      %1706 = sbr.rel (%p1704) target = $region52
    $region51: #{_lambda_.11} parent=5 // pred_region
      %s1707 = ssub.s32 %s12, 2
      // Predicated region
      $region53: #{_lambda_.11} parent=51 // pred_check
        %p1708 = pneg %p172
      $region54: #{_lambda_.11} parent=51 // pred_check_branch
        %1710 = sbr.rel (%p1708) target = $region56
      $region55: #{_lambda_.11} parent=51 // pred_region
        %p1711 = scmp.lt.s32.totalorder %s18, 1
        %s1712 = scalar_select %p1711, %s18, 1
        %s1713 = smul.addr %s1712, 16
        %s1714 = smul.addr %s1713, 4
        %s1715 = scalar_lea.vmem %s6, %s1714
      $region56: #{_lambda_.11} parent=51 // pred_fallthru
        _
    $region52: #{_lambda_.11} parent=5 // pred_fallthru
      _
  $region6: #{_lambda_.11} parent=0 // loop_footer
    %s16 = sadd.s32 1, %s12
  $region7: #{_lambda_.11} parent=0 // loop_footer_branch
    %11 = sbr.rel target = $region3
  $region8: #{_lambda_.11} parent=0 // loop_exit
    _

// kernel: _lambda_.15
$region0: #{_lambda_.15}
  #allocation0 [shape = 'u32[]', space=smem, size = 0x4, offset = 0x4, fixed_abs, tag = 'smem constant byte address 0x4 - core index']
  #allocation1 [shape = 'u32[144,128]{1,0:T(1,128)}', space=vmem, size = 0x12000, scoped, tag = 'internal scratch']
  #allocation2 [shape = 'bf16[10,16,128]{2,1,0:T(16,128)(2,1)}', space=vmem, size = 0xa000, scoped, tag = 'scratch operand']
  %s0 = inlined_call_operand.vmem [shape: bf16[2,8,16,64], index: 0, kind: input, shape index: {}]
  %s1 = inlined_call_operand.vmem [shape: bf16[1,64,128], index: 1, kind: input, shape index: {}]
  %s2 = inlined_call_operand.vmem [shape: f32[1,1,128], index: 2, kind: input, shape index: {}]
  %s3 = inlined_call_operand.vmem [shape: f32[1,16,16], index: 3, kind: input, shape index: {}]
  %s4 = inlined_call_operand.vmem [shape: bf16[3,128,128], index: 4, kind: input, shape index: {}]
  %s5 = inlined_call_operand.vmem [shape: f32[1,128], index: 5, kind: input, shape index: {}]
  %s6 = inlined_call_operand.vmem [shape: bf16[2,4,16,128], index: 6, kind: output, shape index: {}]
  %s7 = sld [smem:[#allocation0]]
  $region57: #{_lambda_.15} parent=0
    _
  %s9 = ssub.s32 1, %s7
  %s10 = scalar_select 0, %s9, %s7
  loop: start=0, step=1, limit=4
  $region2: #{_lambda_.15} parent=0 // loop_pre_header
    _
  $region3: #{_lambda_.15} parent=0 // loop_header
    %s12 = sphi 0, %s16
    %p13 = scmp.ge.s32.totalorder %s12, 4
    %s22 = sphi 0, %s24
    %s25 = sphi 0, %s22
    %s26 = sphi 0, %s25
    %s42 = sphi 0, %s26
    %s46 = sphi 0, %s46
    %s48 = sphi 0, %s46
    %s49 = sphi 0, %s48
    %s63 = sphi 0, %s49
    %s67 = sphi 0, %s67
    %s69 = sphi 0, %s67
    %s70 = sphi 0, %s69
    %s84 = sphi 0, %s70
    %s88 = sphi 0, %s88
    %s90 = sphi 0, %s88
    %s91 = sphi 0, %s90
    %s105 = sphi 0, %s91
    %s109 = sphi 0, %s109
    %s111 = sphi 0, %s109
    %s112 = sphi 0, %s111
    %s126 = sphi 0, %s112
    %s130 = sphi 0, %s130
    %s132 = sphi 0, %s130
    %s133 = sphi 0, %s132
    %s147 = sphi 0, %s133
    %s153 = sphi 0, %s155
    %s156 = sphi 0, %s153
    %s157 = sphi 0, %s156
    %s173 = sphi 0, %s157
  $region4: #{_lambda_.15} parent=0 // loop_header_branch
    %15 = sbr.rel (%p13) target = $region8
  $region5: #{_lambda_.15} parent=0 // loop_body
    %s17 = ssub.s32 %s12, 1
    %s18 = ssub.s32 %s12, 2
    %s19 = sadd.s32 %s12, 1
    %s20 = ssub.s32 %s12, %s19
    %p21 = scmp.eq.s32.totalorder %s20, 0
    %s23 = sadd.s32 %s22, 1
    %s24 = scalar_select %p21, %s22, %s23
    %p27 = pneg %p21
    %p28 = scmp.eq.s32.totalorder %s12, 1
    %p29 = por %p27, %p28
    %p30 = scmp.ne.s32.totalorder %s22, %s25
    %p31 = scmp.eq.s32.totalorder %s12, 0
    %p32 = por %p30, %p31
    %p33 = scmp.ne.s32.totalorder %s22, %s25
    %p34 = scmp.eq.s32.totalorder %s17, 1
    %p35 = por %p33, %p34
    %p36 = scmp.ne.s32.totalorder %s25, %s26
    %p37 = scmp.eq.s32.totalorder %s17, 0
    %p38 = por %p36, %p37
    %p39 = scmp.ne.s32.totalorder %s25, %s26
    %p40 = scmp.eq.s32.totalorder %s18, 1
    %p41 = por %p39, %p40
    %p43 = scmp.ne.s32.totalorder %s26, %s42
    %p44 = scmp.eq.s32.totalorder %s18, 0
    %p45 = por %p43, %p44
    %s47 = sadd.s32 %s46, 1
    %p50 = scmp.eq.s32.totalorder %s12, 1
    %p51 = scmp.ne.s32.totalorder %s46, %s48
    %p52 = scmp.eq.s32.totalorder %s12, 0
    %p53 = por %p51, %p52
    %p54 = scmp.ne.s32.totalorder %s46, %s48
    %p55 = scmp.eq.s32.totalorder %s17, 1
    %p56 = por %p54, %p55
    %p57 = scmp.ne.s32.totalorder %s48, %s49
    %p58 = scmp.eq.s32.totalorder %s17, 0
    %p59 = por %p57, %p58
    %p60 = scmp.ne.s32.totalorder %s48, %s49
    %p61 = scmp.eq.s32.totalorder %s18, 1
    %p62 = por %p60, %p61
    %p64 = scmp.ne.s32.totalorder %s49, %s63
    %p65 = scmp.eq.s32.totalorder %s18, 0
    %p66 = por %p64, %p65
    %s68 = sadd.s32 %s67, 1
    %p71 = scmp.eq.s32.totalorder %s12, 1
    %p72 = scmp.ne.s32.totalorder %s67, %s69
    %p73 = scmp.eq.s32.totalorder %s12, 0
    %p74 = por %p72, %p73
    %p75 = scmp.ne.s32.totalorder %s67, %s69
    %p76 = scmp.eq.s32.totalorder %s17, 1
    %p77 = por %p75, %p76
    %p78 = scmp.ne.s32.totalorder %s69, %s70
    %p79 = scmp.eq.s32.totalorder %s17, 0
    %p80 = por %p78, %p79
    %p81 = scmp.ne.s32.totalorder %s69, %s70
    %p82 = scmp.eq.s32.totalorder %s18, 1
    %p83 = por %p81, %p82
    %p85 = scmp.ne.s32.totalorder %s70, %s84
    %p86 = scmp.eq.s32.totalorder %s18, 0
    %p87 = por %p85, %p86
    %s89 = sadd.s32 %s88, 1
    %p92 = scmp.eq.s32.totalorder %s12, 1
    %p93 = scmp.ne.s32.totalorder %s88, %s90
    %p94 = scmp.eq.s32.totalorder %s12, 0
    %p95 = por %p93, %p94
    %p96 = scmp.ne.s32.totalorder %s88, %s90
    %p97 = scmp.eq.s32.totalorder %s17, 1
    %p98 = por %p96, %p97
    %p99 = scmp.ne.s32.totalorder %s90, %s91
    %p100 = scmp.eq.s32.totalorder %s17, 0
    %p101 = por %p99, %p100
    %p102 = scmp.ne.s32.totalorder %s90, %s91
    %p103 = scmp.eq.s32.totalorder %s18, 1
    %p104 = por %p102, %p103
    %p106 = scmp.ne.s32.totalorder %s91, %s105
    %p107 = scmp.eq.s32.totalorder %s18, 0
    %p108 = por %p106, %p107
    %s110 = sadd.s32 %s109, 1
    %p113 = scmp.eq.s32.totalorder %s12, 1
    %p114 = scmp.ne.s32.totalorder %s109, %s111
    %p115 = scmp.eq.s32.totalorder %s12, 0
    %p116 = por %p114, %p115
    %p117 = scmp.ne.s32.totalorder %s109, %s111
    %p118 = scmp.eq.s32.totalorder %s17, 1
    %p119 = por %p117, %p118
    %p120 = scmp.ne.s32.totalorder %s111, %s112
    %p121 = scmp.eq.s32.totalorder %s17, 0
    %p122 = por %p120, %p121
    %p123 = scmp.ne.s32.totalorder %s111, %s112
    %p124 = scmp.eq.s32.totalorder %s18, 1
    %p125 = por %p123, %p124
    %p127 = scmp.ne.s32.totalorder %s112, %s126
    %p128 = scmp.eq.s32.totalorder %s18, 0
    %p129 = por %p127, %p128
    %s131 = sadd.s32 %s130, 1
    %p134 = scmp.eq.s32.totalorder %s12, 1
    %p135 = scmp.ne.s32.totalorder %s130, %s132
    %p136 = scmp.eq.s32.totalorder %s12, 0
    %p137 = por %p135, %p136
    %p138 = scmp.ne.s32.totalorder %s130, %s132
    %p139 = scmp.eq.s32.totalorder %s17, 1
    %p140 = por %p138, %p139
    %p141 = scmp.ne.s32.totalorder %s132, %s133
    %p142 = scmp.eq.s32.totalorder %s17, 0
    %p143 = por %p141, %p142
    %p144 = scmp.ne.s32.totalorder %s132, %s133
    %p145 = scmp.eq.s32.totalorder %s18, 1
    %p146 = por %p144, %p145
    %p148 = scmp.ne.s32.totalorder %s133, %s147
    %p149 = scmp.eq.s32.totalorder %s18, 0
    %p150 = por %p148, %p149
    %s151 = ssub.s32 %s12, %s19
    %p152 = scmp.eq.s32.totalorder %s151, 0
    %s154 = sadd.s32 %s153, 1
    %s155 = scalar_select %p152, %s153, %s154
    %p158 = pneg %p152
    %p159 = scmp.eq.s32.totalorder %s12, 1
    %p160 = por %p158, %p159
    %p161 = scmp.ne.s32.totalorder %s153, %s156
    %p162 = scmp.eq.s32.totalorder %s12, 0
    %p163 = por %p161, %p162
    %p164 = scmp.ne.s32.totalorder %s153, %s156
    %p165 = scmp.eq.s32.totalorder %s17, 1
    %p166 = por %p164, %p165
    %p167 = scmp.ne.s32.totalorder %s156, %s157
    %p168 = scmp.eq.s32.totalorder %s17, 0
    %p169 = por %p167, %p168
    %p170 = scmp.ne.s32.totalorder %s156, %s157
    %p171 = scmp.eq.s32.totalorder %s18, 1
    %p172 = por %p170, %p171
    %p174 = scmp.ne.s32.totalorder %s157, %s173
    %p175 = scmp.eq.s32.totalorder %s18, 0
    %p176 = por %p174, %p175
    %p177 = scmp.le.s32.totalorder 1, %s12
    %p178 = scmp.lt.s32.totalorder %s12, 3
    %p179 = pnand %p177, %p178
    %p180 = pneg %p179
    // Predicated region
    $region9: #{_lambda_.15} parent=5 // pred_check
      _
    $region10: #{_lambda_.15} parent=5 // pred_check_branch
      %182 = sbr.rel (%p179) target = $region12
    $region11: #{_lambda_.15} parent=5 // pred_region
      %s183 = ssub.s32 %s12, 1
      // Predicated region
      $region13: #{_lambda_.15} parent=11 // pred_check
        %p184 = pneg %p59
      $region14: #{_lambda_.15} parent=11 // pred_check_branch
        %186 = sbr.rel (%p184) target = $region16
      $region15: #{_lambda_.15} parent=11 // pred_region
        _
      $region16: #{_lambda_.15} parent=11 // pred_fallthru
        _
      // Predicated region
      $region17: #{_lambda_.15} parent=11 // pred_check
        %p187 = pneg %p80
      $region18: #{_lambda_.15} parent=11 // pred_check_branch
        %189 = sbr.rel (%p187) target = $region20
      $region19: #{_lambda_.15} parent=11 // pred_region
        _
      $region20: #{_lambda_.15} parent=11 // pred_fallthru
        _
      // Predicated region
      $region21: #{_lambda_.15} parent=11 // pred_check
        %p190 = pneg %p101
      $region22: #{_lambda_.15} parent=11 // pred_check_branch
        %192 = sbr.rel (%p190) target = $region24
      $region23: #{_lambda_.15} parent=11 // pred_region
        _
      $region24: #{_lambda_.15} parent=11 // pred_fallthru
        _
      // Predicated region
      $region25: #{_lambda_.15} parent=11 // pred_check
        %p193 = pneg %p122
      $region26: #{_lambda_.15} parent=11 // pred_check_branch
        %195 = sbr.rel (%p193) target = $region28
      $region27: #{_lambda_.15} parent=11 // pred_region
        _
      $region28: #{_lambda_.15} parent=11 // pred_fallthru
        _
      // Predicated region
      $region29: #{_lambda_.15} parent=11 // pred_check
        %p196 = pneg %p143
      $region30: #{_lambda_.15} parent=11 // pred_check_branch
        %198 = sbr.rel (%p196) target = $region32
      $region31: #{_lambda_.15} parent=11 // pred_region
        _
      $region32: #{_lambda_.15} parent=11 // pred_fallthru
        _
    $region12: #{_lambda_.15} parent=5 // pred_fallthru
      _
    %p199 = scmp.lt.s32.totalorder %s12, 2
    // Predicated region
    $region33: #{_lambda_.15} parent=5 // pred_check
      %p200 = pneg %p199
    $region34: #{_lambda_.15} parent=5 // pred_check_branch
      %202 = sbr.rel (%p200) target = $region36
    $region35: #{_lambda_.15} parent=5 // pred_region
      // Predicated region
      $region37: #{_lambda_.15} parent=35 // pred_check
        %p203 = pneg %p32
      $region38: #{_lambda_.15} parent=35 // pred_check_branch
        %205 = sbr.rel (%p203) target = $region40
      $region39: #{_lambda_.15} parent=35 // pred_region
        %p206 = scmp.lt.s32.totalorder %s12, 1
        %s207 = scalar_select %p206, %s12, 1
        %s208 = smul.addr %s207, 16
        %s209 = smul.addr %s208, 4
        %s210 = scalar_lea.vmem %s0, %s209
      $region40: #{_lambda_.15} parent=35 // pred_fallthru
        _
    $region36: #{_lambda_.15} parent=5 // pred_fallthru
      _
    %p211 = scmp.le.s32.totalorder 1, %s12
    %p212 = scmp.lt.s32.totalorder %s12, 3
    %p213 = pnand %p211, %p212
    %p214 = pneg %p213
    // Predicated region
    $region41: #{_lambda_.15} parent=5 // pred_check
      _
    $region42: #{_lambda_.15} parent=5 // pred_check_branch
      %216 = sbr.rel (%p213) target = $region44
    $region43: #{_lambda_.15} parent=5 // pred_region
      %s217 = ssub.s32 %s12, 1
      %p218 = scmp.lt.s32.totalorder %s17, 1
      %s219 = scalar_select %p218, %s17, 1
      %s220 = smul.addr %s219, 16
      %s221 = smul.addr %s220, 4
      %s222 = scalar_lea.vmem %s0, %s221
      %p223 = pneg %p38
      %p224 = pneg %p35
      %p225 = pneg %p59
      %p226 = pneg %p56
      %p227 = pneg %p80
      %p228 = pneg %p77
      %p229 = pneg %p101
      %p230 = pneg %p98
      %p231 = pneg %p122
      %p232 = pneg %p119
      %p233 = pneg %p143
      %p234 = pneg %p140
      %p235 = pneg %p169
      %p236 = pneg %p166
      %p237 = scmp.lt.s32.totalorder %s17, 1
      %s238 = scalar_select %p237, %s17, 1
      %s239 = smul.addr %s238, 8
      %s240 = smul.addr %s239, 4
      %s241 = scalar_lea.vmem %s6, %s240
      %p242 = scmp.lt.s32.totalorder %s17, 1
      %s243 = scalar_select %p242, %s17, 1
      %s244 = smul.addr %s243, 16
      %s245 = smul.addr %s244, 4
      %s246 = scalar_lea.vmem %s0, %s245
      %p247 = scmp.lt.s32.totalorder %s17, 1
      %s248 = scalar_select %p247, %s17, 1
      %s249 = smul.addr %s248, 8
      %s250 = smul.addr %s249, 4
      %s251 = scalar_lea.vmem %s6, %s250
      %v253 = vld [vmem:[%s246] sm:$0xf]
      %v254 = vld [vmem:[%s246 + $0x4] sm:$0xf]
      %v255 = vld [vmem:[%s246 + $0x8] sm:$0xf]
      %v256 = vld [vmem:[%s246 + $0xc] sm:$0xf]
      %v257 = vld [vmem:[%s246 + $0x10] sm:$0xf]
      %v258 = vld [vmem:[%s246 + $0x14] sm:$0xf]
      %v259 = vld [vmem:[%s246 + $0x18] sm:$0xf]
      %v260 = vld [vmem:[%s246 + $0x1c] sm:$0xf]
      %v261 = vld [vmem:[%s246 + $0x20] sm:$0xf]
      %v262 = vld [vmem:[%s246 + $0x24] sm:$0xf]
      %v263 = vld [vmem:[%s246 + $0x28] sm:$0xf]
      %v264 = vld [vmem:[%s246 + $0x2c] sm:$0xf]
      %v265 = vld [vmem:[%s246 + $0x30] sm:$0xf]
      %v266 = vld [vmem:[%s246 + $0x34] sm:$0xf]
      %v267 = vld [vmem:[%s246 + $0x38] sm:$0xf]
      %v268 = vld [vmem:[%s246 + $0x3c] sm:$0xf]
      %v269 = vld [vmem:[%s1] sm:$0xf]
      %v270 = vld [vmem:[%s1 + $0x4] sm:$0xf]
      %v271 = vld [vmem:[%s1 + $0x8] sm:$0xf]
      %v272 = vld [vmem:[%s1 + $0xc] sm:$0xf]
      %v273 = vld [vmem:[%s1 + $0x10] sm:$0xf]
      %v274 = vld [vmem:[%s1 + $0x14] sm:$0xf]
      %v275 = vld [vmem:[%s1 + $0x18] sm:$0xf]
      %v276 = vld [vmem:[%s1 + $0x1c] sm:$0xf]
      %v277 = vld [vmem:[%s2] sm:$0x1]
      %v279 = vlaneseq
      %v280 = vshrl.u32 %v279, 7
      %v281 = vsub.s32 0, %v280
      %v282 = vrot.slane %v277, %v281
      %v300 = vunpack.c.l.b16 %v253
      %v301 = vunpack.c.l.b16 %v254
      %v302 = vunpack.c.l.b16 %v255
      %v303 = vunpack.c.l.b16 %v256
      %v304 = vunpack.c.l.b16 %v257
      %v305 = vunpack.c.l.b16 %v258
      %v306 = vunpack.c.l.b16 %v259
      %v307 = vunpack.c.l.b16 %v260
      %v308 = vunpack.c.l.b16 %v261
      %v309 = vunpack.c.l.b16 %v262
      %v310 = vunpack.c.l.b16 %v263
      %v311 = vunpack.c.l.b16 %v264
      %v312 = vunpack.c.l.b16 %v265
      %v313 = vunpack.c.l.b16 %v266
      %v314 = vunpack.c.l.b16 %v267
      %v315 = vunpack.c.l.b16 %v268
      %v316 = vpack.c.b16 %v301, %v300
      %v317 = vpack.c.b16 %v303, %v302
      %v318 = vpack.c.b16 %v305, %v304
      %v319 = vpack.c.b16 %v307, %v306
      %v320 = vpack.c.b16 %v309, %v308
      %v321 = vpack.c.b16 %v311, %v310
      %v322 = vpack.c.b16 %v313, %v312
      %v323 = vpack.c.b16 %v315, %v314
      %v332 = vunpack.c.l.b16 %v269
      %v333 = vunpack.c.l.b16 %v270
      %v334 = vunpack.c.l.b16 %v271
      %v335 = vunpack.c.l.b16 %v272
      %v336 = vunpack.c.l.b16 %v273
      %v337 = vunpack.c.l.b16 %v274
      %v338 = vunpack.c.l.b16 %v275
      %v339 = vunpack.c.l.b16 %v276
      %v340 = vpack.c.b16 %v333, %v332
      %v341 = vpack.c.b16 %v335, %v334
      %v342 = vpack.c.b16 %v337, %v336
      %v343 = vpack.c.b16 %v339, %v338
      %vm348 = vcmask 523264
      %v350 = vsel %vm348, %v316, 0
      %v353 = vsel %vm348, %v317, 0
      %v356 = vsel %vm348, %v318, 0
      %v359 = vsel %vm348, %v319, 0
      %v362 = vsel %vm348, %v320, 0
      %v365 = vsel %vm348, %v321, 0
      %v368 = vsel %vm348, %v322, 0
      %v371 = vsel %vm348, %v323, 0
      %373 = vmatprep.subr.bf16.mxu0 0
      %374 = vmatpush1.bf16.msra.mxu0 %v340
      %375 = vmatprep.subr.bf16.mxu0 0
      %376 = vmatpush1.bf16.msra.mxu0 %v341
      %377 = vmatprep.subr.bf16.mxu0 0
      %378 = vmatpush1.bf16.msra.mxu0 %v342
      %379 = vmatprep.subr.bf16.mxu0 0
      %380 = vmatpush1.bf16.msra.mxu0 %v343
      %381 = vmatprep.subr.bf16.mxu0 0
      %382 = vmatpush1.bf16.msra.mxu0 0
      %383 = vmatprep.subr.bf16.mxu0 0
      %384 = vmatpush1.bf16.msra.mxu0 0
      %385 = vmatprep.subr.bf16.mxu0 0
      %386 = vmatpush1.bf16.msra.mxu0 0
      %387 = vmatprep.subr.bf16.mxu0 0
      %388 = vmatpush1.bf16.msra.mxu0 0
      %389 = vmatprep.subr.bf16.mxu0 0
      %390 = vmatpush1.bf16.msra.mxu0 0
      %391 = vmatprep.subr.bf16.mxu0 0
      %392 = vmatpush1.bf16.msra.mxu0 0
      %393 = vmatprep.subr.bf16.mxu0 0
      %394 = vmatpush1.bf16.msra.mxu0 0
      %395 = vmatprep.subr.bf16.mxu0 0
      %396 = vmatpush1.bf16.msra.mxu0 0
      %397 = vmatprep.subr.bf16.mxu0 0
      %398 = vmatpush1.bf16.msra.mxu0 0
      %399 = vmatprep.subr.bf16.mxu0 0
      %400 = vmatpush1.bf16.msra.mxu0 0
      %401 = vmatprep.subr.bf16.mxu0 0
      %402 = vmatpush1.bf16.msra.mxu0 0
      %403 = vmatprep.subr.bf16.mxu0 0
      %404 = vmatpush1.bf16.msra.mxu0 0
      %405 = vmatprep.mubr.bf16.mxu0 0
      %406 = vmatmul.mubr.bf16.gmra.mrb[0].mxu0 %v350
      %v407 = vpop.f32.mrb[0].mxu0
      %v408 = vadd.f32 %v282, %v407
      %v409 = vpop.f32.mrb[0].mxu0
      %v410 = vpop.f32.mrb[0].mxu0
      %v411 = vadd.f32 %v282, %v410
      %v412 = vpop.f32.mrb[0].mxu0
      %413 = vmatprep.mubr.bf16.mxu0 0
      %414 = vmatmul.mubr.bf16.gmra.mrb[0].mxu0 %v353
      %v415 = vpop.f32.mrb[0].mxu0
      %v416 = vadd.f32 %v282, %v415
      %v417 = vpop.f32.mrb[0].mxu0
      %v418 = vpop.f32.mrb[0].mxu0
      %v419 = vadd.f32 %v282, %v418
      %v420 = vpop.f32.mrb[0].mxu0
      %421 = vmatprep.mubr.bf16.mxu0 0
      %422 = vmatmul.mubr.bf16.gmra.mrb[0].mxu0 %v356
      %v423 = vpop.f32.mrb[0].mxu0
      %v424 = vadd.f32 %v282, %v423
      %v425 = vpop.f32.mrb[0].mxu0
      %v426 = vpop.f32.mrb[0].mxu0
      %v427 = vadd.f32 %v282, %v426
      %v428 = vpop.f32.mrb[0].mxu0
      %429 = vmatprep.mubr.bf16.mxu0 0
      %430 = vmatmul.mubr.bf16.gmra.mrb[0].mxu0 %v359
      %v431 = vpop.f32.mrb[0].mxu0
      %v432 = vadd.f32 %v282, %v431
      %v433 = vpop.f32.mrb[0].mxu0
      %v434 = vpop.f32.mrb[0].mxu0
      %v435 = vadd.f32 %v282, %v434
      %v436 = vpop.f32.mrb[0].mxu0
      %437 = vmatprep.mubr.bf16.mxu0 0
      %438 = vmatmul.mubr.bf16.gmra.mrb[0].mxu0 %v362
      %v439 = vpop.f32.mrb[0].mxu0
      %v440 = vadd.f32 %v282, %v439
      %v441 = vpop.f32.mrb[0].mxu0
      %v442 = vpop.f32.mrb[0].mxu0
      %v443 = vadd.f32 %v282, %v442
      %v444 = vpop.f32.mrb[0].mxu0
      %445 = vmatprep.mubr.bf16.mxu0 0
      %446 = vmatmul.mubr.bf16.gmra.mrb[0].mxu0 %v365
      %v447 = vpop.f32.mrb[0].mxu0
      %v448 = vadd.f32 %v282, %v447
      %v449 = vpop.f32.mrb[0].mxu0
      %v450 = vpop.f32.mrb[0].mxu0
      %v451 = vadd.f32 %v282, %v450
      %v452 = vpop.f32.mrb[0].mxu0
      %453 = vmatprep.mubr.bf16.mxu0 0
      %454 = vmatmul.mubr.bf16.gmra.mrb[0].mxu0 %v368
      %v455 = vpop.f32.mrb[0].mxu0
      %v456 = vadd.f32 %v282, %v455
      %v457 = vpop.f32.mrb[0].mxu0
      %v458 = vpop.f32.mrb[0].mxu0
      %v459 = vadd.f32 %v282, %v458
      %v460 = vpop.f32.mrb[0].mxu0
      %461 = vmatprep.mubr.bf16.mxu0 0
      %462 = vmatmul.mubr.bf16.gmra.mrb[0].mxu0 %v371
      %v463 = vpop.f32.mrb[0].mxu0
      %v464 = vadd.f32 %v282, %v463
      %v465 = vpop.f32.mrb[0].mxu0
      %v466 = vpop.f32.mrb[0].mxu0
      %v467 = vadd.f32 %v282, %v466
      %v468 = vpop.f32.mrb[0].mxu0
      %469 = vdwg.mxu0
      %v470 = vld [vmem:[%s3] sm:$0xff]
      %v471 = vld [vmem:[%s3 + $0x8] sm:$0xff]
      %vm472 = vcmask 130048
      %v474 = vsel %vm472, %v470, 0
      %v477 = vsel %vm472, %v471, 0
      %479 = vmatprep.subr.mxu0 0.0
      %480 = vmatpush1.msra.mxu0 %v408
      %481 = vmatprep.subr.mxu0 0.0
      %482 = vmatpush1.msra.mxu0 %v411
      %483 = vmatprep.subr.mxu0 0.0
      %484 = vmatpush1.msra.mxu0 0.0
      %485 = vmatprep.subr.mxu0 0.0
      %486 = vmatpush1.msra.mxu0 0.0
      %487 = vmatprep.subr.mxu0 0.0
      %488 = vmatpush1.msra.mxu0 0.0
      %489 = vmatprep.subr.mxu0 0.0
      %490 = vmatpush1.msra.mxu0 0.0
      %491 = vmatprep.subr.mxu0 0.0
      %492 = vmatpush1.msra.mxu0 0.0
      %493 = vmatprep.subr.mxu0 0.0
      %494 = vmatpush1.msra.mxu0 0.0
      %495 = vmatprep.subr.mxu0 0.0
      %496 = vmatpush1.msra.mxu0 0.0
      %497 = vmatprep.subr.mxu0 0.0
      %498 = vmatpush1.msra.mxu0 0.0
      %499 = vmatprep.subr.mxu0 0.0
      %500 = vmatpush1.msra.mxu0 0.0
      %501 = vmatprep.subr.mxu0 0.0
      %502 = vmatpush1.msra.mxu0 0.0
      %503 = vmatprep.subr.mxu0 0.0
      %504 = vmatpush1.msra.mxu0 0.0
      %505 = vmatprep.subr.mxu0 0.0
      %506 = vmatpush1.msra.mxu0 0.0
      %507 = vmatprep.subr.mxu0 0.0
      %508 = vmatpush1.msra.mxu0 0.0
      %509 = vmatprep.subr.mxu0 0.0
      %510 = vmatpush1.msra.mxu0 0.0
      %511 = vmatprep.subr.mxu0 0.0
      %512 = vmatpush1.msra.mxu0 0.0
      %513 = vmatprep.subr.mxu0 0.0
      %514 = vmatpush1.msra.mxu0 0.0
      %515 = vmatprep.subr.mxu0 0.0
      %516 = vmatpush1.msra.mxu0 0.0
      %517 = vmatprep.subr.mxu0 0.0
      %518 = vmatpush1.msra.mxu0 0.0
      %519 = vmatprep.subr.mxu0 0.0
      %520 = vmatpush1.msra.mxu0 0.0
      %521 = vmatprep.subr.mxu0 0.0
      %522 = vmatpush1.msra.mxu0 0.0
      %523 = vmatprep.subr.mxu0 0.0
      %524 = vmatpush1.msra.mxu0 0.0
      %525 = vmatprep.subr.mxu0 0.0
      %526 = vmatpush1.msra.mxu0 0.0
      %527 = vmatprep.subr.mxu0 0.0
      %528 = vmatpush1.msra.mxu0 0.0
      %529 = vmatprep.subr.mxu0 0.0
      %530 = vmatpush1.msra.mxu0 0.0
      %531 = vmatprep.subr.mxu0 0.0
      %532 = vmatpush1.msra.mxu0 0.0
      %533 = vmatprep.subr.mxu0 0.0
      %534 = vmatpush1.msra.mxu0 0.0
      %535 = vmatprep.subr.mxu0 0.0
      %536 = vmatpush1.msra.mxu0 0.0
      %537 = vmatprep.subr.mxu0 0.0
      %538 = vmatpush1.msra.mxu0 0.0
      %539 = vmatprep.subr.mxu0 0.0
      %540 = vmatpush1.msra.mxu0 0.0
      %541 = vmatprep.subr.mxu0 0.0
      %542 = vmatpush1.msra.mxu0 0.0
      %543 = vmatprep.mubr.f32.mxu0 0.0
      %544 = vmatmul.mubr.f32.gmra.mrb[0].mxu0 %v474
      %v545 = vpop.f32.mrb[0].mxu0
      %v546 = vadd.f32 0.0, %v545
      %v547 = vpop.f32.mrb[0].mxu0
      %548 = vmatprep.mubr.f32.mxu0 0.0
      %549 = vmatmul.mubr.f32.gmra.mrb[0].mxu0 %v477
      %v550 = vpop.f32.mrb[0].mxu0
      %v551 = vadd.f32 0.0, %v550
      %v552 = vpop.f32.mrb[0].mxu0
      %553 = vdwg.mxu0
      %554 = vmatprep.subr.mxu0 0.0
      %555 = vmatpush1.msra.mxu0 %v416
      %556 = vmatprep.subr.mxu0 0.0
      %557 = vmatpush1.msra.mxu0 %v419
      %558 = vmatprep.subr.mxu0 0.0
      %559 = vmatpush1.msra.mxu0 0.0
      %560 = vmatprep.subr.mxu0 0.0
      %561 = vmatpush1.msra.mxu0 0.0
      %562 = vmatprep.subr.mxu0 0.0
      %563 = vmatpush1.msra.mxu0 0.0
      %564 = vmatprep.subr.mxu0 0.0
      %565 = vmatpush1.msra.mxu0 0.0
      %566 = vmatprep.subr.mxu0 0.0
      %567 = vmatpush1.msra.mxu0 0.0
      %568 = vmatprep.subr.mxu0 0.0
      %569 = vmatpush1.msra.mxu0 0.0
      %570 = vmatprep.subr.mxu0 0.0
      %571 = vmatpush1.msra.mxu0 0.0
      %572 = vmatprep.subr.mxu0 0.0
      %573 = vmatpush1.msra.mxu0 0.0
      %574 = vmatprep.subr.mxu0 0.0
      %575 = vmatpush1.msra.mxu0 0.0
      %576 = vmatprep.subr.mxu0 0.0
      %577 = vmatpush1.msra.mxu0 0.0
      %578 = vmatprep.subr.mxu0 0.0
      %579 = vmatpush1.msra.mxu0 0.0
      %580 = vmatprep.subr.mxu0 0.0
      %581 = vmatpush1.msra.mxu0 0.0
      %582 = vmatprep.subr.mxu0 0.0
      %583 = vmatpush1.msra.mxu0 0.0
      %584 = vmatprep.subr.mxu0 0.0
      %585 = vmatpush1.msra.mxu0 0.0
      %586 = vmatprep.subr.mxu0 0.0
      %587 = vmatpush1.msra.mxu0 0.0
      %588 = vmatprep.subr.mxu0 0.0
      %589 = vmatpush1.msra.mxu0 0.0
      %590 = vmatprep.subr.mxu0 0.0
      %591 = vmatpush1.msra.mxu0 0.0
      %592 = vmatprep.subr.mxu0 0.0
      %593 = vmatpush1.msra.mxu0 0.0
      %594 = vmatprep.subr.mxu0 0.0
      %595 = vmatpush1.msra.mxu0 0.0
      %596 = vmatprep.subr.mxu0 0.0
      %597 = vmatpush1.msra.mxu0 0.0
      %598 = vmatprep.subr.mxu0 0.0
      %599 = vmatpush1.msra.mxu0 0.0
      %600 = vmatprep.subr.mxu0 0.0
      %601 = vmatpush1.msra.mxu0 0.0
      %602 = vmatprep.subr.mxu0 0.0
      %603 = vmatpush1.msra.mxu0 0.0
      %604 = vmatprep.subr.mxu0 0.0
      %605 = vmatpush1.msra.mxu0 0.0
      %606 = vmatprep.subr.mxu0 0.0
      %607 = vmatpush1.msra.mxu0 0.0
      %608 = vmatprep.subr.mxu0 0.0
      %609 = vmatpush1.msra.mxu0 0.0
      %610 = vmatprep.subr.mxu0 0.0
      %611 = vmatpush1.msra.mxu0 0.0
      %612 = vmatprep.subr.mxu0 0.0
      %613 = vmatpush1.msra.mxu0 0.0
      %614 = vmatprep.subr.mxu0 0.0
      %615 = vmatpush1.msra.mxu0 0.0
      %616 = vmatprep.subr.mxu0 0.0
      %617 = vmatpush1.msra.mxu0 0.0
      %618 = vmatprep.mubr.f32.mxu0 0.0
      %619 = vmatmul.mubr.f32.gmra.mrb[0].mxu0 %v474
      %v620 = vpop.f32.mrb[0].mxu0
      %v621 = vadd.f32 0.0, %v620
      %v622 = vpop.f32.mrb[0].mxu0
      %623 = vmatprep.mubr.f32.mxu0 0.0
      %624 = vmatmul.mubr.f32.gmra.mrb[0].mxu0 %v477
      %v625 = vpop.f32.mrb[0].mxu0
      %v626 = vadd.f32 0.0, %v625
      %v627 = vpop.f32.mrb[0].mxu0
      %628 = vdwg.mxu0
      %629 = vmatprep.subr.mxu0 0.0
      %630 = vmatpush1.msra.mxu0 %v424
      %631 = vmatprep.subr.mxu0 0.0
      %632 = vmatpush1.msra.mxu0 %v427
      %633 = vmatprep.subr.mxu0 0.0
      %634 = vmatpush1.msra.mxu0 0.0
      %635 = vmatprep.subr.mxu0 0.0
      %636 = vmatpush1.msra.mxu0 0.0
      %637 = vmatprep.subr.mxu0 0.0
      %638 = vmatpush1.msra.mxu0 0.0
      %639 = vmatprep.subr.mxu0 0.0
      %640 = vmatpush1.msra.mxu0 0.0
      %641 = vmatprep.subr.mxu0 0.0
      %642 = vmatpush1.msra.mxu0 0.0
      %643 = vmatprep.subr.mxu0 0.0
      %644 = vmatpush1.msra.mxu0 0.0
      %645 = vmatprep.subr.mxu0 0.0
      %646 = vmatpush1.msra.mxu0 0.0
      %647 = vmatprep.subr.mxu0 0.0
      %648 = vmatpush1.msra.mxu0 0.0
      %649 = vmatprep.subr.mxu0 0.0
      %650 = vmatpush1.msra.mxu0 0.0
      %651 = vmatprep.subr.mxu0 0.0
      %652 = vmatpush1.msra.mxu0 0.0
      %653 = vmatprep.subr.mxu0 0.0
      %654 = vmatpush1.msra.mxu0 0.0
      %655 = vmatprep.subr.mxu0 0.0
      %656 = vmatpush1.msra.mxu0 0.0
      %657 = vmatprep.subr.mxu0 0.0
      %658 = vmatpush1.msra.mxu0 0.0
      %659 = vmatprep.subr.mxu0 0.0
      %660 = vmatpush1.msra.mxu0 0.0
      %661 = vmatprep.subr.mxu0 0.0
      %662 = vmatpush1.msra.mxu0 0.0
      %663 = vmatprep.subr.mxu0 0.0
      %664 = vmatpush1.msra.mxu0 0.0
      %665 = vmatprep.subr.mxu0 0.0
      %666 = vmatpush1.msra.mxu0 0.0
      %667 = vmatprep.subr.mxu0 0.0
      %668 = vmatpush1.msra.mxu0 0.0
      %669 = vmatprep.subr.mxu0 0.0
      %670 = vmatpush1.msra.mxu0 0.0
      %671 = vmatprep.subr.mxu0 0.0
      %672 = vmatpush1.msra.mxu0 0.0
      %673 = vmatprep.subr.mxu0 0.0
      %674 = vmatpush1.msra.mxu0 0.0
      %675 = vmatprep.subr.mxu0 0.0
      %676 = vmatpush1.msra.mxu0 0.0
      %677 = vmatprep.subr.mxu0 0.0
      %678 = vmatpush1.msra.mxu0 0.0
      %679 = vmatprep.subr.mxu0 0.0
      %680 = vmatpush1.msra.mxu0 0.0
      %681 = vmatprep.subr.mxu0 0.0
      %682 = vmatpush1.msra.mxu0 0.0
      %683 = vmatprep.subr.mxu0 0.0
      %684 = vmatpush1.msra.mxu0 0.0
      %685 = vmatprep.subr.mxu0 0.0
      %686 = vmatpush1.msra.mxu0 0.0
      %687 = vmatprep.subr.mxu0 0.0
      %688 = vmatpush1.msra.mxu0 0.0
      %689 = vmatprep.subr.mxu0 0.0
      %690 = vmatpush1.msra.mxu0 0.0
      %691 = vmatprep.subr.mxu0 0.0
      %692 = vmatpush1.msra.mxu0 0.0
      %693 = vmatprep.mubr.f32.mxu0 0.0
      %694 = vmatmul.mubr.f32.gmra.mrb[0].mxu0 %v474
      %v695 = vpop.f32.mrb[0].mxu0
      %v696 = vadd.f32 0.0, %v695
      %v697 = vpop.f32.mrb[0].mxu0
      %698 = vmatprep.mubr.f32.mxu0 0.0
      %699 = vmatmul.mubr.f32.gmra.mrb[0].mxu0 %v477
      %v700 = vpop.f32.mrb[0].mxu0
      %v701 = vadd.f32 0.0, %v700
      %v702 = vpop.f32.mrb[0].mxu0
      %703 = vdwg.mxu0
      %704 = vmatprep.subr.mxu0 0.0
      %705 = vmatpush1.msra.mxu0 %v432
      %706 = vmatprep.subr.mxu0 0.0
      %707 = vmatpush1.msra.mxu0 %v435
      %708 = vmatprep.subr.mxu0 0.0
      %709 = vmatpush1.msra.mxu0 0.0
      %710 = vmatprep.subr.mxu0 0.0
      %711 = vmatpush1.msra.mxu0 0.0
      %712 = vmatprep.subr.mxu0 0.0
      %713 = vmatpush1.msra.mxu0 0.0
      %714 = vmatprep.subr.mxu0 0.0
      %715 = vmatpush1.msra.mxu0 0.0
      %716 = vmatprep.subr.mxu0 0.0
      %717 = vmatpush1.msra.mxu0 0.0
      %718 = vmatprep.subr.mxu0 0.0
      %719 = vmatpush1.msra.mxu0 0.0
      %720 = vmatprep.subr.mxu0 0.0
      %721 = vmatpush1.msra.mxu0 0.0
      %722 = vmatprep.subr.mxu0 0.0
      %723 = vmatpush1.msra.mxu0 0.0
      %724 = vmatprep.subr.mxu0 0.0
      %725 = vmatpush1.msra.mxu0 0.0
      %726 = vmatprep.subr.mxu0 0.0
      %727 = vmatpush1.msra.mxu0 0.0
      %728 = vmatprep.subr.mxu0 0.0
      %729 = vmatpush1.msra.mxu0 0.0
      %730 = vmatprep.subr.mxu0 0.0
      %731 = vmatpush1.msra.mxu0 0.0
      %732 = vmatprep.subr.mxu0 0.0
      %733 = vmatpush1.msra.mxu0 0.0
      %734 = vmatprep.subr.mxu0 0.0
      %735 = vmatpush1.msra.mxu0 0.0
      %736 = vmatprep.subr.mxu0 0.0
      %737 = vmatpush1.msra.mxu0 0.0
      %738 = vmatprep.subr.mxu0 0.0
      %739 = vmatpush1.msra.mxu0 0.0
      %740 = vmatprep.subr.mxu0 0.0
      %741 = vmatpush1.msra.mxu0 0.0
      %742 = vmatprep.subr.mxu0 0.0
      %743 = vmatpush1.msra.mxu0 0.0
      %744 = vmatprep.subr.mxu0 0.0
      %745 = vmatpush1.msra.mxu0 0.0
      %746 = vmatprep.subr.mxu0 0.0
      %747 = vmatpush1.msra.mxu0 0.0
      %748 = vmatprep.subr.mxu0 0.0
      %749 = vmatpush1.msra.mxu0 0.0
      %750 = vmatprep.subr.mxu0 0.0
      %751 = vmatpush1.msra.mxu0 0.0
      %752 = vmatprep.subr.mxu0 0.0
      %753 = vmatpush1.msra.mxu0 0.0
      %754 = vmatprep.subr.mxu0 0.0
      %755 = vmatpush1.msra.mxu0 0.0
      %756 = vmatprep.subr.mxu0 0.0
      %757 = vmatpush1.msra.mxu0 0.0
      %758 = vmatprep.subr.mxu0 0.0
      %759 = vmatpush1.msra.mxu0 0.0
      %760 = vmatprep.subr.mxu0 0.0
      %761 = vmatpush1.msra.mxu0 0.0
      %762 = vmatprep.subr.mxu0 0.0
      %763 = vmatpush1.msra.mxu0 0.0
      %764 = vmatprep.subr.mxu0 0.0
      %765 = vmatpush1.msra.mxu0 0.0
      %766 = vmatprep.subr.mxu0 0.0
      %767 = vmatpush1.msra.mxu0 0.0
      %768 = vmatprep.mubr.f32.mxu0 0.0
      %769 = vmatmul.mubr.f32.gmra.mrb[0].mxu0 %v474
      %v770 = vpop.f32.mrb[0].mxu0
      %v771 = vadd.f32 0.0, %v770
      %v772 = vpop.f32.mrb[0].mxu0
      %773 = vmatprep.mubr.f32.mxu0 0.0
      %774 = vmatmul.mubr.f32.gmra.mrb[0].mxu0 %v477
      %v775 = vpop.f32.mrb[0].mxu0
      %v776 = vadd.f32 0.0, %v775
      %v777 = vpop.f32.mrb[0].mxu0
      %778 = vdwg.mxu0
      %779 = vmatprep.subr.mxu0 0.0
      %780 = vmatpush1.msra.mxu0 %v440
      %781 = vmatprep.subr.mxu0 0.0
      %782 = vmatpush1.msra.mxu0 %v443
      %783 = vmatprep.subr.mxu0 0.0
      %784 = vmatpush1.msra.mxu0 0.0
      %785 = vmatprep.subr.mxu0 0.0
      %786 = vmatpush1.msra.mxu0 0.0
      %787 = vmatprep.subr.mxu0 0.0
      %788 = vmatpush1.msra.mxu0 0.0
      %789 = vmatprep.subr.mxu0 0.0
      %790 = vmatpush1.msra.mxu0 0.0
      %791 = vmatprep.subr.mxu0 0.0
      %792 = vmatpush1.msra.mxu0 0.0
      %793 = vmatprep.subr.mxu0 0.0
      %794 = vmatpush1.msra.mxu0 0.0
      %795 = vmatprep.subr.mxu0 0.0
      %796 = vmatpush1.msra.mxu0 0.0
      %797 = vmatprep.subr.mxu0 0.0
      %798 = vmatpush1.msra.mxu0 0.0
      %799 = vmatprep.subr.mxu0 0.0
      %800 = vmatpush1.msra.mxu0 0.0
      %801 = vmatprep.subr.mxu0 0.0
      %802 = vmatpush1.msra.mxu0 0.0
      %803 = vmatprep.subr.mxu0 0.0
      %804 = vmatpush1.msra.mxu0 0.0
      %805 = vmatprep.subr.mxu0 0.0
      %806 = vmatpush1.msra.mxu0 0.0
      %807 = vmatprep.subr.mxu0 0.0
      %808 = vmatpush1.msra.mxu0 0.0
      %809 = vmatprep.subr.mxu0 0.0
      %810 = vmatpush1.msra.mxu0 0.0
      %811 = vmatprep.subr.mxu0 0.0
      %812 = vmatpush1.msra.mxu0 0.0
      %813 = vmatprep.subr.mxu0 0.0
      %814 = vmatpush1.msra.mxu0 0.0
      %815 = vmatprep.subr.mxu0 0.0
      %816 = vmatpush1.msra.mxu0 0.0
      %817 = vmatprep.subr.mxu0 0.0
      %818 = vmatpush1.msra.mxu0 0.0
      %819 = vmatprep.subr.mxu0 0.0
      %820 = vmatpush1.msra.mxu0 0.0
      %821 = vmatprep.subr.mxu0 0.0
      %822 = vmatpush1.msra.mxu0 0.0
      %823 = vmatprep.subr.mxu0 0.0
      %824 = vmatpush1.msra.mxu0 0.0
      %825 = vmatprep.subr.mxu0 0.0
      %826 = vmatpush1.msra.mxu0 0.0
      %827 = vmatprep.subr.mxu0 0.0
      %828 = vmatpush1.msra.mxu0 0.0
      %829 = vmatprep.subr.mxu0 0.0
      %830 = vmatpush1.msra.mxu0 0.0
      %831 = vmatprep.subr.mxu0 0.0
      %832 = vmatpush1.msra.mxu0 0.0
      %833 = vmatprep.subr.mxu0 0.0
      %834 = vmatpush1.msra.mxu0 0.0
      %835 = vmatprep.subr.mxu0 0.0
      %836 = vmatpush1.msra.mxu0 0.0
      %837 = vmatprep.subr.mxu0 0.0
      %838 = vmatpush1.msra.mxu0 0.0
      %839 = vmatprep.subr.mxu0 0.0
      %840 = vmatpush1.msra.mxu0 0.0
      %841 = vmatprep.subr.mxu0 0.0
      %842 = vmatpush1.msra.mxu0 0.0
      %843 = vmatprep.mubr.f32.mxu0 0.0
      %844 = vmatmul.mubr.f32.gmra.mrb[0].mxu0 %v474
      %v845 = vpop.f32.mrb[0].mxu0
      %v846 = vadd.f32 0.0, %v845
      %v847 = vpop.f32.mrb[0].mxu0
      %848 = vmatprep.mubr.f32.mxu0 0.0
      %849 = vmatmul.mubr.f32.gmra.mrb[0].mxu0 %v477
      %v850 = vpop.f32.mrb[0].mxu0
      %v851 = vadd.f32 0.0, %v850
      %v852 = vpop.f32.mrb[0].mxu0
      %853 = vdwg.mxu0
      %854 = vmatprep.subr.mxu0 0.0
      %855 = vmatpush1.msra.mxu0 %v448
      %856 = vmatprep.subr.mxu0 0.0
      %857 = vmatpush1.msra.mxu0 %v451
      %858 = vmatprep.subr.mxu0 0.0
      %859 = vmatpush1.msra.mxu0 0.0
      %860 = vmatprep.subr.mxu0 0.0
      %861 = vmatpush1.msra.mxu0 0.0
      %862 = vmatprep.subr.mxu0 0.0
      %863 = vmatpush1.msra.mxu0 0.0
      %864 = vmatprep.subr.mxu0 0.0
      %865 = vmatpush1.msra.mxu0 0.0
      %866 = vmatprep.subr.mxu0 0.0
      %867 = vmatpush1.msra.mxu0 0.0
      %868 = vmatprep.subr.mxu0 0.0
      %869 = vmatpush1.msra.mxu0 0.0
      %870 = vmatprep.subr.mxu0 0.0
      %871 = vmatpush1.msra.mxu0 0.0
      %872 = vmatprep.subr.mxu0 0.0
      %873 = vmatpush1.msra.mxu0 0.0
      %874 = vmatprep.subr.mxu0 0.0
      %875 = vmatpush1.msra.mxu0 0.0
      %876 = vmatprep.subr.mxu0 0.0
      %877 = vmatpush1.msra.mxu0 0.0
      %878 = vmatprep.subr.mxu0 0.0
      %879 = vmatpush1.msra.mxu0 0.0
      %880 = vmatprep.subr.mxu0 0.0
      %881 = vmatpush1.msra.mxu0 0.0
      %882 = vmatprep.subr.mxu0 0.0
      %883 = vmatpush1.msra.mxu0 0.0
      %884 = vmatprep.subr.mxu0 0.0
      %885 = vmatpush1.msra.mxu0 0.0
      %886 = vmatprep.subr.mxu0 0.0
      %887 = vmatpush1.msra.mxu0 0.0
      %888 = vmatprep.subr.mxu0 0.0
      %889 = vmatpush1.msra.mxu0 0.0
      %890 = vmatprep.subr.mxu0 0.0
      %891 = vmatpush1.msra.mxu0 0.0
      %892 = vmatprep.subr.mxu0 0.0
      %893 = vmatpush1.msra.mxu0 0.0
      %894 = vmatprep.subr.mxu0 0.0
      %895 = vmatpush1.msra.mxu0 0.0
      %896 = vmatprep.subr.mxu0 0.0
      %897 = vmatpush1.msra.mxu0 0.0
      %898 = vmatprep.subr.mxu0 0.0
      %899 = vmatpush1.msra.mxu0 0.0
      %900 = vmatprep.subr.mxu0 0.0
      %901 = vmatpush1.msra.mxu0 0.0
      %902 = vmatprep.subr.mxu0 0.0
      %903 = vmatpush1.msra.mxu0 0.0
      %904 = vmatprep.subr.mxu0 0.0
      %905 = vmatpush1.msra.mxu0 0.0
      %906 = vmatprep.subr.mxu0 0.0
      %907 = vmatpush1.msra.mxu0 0.0
      %908 = vmatprep.subr.mxu0 0.0
      %909 = vmatpush1.msra.mxu0 0.0
      %910 = vmatprep.subr.mxu0 0.0
      %911 = vmatpush1.msra.mxu0 0.0
      %912 = vmatprep.subr.mxu0 0.0
      %913 = vmatpush1.msra.mxu0 0.0
      %914 = vmatprep.subr.mxu0 0.0
      %915 = vmatpush1.msra.mxu0 0.0
      %916 = vmatprep.subr.mxu0 0.0
      %917 = vmatpush1.msra.mxu0 0.0
      %918 = vmatprep.mubr.f32.mxu0 0.0
      %919 = vmatmul.mubr.f32.gmra.mrb[0].mxu0 %v474
      %v920 = vpop.f32.mrb[0].mxu0
      %v921 = vadd.f32 0.0, %v920
      %v922 = vpop.f32.mrb[0].mxu0
      %923 = vmatprep.mubr.f32.mxu0 0.0
      %924 = vmatmul.mubr.f32.gmra.mrb[0].mxu0 %v477
      %v925 = vpop.f32.mrb[0].mxu0
      %v926 = vadd.f32 0.0, %v925
      %v927 = vpop.f32.mrb[0].mxu0
      %928 = vdwg.mxu0
      %929 = vmatprep.subr.mxu0 0.0
      %930 = vmatpush1.msra.mxu0 %v456
      %931 = vmatprep.subr.mxu0 0.0
      %932 = vmatpush1.msra.mxu0 %v459
      %933 = vmatprep.subr.mxu0 0.0
      %934 = vmatpush1.msra.mxu0 0.0
      %935 = vmatprep.subr.mxu0 0.0
      %936 = vmatpush1.msra.mxu0 0.0
      %937 = vmatprep.subr.mxu0 0.0
      %938 = vmatpush1.msra.mxu0 0.0
      %939 = vmatprep.subr.mxu0 0.0
      %940 = vmatpush1.msra.mxu0 0.0
      %941 = vmatprep.subr.mxu0 0.0
      %942 = vmatpush1.msra.mxu0 0.0
      %943 = vmatprep.subr.mxu0 0.0
      %944 = vmatpush1.msra.mxu0 0.0
      %945 = vmatprep.subr.mxu0 0.0
      %946 = vmatpush1.msra.mxu0 0.0
      %947 = vmatprep.subr.mxu0 0.0
      %948 = vmatpush1.msra.mxu0 0.0
      %949 = vmatprep.subr.mxu0 0.0
      %950 = vmatpush1.msra.mxu0 0.0
      %951 = vmatprep.subr.mxu0 0.0
      %952 = vmatpush1.msra.mxu0 0.0
      %953 = vmatprep.subr.mxu0 0.0
      %954 = vmatpush1.msra.mxu0 0.0
      %955 = vmatprep.subr.mxu0 0.0
      %956 = vmatpush1.msra.mxu0 0.0
      %957 = vmatprep.subr.mxu0 0.0
      %958 = vmatpush1.msra.mxu0 0.0
      %959 = vmatprep.subr.mxu0 0.0
      %960 = vmatpush1.msra.mxu0 0.0
      %961 = vmatprep.subr.mxu0 0.0
      %962 = vmatpush1.msra.mxu0 0.0
      %963 = vmatprep.subr.mxu0 0.0
      %964 = vmatpush1.msra.mxu0 0.0
      %965 = vmatprep.subr.mxu0 0.0
      %966 = vmatpush1.msra.mxu0 0.0
      %967 = vmatprep.subr.mxu0 0.0
      %968 = vmatpush1.msra.mxu0 0.0
      %969 = vmatprep.subr.mxu0 0.0
      %970 = vmatpush1.msra.mxu0 0.0
      %971 = vmatprep.subr.mxu0 0.0
      %972 = vmatpush1.msra.mxu0 0.0
      %973 = vmatprep.subr.mxu0 0.0
      %974 = vmatpush1.msra.mxu0 0.0
      %975 = vmatprep.subr.mxu0 0.0
      %976 = vmatpush1.msra.mxu0 0.0
      %977 = vmatprep.subr.mxu0 0.0
      %978 = vmatpush1.msra.mxu0 0.0
      %979 = vmatprep.subr.mxu0 0.0
      %980 = vmatpush1.msra.mxu0 0.0
      %981 = vmatprep.subr.mxu0 0.0
      %982 = vmatpush1.msra.mxu0 0.0
      %983 = vmatprep.subr.mxu0 0.0
      %984 = vmatpush1.msra.mxu0 0.0
      %985 = vmatprep.subr.mxu0 0.0
      %986 = vmatpush1.msra.mxu0 0.0
      %987 = vmatprep.subr.mxu0 0.0
      %988 = vmatpush1.msra.mxu0 0.0
      %989 = vmatprep.subr.mxu0 0.0
      %990 = vmatpush1.msra.mxu0 0.0
      %991 = vmatprep.subr.mxu0 0.0
      %992 = vmatpush1.msra.mxu0 0.0
      %993 = vmatprep.mubr.f32.mxu0 0.0
      %994 = vmatmul.mubr.f32.gmra.mrb[0].mxu0 %v474
      %v995 = vpop.f32.mrb[0].mxu0
      %v996 = vadd.f32 0.0, %v995
      %v997 = vpop.f32.mrb[0].mxu0
      %998 = vmatprep.mubr.f32.mxu0 0.0
      %999 = vmatmul.mubr.f32.gmra.mrb[0].mxu0 %v477
      %v1000 = vpop.f32.mrb[0].mxu0
      %v1001 = vadd.f32 0.0, %v1000
      %v1002 = vpop.f32.mrb[0].mxu0
      %1003 = vdwg.mxu0
      %1004 = vmatprep.subr.mxu0 0.0
      %1005 = vmatpush1.msra.mxu0 %v464
      %1006 = vmatprep.subr.mxu0 0.0
      %1007 = vmatpush1.msra.mxu0 %v467
      %1008 = vmatprep.subr.mxu0 0.0
      %1009 = vmatpush1.msra.mxu0 0.0
      %1010 = vmatprep.subr.mxu0 0.0
      %1011 = vmatpush1.msra.mxu0 0.0
      %1012 = vmatprep.subr.mxu0 0.0
      %1013 = vmatpush1.msra.mxu0 0.0
      %1014 = vmatprep.subr.mxu0 0.0
      %1015 = vmatpush1.msra.mxu0 0.0
      %1016 = vmatprep.subr.mxu0 0.0
      %1017 = vmatpush1.msra.mxu0 0.0
      %1018 = vmatprep.subr.mxu0 0.0
      %1019 = vmatpush1.msra.mxu0 0.0
      %1020 = vmatprep.subr.mxu0 0.0
      %1021 = vmatpush1.msra.mxu0 0.0
      %1022 = vmatprep.subr.mxu0 0.0
      %1023 = vmatpush1.msra.mxu0 0.0
      %1024 = vmatprep.subr.mxu0 0.0
      %1025 = vmatpush1.msra.mxu0 0.0
      %1026 = vmatprep.subr.mxu0 0.0
      %1027 = vmatpush1.msra.mxu0 0.0
      %1028 = vmatprep.subr.mxu0 0.0
      %1029 = vmatpush1.msra.mxu0 0.0
      %1030 = vmatprep.subr.mxu0 0.0
      %1031 = vmatpush1.msra.mxu0 0.0
      %1032 = vmatprep.subr.mxu0 0.0
      %1033 = vmatpush1.msra.mxu0 0.0
      %1034 = vmatprep.subr.mxu0 0.0
      %1035 = vmatpush1.msra.mxu0 0.0
      %1036 = vmatprep.subr.mxu0 0.0
      %1037 = vmatpush1.msra.mxu0 0.0
      %1038 = vmatprep.subr.mxu0 0.0
      %1039 = vmatpush1.msra.mxu0 0.0
      %1040 = vmatprep.subr.mxu0 0.0
      %1041 = vmatpush1.msra.mxu0 0.0
      %1042 = vmatprep.subr.mxu0 0.0
      %1043 = vmatpush1.msra.mxu0 0.0
      %1044 = vmatprep.subr.mxu0 0.0
      %1045 = vmatpush1.msra.mxu0 0.0
      %1046 = vmatprep.subr.mxu0 0.0
      %1047 = vmatpush1.msra.mxu0 0.0
      %1048 = vmatprep.subr.mxu0 0.0
      %1049 = vmatpush1.msra.mxu0 0.0
      %1050 = vmatprep.subr.mxu0 0.0
      %1051 = vmatpush1.msra.mxu0 0.0
      %1052 = vmatprep.subr.mxu0 0.0
      %1053 = vmatpush1.msra.mxu0 0.0
      %1054 = vmatprep.subr.mxu0 0.0
      %1055 = vmatpush1.msra.mxu0 0.0
      %1056 = vmatprep.subr.mxu0 0.0
      %1057 = vmatpush1.msra.mxu0 0.0
      %1058 = vmatprep.subr.mxu0 0.0
      %1059 = vmatpush1.msra.mxu0 0.0
      %1060 = vmatprep.subr.mxu0 0.0
      %1061 = vmatpush1.msra.mxu0 0.0
      %1062 = vmatprep.subr.mxu0 0.0
      %1063 = vmatpush1.msra.mxu0 0.0
      %1064 = vmatprep.subr.mxu0 0.0
      %1065 = vmatpush1.msra.mxu0 0.0
      %1066 = vmatprep.subr.mxu0 0.0
      %1067 = vmatpush1.msra.mxu0 0.0
      %1068 = vmatprep.mubr.f32.mxu0 0.0
      %1069 = vmatmul.mubr.f32.gmra.mrb[0].mxu0 %v474
      %v1070 = vpop.f32.mrb[0].mxu0
      %v1071 = vadd.f32 0.0, %v1070
      %v1072 = vpop.f32.mrb[0].mxu0
      %1073 = vmatprep.mubr.f32.mxu0 0.0
      %1074 = vmatmul.mubr.f32.gmra.mrb[0].mxu0 %v477
      %v1075 = vpop.f32.mrb[0].mxu0
      %v1076 = vadd.f32 0.0, %v1075
      %v1077 = vpop.f32.mrb[0].mxu0
      %1078 = vdwg.mxu0
      %1079 = vst [vmem:[#allocation2] sm:$0xff] 0
      %s1080 = scalar_lea.vmem [#allocation2], 72
      %1081 = vst [vmem:[%s1080] sm:$0xff] 0
      %v1082 = vpack.c.bf16 %v551, %v546
      %v1083 = vpack.c.bf16 %v626, %v621
      %v1084 = vpack.c.bf16 %v701, %v696
      %v1085 = vpack.c.bf16 %v776, %v771
      %v1086 = vpack.c.bf16 %v851, %v846
      %v1087 = vpack.c.bf16 %v926, %v921
      %v1088 = vpack.c.bf16 %v1001, %v996
      %v1089 = vpack.c.bf16 %v1076, %v1071
      %s1090 = scalar_lea.vmem [#allocation2], 8
      %1091 = vst [vmem:[%s1090] sm:$0xff] %v1082
      %1092 = vst [vmem:[%s1090 + $0x8] sm:$0xff] %v1083
      %1093 = vst [vmem:[%s1090 + $0x10] sm:$0xff] %v1084
      %1094 = vst [vmem:[%s1090 + $0x18] sm:$0xff] %v1085
      %1095 = vst [vmem:[%s1090 + $0x20] sm:$0xff] %v1086
      %1096 = vst [vmem:[%s1090 + $0x28] sm:$0xff] %v1087
      %1097 = vst [vmem:[%s1090 + $0x30] sm:$0xff] %v1088
      %1098 = vst [vmem:[%s1090 + $0x38] sm:$0xff] %v1089
      %v1099 = vld [vmem:[#allocation2] sm:$0xff]
      %v1100 = vld [vmem:[#allocation2 + $0x8] sm:$0xff]
      %v1101 = vld [vmem:[#allocation2 + $0x10] sm:$0xff]
      %v1102 = vld [vmem:[#allocation2 + $0x18] sm:$0xff]
      %v1103 = vld [vmem:[#allocation2 + $0x20] sm:$0xff]
      %v1104 = vld [vmem:[#allocation2 + $0x28] sm:$0xff]
      %v1105 = vld [vmem:[#allocation2 + $0x30] sm:$0xff]
      %v1106 = vld [vmem:[#allocation2 + $0x38] sm:$0xff]
      %v1107 = vld [vmem:[#allocation2 + $0x40] sm:$0xff]
      %v1108 = vld [vmem:[%s4] sm:$0xf]
      %v1109 = vld [vmem:[%s4 + $0x4] sm:$0xf]
      %v1110 = vld [vmem:[%s4 + $0x8] sm:$0xf]
      %v1111 = vld [vmem:[%s4 + $0xc] sm:$0xf]
      %v1112 = vld [vmem:[%s4 + $0x10] sm:$0xf]
      %v1113 = vld [vmem:[%s4 + $0x14] sm:$0xf]
      %v1114 = vld [vmem:[%s4 + $0x18] sm:$0xf]
      %v1115 = vld [vmem:[%s4 + $0x1c] sm:$0xf]
      %v1116 = vld [vmem:[%s4 + $0x20] sm:$0xf]
      %v1117 = vld [vmem:[%s4 + $0x24] sm:$0xf]
      %v1118 = vld [vmem:[%s4 + $0x28] sm:$0xf]
      %v1119 = vld [vmem:[%s4 + $0x2c] sm:$0xf]
      %v1120 = vld [vmem:[%s4 + $0x30] sm:$0xf]
      %v1121 = vld [vmem:[%s4 + $0x34] sm:$0xf]
      %v1122 = vld [vmem:[%s4 + $0x38] sm:$0xf]
      %v1123 = vld [vmem:[%s4 + $0x3c] sm:$0xf]
      %s1124 = scalar_lea.vmem %s4, 64
      %v1125 = vld [vmem:[%s1124] sm:$0xf]
      %v1126 = vld [vmem:[%s1124 + $0x4] sm:$0xf]
      %v1127 = vld [vmem:[%s1124 + $0x8] sm:$0xf]
      %v1128 = vld [vmem:[%s1124 + $0xc] sm:$0xf]
      %v1129 = vld [vmem:[%s1124 + $0x10] sm:$0xf]
      %v1130 = vld [vmem:[%s1124 + $0x14] sm:$0xf]
      %v1131 = vld [vmem:[%s1124 + $0x18] sm:$0xf]
      %v1132 = vld [vmem:[%s1124 + $0x1c] sm:$0xf]
      %v1133 = vld [vmem:[%s1124 + $0x20] sm:$0xf]
      %v1134 = vld [vmem:[%s1124 + $0x24] sm:$0xf]
      %v1135 = vld [vmem:[%s1124 + $0x28] sm:$0xf]
      %v1136 = vld [vmem:[%s1124 + $0x2c] sm:$0xf]
      %v1137 = vld [vmem:[%s1124 + $0x30] sm:$0xf]
      %v1138 = vld [vmem:[%s1124 + $0x34] sm:$0xf]
      %v1139 = vld [vmem:[%s1124 + $0x38] sm:$0xf]
      %v1140 = vld [vmem:[%s1124 + $0x3c] sm:$0xf]
      %v1157 = vunpack.c.l.b16 %v1125
      %v1158 = vunpack.c.l.b16 %v1126
      %v1159 = vunpack.c.l.b16 %v1127
      %v1160 = vunpack.c.l.b16 %v1128
      %v1161 = vunpack.c.l.b16 %v1129
      %v1162 = vunpack.c.l.b16 %v1130
      %v1163 = vunpack.c.l.b16 %v1131
      %v1164 = vunpack.c.l.b16 %v1132
      %v1165 = vunpack.c.l.b16 %v1133
      %v1166 = vunpack.c.l.b16 %v1134
      %v1167 = vunpack.c.l.b16 %v1135
      %v1168 = vunpack.c.l.b16 %v1136
      %v1169 = vunpack.c.l.b16 %v1137
      %v1170 = vunpack.c.l.b16 %v1138
      %v1171 = vunpack.c.l.b16 %v1139
      %v1172 = vunpack.c.l.b16 %v1140
      %v1173 = vpack.c.b16 %v1158, %v1157
      %v1174 = vpack.c.b16 %v1160, %v1159
      %v1175 = vpack.c.b16 %v1162, %v1161
      %v1176 = vpack.c.b16 %v1164, %v1163
      %v1177 = vpack.c.b16 %v1166, %v1165
      %v1178 = vpack.c.b16 %v1168, %v1167
      %v1179 = vpack.c.b16 %v1170, %v1169
      %v1180 = vpack.c.b16 %v1172, %v1171
      %1189 = vmatprep.subr.bf16.mxu0 0
      %1190 = vmatpush1.bf16.msra.mxu0 %v1173
      %1191 = vmatprep.subr.bf16.mxu0 0
      %1192 = vmatpush1.bf16.msra.mxu0 %v1174
      %1193 = vmatprep.subr.bf16.mxu0 0
      %1194 = vmatpush1.bf16.msra.mxu0 %v1175
      %1195 = vmatprep.subr.bf16.mxu0 0
      %1196 = vmatpush1.bf16.msra.mxu0 %v1176
      %1197 = vmatprep.subr.bf16.mxu0 0
      %1198 = vmatpush1.bf16.msra.mxu0 %v1177
      %1199 = vmatprep.subr.bf16.mxu0 0
      %1200 = vmatpush1.bf16.msra.mxu0 %v1178
      %1201 = vmatprep.subr.bf16.mxu0 0
      %1202 = vmatpush1.bf16.msra.mxu0 %v1179
      %1203 = vmatprep.subr.bf16.mxu0 0
      %1204 = vmatpush1.bf16.msra.mxu0 %v1180
      %1205 = vmatprep.subr.bf16.mxu0 0
      %1206 = vmatpush1.bf16.msra.mxu0 0
      %1207 = vmatprep.subr.bf16.mxu0 0
      %1208 = vmatpush1.bf16.msra.mxu0 0
      %1209 = vmatprep.subr.bf16.mxu0 0
      %1210 = vmatpush1.bf16.msra.mxu0 0
      %1211 = vmatprep.subr.bf16.mxu0 0
      %1212 = vmatpush1.bf16.msra.mxu0 0
      %1213 = vmatprep.subr.bf16.mxu0 0
      %1214 = vmatpush1.bf16.msra.mxu0 0
      %1215 = vmatprep.subr.bf16.mxu0 0
      %1216 = vmatpush1.bf16.msra.mxu0 0
      %1217 = vmatprep.subr.bf16.mxu0 0
      %1218 = vmatpush1.bf16.msra.mxu0 0
      %1219 = vmatprep.subr.bf16.mxu0 0
      %1220 = vmatpush1.bf16.msra.mxu0 0
      %1221 = vmatprep.mubr.bf16.mxu0 0
      %1222 = vmatmul.mubr.bf16.gmra.mrb[0].mxu0 %v1100
      %v1223 = vpop.f32.mrb[0].mxu0
      %v1224 = vadd.f32 0.0, %v1223
      %v1225 = vpop.f32.mrb[0].mxu0
      %v1226 = vpop.f32.mrb[0].mxu0
      %v1227 = vadd.f32 0.0, %v1226
      %v1228 = vpop.f32.mrb[0].mxu0
      %1229 = vmatprep.mubr.bf16.mxu0 0
      %1230 = vmatmul.mubr.bf16.gmra.mrb[0].mxu0 %v1102
      %v1231 = vpop.f32.mrb[0].mxu0
      %v1232 = vadd.f32 0.0, %v1231
      %v1233 = vpop.f32.mrb[0].mxu0
      %v1234 = vpop.f32.mrb[0].mxu0
      %v1235 = vadd.f32 0.0, %v1234
      %v1236 = vpop.f32.mrb[0].mxu0
      %1237 = vmatprep.mubr.bf16.mxu0 0
      %1238 = vmatmul.mubr.bf16.gmra.mrb[0].mxu0 %v1104
      %v1239 = vpop.f32.mrb[0].mxu0
      %v1240 = vadd.f32 0.0, %v1239
      %v1241 = vpop.f32.mrb[0].mxu0
      %v1242 = vpop.f32.mrb[0].mxu0
      %v1243 = vadd.f32 0.0, %v1242
      %v1244 = vpop.f32.mrb[0].mxu0
      %1245 = vmatprep.mubr.bf16.mxu0 0
      %1246 = vmatmul.mubr.bf16.gmra.mrb[0].mxu0 %v1106
      %v1247 = vpop.f32.mrb[0].mxu0
      %v1248 = vadd.f32 0.0, %v1247
      %v1249 = vpop.f32.mrb[0].mxu0
      %v1250 = vpop.f32.mrb[0].mxu0
      %v1251 = vadd.f32 0.0, %v1250
      %v1252 = vpop.f32.mrb[0].mxu0
      %1253 = vdwg.mxu0
      %v1270 = vunpack.c.l.b16 %v1108
      %v1271 = vunpack.c.l.b16 %v1109
      %v1272 = vunpack.c.l.b16 %v1110
      %v1273 = vunpack.c.l.b16 %v1111
      %v1274 = vunpack.c.l.b16 %v1112
      %v1275 = vunpack.c.l.b16 %v1113
      %v1276 = vunpack.c.l.b16 %v1114
      %v1277 = vunpack.c.l.b16 %v1115
      %v1278 = vunpack.c.l.b16 %v1116
      %v1279 = vunpack.c.l.b16 %v1117
      %v1280 = vunpack.c.l.b16 %v1118
      %v1281 = vunpack.c.l.b16 %v1119
      %v1282 = vunpack.c.l.b16 %v1120
      %v1283 = vunpack.c.l.b16 %v1121
      %v1284 = vunpack.c.l.b16 %v1122
      %v1285 = vunpack.c.l.b16 %v1123
      %v1286 = vpack.c.b16 %v1271, %v1270
      %v1287 = vpack.c.b16 %v1273, %v1272
      %v1288 = vpack.c.b16 %v1275, %v1274
      %v1289 = vpack.c.b16 %v1277, %v1276
      %v1290 = vpack.c.b16 %v1279, %v1278
      %v1291 = vpack.c.b16 %v1281, %v1280
      %v1292 = vpack.c.b16 %v1283, %v1282
      %v1293 = vpack.c.b16 %v1285, %v1284
      %1302 = vmatprep.subr.bf16.mxu0 0
      %1303 = vmatpush1.bf16.msra.mxu0 %v1286
      %1304 = vmatprep.subr.bf16.mxu0 0
      %1305 = vmatpush1.bf16.msra.mxu0 %v1287
      %1306 = vmatprep.subr.bf16.mxu0 0
      %1307 = vmatpush1.bf16.msra.mxu0 %v1288
      %1308 = vmatprep.subr.bf16.mxu0 0
      %1309 = vmatpush1.bf16.msra.mxu0 %v1289
      %1310 = vmatprep.subr.bf16.mxu0 0
      %1311 = vmatpush1.bf16.msra.mxu0 %v1290
      %1312 = vmatprep.subr.bf16.mxu0 0
      %1313 = vmatpush1.bf16.msra.mxu0 %v1291
      %1314 = vmatprep.subr.bf16.mxu0 0
      %1315 = vmatpush1.bf16.msra.mxu0 %v1292
      %1316 = vmatprep.subr.bf16.mxu0 0
      %1317 = vmatpush1.bf16.msra.mxu0 %v1293
      %1318 = vmatprep.subr.bf16.mxu0 0
      %1319 = vmatpush1.bf16.msra.mxu0 0
      %1320 = vmatprep.subr.bf16.mxu0 0
      %1321 = vmatpush1.bf16.msra.mxu0 0
      %1322 = vmatprep.subr.bf16.mxu0 0
      %1323 = vmatpush1.bf16.msra.mxu0 0
      %1324 = vmatprep.subr.bf16.mxu0 0
      %1325 = vmatpush1.bf16.msra.mxu0 0
      %1326 = vmatprep.subr.bf16.mxu0 0
      %1327 = vmatpush1.bf16.msra.mxu0 0
      %1328 = vmatprep.subr.bf16.mxu0 0
      %1329 = vmatpush1.bf16.msra.mxu0 0
      %1330 = vmatprep.subr.bf16.mxu0 0
      %1331 = vmatpush1.bf16.msra.mxu0 0
      %1332 = vmatprep.subr.bf16.mxu0 0
      %1333 = vmatpush1.bf16.msra.mxu0 0
      %1334 = vmatprep.mubr.bf16.mxu0 0
      %1335 = vmatmul.mubr.bf16.gmra.mrb[0].mxu0 %v1099
      %v1336 = vpop.f32.mrb[0].mxu0
      %v1337 = vadd.f32 %v1224, %v1336
      %v1338 = vpop.f32.mrb[0].mxu0
      %v1339 = vpop.f32.mrb[0].mxu0
      %v1340 = vadd.f32 %v1227, %v1339
      %v1341 = vpop.f32.mrb[0].mxu0
      %1342 = vmatprep.mubr.bf16.mxu0 0
      %1343 = vmatmul.mubr.bf16.gmra.mrb[0].mxu0 %v1101
      %v1344 = vpop.f32.mrb[0].mxu0
      %v1345 = vadd.f32 %v1232, %v1344
      %v1346 = vpop.f32.mrb[0].mxu0
      %v1347 = vpop.f32.mrb[0].mxu0
      %v1348 = vadd.f32 %v1235, %v1347
      %v1349 = vpop.f32.mrb[0].mxu0
      %1350 = vmatprep.mubr.bf16.mxu0 0
      %1351 = vmatmul.mubr.bf16.gmra.mrb[0].mxu0 %v1103
      %v1352 = vpop.f32.mrb[0].mxu0
      %v1353 = vadd.f32 %v1240, %v1352
      %v1354 = vpop.f32.mrb[0].mxu0
      %v1355 = vpop.f32.mrb[0].mxu0
      %v1356 = vadd.f32 %v1243, %v1355
      %v1357 = vpop.f32.mrb[0].mxu0
      %1358 = vmatprep.mubr.bf16.mxu0 0
      %1359 = vmatmul.mubr.bf16.gmra.mrb[0].mxu0 %v1105
      %v1360 = vpop.f32.mrb[0].mxu0
      %v1361 = vadd.f32 %v1248, %v1360
      %v1362 = vpop.f32.mrb[0].mxu0
      %v1363 = vpop.f32.mrb[0].mxu0
      %v1364 = vadd.f32 %v1251, %v1363
      %v1365 = vpop.f32.mrb[0].mxu0
      %1366 = vdwg.mxu0
      %s1367 = scalar_lea.vmem %s4, 128
      %v1368 = vld [vmem:[%s1367] sm:$0xf]
      %v1369 = vld [vmem:[%s1367 + $0x4] sm:$0xf]
      %v1370 = vld [vmem:[%s1367 + $0x8] sm:$0xf]
      %v1371 = vld [vmem:[%s1367 + $0xc] sm:$0xf]
      %v1372 = vld [vmem:[%s1367 + $0x10] sm:$0xf]
      %v1373 = vld [vmem:[%s1367 + $0x14] sm:$0xf]
      %v1374 = vld [vmem:[%s1367 + $0x18] sm:$0xf]
      %v1375 = vld [vmem:[%s1367 + $0x1c] sm:$0xf]
      %v1376 = vld [vmem:[%s1367 + $0x20] sm:$0xf]
      %v1377 = vld [vmem:[%s1367 + $0x24] sm:$0xf]
      %v1378 = vld [vmem:[%s1367 + $0x28] sm:$0xf]
      %v1379 = vld [vmem:[%s1367 + $0x2c] sm:$0xf]
      %v1380 = vld [vmem:[%s1367 + $0x30] sm:$0xf]
      %v1381 = vld [vmem:[%s1367 + $0x34] sm:$0xf]
      %v1382 = vld [vmem:[%s1367 + $0x38] sm:$0xf]
      %v1383 = vld [vmem:[%s1367 + $0x3c] sm:$0xf]
      %v1400 = vunpack.c.l.b16 %v1368
      %v1401 = vunpack.c.l.b16 %v1369
      %v1402 = vunpack.c.l.b16 %v1370
      %v1403 = vunpack.c.l.b16 %v1371
      %v1404 = vunpack.c.l.b16 %v1372
      %v1405 = vunpack.c.l.b16 %v1373
      %v1406 = vunpack.c.l.b16 %v1374
      %v1407 = vunpack.c.l.b16 %v1375
      %v1408 = vunpack.c.l.b16 %v1376
      %v1409 = vunpack.c.l.b16 %v1377
      %v1410 = vunpack.c.l.b16 %v1378
      %v1411 = vunpack.c.l.b16 %v1379
      %v1412 = vunpack.c.l.b16 %v1380
      %v1413 = vunpack.c.l.b16 %v1381
      %v1414 = vunpack.c.l.b16 %v1382
      %v1415 = vunpack.c.l.b16 %v1383
      %v1416 = vpack.c.b16 %v1401, %v1400
      %v1417 = vpack.c.b16 %v1403, %v1402
      %v1418 = vpack.c.b16 %v1405, %v1404
      %v1419 = vpack.c.b16 %v1407, %v1406
      %v1420 = vpack.c.b16 %v1409, %v1408
      %v1421 = vpack.c.b16 %v1411, %v1410
      %v1422 = vpack.c.b16 %v1413, %v1412
      %v1423 = vpack.c.b16 %v1415, %v1414
      %1432 = vmatprep.subr.bf16.mxu0 0
      %1433 = vmatpush1.bf16.msra.mxu0 %v1416
      %1434 = vmatprep.subr.bf16.mxu0 0
      %1435 = vmatpush1.bf16.msra.mxu0 %v1417
      %1436 = vmatprep.subr.bf16.mxu0 0
      %1437 = vmatpush1.bf16.msra.mxu0 %v1418
      %1438 = vmatprep.subr.bf16.mxu0 0
      %1439 = vmatpush1.bf16.msra.mxu0 %v1419
      %1440 = vmatprep.subr.bf16.mxu0 0
      %1441 = vmatpush1.bf16.msra.mxu0 %v1420
      %1442 = vmatprep.subr.bf16.mxu0 0
      %1443 = vmatpush1.bf16.msra.mxu0 %v1421
      %1444 = vmatprep.subr.bf16.mxu0 0
      %1445 = vmatpush1.bf16.msra.mxu0 %v1422
      %1446 = vmatprep.subr.bf16.mxu0 0
      %1447 = vmatpush1.bf16.msra.mxu0 %v1423
      %1448 = vmatprep.subr.bf16.mxu0 0
      %1449 = vmatpush1.bf16.msra.mxu0 0
      %1450 = vmatprep.subr.bf16.mxu0 0
      %1451 = vmatpush1.bf16.msra.mxu0 0
      %1452 = vmatprep.subr.bf16.mxu0 0
      %1453 = vmatpush1.bf16.msra.mxu0 0
      %1454 = vmatprep.subr.bf16.mxu0 0
      %1455 = vmatpush1.bf16.msra.mxu0 0
      %1456 = vmatprep.subr.bf16.mxu0 0
      %1457 = vmatpush1.bf16.msra.mxu0 0
      %1458 = vmatprep.subr.bf16.mxu0 0
      %1459 = vmatpush1.bf16.msra.mxu0 0
      %1460 = vmatprep.subr.bf16.mxu0 0
      %1461 = vmatpush1.bf16.msra.mxu0 0
      %1462 = vmatprep.subr.bf16.mxu0 0
      %1463 = vmatpush1.bf16.msra.mxu0 0
      %1464 = vmatprep.mubr.bf16.mxu0 0
      %1465 = vmatmul.mubr.bf16.gmra.mrb[0].mxu0 %v1101
      %v1466 = vpop.f32.mrb[0].mxu0
      %v1467 = vadd.f32 0.0, %v1466
      %v1468 = vpop.f32.mrb[0].mxu0
      %v1469 = vpop.f32.mrb[0].mxu0
      %v1470 = vadd.f32 0.0, %v1469
      %v1471 = vpop.f32.mrb[0].mxu0
      %1472 = vmatprep.mubr.bf16.mxu0 0
      %1473 = vmatmul.mubr.bf16.gmra.mrb[0].mxu0 %v1103
      %v1474 = vpop.f32.mrb[0].mxu0
      %v1475 = vadd.f32 0.0, %v1474
      %v1476 = vpop.f32.mrb[0].mxu0
      %v1477 = vpop.f32.mrb[0].mxu0
      %v1478 = vadd.f32 0.0, %v1477
      %v1479 = vpop.f32.mrb[0].mxu0
      %1480 = vmatprep.mubr.bf16.mxu0 0
      %1481 = vmatmul.mubr.bf16.gmra.mrb[0].mxu0 %v1105
      %v1482 = vpop.f32.mrb[0].mxu0
      %v1483 = vadd.f32 0.0, %v1482
      %v1484 = vpop.f32.mrb[0].mxu0
      %v1485 = vpop.f32.mrb[0].mxu0
      %v1486 = vadd.f32 0.0, %v1485
      %v1487 = vpop.f32.mrb[0].mxu0
      %1488 = vmatprep.mubr.bf16.mxu0 0
      %1489 = vmatmul.mubr.bf16.gmra.mrb[0].mxu0 %v1107
      %v1490 = vpop.f32.mrb[0].mxu0
      %v1491 = vadd.f32 0.0, %v1490
      %v1492 = vpop.f32.mrb[0].mxu0
      %v1493 = vpop.f32.mrb[0].mxu0
      %v1494 = vadd.f32 0.0, %v1493
      %v1495 = vpop.f32.mrb[0].mxu0
      %1496 = vdwg.mxu0
      %v1497 = vadd.f32 %v1337, %v1467
      %v1498 = vadd.f32 %v1340, %v1470
      %v1499 = vadd.f32 %v1345, %v1475
      %v1500 = vadd.f32 %v1348, %v1478
      %v1501 = vadd.f32 %v1353, %v1483
      %v1502 = vadd.f32 %v1356, %v1486
      %v1503 = vadd.f32 %v1361, %v1491
      %v1504 = vadd.f32 %v1364, %v1494
      %v1505 = vld [vmem:[%s5] sm:$0x1]
      %v1507 = vlaneseq
      %v1508 = vshrl.u32 %v1507, 7
      %v1509 = vsub.s32 0, %v1508
      %v1510 = vrot.slane %v1505, %v1509
      %v1512 = vadd.f32 %v1497, %v1510
      %v1513 = vadd.f32 %v1498, %v1510
      %v1514 = vadd.f32 %v1499, %v1510
      %v1515 = vadd.f32 %v1500, %v1510
      %v1516 = vadd.f32 %v1501, %v1510
      %v1517 = vadd.f32 %v1502, %v1510
      %v1518 = vadd.f32 %v1503, %v1510
      %v1519 = vadd.f32 %v1504, %v1510
      %v1520 = vmax.f32 %v1512, 0.0
      %v1521 = vmax.f32 %v1513, 0.0
      %v1522 = vmax.f32 %v1514, 0.0
      %v1523 = vmax.f32 %v1515, 0.0
      %v1524 = vmax.f32 %v1516, 0.0
      %v1525 = vmax.f32 %v1517, 0.0
      %v1526 = vmax.f32 %v1518, 0.0
      %v1527 = vmax.f32 %v1519, 0.0
      %v1528 = vpack.c.bf16 %v1521, %v1520
      %v1529 = vpack.c.bf16 %v1523, %v1522
      %v1530 = vpack.c.bf16 %v1525, %v1524
      %v1531 = vpack.c.bf16 %v1527, %v1526
      %v1536 = vunpack.c.l.b16 %v1528
      %v1537 = vunpack.c.h.b16 %v1528
      %v1538 = vunpack.c.l.b16 %v1529
      %v1539 = vunpack.c.h.b16 %v1529
      %v1540 = vunpack.c.l.b16 %v1530
      %v1541 = vunpack.c.h.b16 %v1530
      %v1542 = vunpack.c.l.b16 %v1531
      %v1543 = vunpack.c.h.b16 %v1531
      %v1544 = vpack.c.b16 %v1536, %v1536
      %v1545 = vpack.c.b16 %v1537, %v1537
      %v1546 = vpack.c.b16 %v1538, %v1538
      %v1547 = vpack.c.b16 %v1539, %v1539
      %v1548 = vpack.c.b16 %v1540, %v1540
      %v1549 = vpack.c.b16 %v1541, %v1541
      %v1550 = vpack.c.b16 %v1542, %v1542
      %v1551 = vpack.c.b16 %v1543, %v1543
      %1560 = vst [vmem:[%s251] sm:$0xf] %v1544
      %1561 = vst [vmem:[%s251 + $0x4] sm:$0xf] %v1545
      %1562 = vst [vmem:[%s251 + $0x8] sm:$0xf] %v1546
      %1563 = vst [vmem:[%s251 + $0xc] sm:$0xf] %v1547
      %1564 = vst [vmem:[%s251 + $0x10] sm:$0xf] %v1548
      %1565 = vst [vmem:[%s251 + $0x14] sm:$0xf] %v1549
      %1566 = vst [vmem:[%s251 + $0x18] sm:$0xf] %v1550
      %1567 = vst [vmem:[%s251 + $0x1c] sm:$0xf] %v1551
      %p1568 = scmp.lt.s32.totalorder %s17, 1
      %s1569 = scalar_select %p1568, %s17, 1
      %s1570 = smul.addr %s1569, 8
      %s1571 = smul.addr %s1570, 4
      %s1572 = scalar_lea.vmem %s6, %s1571
      // Predicated region
      $region45: #{_lambda_.15} parent=43 // pred_check
        %p1573 = pneg %p166
      $region46: #{_lambda_.15} parent=43 // pred_check_branch
        %1575 = sbr.rel (%p1573) target = $region48
      $region47: #{_lambda_.15} parent=43 // pred_region
        _
      $region48: #{_lambda_.15} parent=43 // pred_fallthru
        _
    $region44: #{_lambda_.15} parent=5 // pred_fallthru
      _
    %p1576 = scmp.le.s32.totalorder 2, %s12
    // Predicated region
    $region49: #{_lambda_.15} parent=5 // pred_check
      %p1577 = pneg %p1576
    $region50: #{_lambda_.15} parent=5 // pred_check_branch
      %1579 = sbr.rel (%p1577) target = $region52
    $region51: #{_lambda_.15} parent=5 // pred_region
      %s1580 = ssub.s32 %s12, 2
      // Predicated region
      $region53: #{_lambda_.15} parent=51 // pred_check
        %p1581 = pneg %p172
      $region54: #{_lambda_.15} parent=51 // pred_check_branch
        %1583 = sbr.rel (%p1581) target = $region56
      $region55: #{_lambda_.15} parent=51 // pred_region
        %p1584 = scmp.lt.s32.totalorder %s18, 1
        %s1585 = scalar_select %p1584, %s18, 1
        %s1586 = smul.addr %s1585, 8
        %s1587 = smul.addr %s1586, 4
        %s1588 = scalar_lea.vmem %s6, %s1587
      $region56: #{_lambda_.15} parent=51 // pred_fallthru
        _
    $region52: #{_lambda_.15} parent=5 // pred_fallthru
      _
  $region6: #{_lambda_.15} parent=0 // loop_footer
    %s16 = sadd.s32 1, %s12
  $region7: #{_lambda_.15} parent=0 // loop_footer_branch
    %11 = sbr.rel target = $region3
  $region8: #{_lambda_.15} parent=0 // loop_exit
    _

// kernel: _lambda_.12
$region0: #{_lambda_.12}
  #allocation0 [shape = 'u32[]', space=smem, size = 0x4, offset = 0x4, fixed_abs, tag = 'smem constant byte address 0x4 - core index']
  #allocation1 [shape = 'u32[144,128]{1,0:T(1,128)}', space=vmem, size = 0x12000, scoped, tag = 'internal scratch']
  #allocation2 [shape = 'bf16[10,16,64]{2,1,0:T(16,128)(2,1)}', space=vmem, size = 0xa000, scoped, tag = 'scratch operand']
  %s0 = inlined_call_operand.vmem [shape: bf16[2,8,16,64], index: 0, kind: input, shape index: {}]
  %s1 = inlined_call_operand.vmem [shape: bf16[1,64,64], index: 1, kind: input, shape index: {}]
  %s2 = inlined_call_operand.vmem [shape: f32[1,1,64], index: 2, kind: input, shape index: {}]
  %s3 = inlined_call_operand.vmem [shape: f32[1,16,16], index: 3, kind: input, shape index: {}]
  %s4 = inlined_call_operand.vmem [shape: bf16[3,64,64], index: 4, kind: input, shape index: {}]
  %s5 = inlined_call_operand.vmem [shape: f32[1,64], index: 5, kind: input, shape index: {}]
  %s6 = inlined_call_operand.vmem [shape: bf16[2,8,16,64], index: 6, kind: output, shape index: {}]
  %s7 = sld [smem:[#allocation0]]
  $region57: #{_lambda_.12} parent=0
    _
  %s9 = ssub.s32 1, %s7
  %s10 = scalar_select 0, %s9, %s7
  loop: start=0, step=1, limit=4
  $region2: #{_lambda_.12} parent=0 // loop_pre_header
    _
  $region3: #{_lambda_.12} parent=0 // loop_header
    %s12 = sphi 0, %s16
    %p13 = scmp.ge.s32.totalorder %s12, 4
    %s22 = sphi 0, %s24
    %s25 = sphi 0, %s22
    %s26 = sphi 0, %s25
    %s42 = sphi 0, %s26
    %s46 = sphi 0, %s46
    %s48 = sphi 0, %s46
    %s49 = sphi 0, %s48
    %s63 = sphi 0, %s49
    %s67 = sphi 0, %s67
    %s69 = sphi 0, %s67
    %s70 = sphi 0, %s69
    %s84 = sphi 0, %s70
    %s88 = sphi 0, %s88
    %s90 = sphi 0, %s88
    %s91 = sphi 0, %s90
    %s105 = sphi 0, %s91
    %s109 = sphi 0, %s109
    %s111 = sphi 0, %s109
    %s112 = sphi 0, %s111
    %s126 = sphi 0, %s112
    %s130 = sphi 0, %s130
    %s132 = sphi 0, %s130
    %s133 = sphi 0, %s132
    %s147 = sphi 0, %s133
    %s153 = sphi 0, %s155
    %s156 = sphi 0, %s153
    %s157 = sphi 0, %s156
    %s173 = sphi 0, %s157
  $region4: #{_lambda_.12} parent=0 // loop_header_branch
    %15 = sbr.rel (%p13) target = $region8
  $region5: #{_lambda_.12} parent=0 // loop_body
    %s17 = ssub.s32 %s12, 1
    %s18 = ssub.s32 %s12, 2
    %s19 = sadd.s32 %s12, 1
    %s20 = ssub.s32 %s12, %s19
    %p21 = scmp.eq.s32.totalorder %s20, 0
    %s23 = sadd.s32 %s22, 1
    %s24 = scalar_select %p21, %s22, %s23
    %p27 = pneg %p21
    %p28 = scmp.eq.s32.totalorder %s12, 1
    %p29 = por %p27, %p28
    %p30 = scmp.ne.s32.totalorder %s22, %s25
    %p31 = scmp.eq.s32.totalorder %s12, 0
    %p32 = por %p30, %p31
    %p33 = scmp.ne.s32.totalorder %s22, %s25
    %p34 = scmp.eq.s32.totalorder %s17, 1
    %p35 = por %p33, %p34
    %p36 = scmp.ne.s32.totalorder %s25, %s26
    %p37 = scmp.eq.s32.totalorder %s17, 0
    %p38 = por %p36, %p37
    %p39 = scmp.ne.s32.totalorder %s25, %s26
    %p40 = scmp.eq.s32.totalorder %s18, 1
    %p41 = por %p39, %p40
    %p43 = scmp.ne.s32.totalorder %s26, %s42
    %p44 = scmp.eq.s32.totalorder %s18, 0
    %p45 = por %p43, %p44
    %s47 = sadd.s32 %s46, 1
    %p50 = scmp.eq.s32.totalorder %s12, 1
    %p51 = scmp.ne.s32.totalorder %s46, %s48
    %p52 = scmp.eq.s32.totalorder %s12, 0
    %p53 = por %p51, %p52
    %p54 = scmp.ne.s32.totalorder %s46, %s48
    %p55 = scmp.eq.s32.totalorder %s17, 1
    %p56 = por %p54, %p55
    %p57 = scmp.ne.s32.totalorder %s48, %s49
    %p58 = scmp.eq.s32.totalorder %s17, 0
    %p59 = por %p57, %p58
    %p60 = scmp.ne.s32.totalorder %s48, %s49
    %p61 = scmp.eq.s32.totalorder %s18, 1
    %p62 = por %p60, %p61
    %p64 = scmp.ne.s32.totalorder %s49, %s63
    %p65 = scmp.eq.s32.totalorder %s18, 0
    %p66 = por %p64, %p65
    %s68 = sadd.s32 %s67, 1
    %p71 = scmp.eq.s32.totalorder %s12, 1
    %p72 = scmp.ne.s32.totalorder %s67, %s69
    %p73 = scmp.eq.s32.totalorder %s12, 0
    %p74 = por %p72, %p73
    %p75 = scmp.ne.s32.totalorder %s67, %s69
    %p76 = scmp.eq.s32.totalorder %s17, 1
    %p77 = por %p75, %p76
    %p78 = scmp.ne.s32.totalorder %s69, %s70
    %p79 = scmp.eq.s32.totalorder %s17, 0
    %p80 = por %p78, %p79
    %p81 = scmp.ne.s32.totalorder %s69, %s70
    %p82 = scmp.eq.s32.totalorder %s18, 1
    %p83 = por %p81, %p82
    %p85 = scmp.ne.s32.totalorder %s70, %s84
    %p86 = scmp.eq.s32.totalorder %s18, 0
    %p87 = por %p85, %p86
    %s89 = sadd.s32 %s88, 1
    %p92 = scmp.eq.s32.totalorder %s12, 1
    %p93 = scmp.ne.s32.totalorder %s88, %s90
    %p94 = scmp.eq.s32.totalorder %s12, 0
    %p95 = por %p93, %p94
    %p96 = scmp.ne.s32.totalorder %s88, %s90
    %p97 = scmp.eq.s32.totalorder %s17, 1
    %p98 = por %p96, %p97
    %p99 = scmp.ne.s32.totalorder %s90, %s91
    %p100 = scmp.eq.s32.totalorder %s17, 0
    %p101 = por %p99, %p100
    %p102 = scmp.ne.s32.totalorder %s90, %s91
    %p103 = scmp.eq.s32.totalorder %s18, 1
    %p104 = por %p102, %p103
    %p106 = scmp.ne.s32.totalorder %s91, %s105
    %p107 = scmp.eq.s32.totalorder %s18, 0
    %p108 = por %p106, %p107
    %s110 = sadd.s32 %s109, 1
    %p113 = scmp.eq.s32.totalorder %s12, 1
    %p114 = scmp.ne.s32.totalorder %s109, %s111
    %p115 = scmp.eq.s32.totalorder %s12, 0
    %p116 = por %p114, %p115
    %p117 = scmp.ne.s32.totalorder %s109, %s111
    %p118 = scmp.eq.s32.totalorder %s17, 1
    %p119 = por %p117, %p118
    %p120 = scmp.ne.s32.totalorder %s111, %s112
    %p121 = scmp.eq.s32.totalorder %s17, 0
    %p122 = por %p120, %p121
    %p123 = scmp.ne.s32.totalorder %s111, %s112
    %p124 = scmp.eq.s32.totalorder %s18, 1
    %p125 = por %p123, %p124
    %p127 = scmp.ne.s32.totalorder %s112, %s126
    %p128 = scmp.eq.s32.totalorder %s18, 0
    %p129 = por %p127, %p128
    %s131 = sadd.s32 %s130, 1
    %p134 = scmp.eq.s32.totalorder %s12, 1
    %p135 = scmp.ne.s32.totalorder %s130, %s132
    %p136 = scmp.eq.s32.totalorder %s12, 0
    %p137 = por %p135, %p136
    %p138 = scmp.ne.s32.totalorder %s130, %s132
    %p139 = scmp.eq.s32.totalorder %s17, 1
    %p140 = por %p138, %p139
    %p141 = scmp.ne.s32.totalorder %s132, %s133
    %p142 = scmp.eq.s32.totalorder %s17, 0
    %p143 = por %p141, %p142
    %p144 = scmp.ne.s32.totalorder %s132, %s133
    %p145 = scmp.eq.s32.totalorder %s18, 1
    %p146 = por %p144, %p145
    %p148 = scmp.ne.s32.totalorder %s133, %s147
    %p149 = scmp.eq.s32.totalorder %s18, 0
    %p150 = por %p148, %p149
    %s151 = ssub.s32 %s12, %s19
    %p152 = scmp.eq.s32.totalorder %s151, 0
    %s154 = sadd.s32 %s153, 1
    %s155 = scalar_select %p152, %s153, %s154
    %p158 = pneg %p152
    %p159 = scmp.eq.s32.totalorder %s12, 1
    %p160 = por %p158, %p159
    %p161 = scmp.ne.s32.totalorder %s153, %s156
    %p162 = scmp.eq.s32.totalorder %s12, 0
    %p163 = por %p161, %p162
    %p164 = scmp.ne.s32.totalorder %s153, %s156
    %p165 = scmp.eq.s32.totalorder %s17, 1
    %p166 = por %p164, %p165
    %p167 = scmp.ne.s32.totalorder %s156, %s157
    %p168 = scmp.eq.s32.totalorder %s17, 0
    %p169 = por %p167, %p168
    %p170 = scmp.ne.s32.totalorder %s156, %s157
    %p171 = scmp.eq.s32.totalorder %s18, 1
    %p172 = por %p170, %p171
    %p174 = scmp.ne.s32.totalorder %s157, %s173
    %p175 = scmp.eq.s32.totalorder %s18, 0
    %p176 = por %p174, %p175
    %p177 = scmp.le.s32.totalorder 1, %s12
    %p178 = scmp.lt.s32.totalorder %s12, 3
    %p179 = pnand %p177, %p178
    %p180 = pneg %p179
    // Predicated region
    $region9: #{_lambda_.12} parent=5 // pred_check
      _
    $region10: #{_lambda_.12} parent=5 // pred_check_branch
      %182 = sbr.rel (%p179) target = $region12
    $region11: #{_lambda_.12} parent=5 // pred_region
      %s183 = ssub.s32 %s12, 1
      // Predicated region
      $region13: #{_lambda_.12} parent=11 // pred_check
        %p184 = pneg %p59
      $region14: #{_lambda_.12} parent=11 // pred_check_branch
        %186 = sbr.rel (%p184) target = $region16
      $region15: #{_lambda_.12} parent=11 // pred_region
        _
      $region16: #{_lambda_.12} parent=11 // pred_fallthru
        _
      // Predicated region
      $region17: #{_lambda_.12} parent=11 // pred_check
        %p187 = pneg %p80
      $region18: #{_lambda_.12} parent=11 // pred_check_branch
        %189 = sbr.rel (%p187) target = $region20
      $region19: #{_lambda_.12} parent=11 // pred_region
        _
      $region20: #{_lambda_.12} parent=11 // pred_fallthru
        _
      // Predicated region
      $region21: #{_lambda_.12} parent=11 // pred_check
        %p190 = pneg %p101
      $region22: #{_lambda_.12} parent=11 // pred_check_branch
        %192 = sbr.rel (%p190) target = $region24
      $region23: #{_lambda_.12} parent=11 // pred_region
        _
      $region24: #{_lambda_.12} parent=11 // pred_fallthru
        _
      // Predicated region
      $region25: #{_lambda_.12} parent=11 // pred_check
        %p193 = pneg %p122
      $region26: #{_lambda_.12} parent=11 // pred_check_branch
        %195 = sbr.rel (%p193) target = $region28
      $region27: #{_lambda_.12} parent=11 // pred_region
        _
      $region28: #{_lambda_.12} parent=11 // pred_fallthru
        _
      // Predicated region
      $region29: #{_lambda_.12} parent=11 // pred_check
        %p196 = pneg %p143
      $region30: #{_lambda_.12} parent=11 // pred_check_branch
        %198 = sbr.rel (%p196) target = $region32
      $region31: #{_lambda_.12} parent=11 // pred_region
        _
      $region32: #{_lambda_.12} parent=11 // pred_fallthru
        _
    $region12: #{_lambda_.12} parent=5 // pred_fallthru
      _
    %p199 = scmp.lt.s32.totalorder %s12, 2
    // Predicated region
    $region33: #{_lambda_.12} parent=5 // pred_check
      %p200 = pneg %p199
    $region34: #{_lambda_.12} parent=5 // pred_check_branch
      %202 = sbr.rel (%p200) target = $region36
    $region35: #{_lambda_.12} parent=5 // pred_region
      // Predicated region
      $region37: #{_lambda_.12} parent=35 // pred_check
        %p203 = pneg %p32
      $region38: #{_lambda_.12} parent=35 // pred_check_branch
        %205 = sbr.rel (%p203) target = $region40
      $region39: #{_lambda_.12} parent=35 // pred_region
        %p206 = scmp.lt.s32.totalorder %s12, 1
        %s207 = scalar_select %p206, %s12, 1
        %s208 = smul.addr %s207, 16
        %s209 = smul.addr %s208, 4
        %s210 = scalar_lea.vmem %s0, %s209
      $region40: #{_lambda_.12} parent=35 // pred_fallthru
        _
    $region36: #{_lambda_.12} parent=5 // pred_fallthru
      _
    %p211 = scmp.le.s32.totalorder 1, %s12
    %p212 = scmp.lt.s32.totalorder %s12, 3
    %p213 = pnand %p211, %p212
    %p214 = pneg %p213
    // Predicated region
    $region41: #{_lambda_.12} parent=5 // pred_check
      _
    $region42: #{_lambda_.12} parent=5 // pred_check_branch
      %216 = sbr.rel (%p213) target = $region44
    $region43: #{_lambda_.12} parent=5 // pred_region
      %s217 = ssub.s32 %s12, 1
      %p218 = scmp.lt.s32.totalorder %s17, 1
      %s219 = scalar_select %p218, %s17, 1
      %s220 = smul.addr %s219, 16
      %s221 = smul.addr %s220, 4
      %s222 = scalar_lea.vmem %s0, %s221
      %p223 = pneg %p38
      %p224 = pneg %p35
      %p225 = pneg %p59
      %p226 = pneg %p56
      %p227 = pneg %p80
      %p228 = pneg %p77
      %p229 = pneg %p101
      %p230 = pneg %p98
      %p231 = pneg %p122
      %p232 = pneg %p119
      %p233 = pneg %p143
      %p234 = pneg %p140
      %p235 = pneg %p169
      %p236 = pneg %p166
      %p237 = scmp.lt.s32.totalorder %s17, 1
      %s238 = scalar_select %p237, %s17, 1
      %s239 = smul.addr %s238, 16
      %s240 = smul.addr %s239, 4
      %s241 = scalar_lea.vmem %s6, %s240
      %p242 = scmp.lt.s32.totalorder %s17, 1
      %s243 = scalar_select %p242, %s17, 1
      %s244 = smul.addr %s243, 16
      %s245 = smul.addr %s244, 4
      %s246 = scalar_lea.vmem %s0, %s245
      %p247 = scmp.lt.s32.totalorder %s17, 1
      %s248 = scalar_select %p247, %s17, 1
      %s249 = smul.addr %s248, 16
      %s250 = smul.addr %s249, 4
      %s251 = scalar_lea.vmem %s6, %s250
      %v253 = vld [vmem:[%s246] sm:$0xf]
      %v254 = vld [vmem:[%s246 + $0x4] sm:$0xf]
      %v255 = vld [vmem:[%s246 + $0x8] sm:$0xf]
      %v256 = vld [vmem:[%s246 + $0xc] sm:$0xf]
      %v257 = vld [vmem:[%s246 + $0x10] sm:$0xf]
      %v258 = vld [vmem:[%s246 + $0x14] sm:$0xf]
      %v259 = vld [vmem:[%s246 + $0x18] sm:$0xf]
      %v260 = vld [vmem:[%s246 + $0x1c] sm:$0xf]
      %v261 = vld [vmem:[%s246 + $0x20] sm:$0xf]
      %v262 = vld [vmem:[%s246 + $0x24] sm:$0xf]
      %v263 = vld [vmem:[%s246 + $0x28] sm:$0xf]
      %v264 = vld [vmem:[%s246 + $0x2c] sm:$0xf]
      %v265 = vld [vmem:[%s246 + $0x30] sm:$0xf]
      %v266 = vld [vmem:[%s246 + $0x34] sm:$0xf]
      %v267 = vld [vmem:[%s246 + $0x38] sm:$0xf]
      %v268 = vld [vmem:[%s246 + $0x3c] sm:$0xf]
      %v269 = vld [vmem:[%s1] sm:$0xf]
      %v270 = vld [vmem:[%s1 + $0x4] sm:$0xf]
      %v271 = vld [vmem:[%s1 + $0x8] sm:$0xf]
      %v272 = vld [vmem:[%s1 + $0xc] sm:$0xf]
      %v273 = vld [vmem:[%s1 + $0x10] sm:$0xf]
      %v274 = vld [vmem:[%s1 + $0x14] sm:$0xf]
      %v275 = vld [vmem:[%s1 + $0x18] sm:$0xf]
      %v276 = vld [vmem:[%s1 + $0x1c] sm:$0xf]
      %v277 = vld [vmem:[%s2] sm:$0x1]
      %v279 = vlaneseq
      %v280 = vshrl.u32 %v279, 7
      %v281 = vsub.s32 0, %v280
      %v282 = vrot.slane %v277, %v281
      %v300 = vunpack.c.l.b16 %v253
      %v301 = vunpack.c.l.b16 %v254
      %v302 = vunpack.c.l.b16 %v255
      %v303 = vunpack.c.l.b16 %v256
      %v304 = vunpack.c.l.b16 %v257
      %v305 = vunpack.c.l.b16 %v258
      %v306 = vunpack.c.l.b16 %v259
      %v307 = vunpack.c.l.b16 %v260
      %v308 = vunpack.c.l.b16 %v261
      %v309 = vunpack.c.l.b16 %v262
      %v310 = vunpack.c.l.b16 %v263
      %v311 = vunpack.c.l.b16 %v264
      %v312 = vunpack.c.l.b16 %v265
      %v313 = vunpack.c.l.b16 %v266
      %v314 = vunpack.c.l.b16 %v267
      %v315 = vunpack.c.l.b16 %v268
      %v316 = vpack.c.b16 %v301, %v300
      %v317 = vpack.c.b16 %v303, %v302
      %v318 = vpack.c.b16 %v305, %v304
      %v319 = vpack.c.b16 %v307, %v306
      %v320 = vpack.c.b16 %v309, %v308
      %v321 = vpack.c.b16 %v311, %v310
      %v322 = vpack.c.b16 %v313, %v312
      %v323 = vpack.c.b16 %v315, %v314
      %v332 = vunpack.c.l.b16 %v269
      %v333 = vunpack.c.l.b16 %v270
      %v334 = vunpack.c.l.b16 %v271
      %v335 = vunpack.c.l.b16 %v272
      %v336 = vunpack.c.l.b16 %v273
      %v337 = vunpack.c.l.b16 %v274
      %v338 = vunpack.c.l.b16 %v275
      %v339 = vunpack.c.l.b16 %v276
      %v340 = vpack.c.b16 %v333, %v332
      %v341 = vpack.c.b16 %v335, %v334
      %v342 = vpack.c.b16 %v337, %v336
      %v343 = vpack.c.b16 %v339, %v338
      %vm348 = vcmask 523264
      %v350 = vsel %vm348, %v316, 0
      %v353 = vsel %vm348, %v317, 0
      %v356 = vsel %vm348, %v318, 0
      %v359 = vsel %vm348, %v319, 0
      %v362 = vsel %vm348, %v320, 0
      %v365 = vsel %vm348, %v321, 0
      %v368 = vsel %vm348, %v322, 0
      %v371 = vsel %vm348, %v323, 0
      %373 = vmatprep.subr.bf16.mxu0 0
      %374 = vmatpush1.bf16.msra.mxu0 %v340
      %375 = vmatprep.subr.bf16.mxu0 0
      %376 = vmatpush1.bf16.msra.mxu0 %v341
      %377 = vmatprep.subr.bf16.mxu0 0
      %378 = vmatpush1.bf16.msra.mxu0 %v342
      %379 = vmatprep.subr.bf16.mxu0 0
      %380 = vmatpush1.bf16.msra.mxu0 %v343
      %381 = vmatprep.subr.bf16.mxu0 0
      %382 = vmatpush1.bf16.msra.mxu0 0
      %383 = vmatprep.subr.bf16.mxu0 0
      %384 = vmatpush1.bf16.msra.mxu0 0
      %385 = vmatprep.subr.bf16.mxu0 0
      %386 = vmatpush1.bf16.msra.mxu0 0
      %387 = vmatprep.subr.bf16.mxu0 0
      %388 = vmatpush1.bf16.msra.mxu0 0
      %389 = vmatprep.subr.bf16.mxu0 0
      %390 = vmatpush1.bf16.msra.mxu0 0
      %391 = vmatprep.subr.bf16.mxu0 0
      %392 = vmatpush1.bf16.msra.mxu0 0
      %393 = vmatprep.subr.bf16.mxu0 0
      %394 = vmatpush1.bf16.msra.mxu0 0
      %395 = vmatprep.subr.bf16.mxu0 0
      %396 = vmatpush1.bf16.msra.mxu0 0
      %397 = vmatprep.subr.bf16.mxu0 0
      %398 = vmatpush1.bf16.msra.mxu0 0
      %399 = vmatprep.subr.bf16.mxu0 0
      %400 = vmatpush1.bf16.msra.mxu0 0
      %401 = vmatprep.subr.bf16.mxu0 0
      %402 = vmatpush1.bf16.msra.mxu0 0
      %403 = vmatprep.subr.bf16.mxu0 0
      %404 = vmatpush1.bf16.msra.mxu0 0
      %405 = vmatprep.mubr.bf16.mxu0 0
      %406 = vmatmul.mubr.bf16.gmra.mrb[0].mxu0 %v350
      %v407 = vpop.f32.mrb[0].mxu0
      %v408 = vadd.f32 %v282, %v407
      %v409 = vpop.f32.mrb[0].mxu0
      %v410 = vpop.f32.mrb[0].mxu0
      %v411 = vadd.f32 %v282, %v410
      %v412 = vpop.f32.mrb[0].mxu0
      %413 = vmatprep.mubr.bf16.mxu0 0
      %414 = vmatmul.mubr.bf16.gmra.mrb[0].mxu0 %v353
      %v415 = vpop.f32.mrb[0].mxu0
      %v416 = vadd.f32 %v282, %v415
      %v417 = vpop.f32.mrb[0].mxu0
      %v418 = vpop.f32.mrb[0].mxu0
      %v419 = vadd.f32 %v282, %v418
      %v420 = vpop.f32.mrb[0].mxu0
      %421 = vmatprep.mubr.bf16.mxu0 0
      %422 = vmatmul.mubr.bf16.gmra.mrb[0].mxu0 %v356
      %v423 = vpop.f32.mrb[0].mxu0
      %v424 = vadd.f32 %v282, %v423
      %v425 = vpop.f32.mrb[0].mxu0
      %v426 = vpop.f32.mrb[0].mxu0
      %v427 = vadd.f32 %v282, %v426
      %v428 = vpop.f32.mrb[0].mxu0
      %429 = vmatprep.mubr.bf16.mxu0 0
      %430 = vmatmul.mubr.bf16.gmra.mrb[0].mxu0 %v359
      %v431 = vpop.f32.mrb[0].mxu0
      %v432 = vadd.f32 %v282, %v431
      %v433 = vpop.f32.mrb[0].mxu0
      %v434 = vpop.f32.mrb[0].mxu0
      %v435 = vadd.f32 %v282, %v434
      %v436 = vpop.f32.mrb[0].mxu0
      %437 = vmatprep.mubr.bf16.mxu0 0
      %438 = vmatmul.mubr.bf16.gmra.mrb[0].mxu0 %v362
      %v439 = vpop.f32.mrb[0].mxu0
      %v440 = vadd.f32 %v282, %v439
      %v441 = vpop.f32.mrb[0].mxu0
      %v442 = vpop.f32.mrb[0].mxu0
      %v443 = vadd.f32 %v282, %v442
      %v444 = vpop.f32.mrb[0].mxu0
      %445 = vmatprep.mubr.bf16.mxu0 0
      %446 = vmatmul.mubr.bf16.gmra.mrb[0].mxu0 %v365
      %v447 = vpop.f32.mrb[0].mxu0
      %v448 = vadd.f32 %v282, %v447
      %v449 = vpop.f32.mrb[0].mxu0
      %v450 = vpop.f32.mrb[0].mxu0
      %v451 = vadd.f32 %v282, %v450
      %v452 = vpop.f32.mrb[0].mxu0
      %453 = vmatprep.mubr.bf16.mxu0 0
      %454 = vmatmul.mubr.bf16.gmra.mrb[0].mxu0 %v368
      %v455 = vpop.f32.mrb[0].mxu0
      %v456 = vadd.f32 %v282, %v455
      %v457 = vpop.f32.mrb[0].mxu0
      %v458 = vpop.f32.mrb[0].mxu0
      %v459 = vadd.f32 %v282, %v458
      %v460 = vpop.f32.mrb[0].mxu0
      %461 = vmatprep.mubr.bf16.mxu0 0
      %462 = vmatmul.mubr.bf16.gmra.mrb[0].mxu0 %v371
      %v463 = vpop.f32.mrb[0].mxu0
      %v464 = vadd.f32 %v282, %v463
      %v465 = vpop.f32.mrb[0].mxu0
      %v466 = vpop.f32.mrb[0].mxu0
      %v467 = vadd.f32 %v282, %v466
      %v468 = vpop.f32.mrb[0].mxu0
      %469 = vdwg.mxu0
      %v470 = vld [vmem:[%s3] sm:$0xff]
      %v471 = vld [vmem:[%s3 + $0x8] sm:$0xff]
      %vm472 = vcmask 130048
      %v474 = vsel %vm472, %v470, 0
      %v477 = vsel %vm472, %v471, 0
      %479 = vmatprep.subr.mxu0 0.0
      %480 = vmatpush1.msra.mxu0 %v408
      %481 = vmatprep.subr.mxu0 0.0
      %482 = vmatpush1.msra.mxu0 %v411
      %483 = vmatprep.subr.mxu0 0.0
      %484 = vmatpush1.msra.mxu0 0.0
      %485 = vmatprep.subr.mxu0 0.0
      %486 = vmatpush1.msra.mxu0 0.0
      %487 = vmatprep.subr.mxu0 0.0
      %488 = vmatpush1.msra.mxu0 0.0
      %489 = vmatprep.subr.mxu0 0.0
      %490 = vmatpush1.msra.mxu0 0.0
      %491 = vmatprep.subr.mxu0 0.0
      %492 = vmatpush1.msra.mxu0 0.0
      %493 = vmatprep.subr.mxu0 0.0
      %494 = vmatpush1.msra.mxu0 0.0
      %495 = vmatprep.subr.mxu0 0.0
      %496 = vmatpush1.msra.mxu0 0.0
      %497 = vmatprep.subr.mxu0 0.0
      %498 = vmatpush1.msra.mxu0 0.0
      %499 = vmatprep.subr.mxu0 0.0
      %500 = vmatpush1.msra.mxu0 0.0
      %501 = vmatprep.subr.mxu0 0.0
      %502 = vmatpush1.msra.mxu0 0.0
      %503 = vmatprep.subr.mxu0 0.0
      %504 = vmatpush1.msra.mxu0 0.0
      %505 = vmatprep.subr.mxu0 0.0
      %506 = vmatpush1.msra.mxu0 0.0
      %507 = vmatprep.subr.mxu0 0.0
      %508 = vmatpush1.msra.mxu0 0.0
      %509 = vmatprep.subr.mxu0 0.0
      %510 = vmatpush1.msra.mxu0 0.0
      %511 = vmatprep.subr.mxu0 0.0
      %512 = vmatpush1.msra.mxu0 0.0
      %513 = vmatprep.subr.mxu0 0.0
      %514 = vmatpush1.msra.mxu0 0.0
      %515 = vmatprep.subr.mxu0 0.0
      %516 = vmatpush1.msra.mxu0 0.0
      %517 = vmatprep.subr.mxu0 0.0
      %518 = vmatpush1.msra.mxu0 0.0
      %519 = vmatprep.subr.mxu0 0.0
      %520 = vmatpush1.msra.mxu0 0.0
      %521 = vmatprep.subr.mxu0 0.0
      %522 = vmatpush1.msra.mxu0 0.0
      %523 = vmatprep.subr.mxu0 0.0
      %524 = vmatpush1.msra.mxu0 0.0
      %525 = vmatprep.subr.mxu0 0.0
      %526 = vmatpush1.msra.mxu0 0.0
      %527 = vmatprep.subr.mxu0 0.0
      %528 = vmatpush1.msra.mxu0 0.0
      %529 = vmatprep.subr.mxu0 0.0
      %530 = vmatpush1.msra.mxu0 0.0
      %531 = vmatprep.subr.mxu0 0.0
      %532 = vmatpush1.msra.mxu0 0.0
      %533 = vmatprep.subr.mxu0 0.0
      %534 = vmatpush1.msra.mxu0 0.0
      %535 = vmatprep.subr.mxu0 0.0
      %536 = vmatpush1.msra.mxu0 0.0
      %537 = vmatprep.subr.mxu0 0.0
      %538 = vmatpush1.msra.mxu0 0.0
      %539 = vmatprep.subr.mxu0 0.0
      %540 = vmatpush1.msra.mxu0 0.0
      %541 = vmatprep.subr.mxu0 0.0
      %542 = vmatpush1.msra.mxu0 0.0
      %543 = vmatprep.mubr.f32.mxu0 0.0
      %544 = vmatmul.mubr.f32.gmra.mrb[0].mxu0 %v474
      %v545 = vpop.f32.mrb[0].mxu0
      %v546 = vadd.f32 0.0, %v545
      %v547 = vpop.f32.mrb[0].mxu0
      %548 = vmatprep.mubr.f32.mxu0 0.0
      %549 = vmatmul.mubr.f32.gmra.mrb[0].mxu0 %v477
      %v550 = vpop.f32.mrb[0].mxu0
      %v551 = vadd.f32 0.0, %v550
      %v552 = vpop.f32.mrb[0].mxu0
      %553 = vdwg.mxu0
      %554 = vmatprep.subr.mxu0 0.0
      %555 = vmatpush1.msra.mxu0 %v416
      %556 = vmatprep.subr.mxu0 0.0
      %557 = vmatpush1.msra.mxu0 %v419
      %558 = vmatprep.subr.mxu0 0.0
      %559 = vmatpush1.msra.mxu0 0.0
      %560 = vmatprep.subr.mxu0 0.0
      %561 = vmatpush1.msra.mxu0 0.0
      %562 = vmatprep.subr.mxu0 0.0
      %563 = vmatpush1.msra.mxu0 0.0
      %564 = vmatprep.subr.mxu0 0.0
      %565 = vmatpush1.msra.mxu0 0.0
      %566 = vmatprep.subr.mxu0 0.0
      %567 = vmatpush1.msra.mxu0 0.0
      %568 = vmatprep.subr.mxu0 0.0
      %569 = vmatpush1.msra.mxu0 0.0
      %570 = vmatprep.subr.mxu0 0.0
      %571 = vmatpush1.msra.mxu0 0.0
      %572 = vmatprep.subr.mxu0 0.0
      %573 = vmatpush1.msra.mxu0 0.0
      %574 = vmatprep.subr.mxu0 0.0
      %575 = vmatpush1.msra.mxu0 0.0
      %576 = vmatprep.subr.mxu0 0.0
      %577 = vmatpush1.msra.mxu0 0.0
      %578 = vmatprep.subr.mxu0 0.0
      %579 = vmatpush1.msra.mxu0 0.0
      %580 = vmatprep.subr.mxu0 0.0
      %581 = vmatpush1.msra.mxu0 0.0
      %582 = vmatprep.subr.mxu0 0.0
      %583 = vmatpush1.msra.mxu0 0.0
      %584 = vmatprep.subr.mxu0 0.0
      %585 = vmatpush1.msra.mxu0 0.0
      %586 = vmatprep.subr.mxu0 0.0
      %587 = vmatpush1.msra.mxu0 0.0
      %588 = vmatprep.subr.mxu0 0.0
      %589 = vmatpush1.msra.mxu0 0.0
      %590 = vmatprep.subr.mxu0 0.0
      %591 = vmatpush1.msra.mxu0 0.0
      %592 = vmatprep.subr.mxu0 0.0
      %593 = vmatpush1.msra.mxu0 0.0
      %594 = vmatprep.subr.mxu0 0.0
      %595 = vmatpush1.msra.mxu0 0.0
      %596 = vmatprep.subr.mxu0 0.0
      %597 = vmatpush1.msra.mxu0 0.0
      %598 = vmatprep.subr.mxu0 0.0
      %599 = vmatpush1.msra.mxu0 0.0
      %600 = vmatprep.subr.mxu0 0.0
      %601 = vmatpush1.msra.mxu0 0.0
      %602 = vmatprep.subr.mxu0 0.0
      %603 = vmatpush1.msra.mxu0 0.0
      %604 = vmatprep.subr.mxu0 0.0
      %605 = vmatpush1.msra.mxu0 0.0
      %606 = vmatprep.subr.mxu0 0.0
      %607 = vmatpush1.msra.mxu0 0.0
      %608 = vmatprep.subr.mxu0 0.0
      %609 = vmatpush1.msra.mxu0 0.0
      %610 = vmatprep.subr.mxu0 0.0
      %611 = vmatpush1.msra.mxu0 0.0
      %612 = vmatprep.subr.mxu0 0.0
      %613 = vmatpush1.msra.mxu0 0.0
      %614 = vmatprep.subr.mxu0 0.0
      %615 = vmatpush1.msra.mxu0 0.0
      %616 = vmatprep.subr.mxu0 0.0
      %617 = vmatpush1.msra.mxu0 0.0
      %618 = vmatprep.mubr.f32.mxu0 0.0
      %619 = vmatmul.mubr.f32.gmra.mrb[0].mxu0 %v474
      %v620 = vpop.f32.mrb[0].mxu0
      %v621 = vadd.f32 0.0, %v620
      %v622 = vpop.f32.mrb[0].mxu0
      %623 = vmatprep.mubr.f32.mxu0 0.0
      %624 = vmatmul.mubr.f32.gmra.mrb[0].mxu0 %v477
      %v625 = vpop.f32.mrb[0].mxu0
      %v626 = vadd.f32 0.0, %v625
      %v627 = vpop.f32.mrb[0].mxu0
      %628 = vdwg.mxu0
      %629 = vmatprep.subr.mxu0 0.0
      %630 = vmatpush1.msra.mxu0 %v424
      %631 = vmatprep.subr.mxu0 0.0
      %632 = vmatpush1.msra.mxu0 %v427
      %633 = vmatprep.subr.mxu0 0.0
      %634 = vmatpush1.msra.mxu0 0.0
      %635 = vmatprep.subr.mxu0 0.0
      %636 = vmatpush1.msra.mxu0 0.0
      %637 = vmatprep.subr.mxu0 0.0
      %638 = vmatpush1.msra.mxu0 0.0
      %639 = vmatprep.subr.mxu0 0.0
      %640 = vmatpush1.msra.mxu0 0.0
      %641 = vmatprep.subr.mxu0 0.0
      %642 = vmatpush1.msra.mxu0 0.0
      %643 = vmatprep.subr.mxu0 0.0
      %644 = vmatpush1.msra.mxu0 0.0
      %645 = vmatprep.subr.mxu0 0.0
      %646 = vmatpush1.msra.mxu0 0.0
      %647 = vmatprep.subr.mxu0 0.0
      %648 = vmatpush1.msra.mxu0 0.0
      %649 = vmatprep.subr.mxu0 0.0
      %650 = vmatpush1.msra.mxu0 0.0
      %651 = vmatprep.subr.mxu0 0.0
      %652 = vmatpush1.msra.mxu0 0.0
      %653 = vmatprep.subr.mxu0 0.0
      %654 = vmatpush1.msra.mxu0 0.0
      %655 = vmatprep.subr.mxu0 0.0
      %656 = vmatpush1.msra.mxu0 0.0
      %657 = vmatprep.subr.mxu0 0.0
      %658 = vmatpush1.msra.mxu0 0.0
      %659 = vmatprep.subr.mxu0 0.0
      %660 = vmatpush1.msra.mxu0 0.0
      %661 = vmatprep.subr.mxu0 0.0
      %662 = vmatpush1.msra.mxu0 0.0
      %663 = vmatprep.subr.mxu0 0.0
      %664 = vmatpush1.msra.mxu0 0.0
      %665 = vmatprep.subr.mxu0 0.0
      %666 = vmatpush1.msra.mxu0 0.0
      %667 = vmatprep.subr.mxu0 0.0
      %668 = vmatpush1.msra.mxu0 0.0
      %669 = vmatprep.subr.mxu0 0.0
      %670 = vmatpush1.msra.mxu0 0.0
      %671 = vmatprep.subr.mxu0 0.0
      %672 = vmatpush1.msra.mxu0 0.0
      %673 = vmatprep.subr.mxu0 0.0
      %674 = vmatpush1.msra.mxu0 0.0
      %675 = vmatprep.subr.mxu0 0.0
      %676 = vmatpush1.msra.mxu0 0.0
      %677 = vmatprep.subr.mxu0 0.0
      %678 = vmatpush1.msra.mxu0 0.0
      %679 = vmatprep.subr.mxu0 0.0
      %680 = vmatpush1.msra.mxu0 0.0
      %681 = vmatprep.subr.mxu0 0.0
      %682 = vmatpush1.msra.mxu0 0.0
      %683 = vmatprep.subr.mxu0 0.0
      %684 = vmatpush1.msra.mxu0 0.0
      %685 = vmatprep.subr.mxu0 0.0
      %686 = vmatpush1.msra.mxu0 0.0
      %687 = vmatprep.subr.mxu0 0.0
      %688 = vmatpush1.msra.mxu0 0.0
      %689 = vmatprep.subr.mxu0 0.0
      %690 = vmatpush1.msra.mxu0 0.0
      %691 = vmatprep.subr.mxu0 0.0
      %692 = vmatpush1.msra.mxu0 0.0
      %693 = vmatprep.mubr.f32.mxu0 0.0
      %694 = vmatmul.mubr.f32.gmra.mrb[0].mxu0 %v474
      %v695 = vpop.f32.mrb[0].mxu0
      %v696 = vadd.f32 0.0, %v695
      %v697 = vpop.f32.mrb[0].mxu0
      %698 = vmatprep.mubr.f32.mxu0 0.0
      %699 = vmatmul.mubr.f32.gmra.mrb[0].mxu0 %v477
      %v700 = vpop.f32.mrb[0].mxu0
      %v701 = vadd.f32 0.0, %v700
      %v702 = vpop.f32.mrb[0].mxu0
      %703 = vdwg.mxu0
      %704 = vmatprep.subr.mxu0 0.0
      %705 = vmatpush1.msra.mxu0 %v432
      %706 = vmatprep.subr.mxu0 0.0
      %707 = vmatpush1.msra.mxu0 %v435
      %708 = vmatprep.subr.mxu0 0.0
      %709 = vmatpush1.msra.mxu0 0.0
      %710 = vmatprep.subr.mxu0 0.0
      %711 = vmatpush1.msra.mxu0 0.0
      %712 = vmatprep.subr.mxu0 0.0
      %713 = vmatpush1.msra.mxu0 0.0
      %714 = vmatprep.subr.mxu0 0.0
      %715 = vmatpush1.msra.mxu0 0.0
      %716 = vmatprep.subr.mxu0 0.0
      %717 = vmatpush1.msra.mxu0 0.0
      %718 = vmatprep.subr.mxu0 0.0
      %719 = vmatpush1.msra.mxu0 0.0
      %720 = vmatprep.subr.mxu0 0.0
      %721 = vmatpush1.msra.mxu0 0.0
      %722 = vmatprep.subr.mxu0 0.0
      %723 = vmatpush1.msra.mxu0 0.0
      %724 = vmatprep.subr.mxu0 0.0
      %725 = vmatpush1.msra.mxu0 0.0
      %726 = vmatprep.subr.mxu0 0.0
      %727 = vmatpush1.msra.mxu0 0.0
      %728 = vmatprep.subr.mxu0 0.0
      %729 = vmatpush1.msra.mxu0 0.0
      %730 = vmatprep.subr.mxu0 0.0
      %731 = vmatpush1.msra.mxu0 0.0
      %732 = vmatprep.subr.mxu0 0.0
      %733 = vmatpush1.msra.mxu0 0.0
      %734 = vmatprep.subr.mxu0 0.0
      %735 = vmatpush1.msra.mxu0 0.0
      %736 = vmatprep.subr.mxu0 0.0
      %737 = vmatpush1.msra.mxu0 0.0
      %738 = vmatprep.subr.mxu0 0.0
      %739 = vmatpush1.msra.mxu0 0.0
      %740 = vmatprep.subr.mxu0 0.0
      %741 = vmatpush1.msra.mxu0 0.0
      %742 = vmatprep.subr.mxu0 0.0
      %743 = vmatpush1.msra.mxu0 0.0
      %744 = vmatprep.subr.mxu0 0.0
      %745 = vmatpush1.msra.mxu0 0.0
      %746 = vmatprep.subr.mxu0 0.0
      %747 = vmatpush1.msra.mxu0 0.0
      %748 = vmatprep.subr.mxu0 0.0
      %749 = vmatpush1.msra.mxu0 0.0
      %750 = vmatprep.subr.mxu0 0.0
      %751 = vmatpush1.msra.mxu0 0.0
      %752 = vmatprep.subr.mxu0 0.0
      %753 = vmatpush1.msra.mxu0 0.0
      %754 = vmatprep.subr.mxu0 0.0
      %755 = vmatpush1.msra.mxu0 0.0
      %756 = vmatprep.subr.mxu0 0.0
      %757 = vmatpush1.msra.mxu0 0.0
      %758 = vmatprep.subr.mxu0 0.0
      %759 = vmatpush1.msra.mxu0 0.0
      %760 = vmatprep.subr.mxu0 0.0
      %761 = vmatpush1.msra.mxu0 0.0
      %762 = vmatprep.subr.mxu0 0.0
      %763 = vmatpush1.msra.mxu0 0.0
      %764 = vmatprep.subr.mxu0 0.0
      %765 = vmatpush1.msra.mxu0 0.0
      %766 = vmatprep.subr.mxu0 0.0
      %767 = vmatpush1.msra.mxu0 0.0
      %768 = vmatprep.mubr.f32.mxu0 0.0
      %769 = vmatmul.mubr.f32.gmra.mrb[0].mxu0 %v474
      %v770 = vpop.f32.mrb[0].mxu0
      %v771 = vadd.f32 0.0, %v770
      %v772 = vpop.f32.mrb[0].mxu0
      %773 = vmatprep.mubr.f32.mxu0 0.0
      %774 = vmatmul.mubr.f32.gmra.mrb[0].mxu0 %v477
      %v775 = vpop.f32.mrb[0].mxu0
      %v776 = vadd.f32 0.0, %v775
      %v777 = vpop.f32.mrb[0].mxu0
      %778 = vdwg.mxu0
      %779 = vmatprep.subr.mxu0 0.0
      %780 = vmatpush1.msra.mxu0 %v440
      %781 = vmatprep.subr.mxu0 0.0
      %782 = vmatpush1.msra.mxu0 %v443
      %783 = vmatprep.subr.mxu0 0.0
      %784 = vmatpush1.msra.mxu0 0.0
      %785 = vmatprep.subr.mxu0 0.0
      %786 = vmatpush1.msra.mxu0 0.0
      %787 = vmatprep.subr.mxu0 0.0
      %788 = vmatpush1.msra.mxu0 0.0
      %789 = vmatprep.subr.mxu0 0.0
      %790 = vmatpush1.msra.mxu0 0.0
      %791 = vmatprep.subr.mxu0 0.0
      %792 = vmatpush1.msra.mxu0 0.0
      %793 = vmatprep.subr.mxu0 0.0
      %794 = vmatpush1.msra.mxu0 0.0
      %795 = vmatprep.subr.mxu0 0.0
      %796 = vmatpush1.msra.mxu0 0.0
      %797 = vmatprep.subr.mxu0 0.0
      %798 = vmatpush1.msra.mxu0 0.0
      %799 = vmatprep.subr.mxu0 0.0
      %800 = vmatpush1.msra.mxu0 0.0
      %801 = vmatprep.subr.mxu0 0.0
      %802 = vmatpush1.msra.mxu0 0.0
      %803 = vmatprep.subr.mxu0 0.0
      %804 = vmatpush1.msra.mxu0 0.0
      %805 = vmatprep.subr.mxu0 0.0
      %806 = vmatpush1.msra.mxu0 0.0
      %807 = vmatprep.subr.mxu0 0.0
      %808 = vmatpush1.msra.mxu0 0.0
      %809 = vmatprep.subr.mxu0 0.0
      %810 = vmatpush1.msra.mxu0 0.0
      %811 = vmatprep.subr.mxu0 0.0
      %812 = vmatpush1.msra.mxu0 0.0
      %813 = vmatprep.subr.mxu0 0.0
      %814 = vmatpush1.msra.mxu0 0.0
      %815 = vmatprep.subr.mxu0 0.0
      %816 = vmatpush1.msra.mxu0 0.0
      %817 = vmatprep.subr.mxu0 0.0
      %818 = vmatpush1.msra.mxu0 0.0
      %819 = vmatprep.subr.mxu0 0.0
      %820 = vmatpush1.msra.mxu0 0.0
      %821 = vmatprep.subr.mxu0 0.0
      %822 = vmatpush1.msra.mxu0 0.0
      %823 = vmatprep.subr.mxu0 0.0
      %824 = vmatpush1.msra.mxu0 0.0
      %825 = vmatprep.subr.mxu0 0.0
      %826 = vmatpush1.msra.mxu0 0.0
      %827 = vmatprep.subr.mxu0 0.0
      %828 = vmatpush1.msra.mxu0 0.0
      %829 = vmatprep.subr.mxu0 0.0
      %830 = vmatpush1.msra.mxu0 0.0
      %831 = vmatprep.subr.mxu0 0.0
      %832 = vmatpush1.msra.mxu0 0.0
      %833 = vmatprep.subr.mxu0 0.0
      %834 = vmatpush1.msra.mxu0 0.0
      %835 = vmatprep.subr.mxu0 0.0
      %836 = vmatpush1.msra.mxu0 0.0
      %837 = vmatprep.subr.mxu0 0.0
      %838 = vmatpush1.msra.mxu0 0.0
      %839 = vmatprep.subr.mxu0 0.0
      %840 = vmatpush1.msra.mxu0 0.0
      %841 = vmatprep.subr.mxu0 0.0
      %842 = vmatpush1.msra.mxu0 0.0
      %843 = vmatprep.mubr.f32.mxu0 0.0
      %844 = vmatmul.mubr.f32.gmra.mrb[0].mxu0 %v474
      %v845 = vpop.f32.mrb[0].mxu0
      %v846 = vadd.f32 0.0, %v845
      %v847 = vpop.f32.mrb[0].mxu0
      %848 = vmatprep.mubr.f32.mxu0 0.0
      %849 = vmatmul.mubr.f32.gmra.mrb[0].mxu0 %v477
      %v850 = vpop.f32.mrb[0].mxu0
      %v851 = vadd.f32 0.0, %v850
      %v852 = vpop.f32.mrb[0].mxu0
      %853 = vdwg.mxu0
      %854 = vmatprep.subr.mxu0 0.0
      %855 = vmatpush1.msra.mxu0 %v448
      %856 = vmatprep.subr.mxu0 0.0
      %857 = vmatpush1.msra.mxu0 %v451
      %858 = vmatprep.subr.mxu0 0.0
      %859 = vmatpush1.msra.mxu0 0.0
      %860 = vmatprep.subr.mxu0 0.0
      %861 = vmatpush1.msra.mxu0 0.0
      %862 = vmatprep.subr.mxu0 0.0
      %863 = vmatpush1.msra.mxu0 0.0
      %864 = vmatprep.subr.mxu0 0.0
      %865 = vmatpush1.msra.mxu0 0.0
      %866 = vmatprep.subr.mxu0 0.0
      %867 = vmatpush1.msra.mxu0 0.0
      %868 = vmatprep.subr.mxu0 0.0
      %869 = vmatpush1.msra.mxu0 0.0
      %870 = vmatprep.subr.mxu0 0.0
      %871 = vmatpush1.msra.mxu0 0.0
      %872 = vmatprep.subr.mxu0 0.0
      %873 = vmatpush1.msra.mxu0 0.0
      %874 = vmatprep.subr.mxu0 0.0
      %875 = vmatpush1.msra.mxu0 0.0
      %876 = vmatprep.subr.mxu0 0.0
      %877 = vmatpush1.msra.mxu0 0.0
      %878 = vmatprep.subr.mxu0 0.0
      %879 = vmatpush1.msra.mxu0 0.0
      %880 = vmatprep.subr.mxu0 0.0
      %881 = vmatpush1.msra.mxu0 0.0
      %882 = vmatprep.subr.mxu0 0.0
      %883 = vmatpush1.msra.mxu0 0.0
      %884 = vmatprep.subr.mxu0 0.0
      %885 = vmatpush1.msra.mxu0 0.0
      %886 = vmatprep.subr.mxu0 0.0
      %887 = vmatpush1.msra.mxu0 0.0
      %888 = vmatprep.subr.mxu0 0.0
      %889 = vmatpush1.msra.mxu0 0.0
      %890 = vmatprep.subr.mxu0 0.0
      %891 = vmatpush1.msra.mxu0 0.0
      %892 = vmatprep.subr.mxu0 0.0
      %893 = vmatpush1.msra.mxu0 0.0
      %894 = vmatprep.subr.mxu0 0.0
      %895 = vmatpush1.msra.mxu0 0.0
      %896 = vmatprep.subr.mxu0 0.0
      %897 = vmatpush1.msra.mxu0 0.0
      %898 = vmatprep.subr.mxu0 0.0
      %899 = vmatpush1.msra.mxu0 0.0
      %900 = vmatprep.subr.mxu0 0.0
      %901 = vmatpush1.msra.mxu0 0.0
      %902 = vmatprep.subr.mxu0 0.0
      %903 = vmatpush1.msra.mxu0 0.0
      %904 = vmatprep.subr.mxu0 0.0
      %905 = vmatpush1.msra.mxu0 0.0
      %906 = vmatprep.subr.mxu0 0.0
      %907 = vmatpush1.msra.mxu0 0.0
      %908 = vmatprep.subr.mxu0 0.0
      %909 = vmatpush1.msra.mxu0 0.0
      %910 = vmatprep.subr.mxu0 0.0
      %911 = vmatpush1.msra.mxu0 0.0
      %912 = vmatprep.subr.mxu0 0.0
      %913 = vmatpush1.msra.mxu0 0.0
      %914 = vmatprep.subr.mxu0 0.0
      %915 = vmatpush1.msra.mxu0 0.0
      %916 = vmatprep.subr.mxu0 0.0
      %917 = vmatpush1.msra.mxu0 0.0
      %918 = vmatprep.mubr.f32.mxu0 0.0
      %919 = vmatmul.mubr.f32.gmra.mrb[0].mxu0 %v474
      %v920 = vpop.f32.mrb[0].mxu0
      %v921 = vadd.f32 0.0, %v920
      %v922 = vpop.f32.mrb[0].mxu0
      %923 = vmatprep.mubr.f32.mxu0 0.0
      %924 = vmatmul.mubr.f32.gmra.mrb[0].mxu0 %v477
      %v925 = vpop.f32.mrb[0].mxu0
      %v926 = vadd.f32 0.0, %v925
      %v927 = vpop.f32.mrb[0].mxu0
      %928 = vdwg.mxu0
      %929 = vmatprep.subr.mxu0 0.0
      %930 = vmatpush1.msra.mxu0 %v456
      %931 = vmatprep.subr.mxu0 0.0
      %932 = vmatpush1.msra.mxu0 %v459
      %933 = vmatprep.subr.mxu0 0.0
      %934 = vmatpush1.msra.mxu0 0.0
      %935 = vmatprep.subr.mxu0 0.0
      %936 = vmatpush1.msra.mxu0 0.0
      %937 = vmatprep.subr.mxu0 0.0
      %938 = vmatpush1.msra.mxu0 0.0
      %939 = vmatprep.subr.mxu0 0.0
      %940 = vmatpush1.msra.mxu0 0.0
      %941 = vmatprep.subr.mxu0 0.0
      %942 = vmatpush1.msra.mxu0 0.0
      %943 = vmatprep.subr.mxu0 0.0
      %944 = vmatpush1.msra.mxu0 0.0
      %945 = vmatprep.subr.mxu0 0.0
      %946 = vmatpush1.msra.mxu0 0.0
      %947 = vmatprep.subr.mxu0 0.0
      %948 = vmatpush1.msra.mxu0 0.0
      %949 = vmatprep.subr.mxu0 0.0
      %950 = vmatpush1.msra.mxu0 0.0
      %951 = vmatprep.subr.mxu0 0.0
      %952 = vmatpush1.msra.mxu0 0.0
      %953 = vmatprep.subr.mxu0 0.0
      %954 = vmatpush1.msra.mxu0 0.0
      %955 = vmatprep.subr.mxu0 0.0
      %956 = vmatpush1.msra.mxu0 0.0
      %957 = vmatprep.subr.mxu0 0.0
      %958 = vmatpush1.msra.mxu0 0.0
      %959 = vmatprep.subr.mxu0 0.0
      %960 = vmatpush1.msra.mxu0 0.0
      %961 = vmatprep.subr.mxu0 0.0
      %962 = vmatpush1.msra.mxu0 0.0
      %963 = vmatprep.subr.mxu0 0.0
      %964 = vmatpush1.msra.mxu0 0.0
      %965 = vmatprep.subr.mxu0 0.0
      %966 = vmatpush1.msra.mxu0 0.0
      %967 = vmatprep.subr.mxu0 0.0
      %968 = vmatpush1.msra.mxu0 0.0
      %969 = vmatprep.subr.mxu0 0.0
      %970 = vmatpush1.msra.mxu0 0.0
      %971 = vmatprep.subr.mxu0 0.0
      %972 = vmatpush1.msra.mxu0 0.0
      %973 = vmatprep.subr.mxu0 0.0
      %974 = vmatpush1.msra.mxu0 0.0
      %975 = vmatprep.subr.mxu0 0.0
      %976 = vmatpush1.msra.mxu0 0.0
      %977 = vmatprep.subr.mxu0 0.0
      %978 = vmatpush1.msra.mxu0 0.0
      %979 = vmatprep.subr.mxu0 0.0
      %980 = vmatpush1.msra.mxu0 0.0
      %981 = vmatprep.subr.mxu0 0.0
      %982 = vmatpush1.msra.mxu0 0.0
      %983 = vmatprep.subr.mxu0 0.0
      %984 = vmatpush1.msra.mxu0 0.0
      %985 = vmatprep.subr.mxu0 0.0
      %986 = vmatpush1.msra.mxu0 0.0
      %987 = vmatprep.subr.mxu0 0.0
      %988 = vmatpush1.msra.mxu0 0.0
      %989 = vmatprep.subr.mxu0 0.0
      %990 = vmatpush1.msra.mxu0 0.0
      %991 = vmatprep.subr.mxu0 0.0
      %992 = vmatpush1.msra.mxu0 0.0
      %993 = vmatprep.mubr.f32.mxu0 0.0
      %994 = vmatmul.mubr.f32.gmra.mrb[0].mxu0 %v474
      %v995 = vpop.f32.mrb[0].mxu0
      %v996 = vadd.f32 0.0, %v995
      %v997 = vpop.f32.mrb[0].mxu0
      %998 = vmatprep.mubr.f32.mxu0 0.0
      %999 = vmatmul.mubr.f32.gmra.mrb[0].mxu0 %v477
      %v1000 = vpop.f32.mrb[0].mxu0
      %v1001 = vadd.f32 0.0, %v1000
      %v1002 = vpop.f32.mrb[0].mxu0
      %1003 = vdwg.mxu0
      %1004 = vmatprep.subr.mxu0 0.0
      %1005 = vmatpush1.msra.mxu0 %v464
      %1006 = vmatprep.subr.mxu0 0.0
      %1007 = vmatpush1.msra.mxu0 %v467
      %1008 = vmatprep.subr.mxu0 0.0
      %1009 = vmatpush1.msra.mxu0 0.0
      %1010 = vmatprep.subr.mxu0 0.0
      %1011 = vmatpush1.msra.mxu0 0.0
      %1012 = vmatprep.subr.mxu0 0.0
      %1013 = vmatpush1.msra.mxu0 0.0
      %1014 = vmatprep.subr.mxu0 0.0
      %1015 = vmatpush1.msra.mxu0 0.0
      %1016 = vmatprep.subr.mxu0 0.0
      %1017 = vmatpush1.msra.mxu0 0.0
      %1018 = vmatprep.subr.mxu0 0.0
      %1019 = vmatpush1.msra.mxu0 0.0
      %1020 = vmatprep.subr.mxu0 0.0
      %1021 = vmatpush1.msra.mxu0 0.0
      %1022 = vmatprep.subr.mxu0 0.0
      %1023 = vmatpush1.msra.mxu0 0.0
      %1024 = vmatprep.subr.mxu0 0.0
      %1025 = vmatpush1.msra.mxu0 0.0
      %1026 = vmatprep.subr.mxu0 0.0
      %1027 = vmatpush1.msra.mxu0 0.0
      %1028 = vmatprep.subr.mxu0 0.0
      %1029 = vmatpush1.msra.mxu0 0.0
      %1030 = vmatprep.subr.mxu0 0.0
      %1031 = vmatpush1.msra.mxu0 0.0
      %1032 = vmatprep.subr.mxu0 0.0
      %1033 = vmatpush1.msra.mxu0 0.0
      %1034 = vmatprep.subr.mxu0 0.0
      %1035 = vmatpush1.msra.mxu0 0.0
      %1036 = vmatprep.subr.mxu0 0.0
      %1037 = vmatpush1.msra.mxu0 0.0
      %1038 = vmatprep.subr.mxu0 0.0
      %1039 = vmatpush1.msra.mxu0 0.0
      %1040 = vmatprep.subr.mxu0 0.0
      %1041 = vmatpush1.msra.mxu0 0.0
      %1042 = vmatprep.subr.mxu0 0.0
      %1043 = vmatpush1.msra.mxu0 0.0
      %1044 = vmatprep.subr.mxu0 0.0
      %1045 = vmatpush1.msra.mxu0 0.0
      %1046 = vmatprep.subr.mxu0 0.0
      %1047 = vmatpush1.msra.mxu0 0.0
      %1048 = vmatprep.subr.mxu0 0.0
      %1049 = vmatpush1.msra.mxu0 0.0
      %1050 = vmatprep.subr.mxu0 0.0
      %1051 = vmatpush1.msra.mxu0 0.0
      %1052 = vmatprep.subr.mxu0 0.0
      %1053 = vmatpush1.msra.mxu0 0.0
      %1054 = vmatprep.subr.mxu0 0.0
      %1055 = vmatpush1.msra.mxu0 0.0
      %1056 = vmatprep.subr.mxu0 0.0
      %1057 = vmatpush1.msra.mxu0 0.0
      %1058 = vmatprep.subr.mxu0 0.0
      %1059 = vmatpush1.msra.mxu0 0.0
      %1060 = vmatprep.subr.mxu0 0.0
      %1061 = vmatpush1.msra.mxu0 0.0
      %1062 = vmatprep.subr.mxu0 0.0
      %1063 = vmatpush1.msra.mxu0 0.0
      %1064 = vmatprep.subr.mxu0 0.0
      %1065 = vmatpush1.msra.mxu0 0.0
      %1066 = vmatprep.subr.mxu0 0.0
      %1067 = vmatpush1.msra.mxu0 0.0
      %1068 = vmatprep.mubr.f32.mxu0 0.0
      %1069 = vmatmul.mubr.f32.gmra.mrb[0].mxu0 %v474
      %v1070 = vpop.f32.mrb[0].mxu0
      %v1071 = vadd.f32 0.0, %v1070
      %v1072 = vpop.f32.mrb[0].mxu0
      %1073 = vmatprep.mubr.f32.mxu0 0.0
      %1074 = vmatmul.mubr.f32.gmra.mrb[0].mxu0 %v477
      %v1075 = vpop.f32.mrb[0].mxu0
      %v1076 = vadd.f32 0.0, %v1075
      %v1077 = vpop.f32.mrb[0].mxu0
      %1078 = vdwg.mxu0
      %1079 = vst.msk [vmem:[#allocation2] sm:$0xff] %vm348, 0
      %s1080 = scalar_lea.vmem [#allocation2], 72
      %1081 = vst.msk [vmem:[%s1080] sm:$0xff] %vm348, 0
      %v1082 = vpack.c.bf16 %v551, %v546
      %v1083 = vpack.c.bf16 %v626, %v621
      %v1084 = vpack.c.bf16 %v701, %v696
      %v1085 = vpack.c.bf16 %v776, %v771
      %v1086 = vpack.c.bf16 %v851, %v846
      %v1087 = vpack.c.bf16 %v926, %v921
      %v1088 = vpack.c.bf16 %v1001, %v996
      %v1089 = vpack.c.bf16 %v1076, %v1071
      %s1090 = scalar_lea.vmem [#allocation2], 8
      %1091 = vst.msk [vmem:[%s1090] sm:$0xff] %vm348, %v1082
      %1092 = vst.msk [vmem:[%s1090 + $0x8] sm:$0xff] %vm348, %v1083
      %1093 = vst.msk [vmem:[%s1090 + $0x10] sm:$0xff] %vm348, %v1084
      %1094 = vst.msk [vmem:[%s1090 + $0x18] sm:$0xff] %vm348, %v1085
      %1095 = vst.msk [vmem:[%s1090 + $0x20] sm:$0xff] %vm348, %v1086
      %1096 = vst.msk [vmem:[%s1090 + $0x28] sm:$0xff] %vm348, %v1087
      %1097 = vst.msk [vmem:[%s1090 + $0x30] sm:$0xff] %vm348, %v1088
      %1098 = vst.msk [vmem:[%s1090 + $0x38] sm:$0xff] %vm348, %v1089
      %v1099 = vld [vmem:[#allocation2] sm:$0xff]
      %v1100 = vld [vmem:[#allocation2 + $0x8] sm:$0xff]
      %v1101 = vld [vmem:[#allocation2 + $0x10] sm:$0xff]
      %v1102 = vld [vmem:[#allocation2 + $0x18] sm:$0xff]
      %v1103 = vld [vmem:[#allocation2 + $0x20] sm:$0xff]
      %v1104 = vld [vmem:[#allocation2 + $0x28] sm:$0xff]
      %v1105 = vld [vmem:[#allocation2 + $0x30] sm:$0xff]
      %v1106 = vld [vmem:[#allocation2 + $0x38] sm:$0xff]
      %v1107 = vld [vmem:[%s4] sm:$0xf]
      %v1108 = vld [vmem:[%s4 + $0x4] sm:$0xf]
      %v1109 = vld [vmem:[%s4 + $0x8] sm:$0xf]
      %v1110 = vld [vmem:[%s4 + $0xc] sm:$0xf]
      %v1111 = vld [vmem:[%s4 + $0x10] sm:$0xf]
      %v1112 = vld [vmem:[%s4 + $0x14] sm:$0xf]
      %v1113 = vld [vmem:[%s4 + $0x18] sm:$0xf]
      %v1114 = vld [vmem:[%s4 + $0x1c] sm:$0xf]
      %v1115 = vld [vmem:[%s1090] sm:$0xff]
      %v1116 = vld [vmem:[%s1090 + $0x8] sm:$0xff]
      %v1117 = vld [vmem:[%s1090 + $0x10] sm:$0xff]
      %v1118 = vld [vmem:[%s1090 + $0x18] sm:$0xff]
      %v1119 = vld [vmem:[%s1090 + $0x20] sm:$0xff]
      %v1120 = vld [vmem:[%s1090 + $0x28] sm:$0xff]
      %v1121 = vld [vmem:[%s1090 + $0x30] sm:$0xff]
      %v1122 = vld [vmem:[%s1090 + $0x38] sm:$0xff]
      %s1123 = scalar_lea.vmem %s4, 32
      %v1124 = vld [vmem:[%s1123] sm:$0xf]
      %v1125 = vld [vmem:[%s1123 + $0x4] sm:$0xf]
      %v1126 = vld [vmem:[%s1123 + $0x8] sm:$0xf]
      %v1127 = vld [vmem:[%s1123 + $0xc] sm:$0xf]
      %v1128 = vld [vmem:[%s1123 + $0x10] sm:$0xf]
      %v1129 = vld [vmem:[%s1123 + $0x14] sm:$0xf]
      %v1130 = vld [vmem:[%s1123 + $0x18] sm:$0xf]
      %v1131 = vld [vmem:[%s1123 + $0x1c] sm:$0xf]
      %v1140 = vunpack.c.l.b16 %v1124
      %v1141 = vunpack.c.l.b16 %v1125
      %v1142 = vunpack.c.l.b16 %v1126
      %v1143 = vunpack.c.l.b16 %v1127
      %v1144 = vunpack.c.l.b16 %v1128
      %v1145 = vunpack.c.l.b16 %v1129
      %v1146 = vunpack.c.l.b16 %v1130
      %v1147 = vunpack.c.l.b16 %v1131
      %v1148 = vpack.c.b16 %v1141, %v1140
      %v1149 = vpack.c.b16 %v1143, %v1142
      %v1150 = vpack.c.b16 %v1145, %v1144
      %v1151 = vpack.c.b16 %v1147, %v1146
      %v1157 = vsel %vm348, %v1115, 0
      %v1160 = vsel %vm348, %v1116, 0
      %v1163 = vsel %vm348, %v1117, 0
      %v1166 = vsel %vm348, %v1118, 0
      %v1169 = vsel %vm348, %v1119, 0
      %v1172 = vsel %vm348, %v1120, 0
      %v1175 = vsel %vm348, %v1121, 0
      %v1178 = vsel %vm348, %v1122, 0
      %1180 = vmatprep.subr.bf16.mxu0 0
      %1181 = vmatpush1.bf16.msra.mxu0 %v1148
      %1182 = vmatprep.subr.bf16.mxu0 0
      %1183 = vmatpush1.bf16.msra.mxu0 %v1149
      %1184 = vmatprep.subr.bf16.mxu0 0
      %1185 = vmatpush1.bf16.msra.mxu0 %v1150
      %1186 = vmatprep.subr.bf16.mxu0 0
      %1187 = vmatpush1.bf16.msra.mxu0 %v1151
      %1188 = vmatprep.subr.bf16.mxu0 0
      %1189 = vmatpush1.bf16.msra.mxu0 0
      %1190 = vmatprep.subr.bf16.mxu0 0
      %1191 = vmatpush1.bf16.msra.mxu0 0
      %1192 = vmatprep.subr.bf16.mxu0 0
      %1193 = vmatpush1.bf16.msra.mxu0 0
      %1194 = vmatprep.subr.bf16.mxu0 0
      %1195 = vmatpush1.bf16.msra.mxu0 0
      %1196 = vmatprep.subr.bf16.mxu0 0
      %1197 = vmatpush1.bf16.msra.mxu0 0
      %1198 = vmatprep.subr.bf16.mxu0 0
      %1199 = vmatpush1.bf16.msra.mxu0 0
      %1200 = vmatprep.subr.bf16.mxu0 0
      %1201 = vmatpush1.bf16.msra.mxu0 0
      %1202 = vmatprep.subr.bf16.mxu0 0
      %1203 = vmatpush1.bf16.msra.mxu0 0
      %1204 = vmatprep.subr.bf16.mxu0 0
      %1205 = vmatpush1.bf16.msra.mxu0 0
      %1206 = vmatprep.subr.bf16.mxu0 0
      %1207 = vmatpush1.bf16.msra.mxu0 0
      %1208 = vmatprep.subr.bf16.mxu0 0
      %1209 = vmatpush1.bf16.msra.mxu0 0
      %1210 = vmatprep.subr.bf16.mxu0 0
      %1211 = vmatpush1.bf16.msra.mxu0 0
      %1212 = vmatprep.mubr.bf16.mxu0 0
      %1213 = vmatmul.mubr.bf16.gmra.mrb[0].mxu0 %v1157
      %v1214 = vpop.f32.mrb[0].mxu0
      %v1215 = vadd.f32 0.0, %v1214
      %v1216 = vpop.f32.mrb[0].mxu0
      %v1217 = vpop.f32.mrb[0].mxu0
      %v1218 = vadd.f32 0.0, %v1217
      %v1219 = vpop.f32.mrb[0].mxu0
      %1220 = vmatprep.mubr.bf16.mxu0 0
      %1221 = vmatmul.mubr.bf16.gmra.mrb[0].mxu0 %v1160
      %v1222 = vpop.f32.mrb[0].mxu0
      %v1223 = vadd.f32 0.0, %v1222
      %v1224 = vpop.f32.mrb[0].mxu0
      %v1225 = vpop.f32.mrb[0].mxu0
      %v1226 = vadd.f32 0.0, %v1225
      %v1227 = vpop.f32.mrb[0].mxu0
      %1228 = vmatprep.mubr.bf16.mxu0 0
      %1229 = vmatmul.mubr.bf16.gmra.mrb[0].mxu0 %v1163
      %v1230 = vpop.f32.mrb[0].mxu0
      %v1231 = vadd.f32 0.0, %v1230
      %v1232 = vpop.f32.mrb[0].mxu0
      %v1233 = vpop.f32.mrb[0].mxu0
      %v1234 = vadd.f32 0.0, %v1233
      %v1235 = vpop.f32.mrb[0].mxu0
      %1236 = vmatprep.mubr.bf16.mxu0 0
      %1237 = vmatmul.mubr.bf16.gmra.mrb[0].mxu0 %v1166
      %v1238 = vpop.f32.mrb[0].mxu0
      %v1239 = vadd.f32 0.0, %v1238
      %v1240 = vpop.f32.mrb[0].mxu0
      %v1241 = vpop.f32.mrb[0].mxu0
      %v1242 = vadd.f32 0.0, %v1241
      %v1243 = vpop.f32.mrb[0].mxu0
      %1244 = vmatprep.mubr.bf16.mxu0 0
      %1245 = vmatmul.mubr.bf16.gmra.mrb[0].mxu0 %v1169
      %v1246 = vpop.f32.mrb[0].mxu0
      %v1247 = vadd.f32 0.0, %v1246
      %v1248 = vpop.f32.mrb[0].mxu0
      %v1249 = vpop.f32.mrb[0].mxu0
      %v1250 = vadd.f32 0.0, %v1249
      %v1251 = vpop.f32.mrb[0].mxu0
      %1252 = vmatprep.mubr.bf16.mxu0 0
      %1253 = vmatmul.mubr.bf16.gmra.mrb[0].mxu0 %v1172
      %v1254 = vpop.f32.mrb[0].mxu0
      %v1255 = vadd.f32 0.0, %v1254
      %v1256 = vpop.f32.mrb[0].mxu0
      %v1257 = vpop.f32.mrb[0].mxu0
      %v1258 = vadd.f32 0.0, %v1257
      %v1259 = vpop.f32.mrb[0].mxu0
      %1260 = vmatprep.mubr.bf16.mxu0 0
      %1261 = vmatmul.mubr.bf16.gmra.mrb[0].mxu0 %v1175
      %v1262 = vpop.f32.mrb[0].mxu0
      %v1263 = vadd.f32 0.0, %v1262
      %v1264 = vpop.f32.mrb[0].mxu0
      %v1265 = vpop.f32.mrb[0].mxu0
      %v1266 = vadd.f32 0.0, %v1265
      %v1267 = vpop.f32.mrb[0].mxu0
      %1268 = vmatprep.mubr.bf16.mxu0 0
      %1269 = vmatmul.mubr.bf16.gmra.mrb[0].mxu0 %v1178
      %v1270 = vpop.f32.mrb[0].mxu0
      %v1271 = vadd.f32 0.0, %v1270
      %v1272 = vpop.f32.mrb[0].mxu0
      %v1273 = vpop.f32.mrb[0].mxu0
      %v1274 = vadd.f32 0.0, %v1273
      %v1275 = vpop.f32.mrb[0].mxu0
      %1276 = vdwg.mxu0
      %v1285 = vunpack.c.l.b16 %v1107
      %v1286 = vunpack.c.l.b16 %v1108
      %v1287 = vunpack.c.l.b16 %v1109
      %v1288 = vunpack.c.l.b16 %v1110
      %v1289 = vunpack.c.l.b16 %v1111
      %v1290 = vunpack.c.l.b16 %v1112
      %v1291 = vunpack.c.l.b16 %v1113
      %v1292 = vunpack.c.l.b16 %v1114
      %v1293 = vpack.c.b16 %v1286, %v1285
      %v1294 = vpack.c.b16 %v1288, %v1287
      %v1295 = vpack.c.b16 %v1290, %v1289
      %v1296 = vpack.c.b16 %v1292, %v1291
      %v1302 = vsel %vm348, %v1099, 0
      %v1305 = vsel %vm348, %v1100, 0
      %v1308 = vsel %vm348, %v1101, 0
      %v1311 = vsel %vm348, %v1102, 0
      %v1314 = vsel %vm348, %v1103, 0
      %v1317 = vsel %vm348, %v1104, 0
      %v1320 = vsel %vm348, %v1105, 0
      %v1323 = vsel %vm348, %v1106, 0
      %1325 = vmatprep.subr.bf16.mxu0 0
      %1326 = vmatpush1.bf16.msra.mxu0 %v1293
      %1327 = vmatprep.subr.bf16.mxu0 0
      %1328 = vmatpush1.bf16.msra.mxu0 %v1294
      %1329 = vmatprep.subr.bf16.mxu0 0
      %1330 = vmatpush1.bf16.msra.mxu0 %v1295
      %1331 = vmatprep.subr.bf16.mxu0 0
      %1332 = vmatpush1.bf16.msra.mxu0 %v1296
      %1333 = vmatprep.subr.bf16.mxu0 0
      %1334 = vmatpush1.bf16.msra.mxu0 0
      %1335 = vmatprep.subr.bf16.mxu0 0
      %1336 = vmatpush1.bf16.msra.mxu0 0
      %1337 = vmatprep.subr.bf16.mxu0 0
      %1338 = vmatpush1.bf16.msra.mxu0 0
      %1339 = vmatprep.subr.bf16.mxu0 0
      %1340 = vmatpush1.bf16.msra.mxu0 0
      %1341 = vmatprep.subr.bf16.mxu0 0
      %1342 = vmatpush1.bf16.msra.mxu0 0
      %1343 = vmatprep.subr.bf16.mxu0 0
      %1344 = vmatpush1.bf16.msra.mxu0 0
      %1345 = vmatprep.subr.bf16.mxu0 0
      %1346 = vmatpush1.bf16.msra.mxu0 0
      %1347 = vmatprep.subr.bf16.mxu0 0
      %1348 = vmatpush1.bf16.msra.mxu0 0
      %1349 = vmatprep.subr.bf16.mxu0 0
      %1350 = vmatpush1.bf16.msra.mxu0 0
      %1351 = vmatprep.subr.bf16.mxu0 0
      %1352 = vmatpush1.bf16.msra.mxu0 0
      %1353 = vmatprep.subr.bf16.mxu0 0
      %1354 = vmatpush1.bf16.msra.mxu0 0
      %1355 = vmatprep.subr.bf16.mxu0 0
      %1356 = vmatpush1.bf16.msra.mxu0 0
      %1357 = vmatprep.mubr.bf16.mxu0 0
      %1358 = vmatmul.mubr.bf16.gmra.mrb[0].mxu0 %v1302
      %v1359 = vpop.f32.mrb[0].mxu0
      %v1360 = vadd.f32 %v1215, %v1359
      %v1361 = vpop.f32.mrb[0].mxu0
      %v1362 = vpop.f32.mrb[0].mxu0
      %v1363 = vadd.f32 %v1218, %v1362
      %v1364 = vpop.f32.mrb[0].mxu0
      %1365 = vmatprep.mubr.bf16.mxu0 0
      %1366 = vmatmul.mubr.bf16.gmra.mrb[0].mxu0 %v1305
      %v1367 = vpop.f32.mrb[0].mxu0
      %v1368 = vadd.f32 %v1223, %v1367
      %v1369 = vpop.f32.mrb[0].mxu0
      %v1370 = vpop.f32.mrb[0].mxu0
      %v1371 = vadd.f32 %v1226, %v1370
      %v1372 = vpop.f32.mrb[0].mxu0
      %1373 = vmatprep.mubr.bf16.mxu0 0
      %1374 = vmatmul.mubr.bf16.gmra.mrb[0].mxu0 %v1308
      %v1375 = vpop.f32.mrb[0].mxu0
      %v1376 = vadd.f32 %v1231, %v1375
      %v1377 = vpop.f32.mrb[0].mxu0
      %v1378 = vpop.f32.mrb[0].mxu0
      %v1379 = vadd.f32 %v1234, %v1378
      %v1380 = vpop.f32.mrb[0].mxu0
      %1381 = vmatprep.mubr.bf16.mxu0 0
      %1382 = vmatmul.mubr.bf16.gmra.mrb[0].mxu0 %v1311
      %v1383 = vpop.f32.mrb[0].mxu0
      %v1384 = vadd.f32 %v1239, %v1383
      %v1385 = vpop.f32.mrb[0].mxu0
      %v1386 = vpop.f32.mrb[0].mxu0
      %v1387 = vadd.f32 %v1242, %v1386
      %v1388 = vpop.f32.mrb[0].mxu0
      %1389 = vmatprep.mubr.bf16.mxu0 0
      %1390 = vmatmul.mubr.bf16.gmra.mrb[0].mxu0 %v1314
      %v1391 = vpop.f32.mrb[0].mxu0
      %v1392 = vadd.f32 %v1247, %v1391
      %v1393 = vpop.f32.mrb[0].mxu0
      %v1394 = vpop.f32.mrb[0].mxu0
      %v1395 = vadd.f32 %v1250, %v1394
      %v1396 = vpop.f32.mrb[0].mxu0
      %1397 = vmatprep.mubr.bf16.mxu0 0
      %1398 = vmatmul.mubr.bf16.gmra.mrb[0].mxu0 %v1317
      %v1399 = vpop.f32.mrb[0].mxu0
      %v1400 = vadd.f32 %v1255, %v1399
      %v1401 = vpop.f32.mrb[0].mxu0
      %v1402 = vpop.f32.mrb[0].mxu0
      %v1403 = vadd.f32 %v1258, %v1402
      %v1404 = vpop.f32.mrb[0].mxu0
      %1405 = vmatprep.mubr.bf16.mxu0 0
      %1406 = vmatmul.mubr.bf16.gmra.mrb[0].mxu0 %v1320
      %v1407 = vpop.f32.mrb[0].mxu0
      %v1408 = vadd.f32 %v1263, %v1407
      %v1409 = vpop.f32.mrb[0].mxu0
      %v1410 = vpop.f32.mrb[0].mxu0
      %v1411 = vadd.f32 %v1266, %v1410
      %v1412 = vpop.f32.mrb[0].mxu0
      %1413 = vmatprep.mubr.bf16.mxu0 0
      %1414 = vmatmul.mubr.bf16.gmra.mrb[0].mxu0 %v1323
      %v1415 = vpop.f32.mrb[0].mxu0
      %v1416 = vadd.f32 %v1271, %v1415
      %v1417 = vpop.f32.mrb[0].mxu0
      %v1418 = vpop.f32.mrb[0].mxu0
      %v1419 = vadd.f32 %v1274, %v1418
      %v1420 = vpop.f32.mrb[0].mxu0
      %1421 = vdwg.mxu0
      %s1422 = scalar_lea.vmem [#allocation2], 16
      %v1423 = vld [vmem:[%s1422] sm:$0xff]
      %v1424 = vld [vmem:[%s1422 + $0x8] sm:$0xff]
      %v1425 = vld [vmem:[%s1422 + $0x10] sm:$0xff]
      %v1426 = vld [vmem:[%s1422 + $0x18] sm:$0xff]
      %v1427 = vld [vmem:[%s1422 + $0x20] sm:$0xff]
      %v1428 = vld [vmem:[%s1422 + $0x28] sm:$0xff]
      %v1429 = vld [vmem:[%s1422 + $0x30] sm:$0xff]
      %v1430 = vld [vmem:[%s1422 + $0x38] sm:$0xff]
      %s1431 = scalar_lea.vmem %s4, 64
      %v1432 = vld [vmem:[%s1431] sm:$0xf]
      %v1433 = vld [vmem:[%s1431 + $0x4] sm:$0xf]
      %v1434 = vld [vmem:[%s1431 + $0x8] sm:$0xf]
      %v1435 = vld [vmem:[%s1431 + $0xc] sm:$0xf]
      %v1436 = vld [vmem:[%s1431 + $0x10] sm:$0xf]
      %v1437 = vld [vmem:[%s1431 + $0x14] sm:$0xf]
      %v1438 = vld [vmem:[%s1431 + $0x18] sm:$0xf]
      %v1439 = vld [vmem:[%s1431 + $0x1c] sm:$0xf]
      %v1448 = vunpack.c.l.b16 %v1432
      %v1449 = vunpack.c.l.b16 %v1433
      %v1450 = vunpack.c.l.b16 %v1434
      %v1451 = vunpack.c.l.b16 %v1435
      %v1452 = vunpack.c.l.b16 %v1436
      %v1453 = vunpack.c.l.b16 %v1437
      %v1454 = vunpack.c.l.b16 %v1438
      %v1455 = vunpack.c.l.b16 %v1439
      %v1456 = vpack.c.b16 %v1449, %v1448
      %v1457 = vpack.c.b16 %v1451, %v1450
      %v1458 = vpack.c.b16 %v1453, %v1452
      %v1459 = vpack.c.b16 %v1455, %v1454
      %v1465 = vsel %vm348, %v1423, 0
      %v1468 = vsel %vm348, %v1424, 0
      %v1471 = vsel %vm348, %v1425, 0
      %v1474 = vsel %vm348, %v1426, 0
      %v1477 = vsel %vm348, %v1427, 0
      %v1480 = vsel %vm348, %v1428, 0
      %v1483 = vsel %vm348, %v1429, 0
      %v1486 = vsel %vm348, %v1430, 0
      %1488 = vmatprep.subr.bf16.mxu0 0
      %1489 = vmatpush1.bf16.msra.mxu0 %v1456
      %1490 = vmatprep.subr.bf16.mxu0 0
      %1491 = vmatpush1.bf16.msra.mxu0 %v1457
      %1492 = vmatprep.subr.bf16.mxu0 0
      %1493 = vmatpush1.bf16.msra.mxu0 %v1458
      %1494 = vmatprep.subr.bf16.mxu0 0
      %1495 = vmatpush1.bf16.msra.mxu0 %v1459
      %1496 = vmatprep.subr.bf16.mxu0 0
      %1497 = vmatpush1.bf16.msra.mxu0 0
      %1498 = vmatprep.subr.bf16.mxu0 0
      %1499 = vmatpush1.bf16.msra.mxu0 0
      %1500 = vmatprep.subr.bf16.mxu0 0
      %1501 = vmatpush1.bf16.msra.mxu0 0
      %1502 = vmatprep.subr.bf16.mxu0 0
      %1503 = vmatpush1.bf16.msra.mxu0 0
      %1504 = vmatprep.subr.bf16.mxu0 0
      %1505 = vmatpush1.bf16.msra.mxu0 0
      %1506 = vmatprep.subr.bf16.mxu0 0
      %1507 = vmatpush1.bf16.msra.mxu0 0
      %1508 = vmatprep.subr.bf16.mxu0 0
      %1509 = vmatpush1.bf16.msra.mxu0 0
      %1510 = vmatprep.subr.bf16.mxu0 0
      %1511 = vmatpush1.bf16.msra.mxu0 0
      %1512 = vmatprep.subr.bf16.mxu0 0
      %1513 = vmatpush1.bf16.msra.mxu0 0
      %1514 = vmatprep.subr.bf16.mxu0 0
      %1515 = vmatpush1.bf16.msra.mxu0 0
      %1516 = vmatprep.subr.bf16.mxu0 0
      %1517 = vmatpush1.bf16.msra.mxu0 0
      %1518 = vmatprep.subr.bf16.mxu0 0
      %1519 = vmatpush1.bf16.msra.mxu0 0
      %1520 = vmatprep.mubr.bf16.mxu0 0
      %1521 = vmatmul.mubr.bf16.gmra.mrb[0].mxu0 %v1465
      %v1522 = vpop.f32.mrb[0].mxu0
      %v1523 = vadd.f32 0.0, %v1522
      %v1524 = vpop.f32.mrb[0].mxu0
      %v1525 = vpop.f32.mrb[0].mxu0
      %v1526 = vadd.f32 0.0, %v1525
      %v1527 = vpop.f32.mrb[0].mxu0
      %1528 = vmatprep.mubr.bf16.mxu0 0
      %1529 = vmatmul.mubr.bf16.gmra.mrb[0].mxu0 %v1468
      %v1530 = vpop.f32.mrb[0].mxu0
      %v1531 = vadd.f32 0.0, %v1530
      %v1532 = vpop.f32.mrb[0].mxu0
      %v1533 = vpop.f32.mrb[0].mxu0
      %v1534 = vadd.f32 0.0, %v1533
      %v1535 = vpop.f32.mrb[0].mxu0
      %1536 = vmatprep.mubr.bf16.mxu0 0
      %1537 = vmatmul.mubr.bf16.gmra.mrb[0].mxu0 %v1471
      %v1538 = vpop.f32.mrb[0].mxu0
      %v1539 = vadd.f32 0.0, %v1538
      %v1540 = vpop.f32.mrb[0].mxu0
      %v1541 = vpop.f32.mrb[0].mxu0
      %v1542 = vadd.f32 0.0, %v1541
      %v1543 = vpop.f32.mrb[0].mxu0
      %1544 = vmatprep.mubr.bf16.mxu0 0
      %1545 = vmatmul.mubr.bf16.gmra.mrb[0].mxu0 %v1474
      %v1546 = vpop.f32.mrb[0].mxu0
      %v1547 = vadd.f32 0.0, %v1546
      %v1548 = vpop.f32.mrb[0].mxu0
      %v1549 = vpop.f32.mrb[0].mxu0
      %v1550 = vadd.f32 0.0, %v1549
      %v1551 = vpop.f32.mrb[0].mxu0
      %1552 = vmatprep.mubr.bf16.mxu0 0
      %1553 = vmatmul.mubr.bf16.gmra.mrb[0].mxu0 %v1477
      %v1554 = vpop.f32.mrb[0].mxu0
      %v1555 = vadd.f32 0.0, %v1554
      %v1556 = vpop.f32.mrb[0].mxu0
      %v1557 = vpop.f32.mrb[0].mxu0
      %v1558 = vadd.f32 0.0, %v1557
      %v1559 = vpop.f32.mrb[0].mxu0
      %1560 = vmatprep.mubr.bf16.mxu0 0
      %1561 = vmatmul.mubr.bf16.gmra.mrb[0].mxu0 %v1480
      %v1562 = vpop.f32.mrb[0].mxu0
      %v1563 = vadd.f32 0.0, %v1562
      %v1564 = vpop.f32.mrb[0].mxu0
      %v1565 = vpop.f32.mrb[0].mxu0
      %v1566 = vadd.f32 0.0, %v1565
      %v1567 = vpop.f32.mrb[0].mxu0
      %1568 = vmatprep.mubr.bf16.mxu0 0
      %1569 = vmatmul.mubr.bf16.gmra.mrb[0].mxu0 %v1483
      %v1570 = vpop.f32.mrb[0].mxu0
      %v1571 = vadd.f32 0.0, %v1570
      %v1572 = vpop.f32.mrb[0].mxu0
      %v1573 = vpop.f32.mrb[0].mxu0
      %v1574 = vadd.f32 0.0, %v1573
      %v1575 = vpop.f32.mrb[0].mxu0
      %1576 = vmatprep.mubr.bf16.mxu0 0
      %1577 = vmatmul.mubr.bf16.gmra.mrb[0].mxu0 %v1486
      %v1578 = vpop.f32.mrb[0].mxu0
      %v1579 = vadd.f32 0.0, %v1578
      %v1580 = vpop.f32.mrb[0].mxu0
      %v1581 = vpop.f32.mrb[0].mxu0
      %v1582 = vadd.f32 0.0, %v1581
      %v1583 = vpop.f32.mrb[0].mxu0
      %1584 = vdwg.mxu0
      %v1585 = vadd.f32 %v1360, %v1523
      %v1586 = vadd.f32 %v1363, %v1526
      %v1587 = vadd.f32 %v1368, %v1531
      %v1588 = vadd.f32 %v1371, %v1534
      %v1589 = vadd.f32 %v1376, %v1539
      %v1590 = vadd.f32 %v1379, %v1542
      %v1591 = vadd.f32 %v1384, %v1547
      %v1592 = vadd.f32 %v1387, %v1550
      %v1593 = vadd.f32 %v1392, %v1555
      %v1594 = vadd.f32 %v1395, %v1558
      %v1595 = vadd.f32 %v1400, %v1563
      %v1596 = vadd.f32 %v1403, %v1566
      %v1597 = vadd.f32 %v1408, %v1571
      %v1598 = vadd.f32 %v1411, %v1574
      %v1599 = vadd.f32 %v1416, %v1579
      %v1600 = vadd.f32 %v1419, %v1582
      %v1601 = vld [vmem:[%s5] sm:$0x1]
      %v1603 = vlaneseq
      %v1604 = vshrl.u32 %v1603, 7
      %v1605 = vsub.s32 0, %v1604
      %v1606 = vrot.slane %v1601, %v1605
      %v1608 = vadd.f32 %v1585, %v1606
      %v1609 = vadd.f32 %v1586, %v1606
      %v1610 = vadd.f32 %v1587, %v1606
      %v1611 = vadd.f32 %v1588, %v1606
      %v1612 = vadd.f32 %v1589, %v1606
      %v1613 = vadd.f32 %v1590, %v1606
      %v1614 = vadd.f32 %v1591, %v1606
      %v1615 = vadd.f32 %v1592, %v1606
      %v1616 = vadd.f32 %v1593, %v1606
      %v1617 = vadd.f32 %v1594, %v1606
      %v1618 = vadd.f32 %v1595, %v1606
      %v1619 = vadd.f32 %v1596, %v1606
      %v1620 = vadd.f32 %v1597, %v1606
      %v1621 = vadd.f32 %v1598, %v1606
      %v1622 = vadd.f32 %v1599, %v1606
      %v1623 = vadd.f32 %v1600, %v1606
      %v1624 = vmax.f32 %v1608, 0.0
      %v1625 = vmax.f32 %v1609, 0.0
      %v1626 = vmax.f32 %v1610, 0.0
      %v1627 = vmax.f32 %v1611, 0.0
      %v1628 = vmax.f32 %v1612, 0.0
      %v1629 = vmax.f32 %v1613, 0.0
      %v1630 = vmax.f32 %v1614, 0.0
      %v1631 = vmax.f32 %v1615, 0.0
      %v1632 = vmax.f32 %v1616, 0.0
      %v1633 = vmax.f32 %v1617, 0.0
      %v1634 = vmax.f32 %v1618, 0.0
      %v1635 = vmax.f32 %v1619, 0.0
      %v1636 = vmax.f32 %v1620, 0.0
      %v1637 = vmax.f32 %v1621, 0.0
      %v1638 = vmax.f32 %v1622, 0.0
      %v1639 = vmax.f32 %v1623, 0.0
      %v1640 = vpack.c.bf16 %v1625, %v1624
      %v1641 = vpack.c.bf16 %v1627, %v1626
      %v1642 = vpack.c.bf16 %v1629, %v1628
      %v1643 = vpack.c.bf16 %v1631, %v1630
      %v1644 = vpack.c.bf16 %v1633, %v1632
      %v1645 = vpack.c.bf16 %v1635, %v1634
      %v1646 = vpack.c.bf16 %v1637, %v1636
      %v1647 = vpack.c.bf16 %v1639, %v1638
      %v1656 = vunpack.c.l.b16 %v1640
      %v1657 = vunpack.c.h.b16 %v1640
      %v1658 = vunpack.c.l.b16 %v1641
      %v1659 = vunpack.c.h.b16 %v1641
      %v1660 = vunpack.c.l.b16 %v1642
      %v1661 = vunpack.c.h.b16 %v1642
      %v1662 = vunpack.c.l.b16 %v1643
      %v1663 = vunpack.c.h.b16 %v1643
      %v1664 = vunpack.c.l.b16 %v1644
      %v1665 = vunpack.c.h.b16 %v1644
      %v1666 = vunpack.c.l.b16 %v1645
      %v1667 = vunpack.c.h.b16 %v1645
      %v1668 = vunpack.c.l.b16 %v1646
      %v1669 = vunpack.c.h.b16 %v1646
      %v1670 = vunpack.c.l.b16 %v1647
      %v1671 = vunpack.c.h.b16 %v1647
      %v1672 = vpack.c.b16 %v1656, %v1656
      %v1673 = vpack.c.b16 %v1657, %v1657
      %v1674 = vpack.c.b16 %v1658, %v1658
      %v1675 = vpack.c.b16 %v1659, %v1659
      %v1676 = vpack.c.b16 %v1660, %v1660
      %v1677 = vpack.c.b16 %v1661, %v1661
      %v1678 = vpack.c.b16 %v1662, %v1662
      %v1679 = vpack.c.b16 %v1663, %v1663
      %v1680 = vpack.c.b16 %v1664, %v1664
      %v1681 = vpack.c.b16 %v1665, %v1665
      %v1682 = vpack.c.b16 %v1666, %v1666
      %v1683 = vpack.c.b16 %v1667, %v1667
      %v1684 = vpack.c.b16 %v1668, %v1668
      %v1685 = vpack.c.b16 %v1669, %v1669
      %v1686 = vpack.c.b16 %v1670, %v1670
      %v1687 = vpack.c.b16 %v1671, %v1671
      %vm1704 = vcmask 519168
      %1705 = vst.msk [vmem:[%s251] sm:$0xf] %vm1704, %v1672
      %1706 = vst.msk [vmem:[%s251 + $0x4] sm:$0xf] %vm1704, %v1673
      %1707 = vst.msk [vmem:[%s251 + $0x8] sm:$0xf] %vm1704, %v1674
      %1708 = vst.msk [vmem:[%s251 + $0xc] sm:$0xf] %vm1704, %v1675
      %1709 = vst.msk [vmem:[%s251 + $0x10] sm:$0xf] %vm1704, %v1676
      %1710 = vst.msk [vmem:[%s251 + $0x14] sm:$0xf] %vm1704, %v1677
      %1711 = vst.msk [vmem:[%s251 + $0x18] sm:$0xf] %vm1704, %v1678
      %1712 = vst.msk [vmem:[%s251 + $0x1c] sm:$0xf] %vm1704, %v1679
      %1713 = vst.msk [vmem:[%s251 + $0x20] sm:$0xf] %vm1704, %v1680
      %1714 = vst.msk [vmem:[%s251 + $0x24] sm:$0xf] %vm1704, %v1681
      %1715 = vst.msk [vmem:[%s251 + $0x28] sm:$0xf] %vm1704, %v1682
      %1716 = vst.msk [vmem:[%s251 + $0x2c] sm:$0xf] %vm1704, %v1683
      %1717 = vst.msk [vmem:[%s251 + $0x30] sm:$0xf] %vm1704, %v1684
      %1718 = vst.msk [vmem:[%s251 + $0x34] sm:$0xf] %vm1704, %v1685
      %1719 = vst.msk [vmem:[%s251 + $0x38] sm:$0xf] %vm1704, %v1686
      %1720 = vst.msk [vmem:[%s251 + $0x3c] sm:$0xf] %vm1704, %v1687
      %p1721 = scmp.lt.s32.totalorder %s17, 1
      %s1722 = scalar_select %p1721, %s17, 1
      %s1723 = smul.addr %s1722, 16
      %s1724 = smul.addr %s1723, 4
      %s1725 = scalar_lea.vmem %s6, %s1724
      // Predicated region
      $region45: #{_lambda_.12} parent=43 // pred_check
        %p1726 = pneg %p166
      $region46: #{_lambda_.12} parent=43 // pred_check_branch
        %1728 = sbr.rel (%p1726) target = $region48
      $region47: #{_lambda_.12} parent=43 // pred_region
        _
      $region48: #{_lambda_.12} parent=43 // pred_fallthru
        _
    $region44: #{_lambda_.12} parent=5 // pred_fallthru
      _
    %p1729 = scmp.le.s32.totalorder 2, %s12
    // Predicated region
    $region49: #{_lambda_.12} parent=5 // pred_check
      %p1730 = pneg %p1729
    $region50: #{_lambda_.12} parent=5 // pred_check_branch
      %1732 = sbr.rel (%p1730) target = $region52
    $region51: #{_lambda_.12} parent=5 // pred_region
      %s1733 = ssub.s32 %s12, 2
      // Predicated region
      $region53: #{_lambda_.12} parent=51 // pred_check
        %p1734 = pneg %p172
      $region54: #{_lambda_.12} parent=51 // pred_check_branch
        %1736 = sbr.rel (%p1734) target = $region56
      $region55: #{_lambda_.12} parent=51 // pred_region
        %p1737 = scmp.lt.s32.totalorder %s18, 1
        %s1738 = scalar_select %p1737, %s18, 1
        %s1739 = smul.addr %s1738, 16
        %s1740 = smul.addr %s1739, 4
        %s1741 = scalar_lea.vmem %s6, %s1740
      $region56: #{_lambda_.12} parent=51 // pred_fallthru
        _
    $region52: #{_lambda_.12} parent=5 // pred_fallthru
      _
  $region6: #{_lambda_.12} parent=0 // loop_footer
    %s16 = sadd.s32 1, %s12
  $region7: #{_lambda_.12} parent=0 // loop_footer_branch
    %11 = sbr.rel target = $region3
  $region8: #{_lambda_.12} parent=0 // loop_exit
    _

// kernel: _lambda_.16
$region0: #{_lambda_.16}
  #allocation0 [shape = 'u32[]', space=smem, size = 0x4, offset = 0x4, fixed_abs, tag = 'smem constant byte address 0x4 - core index']
  #allocation1 [shape = 'u32[144,128]{1,0:T(1,128)}', space=vmem, size = 0x12000, scoped, tag = 'internal scratch']
  #allocation2 [shape = 'bf16[6,16,128]{2,1,0:T(16,128)(2,1)}', space=vmem, size = 0x6000, scoped, tag = 'scratch operand']
  %s0 = inlined_call_operand.vmem [shape: bf16[2,4,16,128], index: 0, kind: input, shape index: {}]
  %s1 = inlined_call_operand.vmem [shape: bf16[1,128,128], index: 1, kind: input, shape index: {}]
  %s2 = inlined_call_operand.vmem [shape: f32[1,1,128], index: 2, kind: input, shape index: {}]
  %s3 = inlined_call_operand.vmem [shape: f32[1,16,16], index: 3, kind: input, shape index: {}]
  %s4 = inlined_call_operand.vmem [shape: bf16[3,128,128], index: 4, kind: input, shape index: {}]
  %s5 = inlined_call_operand.vmem [shape: f32[1,128], index: 5, kind: input, shape index: {}]
  %s6 = inlined_call_operand.vmem [shape: bf16[2,4,16,128], index: 6, kind: output, shape index: {}]
  %s7 = sld [smem:[#allocation0]]
  $region57: #{_lambda_.16} parent=0
    _
  %s9 = ssub.s32 1, %s7
  %s10 = scalar_select 0, %s9, %s7
  loop: start=0, step=1, limit=4
  $region2: #{_lambda_.16} parent=0 // loop_pre_header
    _
  $region3: #{_lambda_.16} parent=0 // loop_header
    %s12 = sphi 0, %s16
    %p13 = scmp.ge.s32.totalorder %s12, 4
    %s22 = sphi 0, %s24
    %s25 = sphi 0, %s22
    %s26 = sphi 0, %s25
    %s42 = sphi 0, %s26
    %s46 = sphi 0, %s46
    %s48 = sphi 0, %s46
    %s49 = sphi 0, %s48
    %s63 = sphi 0, %s49
    %s67 = sphi 0, %s67
    %s69 = sphi 0, %s67
    %s70 = sphi 0, %s69
    %s84 = sphi 0, %s70
    %s88 = sphi 0, %s88
    %s90 = sphi 0, %s88
    %s91 = sphi 0, %s90
    %s105 = sphi 0, %s91
    %s109 = sphi 0, %s109
    %s111 = sphi 0, %s109
    %s112 = sphi 0, %s111
    %s126 = sphi 0, %s112
    %s130 = sphi 0, %s130
    %s132 = sphi 0, %s130
    %s133 = sphi 0, %s132
    %s147 = sphi 0, %s133
    %s153 = sphi 0, %s155
    %s156 = sphi 0, %s153
    %s157 = sphi 0, %s156
    %s173 = sphi 0, %s157
  $region4: #{_lambda_.16} parent=0 // loop_header_branch
    %15 = sbr.rel (%p13) target = $region8
  $region5: #{_lambda_.16} parent=0 // loop_body
    %s17 = ssub.s32 %s12, 1
    %s18 = ssub.s32 %s12, 2
    %s19 = sadd.s32 %s12, 1
    %s20 = ssub.s32 %s12, %s19
    %p21 = scmp.eq.s32.totalorder %s20, 0
    %s23 = sadd.s32 %s22, 1
    %s24 = scalar_select %p21, %s22, %s23
    %p27 = pneg %p21
    %p28 = scmp.eq.s32.totalorder %s12, 1
    %p29 = por %p27, %p28
    %p30 = scmp.ne.s32.totalorder %s22, %s25
    %p31 = scmp.eq.s32.totalorder %s12, 0
    %p32 = por %p30, %p31
    %p33 = scmp.ne.s32.totalorder %s22, %s25
    %p34 = scmp.eq.s32.totalorder %s17, 1
    %p35 = por %p33, %p34
    %p36 = scmp.ne.s32.totalorder %s25, %s26
    %p37 = scmp.eq.s32.totalorder %s17, 0
    %p38 = por %p36, %p37
    %p39 = scmp.ne.s32.totalorder %s25, %s26
    %p40 = scmp.eq.s32.totalorder %s18, 1
    %p41 = por %p39, %p40
    %p43 = scmp.ne.s32.totalorder %s26, %s42
    %p44 = scmp.eq.s32.totalorder %s18, 0
    %p45 = por %p43, %p44
    %s47 = sadd.s32 %s46, 1
    %p50 = scmp.eq.s32.totalorder %s12, 1
    %p51 = scmp.ne.s32.totalorder %s46, %s48
    %p52 = scmp.eq.s32.totalorder %s12, 0
    %p53 = por %p51, %p52
    %p54 = scmp.ne.s32.totalorder %s46, %s48
    %p55 = scmp.eq.s32.totalorder %s17, 1
    %p56 = por %p54, %p55
    %p57 = scmp.ne.s32.totalorder %s48, %s49
    %p58 = scmp.eq.s32.totalorder %s17, 0
    %p59 = por %p57, %p58
    %p60 = scmp.ne.s32.totalorder %s48, %s49
    %p61 = scmp.eq.s32.totalorder %s18, 1
    %p62 = por %p60, %p61
    %p64 = scmp.ne.s32.totalorder %s49, %s63
    %p65 = scmp.eq.s32.totalorder %s18, 0
    %p66 = por %p64, %p65
    %s68 = sadd.s32 %s67, 1
    %p71 = scmp.eq.s32.totalorder %s12, 1
    %p72 = scmp.ne.s32.totalorder %s67, %s69
    %p73 = scmp.eq.s32.totalorder %s12, 0
    %p74 = por %p72, %p73
    %p75 = scmp.ne.s32.totalorder %s67, %s69
    %p76 = scmp.eq.s32.totalorder %s17, 1
    %p77 = por %p75, %p76
    %p78 = scmp.ne.s32.totalorder %s69, %s70
    %p79 = scmp.eq.s32.totalorder %s17, 0
    %p80 = por %p78, %p79
    %p81 = scmp.ne.s32.totalorder %s69, %s70
    %p82 = scmp.eq.s32.totalorder %s18, 1
    %p83 = por %p81, %p82
    %p85 = scmp.ne.s32.totalorder %s70, %s84
    %p86 = scmp.eq.s32.totalorder %s18, 0
    %p87 = por %p85, %p86
    %s89 = sadd.s32 %s88, 1
    %p92 = scmp.eq.s32.totalorder %s12, 1
    %p93 = scmp.ne.s32.totalorder %s88, %s90
    %p94 = scmp.eq.s32.totalorder %s12, 0
    %p95 = por %p93, %p94
    %p96 = scmp.ne.s32.totalorder %s88, %s90
    %p97 = scmp.eq.s32.totalorder %s17, 1
    %p98 = por %p96, %p97
    %p99 = scmp.ne.s32.totalorder %s90, %s91
    %p100 = scmp.eq.s32.totalorder %s17, 0
    %p101 = por %p99, %p100
    %p102 = scmp.ne.s32.totalorder %s90, %s91
    %p103 = scmp.eq.s32.totalorder %s18, 1
    %p104 = por %p102, %p103
    %p106 = scmp.ne.s32.totalorder %s91, %s105
    %p107 = scmp.eq.s32.totalorder %s18, 0
    %p108 = por %p106, %p107
    %s110 = sadd.s32 %s109, 1
    %p113 = scmp.eq.s32.totalorder %s12, 1
    %p114 = scmp.ne.s32.totalorder %s109, %s111
    %p115 = scmp.eq.s32.totalorder %s12, 0
    %p116 = por %p114, %p115
    %p117 = scmp.ne.s32.totalorder %s109, %s111
    %p118 = scmp.eq.s32.totalorder %s17, 1
    %p119 = por %p117, %p118
    %p120 = scmp.ne.s32.totalorder %s111, %s112
    %p121 = scmp.eq.s32.totalorder %s17, 0
    %p122 = por %p120, %p121
    %p123 = scmp.ne.s32.totalorder %s111, %s112
    %p124 = scmp.eq.s32.totalorder %s18, 1
    %p125 = por %p123, %p124
    %p127 = scmp.ne.s32.totalorder %s112, %s126
    %p128 = scmp.eq.s32.totalorder %s18, 0
    %p129 = por %p127, %p128
    %s131 = sadd.s32 %s130, 1
    %p134 = scmp.eq.s32.totalorder %s12, 1
    %p135 = scmp.ne.s32.totalorder %s130, %s132
    %p136 = scmp.eq.s32.totalorder %s12, 0
    %p137 = por %p135, %p136
    %p138 = scmp.ne.s32.totalorder %s130, %s132
    %p139 = scmp.eq.s32.totalorder %s17, 1
    %p140 = por %p138, %p139
    %p141 = scmp.ne.s32.totalorder %s132, %s133
    %p142 = scmp.eq.s32.totalorder %s17, 0
    %p143 = por %p141, %p142
    %p144 = scmp.ne.s32.totalorder %s132, %s133
    %p145 = scmp.eq.s32.totalorder %s18, 1
    %p146 = por %p144, %p145
    %p148 = scmp.ne.s32.totalorder %s133, %s147
    %p149 = scmp.eq.s32.totalorder %s18, 0
    %p150 = por %p148, %p149
    %s151 = ssub.s32 %s12, %s19
    %p152 = scmp.eq.s32.totalorder %s151, 0
    %s154 = sadd.s32 %s153, 1
    %s155 = scalar_select %p152, %s153, %s154
    %p158 = pneg %p152
    %p159 = scmp.eq.s32.totalorder %s12, 1
    %p160 = por %p158, %p159
    %p161 = scmp.ne.s32.totalorder %s153, %s156
    %p162 = scmp.eq.s32.totalorder %s12, 0
    %p163 = por %p161, %p162
    %p164 = scmp.ne.s32.totalorder %s153, %s156
    %p165 = scmp.eq.s32.totalorder %s17, 1
    %p166 = por %p164, %p165
    %p167 = scmp.ne.s32.totalorder %s156, %s157
    %p168 = scmp.eq.s32.totalorder %s17, 0
    %p169 = por %p167, %p168
    %p170 = scmp.ne.s32.totalorder %s156, %s157
    %p171 = scmp.eq.s32.totalorder %s18, 1
    %p172 = por %p170, %p171
    %p174 = scmp.ne.s32.totalorder %s157, %s173
    %p175 = scmp.eq.s32.totalorder %s18, 0
    %p176 = por %p174, %p175
    %p177 = scmp.le.s32.totalorder 1, %s12
    %p178 = scmp.lt.s32.totalorder %s12, 3
    %p179 = pnand %p177, %p178
    %p180 = pneg %p179
    // Predicated region
    $region9: #{_lambda_.16} parent=5 // pred_check
      _
    $region10: #{_lambda_.16} parent=5 // pred_check_branch
      %182 = sbr.rel (%p179) target = $region12
    $region11: #{_lambda_.16} parent=5 // pred_region
      %s183 = ssub.s32 %s12, 1
      // Predicated region
      $region13: #{_lambda_.16} parent=11 // pred_check
        %p184 = pneg %p59
      $region14: #{_lambda_.16} parent=11 // pred_check_branch
        %186 = sbr.rel (%p184) target = $region16
      $region15: #{_lambda_.16} parent=11 // pred_region
        _
      $region16: #{_lambda_.16} parent=11 // pred_fallthru
        _
      // Predicated region
      $region17: #{_lambda_.16} parent=11 // pred_check
        %p187 = pneg %p80
      $region18: #{_lambda_.16} parent=11 // pred_check_branch
        %189 = sbr.rel (%p187) target = $region20
      $region19: #{_lambda_.16} parent=11 // pred_region
        _
      $region20: #{_lambda_.16} parent=11 // pred_fallthru
        _
      // Predicated region
      $region21: #{_lambda_.16} parent=11 // pred_check
        %p190 = pneg %p101
      $region22: #{_lambda_.16} parent=11 // pred_check_branch
        %192 = sbr.rel (%p190) target = $region24
      $region23: #{_lambda_.16} parent=11 // pred_region
        _
      $region24: #{_lambda_.16} parent=11 // pred_fallthru
        _
      // Predicated region
      $region25: #{_lambda_.16} parent=11 // pred_check
        %p193 = pneg %p122
      $region26: #{_lambda_.16} parent=11 // pred_check_branch
        %195 = sbr.rel (%p193) target = $region28
      $region27: #{_lambda_.16} parent=11 // pred_region
        _
      $region28: #{_lambda_.16} parent=11 // pred_fallthru
        _
      // Predicated region
      $region29: #{_lambda_.16} parent=11 // pred_check
        %p196 = pneg %p143
      $region30: #{_lambda_.16} parent=11 // pred_check_branch
        %198 = sbr.rel (%p196) target = $region32
      $region31: #{_lambda_.16} parent=11 // pred_region
        _
      $region32: #{_lambda_.16} parent=11 // pred_fallthru
        _
    $region12: #{_lambda_.16} parent=5 // pred_fallthru
      _
    %p199 = scmp.lt.s32.totalorder %s12, 2
    // Predicated region
    $region33: #{_lambda_.16} parent=5 // pred_check
      %p200 = pneg %p199
    $region34: #{_lambda_.16} parent=5 // pred_check_branch
      %202 = sbr.rel (%p200) target = $region36
    $region35: #{_lambda_.16} parent=5 // pred_region
      // Predicated region
      $region37: #{_lambda_.16} parent=35 // pred_check
        %p203 = pneg %p32
      $region38: #{_lambda_.16} parent=35 // pred_check_branch
        %205 = sbr.rel (%p203) target = $region40
      $region39: #{_lambda_.16} parent=35 // pred_region
        %p206 = scmp.lt.s32.totalorder %s12, 1
        %s207 = scalar_select %p206, %s12, 1
        %s208 = smul.addr %s207, 8
        %s209 = smul.addr %s208, 4
        %s210 = scalar_lea.vmem %s0, %s209
      $region40: #{_lambda_.16} parent=35 // pred_fallthru
        _
    $region36: #{_lambda_.16} parent=5 // pred_fallthru
      _
    %p211 = scmp.le.s32.totalorder 1, %s12
    %p212 = scmp.lt.s32.totalorder %s12, 3
    %p213 = pnand %p211, %p212
    %p214 = pneg %p213
    // Predicated region
    $region41: #{_lambda_.16} parent=5 // pred_check
      _
    $region42: #{_lambda_.16} parent=5 // pred_check_branch
      %216 = sbr.rel (%p213) target = $region44
    $region43: #{_lambda_.16} parent=5 // pred_region
      %s217 = ssub.s32 %s12, 1
      %p218 = scmp.lt.s32.totalorder %s17, 1
      %s219 = scalar_select %p218, %s17, 1
      %s220 = smul.addr %s219, 8
      %s221 = smul.addr %s220, 4
      %s222 = scalar_lea.vmem %s0, %s221
      %p223 = pneg %p38
      %p224 = pneg %p35
      %p225 = pneg %p59
      %p226 = pneg %p56
      %p227 = pneg %p80
      %p228 = pneg %p77
      %p229 = pneg %p101
      %p230 = pneg %p98
      %p231 = pneg %p122
      %p232 = pneg %p119
      %p233 = pneg %p143
      %p234 = pneg %p140
      %p235 = pneg %p169
      %p236 = pneg %p166
      %p237 = scmp.lt.s32.totalorder %s17, 1
      %s238 = scalar_select %p237, %s17, 1
      %s239 = smul.addr %s238, 8
      %s240 = smul.addr %s239, 4
      %s241 = scalar_lea.vmem %s6, %s240
      %p242 = scmp.lt.s32.totalorder %s17, 1
      %s243 = scalar_select %p242, %s17, 1
      %s244 = smul.addr %s243, 8
      %s245 = smul.addr %s244, 4
      %s246 = scalar_lea.vmem %s0, %s245
      %p247 = scmp.lt.s32.totalorder %s17, 1
      %s248 = scalar_select %p247, %s17, 1
      %s249 = smul.addr %s248, 8
      %s250 = smul.addr %s249, 4
      %s251 = scalar_lea.vmem %s6, %s250
      %v253 = vld [vmem:[%s246] sm:$0xf]
      %v254 = vld [vmem:[%s246 + $0x4] sm:$0xf]
      %v255 = vld [vmem:[%s246 + $0x8] sm:$0xf]
      %v256 = vld [vmem:[%s246 + $0xc] sm:$0xf]
      %v257 = vld [vmem:[%s246 + $0x10] sm:$0xf]
      %v258 = vld [vmem:[%s246 + $0x14] sm:$0xf]
      %v259 = vld [vmem:[%s246 + $0x18] sm:$0xf]
      %v260 = vld [vmem:[%s246 + $0x1c] sm:$0xf]
      %v261 = vld [vmem:[%s1] sm:$0xf]
      %v262 = vld [vmem:[%s1 + $0x4] sm:$0xf]
      %v263 = vld [vmem:[%s1 + $0x8] sm:$0xf]
      %v264 = vld [vmem:[%s1 + $0xc] sm:$0xf]
      %v265 = vld [vmem:[%s1 + $0x10] sm:$0xf]
      %v266 = vld [vmem:[%s1 + $0x14] sm:$0xf]
      %v267 = vld [vmem:[%s1 + $0x18] sm:$0xf]
      %v268 = vld [vmem:[%s1 + $0x1c] sm:$0xf]
      %v269 = vld [vmem:[%s1 + $0x20] sm:$0xf]
      %v270 = vld [vmem:[%s1 + $0x24] sm:$0xf]
      %v271 = vld [vmem:[%s1 + $0x28] sm:$0xf]
      %v272 = vld [vmem:[%s1 + $0x2c] sm:$0xf]
      %v273 = vld [vmem:[%s1 + $0x30] sm:$0xf]
      %v274 = vld [vmem:[%s1 + $0x34] sm:$0xf]
      %v275 = vld [vmem:[%s1 + $0x38] sm:$0xf]
      %v276 = vld [vmem:[%s1 + $0x3c] sm:$0xf]
      %v277 = vld [vmem:[%s2] sm:$0x1]
      %v279 = vlaneseq
      %v280 = vshrl.u32 %v279, 7
      %v281 = vsub.s32 0, %v280
      %v282 = vrot.slane %v277, %v281
      %v292 = vunpack.c.l.b16 %v253
      %v293 = vunpack.c.l.b16 %v254
      %v294 = vunpack.c.l.b16 %v255
      %v295 = vunpack.c.l.b16 %v256
      %v296 = vunpack.c.l.b16 %v257
      %v297 = vunpack.c.l.b16 %v258
      %v298 = vunpack.c.l.b16 %v259
      %v299 = vunpack.c.l.b16 %v260
      %v300 = vpack.c.b16 %v293, %v292
      %v301 = vpack.c.b16 %v295, %v294
      %v302 = vpack.c.b16 %v297, %v296
      %v303 = vpack.c.b16 %v299, %v298
      %v324 = vunpack.c.l.b16 %v261
      %v325 = vunpack.c.l.b16 %v262
      %v326 = vunpack.c.l.b16 %v263
      %v327 = vunpack.c.l.b16 %v264
      %v328 = vunpack.c.l.b16 %v265
      %v329 = vunpack.c.l.b16 %v266
      %v330 = vunpack.c.l.b16 %v267
      %v331 = vunpack.c.l.b16 %v268
      %v332 = vunpack.c.l.b16 %v269
      %v333 = vunpack.c.l.b16 %v270
      %v334 = vunpack.c.l.b16 %v271
      %v335 = vunpack.c.l.b16 %v272
      %v336 = vunpack.c.l.b16 %v273
      %v337 = vunpack.c.l.b16 %v274
      %v338 = vunpack.c.l.b16 %v275
      %v339 = vunpack.c.l.b16 %v276
      %v340 = vpack.c.b16 %v325, %v324
      %v341 = vpack.c.b16 %v327, %v326
      %v342 = vpack.c.b16 %v329, %v328
      %v343 = vpack.c.b16 %v331, %v330
      %v344 = vpack.c.b16 %v333, %v332
      %v345 = vpack.c.b16 %v335, %v334
      %v346 = vpack.c.b16 %v337, %v336
      %v347 = vpack.c.b16 %v339, %v338
      %356 = vmatprep.subr.bf16.mxu0 0
      %357 = vmatpush1.bf16.msra.mxu0 %v340
      %358 = vmatprep.subr.bf16.mxu0 0
      %359 = vmatpush1.bf16.msra.mxu0 %v341
      %360 = vmatprep.subr.bf16.mxu0 0
      %361 = vmatpush1.bf16.msra.mxu0 %v342
      %362 = vmatprep.subr.bf16.mxu0 0
      %363 = vmatpush1.bf16.msra.mxu0 %v343
      %364 = vmatprep.subr.bf16.mxu0 0
      %365 = vmatpush1.bf16.msra.mxu0 %v344
      %366 = vmatprep.subr.bf16.mxu0 0
      %367 = vmatpush1.bf16.msra.mxu0 %v345
      %368 = vmatprep.subr.bf16.mxu0 0
      %369 = vmatpush1.bf16.msra.mxu0 %v346
      %370 = vmatprep.subr.bf16.mxu0 0
      %371 = vmatpush1.bf16.msra.mxu0 %v347
      %372 = vmatprep.subr.bf16.mxu0 0
      %373 = vmatpush1.bf16.msra.mxu0 0
      %374 = vmatprep.subr.bf16.mxu0 0
      %375 = vmatpush1.bf16.msra.mxu0 0
      %376 = vmatprep.subr.bf16.mxu0 0
      %377 = vmatpush1.bf16.msra.mxu0 0
      %378 = vmatprep.subr.bf16.mxu0 0
      %379 = vmatpush1.bf16.msra.mxu0 0
      %380 = vmatprep.subr.bf16.mxu0 0
      %381 = vmatpush1.bf16.msra.mxu0 0
      %382 = vmatprep.subr.bf16.mxu0 0
      %383 = vmatpush1.bf16.msra.mxu0 0
      %384 = vmatprep.subr.bf16.mxu0 0
      %385 = vmatpush1.bf16.msra.mxu0 0
      %386 = vmatprep.subr.bf16.mxu0 0
      %387 = vmatpush1.bf16.msra.mxu0 0
      %388 = vmatprep.mubr.bf16.mxu0 0
      %389 = vmatmul.mubr.bf16.gmra.mrb[0].mxu0 %v300
      %v390 = vpop.f32.mrb[0].mxu0
      %v391 = vadd.f32 %v282, %v390
      %v392 = vpop.f32.mrb[0].mxu0
      %v393 = vpop.f32.mrb[0].mxu0
      %v394 = vadd.f32 %v282, %v393
      %v395 = vpop.f32.mrb[0].mxu0
      %396 = vmatprep.mubr.bf16.mxu0 0
      %397 = vmatmul.mubr.bf16.gmra.mrb[0].mxu0 %v301
      %v398 = vpop.f32.mrb[0].mxu0
      %v399 = vadd.f32 %v282, %v398
      %v400 = vpop.f32.mrb[0].mxu0
      %v401 = vpop.f32.mrb[0].mxu0
      %v402 = vadd.f32 %v282, %v401
      %v403 = vpop.f32.mrb[0].mxu0
      %404 = vmatprep.mubr.bf16.mxu0 0
      %405 = vmatmul.mubr.bf16.gmra.mrb[0].mxu0 %v302
      %v406 = vpop.f32.mrb[0].mxu0
      %v407 = vadd.f32 %v282, %v406
      %v408 = vpop.f32.mrb[0].mxu0
      %v409 = vpop.f32.mrb[0].mxu0
      %v410 = vadd.f32 %v282, %v409
      %v411 = vpop.f32.mrb[0].mxu0
      %412 = vmatprep.mubr.bf16.mxu0 0
      %413 = vmatmul.mubr.bf16.gmra.mrb[0].mxu0 %v303
      %v414 = vpop.f32.mrb[0].mxu0
      %v415 = vadd.f32 %v282, %v414
      %v416 = vpop.f32.mrb[0].mxu0
      %v417 = vpop.f32.mrb[0].mxu0
      %v418 = vadd.f32 %v282, %v417
      %v419 = vpop.f32.mrb[0].mxu0
      %420 = vdwg.mxu0
      %v421 = vld [vmem:[%s3] sm:$0xff]
      %v422 = vld [vmem:[%s3 + $0x8] sm:$0xff]
      %vm423 = vcmask 130048
      %v425 = vsel %vm423, %v421, 0
      %v428 = vsel %vm423, %v422, 0
      %430 = vmatprep.subr.mxu0 0.0
      %431 = vmatpush1.msra.mxu0 %v391
      %432 = vmatprep.subr.mxu0 0.0
      %433 = vmatpush1.msra.mxu0 %v394
      %434 = vmatprep.subr.mxu0 0.0
      %435 = vmatpush1.msra.mxu0 0.0
      %436 = vmatprep.subr.mxu0 0.0
      %437 = vmatpush1.msra.mxu0 0.0
      %438 = vmatprep.subr.mxu0 0.0
      %439 = vmatpush1.msra.mxu0 0.0
      %440 = vmatprep.subr.mxu0 0.0
      %441 = vmatpush1.msra.mxu0 0.0
      %442 = vmatprep.subr.mxu0 0.0
      %443 = vmatpush1.msra.mxu0 0.0
      %444 = vmatprep.subr.mxu0 0.0
      %445 = vmatpush1.msra.mxu0 0.0
      %446 = vmatprep.subr.mxu0 0.0
      %447 = vmatpush1.msra.mxu0 0.0
      %448 = vmatprep.subr.mxu0 0.0
      %449 = vmatpush1.msra.mxu0 0.0
      %450 = vmatprep.subr.mxu0 0.0
      %451 = vmatpush1.msra.mxu0 0.0
      %452 = vmatprep.subr.mxu0 0.0
      %453 = vmatpush1.msra.mxu0 0.0
      %454 = vmatprep.subr.mxu0 0.0
      %455 = vmatpush1.msra.mxu0 0.0
      %456 = vmatprep.subr.mxu0 0.0
      %457 = vmatpush1.msra.mxu0 0.0
      %458 = vmatprep.subr.mxu0 0.0
      %459 = vmatpush1.msra.mxu0 0.0
      %460 = vmatprep.subr.mxu0 0.0
      %461 = vmatpush1.msra.mxu0 0.0
      %462 = vmatprep.subr.mxu0 0.0
      %463 = vmatpush1.msra.mxu0 0.0
      %464 = vmatprep.subr.mxu0 0.0
      %465 = vmatpush1.msra.mxu0 0.0
      %466 = vmatprep.subr.mxu0 0.0
      %467 = vmatpush1.msra.mxu0 0.0
      %468 = vmatprep.subr.mxu0 0.0
      %469 = vmatpush1.msra.mxu0 0.0
      %470 = vmatprep.subr.mxu0 0.0
      %471 = vmatpush1.msra.mxu0 0.0
      %472 = vmatprep.subr.mxu0 0.0
      %473 = vmatpush1.msra.mxu0 0.0
      %474 = vmatprep.subr.mxu0 0.0
      %475 = vmatpush1.msra.mxu0 0.0
      %476 = vmatprep.subr.mxu0 0.0
      %477 = vmatpush1.msra.mxu0 0.0
      %478 = vmatprep.subr.mxu0 0.0
      %479 = vmatpush1.msra.mxu0 0.0
      %480 = vmatprep.subr.mxu0 0.0
      %481 = vmatpush1.msra.mxu0 0.0
      %482 = vmatprep.subr.mxu0 0.0
      %483 = vmatpush1.msra.mxu0 0.0
      %484 = vmatprep.subr.mxu0 0.0
      %485 = vmatpush1.msra.mxu0 0.0
      %486 = vmatprep.subr.mxu0 0.0
      %487 = vmatpush1.msra.mxu0 0.0
      %488 = vmatprep.subr.mxu0 0.0
      %489 = vmatpush1.msra.mxu0 0.0
      %490 = vmatprep.subr.mxu0 0.0
      %491 = vmatpush1.msra.mxu0 0.0
      %492 = vmatprep.subr.mxu0 0.0
      %493 = vmatpush1.msra.mxu0 0.0
      %494 = vmatprep.mubr.f32.mxu0 0.0
      %495 = vmatmul.mubr.f32.gmra.mrb[0].mxu0 %v425
      %v496 = vpop.f32.mrb[0].mxu0
      %v497 = vadd.f32 0.0, %v496
      %v498 = vpop.f32.mrb[0].mxu0
      %499 = vmatprep.mubr.f32.mxu0 0.0
      %500 = vmatmul.mubr.f32.gmra.mrb[0].mxu0 %v428
      %v501 = vpop.f32.mrb[0].mxu0
      %v502 = vadd.f32 0.0, %v501
      %v503 = vpop.f32.mrb[0].mxu0
      %504 = vdwg.mxu0
      %505 = vmatprep.subr.mxu0 0.0
      %506 = vmatpush1.msra.mxu0 %v399
      %507 = vmatprep.subr.mxu0 0.0
      %508 = vmatpush1.msra.mxu0 %v402
      %509 = vmatprep.subr.mxu0 0.0
      %510 = vmatpush1.msra.mxu0 0.0
      %511 = vmatprep.subr.mxu0 0.0
      %512 = vmatpush1.msra.mxu0 0.0
      %513 = vmatprep.subr.mxu0 0.0
      %514 = vmatpush1.msra.mxu0 0.0
      %515 = vmatprep.subr.mxu0 0.0
      %516 = vmatpush1.msra.mxu0 0.0
      %517 = vmatprep.subr.mxu0 0.0
      %518 = vmatpush1.msra.mxu0 0.0
      %519 = vmatprep.subr.mxu0 0.0
      %520 = vmatpush1.msra.mxu0 0.0
      %521 = vmatprep.subr.mxu0 0.0
      %522 = vmatpush1.msra.mxu0 0.0
      %523 = vmatprep.subr.mxu0 0.0
      %524 = vmatpush1.msra.mxu0 0.0
      %525 = vmatprep.subr.mxu0 0.0
      %526 = vmatpush1.msra.mxu0 0.0
      %527 = vmatprep.subr.mxu0 0.0
      %528 = vmatpush1.msra.mxu0 0.0
      %529 = vmatprep.subr.mxu0 0.0
      %530 = vmatpush1.msra.mxu0 0.0
      %531 = vmatprep.subr.mxu0 0.0
      %532 = vmatpush1.msra.mxu0 0.0
      %533 = vmatprep.subr.mxu0 0.0
      %534 = vmatpush1.msra.mxu0 0.0
      %535 = vmatprep.subr.mxu0 0.0
      %536 = vmatpush1.msra.mxu0 0.0
      %537 = vmatprep.subr.mxu0 0.0
      %538 = vmatpush1.msra.mxu0 0.0
      %539 = vmatprep.subr.mxu0 0.0
      %540 = vmatpush1.msra.mxu0 0.0
      %541 = vmatprep.subr.mxu0 0.0
      %542 = vmatpush1.msra.mxu0 0.0
      %543 = vmatprep.subr.mxu0 0.0
      %544 = vmatpush1.msra.mxu0 0.0
      %545 = vmatprep.subr.mxu0 0.0
      %546 = vmatpush1.msra.mxu0 0.0
      %547 = vmatprep.subr.mxu0 0.0
      %548 = vmatpush1.msra.mxu0 0.0
      %549 = vmatprep.subr.mxu0 0.0
      %550 = vmatpush1.msra.mxu0 0.0
      %551 = vmatprep.subr.mxu0 0.0
      %552 = vmatpush1.msra.mxu0 0.0
      %553 = vmatprep.subr.mxu0 0.0
      %554 = vmatpush1.msra.mxu0 0.0
      %555 = vmatprep.subr.mxu0 0.0
      %556 = vmatpush1.msra.mxu0 0.0
      %557 = vmatprep.subr.mxu0 0.0
      %558 = vmatpush1.msra.mxu0 0.0
      %559 = vmatprep.subr.mxu0 0.0
      %560 = vmatpush1.msra.mxu0 0.0
      %561 = vmatprep.subr.mxu0 0.0
      %562 = vmatpush1.msra.mxu0 0.0
      %563 = vmatprep.subr.mxu0 0.0
      %564 = vmatpush1.msra.mxu0 0.0
      %565 = vmatprep.subr.mxu0 0.0
      %566 = vmatpush1.msra.mxu0 0.0
      %567 = vmatprep.subr.mxu0 0.0
      %568 = vmatpush1.msra.mxu0 0.0
      %569 = vmatprep.mubr.f32.mxu0 0.0
      %570 = vmatmul.mubr.f32.gmra.mrb[0].mxu0 %v425
      %v571 = vpop.f32.mrb[0].mxu0
      %v572 = vadd.f32 0.0, %v571
      %v573 = vpop.f32.mrb[0].mxu0
      %574 = vmatprep.mubr.f32.mxu0 0.0
      %575 = vmatmul.mubr.f32.gmra.mrb[0].mxu0 %v428
      %v576 = vpop.f32.mrb[0].mxu0
      %v577 = vadd.f32 0.0, %v576
      %v578 = vpop.f32.mrb[0].mxu0
      %579 = vdwg.mxu0
      %580 = vmatprep.subr.mxu0 0.0
      %581 = vmatpush1.msra.mxu0 %v407
      %582 = vmatprep.subr.mxu0 0.0
      %583 = vmatpush1.msra.mxu0 %v410
      %584 = vmatprep.subr.mxu0 0.0
      %585 = vmatpush1.msra.mxu0 0.0
      %586 = vmatprep.subr.mxu0 0.0
      %587 = vmatpush1.msra.mxu0 0.0
      %588 = vmatprep.subr.mxu0 0.0
      %589 = vmatpush1.msra.mxu0 0.0
      %590 = vmatprep.subr.mxu0 0.0
      %591 = vmatpush1.msra.mxu0 0.0
      %592 = vmatprep.subr.mxu0 0.0
      %593 = vmatpush1.msra.mxu0 0.0
      %594 = vmatprep.subr.mxu0 0.0
      %595 = vmatpush1.msra.mxu0 0.0
      %596 = vmatprep.subr.mxu0 0.0
      %597 = vmatpush1.msra.mxu0 0.0
      %598 = vmatprep.subr.mxu0 0.0
      %599 = vmatpush1.msra.mxu0 0.0
      %600 = vmatprep.subr.mxu0 0.0
      %601 = vmatpush1.msra.mxu0 0.0
      %602 = vmatprep.subr.mxu0 0.0
      %603 = vmatpush1.msra.mxu0 0.0
      %604 = vmatprep.subr.mxu0 0.0
      %605 = vmatpush1.msra.mxu0 0.0
      %606 = vmatprep.subr.mxu0 0.0
      %607 = vmatpush1.msra.mxu0 0.0
      %608 = vmatprep.subr.mxu0 0.0
      %609 = vmatpush1.msra.mxu0 0.0
      %610 = vmatprep.subr.mxu0 0.0
      %611 = vmatpush1.msra.mxu0 0.0
      %612 = vmatprep.subr.mxu0 0.0
      %613 = vmatpush1.msra.mxu0 0.0
      %614 = vmatprep.subr.mxu0 0.0
      %615 = vmatpush1.msra.mxu0 0.0
      %616 = vmatprep.subr.mxu0 0.0
      %617 = vmatpush1.msra.mxu0 0.0
      %618 = vmatprep.subr.mxu0 0.0
      %619 = vmatpush1.msra.mxu0 0.0
      %620 = vmatprep.subr.mxu0 0.0
      %621 = vmatpush1.msra.mxu0 0.0
      %622 = vmatprep.subr.mxu0 0.0
      %623 = vmatpush1.msra.mxu0 0.0
      %624 = vmatprep.subr.mxu0 0.0
      %625 = vmatpush1.msra.mxu0 0.0
      %626 = vmatprep.subr.mxu0 0.0
      %627 = vmatpush1.msra.mxu0 0.0
      %628 = vmatprep.subr.mxu0 0.0
      %629 = vmatpush1.msra.mxu0 0.0
      %630 = vmatprep.subr.mxu0 0.0
      %631 = vmatpush1.msra.mxu0 0.0
      %632 = vmatprep.subr.mxu0 0.0
      %633 = vmatpush1.msra.mxu0 0.0
      %634 = vmatprep.subr.mxu0 0.0
      %635 = vmatpush1.msra.mxu0 0.0
      %636 = vmatprep.subr.mxu0 0.0
      %637 = vmatpush1.msra.mxu0 0.0
      %638 = vmatprep.subr.mxu0 0.0
      %639 = vmatpush1.msra.mxu0 0.0
      %640 = vmatprep.subr.mxu0 0.0
      %641 = vmatpush1.msra.mxu0 0.0
      %642 = vmatprep.subr.mxu0 0.0
      %643 = vmatpush1.msra.mxu0 0.0
      %644 = vmatprep.mubr.f32.mxu0 0.0
      %645 = vmatmul.mubr.f32.gmra.mrb[0].mxu0 %v425
      %v646 = vpop.f32.mrb[0].mxu0
      %v647 = vadd.f32 0.0, %v646
      %v648 = vpop.f32.mrb[0].mxu0
      %649 = vmatprep.mubr.f32.mxu0 0.0
      %650 = vmatmul.mubr.f32.gmra.mrb[0].mxu0 %v428
      %v651 = vpop.f32.mrb[0].mxu0
      %v652 = vadd.f32 0.0, %v651
      %v653 = vpop.f32.mrb[0].mxu0
      %654 = vdwg.mxu0
      %655 = vmatprep.subr.mxu0 0.0
      %656 = vmatpush1.msra.mxu0 %v415
      %657 = vmatprep.subr.mxu0 0.0
      %658 = vmatpush1.msra.mxu0 %v418
      %659 = vmatprep.subr.mxu0 0.0
      %660 = vmatpush1.msra.mxu0 0.0
      %661 = vmatprep.subr.mxu0 0.0
      %662 = vmatpush1.msra.mxu0 0.0
      %663 = vmatprep.subr.mxu0 0.0
      %664 = vmatpush1.msra.mxu0 0.0
      %665 = vmatprep.subr.mxu0 0.0
      %666 = vmatpush1.msra.mxu0 0.0
      %667 = vmatprep.subr.mxu0 0.0
      %668 = vmatpush1.msra.mxu0 0.0
      %669 = vmatprep.subr.mxu0 0.0
      %670 = vmatpush1.msra.mxu0 0.0
      %671 = vmatprep.subr.mxu0 0.0
      %672 = vmatpush1.msra.mxu0 0.0
      %673 = vmatprep.subr.mxu0 0.0
      %674 = vmatpush1.msra.mxu0 0.0
      %675 = vmatprep.subr.mxu0 0.0
      %676 = vmatpush1.msra.mxu0 0.0
      %677 = vmatprep.subr.mxu0 0.0
      %678 = vmatpush1.msra.mxu0 0.0
      %679 = vmatprep.subr.mxu0 0.0
      %680 = vmatpush1.msra.mxu0 0.0
      %681 = vmatprep.subr.mxu0 0.0
      %682 = vmatpush1.msra.mxu0 0.0
      %683 = vmatprep.subr.mxu0 0.0
      %684 = vmatpush1.msra.mxu0 0.0
      %685 = vmatprep.subr.mxu0 0.0
      %686 = vmatpush1.msra.mxu0 0.0
      %687 = vmatprep.subr.mxu0 0.0
      %688 = vmatpush1.msra.mxu0 0.0
      %689 = vmatprep.subr.mxu0 0.0
      %690 = vmatpush1.msra.mxu0 0.0
      %691 = vmatprep.subr.mxu0 0.0
      %692 = vmatpush1.msra.mxu0 0.0
      %693 = vmatprep.subr.mxu0 0.0
      %694 = vmatpush1.msra.mxu0 0.0
      %695 = vmatprep.subr.mxu0 0.0
      %696 = vmatpush1.msra.mxu0 0.0
      %697 = vmatprep.subr.mxu0 0.0
      %698 = vmatpush1.msra.mxu0 0.0
      %699 = vmatprep.subr.mxu0 0.0
      %700 = vmatpush1.msra.mxu0 0.0
      %701 = vmatprep.subr.mxu0 0.0
      %702 = vmatpush1.msra.mxu0 0.0
      %703 = vmatprep.subr.mxu0 0.0
      %704 = vmatpush1.msra.mxu0 0.0
      %705 = vmatprep.subr.mxu0 0.0
      %706 = vmatpush1.msra.mxu0 0.0
      %707 = vmatprep.subr.mxu0 0.0
      %708 = vmatpush1.msra.mxu0 0.0
      %709 = vmatprep.subr.mxu0 0.0
      %710 = vmatpush1.msra.mxu0 0.0
      %711 = vmatprep.subr.mxu0 0.0
      %712 = vmatpush1.msra.mxu0 0.0
      %713 = vmatprep.subr.mxu0 0.0
      %714 = vmatpush1.msra.mxu0 0.0
      %715 = vmatprep.subr.mxu0 0.0
      %716 = vmatpush1.msra.mxu0 0.0
      %717 = vmatprep.subr.mxu0 0.0
      %718 = vmatpush1.msra.mxu0 0.0
      %719 = vmatprep.mubr.f32.mxu0 0.0
      %720 = vmatmul.mubr.f32.gmra.mrb[0].mxu0 %v425
      %v721 = vpop.f32.mrb[0].mxu0
      %v722 = vadd.f32 0.0, %v721
      %v723 = vpop.f32.mrb[0].mxu0
      %724 = vmatprep.mubr.f32.mxu0 0.0
      %725 = vmatmul.mubr.f32.gmra.mrb[0].mxu0 %v428
      %v726 = vpop.f32.mrb[0].mxu0
      %v727 = vadd.f32 0.0, %v726
      %v728 = vpop.f32.mrb[0].mxu0
      %729 = vdwg.mxu0
      %730 = vst [vmem:[#allocation2] sm:$0xff] 0
      %s731 = scalar_lea.vmem [#allocation2], 40
      %732 = vst [vmem:[%s731] sm:$0xff] 0
      %v733 = vpack.c.bf16 %v502, %v497
      %v734 = vpack.c.bf16 %v577, %v572
      %v735 = vpack.c.bf16 %v652, %v647
      %v736 = vpack.c.bf16 %v727, %v722
      %s737 = scalar_lea.vmem [#allocation2], 8
      %738 = vst [vmem:[%s737] sm:$0xff] %v733
      %739 = vst [vmem:[%s737 + $0x8] sm:$0xff] %v734
      %740 = vst [vmem:[%s737 + $0x10] sm:$0xff] %v735
      %741 = vst [vmem:[%s737 + $0x18] sm:$0xff] %v736
      %v742 = vld [vmem:[#allocation2] sm:$0xff]
      %v743 = vld [vmem:[#allocation2 + $0x8] sm:$0xff]
      %v744 = vld [vmem:[#allocation2 + $0x10] sm:$0xff]
      %v745 = vld [vmem:[#allocation2 + $0x18] sm:$0xff]
      %v746 = vld [vmem:[%s4] sm:$0xf]
      %v747 = vld [vmem:[%s4 + $0x4] sm:$0xf]
      %v748 = vld [vmem:[%s4 + $0x8] sm:$0xf]
      %v749 = vld [vmem:[%s4 + $0xc] sm:$0xf]
      %v750 = vld [vmem:[%s4 + $0x10] sm:$0xf]
      %v751 = vld [vmem:[%s4 + $0x14] sm:$0xf]
      %v752 = vld [vmem:[%s4 + $0x18] sm:$0xf]
      %v753 = vld [vmem:[%s4 + $0x1c] sm:$0xf]
      %v754 = vld [vmem:[%s4 + $0x20] sm:$0xf]
      %v755 = vld [vmem:[%s4 + $0x24] sm:$0xf]
      %v756 = vld [vmem:[%s4 + $0x28] sm:$0xf]
      %v757 = vld [vmem:[%s4 + $0x2c] sm:$0xf]
      %v758 = vld [vmem:[%s4 + $0x30] sm:$0xf]
      %v759 = vld [vmem:[%s4 + $0x34] sm:$0xf]
      %v760 = vld [vmem:[%s4 + $0x38] sm:$0xf]
      %v761 = vld [vmem:[%s4 + $0x3c] sm:$0xf]
      %v762 = vld [vmem:[%s737] sm:$0xff]
      %v763 = vld [vmem:[%s737 + $0x8] sm:$0xff]
      %v764 = vld [vmem:[%s737 + $0x10] sm:$0xff]
      %v765 = vld [vmem:[%s737 + $0x18] sm:$0xff]
      %s766 = scalar_lea.vmem %s4, 64
      %v767 = vld [vmem:[%s766] sm:$0xf]
      %v768 = vld [vmem:[%s766 + $0x4] sm:$0xf]
      %v769 = vld [vmem:[%s766 + $0x8] sm:$0xf]
      %v770 = vld [vmem:[%s766 + $0xc] sm:$0xf]
      %v771 = vld [vmem:[%s766 + $0x10] sm:$0xf]
      %v772 = vld [vmem:[%s766 + $0x14] sm:$0xf]
      %v773 = vld [vmem:[%s766 + $0x18] sm:$0xf]
      %v774 = vld [vmem:[%s766 + $0x1c] sm:$0xf]
      %v775 = vld [vmem:[%s766 + $0x20] sm:$0xf]
      %v776 = vld [vmem:[%s766 + $0x24] sm:$0xf]
      %v777 = vld [vmem:[%s766 + $0x28] sm:$0xf]
      %v778 = vld [vmem:[%s766 + $0x2c] sm:$0xf]
      %v779 = vld [vmem:[%s766 + $0x30] sm:$0xf]
      %v780 = vld [vmem:[%s766 + $0x34] sm:$0xf]
      %v781 = vld [vmem:[%s766 + $0x38] sm:$0xf]
      %v782 = vld [vmem:[%s766 + $0x3c] sm:$0xf]
      %v799 = vunpack.c.l.b16 %v767
      %v800 = vunpack.c.l.b16 %v768
      %v801 = vunpack.c.l.b16 %v769
      %v802 = vunpack.c.l.b16 %v770
      %v803 = vunpack.c.l.b16 %v771
      %v804 = vunpack.c.l.b16 %v772
      %v805 = vunpack.c.l.b16 %v773
      %v806 = vunpack.c.l.b16 %v774
      %v807 = vunpack.c.l.b16 %v775
      %v808 = vunpack.c.l.b16 %v776
      %v809 = vunpack.c.l.b16 %v777
      %v810 = vunpack.c.l.b16 %v778
      %v811 = vunpack.c.l.b16 %v779
      %v812 = vunpack.c.l.b16 %v780
      %v813 = vunpack.c.l.b16 %v781
      %v814 = vunpack.c.l.b16 %v782
      %v815 = vpack.c.b16 %v800, %v799
      %v816 = vpack.c.b16 %v802, %v801
      %v817 = vpack.c.b16 %v804, %v803
      %v818 = vpack.c.b16 %v806, %v805
      %v819 = vpack.c.b16 %v808, %v807
      %v820 = vpack.c.b16 %v810, %v809
      %v821 = vpack.c.b16 %v812, %v811
      %v822 = vpack.c.b16 %v814, %v813
      %831 = vmatprep.subr.bf16.mxu0 0
      %832 = vmatpush1.bf16.msra.mxu0 %v815
      %833 = vmatprep.subr.bf16.mxu0 0
      %834 = vmatpush1.bf16.msra.mxu0 %v816
      %835 = vmatprep.subr.bf16.mxu0 0
      %836 = vmatpush1.bf16.msra.mxu0 %v817
      %837 = vmatprep.subr.bf16.mxu0 0
      %838 = vmatpush1.bf16.msra.mxu0 %v818
      %839 = vmatprep.subr.bf16.mxu0 0
      %840 = vmatpush1.bf16.msra.mxu0 %v819
      %841 = vmatprep.subr.bf16.mxu0 0
      %842 = vmatpush1.bf16.msra.mxu0 %v820
      %843 = vmatprep.subr.bf16.mxu0 0
      %844 = vmatpush1.bf16.msra.mxu0 %v821
      %845 = vmatprep.subr.bf16.mxu0 0
      %846 = vmatpush1.bf16.msra.mxu0 %v822
      %847 = vmatprep.subr.bf16.mxu0 0
      %848 = vmatpush1.bf16.msra.mxu0 0
      %849 = vmatprep.subr.bf16.mxu0 0
      %850 = vmatpush1.bf16.msra.mxu0 0
      %851 = vmatprep.subr.bf16.mxu0 0
      %852 = vmatpush1.bf16.msra.mxu0 0
      %853 = vmatprep.subr.bf16.mxu0 0
      %854 = vmatpush1.bf16.msra.mxu0 0
      %855 = vmatprep.subr.bf16.mxu0 0
      %856 = vmatpush1.bf16.msra.mxu0 0
      %857 = vmatprep.subr.bf16.mxu0 0
      %858 = vmatpush1.bf16.msra.mxu0 0
      %859 = vmatprep.subr.bf16.mxu0 0
      %860 = vmatpush1.bf16.msra.mxu0 0
      %861 = vmatprep.subr.bf16.mxu0 0
      %862 = vmatpush1.bf16.msra.mxu0 0
      %863 = vmatprep.mubr.bf16.mxu0 0
      %864 = vmatmul.mubr.bf16.gmra.mrb[0].mxu0 %v762
      %v865 = vpop.f32.mrb[0].mxu0
      %v866 = vadd.f32 0.0, %v865
      %v867 = vpop.f32.mrb[0].mxu0
      %v868 = vpop.f32.mrb[0].mxu0
      %v869 = vadd.f32 0.0, %v868
      %v870 = vpop.f32.mrb[0].mxu0
      %871 = vmatprep.mubr.bf16.mxu0 0
      %872 = vmatmul.mubr.bf16.gmra.mrb[0].mxu0 %v763
      %v873 = vpop.f32.mrb[0].mxu0
      %v874 = vadd.f32 0.0, %v873
      %v875 = vpop.f32.mrb[0].mxu0
      %v876 = vpop.f32.mrb[0].mxu0
      %v877 = vadd.f32 0.0, %v876
      %v878 = vpop.f32.mrb[0].mxu0
      %879 = vmatprep.mubr.bf16.mxu0 0
      %880 = vmatmul.mubr.bf16.gmra.mrb[0].mxu0 %v764
      %v881 = vpop.f32.mrb[0].mxu0
      %v882 = vadd.f32 0.0, %v881
      %v883 = vpop.f32.mrb[0].mxu0
      %v884 = vpop.f32.mrb[0].mxu0
      %v885 = vadd.f32 0.0, %v884
      %v886 = vpop.f32.mrb[0].mxu0
      %887 = vmatprep.mubr.bf16.mxu0 0
      %888 = vmatmul.mubr.bf16.gmra.mrb[0].mxu0 %v765
      %v889 = vpop.f32.mrb[0].mxu0
      %v890 = vadd.f32 0.0, %v889
      %v891 = vpop.f32.mrb[0].mxu0
      %v892 = vpop.f32.mrb[0].mxu0
      %v893 = vadd.f32 0.0, %v892
      %v894 = vpop.f32.mrb[0].mxu0
      %895 = vdwg.mxu0
      %v912 = vunpack.c.l.b16 %v746
      %v913 = vunpack.c.l.b16 %v747
      %v914 = vunpack.c.l.b16 %v748
      %v915 = vunpack.c.l.b16 %v749
      %v916 = vunpack.c.l.b16 %v750
      %v917 = vunpack.c.l.b16 %v751
      %v918 = vunpack.c.l.b16 %v752
      %v919 = vunpack.c.l.b16 %v753
      %v920 = vunpack.c.l.b16 %v754
      %v921 = vunpack.c.l.b16 %v755
      %v922 = vunpack.c.l.b16 %v756
      %v923 = vunpack.c.l.b16 %v757
      %v924 = vunpack.c.l.b16 %v758
      %v925 = vunpack.c.l.b16 %v759
      %v926 = vunpack.c.l.b16 %v760
      %v927 = vunpack.c.l.b16 %v761
      %v928 = vpack.c.b16 %v913, %v912
      %v929 = vpack.c.b16 %v915, %v914
      %v930 = vpack.c.b16 %v917, %v916
      %v931 = vpack.c.b16 %v919, %v918
      %v932 = vpack.c.b16 %v921, %v920
      %v933 = vpack.c.b16 %v923, %v922
      %v934 = vpack.c.b16 %v925, %v924
      %v935 = vpack.c.b16 %v927, %v926
      %944 = vmatprep.subr.bf16.mxu0 0
      %945 = vmatpush1.bf16.msra.mxu0 %v928
      %946 = vmatprep.subr.bf16.mxu0 0
      %947 = vmatpush1.bf16.msra.mxu0 %v929
      %948 = vmatprep.subr.bf16.mxu0 0
      %949 = vmatpush1.bf16.msra.mxu0 %v930
      %950 = vmatprep.subr.bf16.mxu0 0
      %951 = vmatpush1.bf16.msra.mxu0 %v931
      %952 = vmatprep.subr.bf16.mxu0 0
      %953 = vmatpush1.bf16.msra.mxu0 %v932
      %954 = vmatprep.subr.bf16.mxu0 0
      %955 = vmatpush1.bf16.msra.mxu0 %v933
      %956 = vmatprep.subr.bf16.mxu0 0
      %957 = vmatpush1.bf16.msra.mxu0 %v934
      %958 = vmatprep.subr.bf16.mxu0 0
      %959 = vmatpush1.bf16.msra.mxu0 %v935
      %960 = vmatprep.subr.bf16.mxu0 0
      %961 = vmatpush1.bf16.msra.mxu0 0
      %962 = vmatprep.subr.bf16.mxu0 0
      %963 = vmatpush1.bf16.msra.mxu0 0
      %964 = vmatprep.subr.bf16.mxu0 0
      %965 = vmatpush1.bf16.msra.mxu0 0
      %966 = vmatprep.subr.bf16.mxu0 0
      %967 = vmatpush1.bf16.msra.mxu0 0
      %968 = vmatprep.subr.bf16.mxu0 0
      %969 = vmatpush1.bf16.msra.mxu0 0
      %970 = vmatprep.subr.bf16.mxu0 0
      %971 = vmatpush1.bf16.msra.mxu0 0
      %972 = vmatprep.subr.bf16.mxu0 0
      %973 = vmatpush1.bf16.msra.mxu0 0
      %974 = vmatprep.subr.bf16.mxu0 0
      %975 = vmatpush1.bf16.msra.mxu0 0
      %976 = vmatprep.mubr.bf16.mxu0 0
      %977 = vmatmul.mubr.bf16.gmra.mrb[0].mxu0 %v742
      %v978 = vpop.f32.mrb[0].mxu0
      %v979 = vadd.f32 %v866, %v978
      %v980 = vpop.f32.mrb[0].mxu0
      %v981 = vpop.f32.mrb[0].mxu0
      %v982 = vadd.f32 %v869, %v981
      %v983 = vpop.f32.mrb[0].mxu0
      %984 = vmatprep.mubr.bf16.mxu0 0
      %985 = vmatmul.mubr.bf16.gmra.mrb[0].mxu0 %v743
      %v986 = vpop.f32.mrb[0].mxu0
      %v987 = vadd.f32 %v874, %v986
      %v988 = vpop.f32.mrb[0].mxu0
      %v989 = vpop.f32.mrb[0].mxu0
      %v990 = vadd.f32 %v877, %v989
      %v991 = vpop.f32.mrb[0].mxu0
      %992 = vmatprep.mubr.bf16.mxu0 0
      %993 = vmatmul.mubr.bf16.gmra.mrb[0].mxu0 %v744
      %v994 = vpop.f32.mrb[0].mxu0
      %v995 = vadd.f32 %v882, %v994
      %v996 = vpop.f32.mrb[0].mxu0
      %v997 = vpop.f32.mrb[0].mxu0
      %v998 = vadd.f32 %v885, %v997
      %v999 = vpop.f32.mrb[0].mxu0
      %1000 = vmatprep.mubr.bf16.mxu0 0
      %1001 = vmatmul.mubr.bf16.gmra.mrb[0].mxu0 %v745
      %v1002 = vpop.f32.mrb[0].mxu0
      %v1003 = vadd.f32 %v890, %v1002
      %v1004 = vpop.f32.mrb[0].mxu0
      %v1005 = vpop.f32.mrb[0].mxu0
      %v1006 = vadd.f32 %v893, %v1005
      %v1007 = vpop.f32.mrb[0].mxu0
      %1008 = vdwg.mxu0
      %s1009 = scalar_lea.vmem [#allocation2], 16
      %v1010 = vld [vmem:[%s1009] sm:$0xff]
      %v1011 = vld [vmem:[%s1009 + $0x8] sm:$0xff]
      %v1012 = vld [vmem:[%s1009 + $0x10] sm:$0xff]
      %v1013 = vld [vmem:[%s1009 + $0x18] sm:$0xff]
      %s1014 = scalar_lea.vmem %s4, 128
      %v1015 = vld [vmem:[%s1014] sm:$0xf]
      %v1016 = vld [vmem:[%s1014 + $0x4] sm:$0xf]
      %v1017 = vld [vmem:[%s1014 + $0x8] sm:$0xf]
      %v1018 = vld [vmem:[%s1014 + $0xc] sm:$0xf]
      %v1019 = vld [vmem:[%s1014 + $0x10] sm:$0xf]
      %v1020 = vld [vmem:[%s1014 + $0x14] sm:$0xf]
      %v1021 = vld [vmem:[%s1014 + $0x18] sm:$0xf]
      %v1022 = vld [vmem:[%s1014 + $0x1c] sm:$0xf]
      %v1023 = vld [vmem:[%s1014 + $0x20] sm:$0xf]
      %v1024 = vld [vmem:[%s1014 + $0x24] sm:$0xf]
      %v1025 = vld [vmem:[%s1014 + $0x28] sm:$0xf]
      %v1026 = vld [vmem:[%s1014 + $0x2c] sm:$0xf]
      %v1027 = vld [vmem:[%s1014 + $0x30] sm:$0xf]
      %v1028 = vld [vmem:[%s1014 + $0x34] sm:$0xf]
      %v1029 = vld [vmem:[%s1014 + $0x38] sm:$0xf]
      %v1030 = vld [vmem:[%s1014 + $0x3c] sm:$0xf]
      %v1047 = vunpack.c.l.b16 %v1015
      %v1048 = vunpack.c.l.b16 %v1016
      %v1049 = vunpack.c.l.b16 %v1017
      %v1050 = vunpack.c.l.b16 %v1018
      %v1051 = vunpack.c.l.b16 %v1019
      %v1052 = vunpack.c.l.b16 %v1020
      %v1053 = vunpack.c.l.b16 %v1021
      %v1054 = vunpack.c.l.b16 %v1022
      %v1055 = vunpack.c.l.b16 %v1023
      %v1056 = vunpack.c.l.b16 %v1024
      %v1057 = vunpack.c.l.b16 %v1025
      %v1058 = vunpack.c.l.b16 %v1026
      %v1059 = vunpack.c.l.b16 %v1027
      %v1060 = vunpack.c.l.b16 %v1028
      %v1061 = vunpack.c.l.b16 %v1029
      %v1062 = vunpack.c.l.b16 %v1030
      %v1063 = vpack.c.b16 %v1048, %v1047
      %v1064 = vpack.c.b16 %v1050, %v1049
      %v1065 = vpack.c.b16 %v1052, %v1051
      %v1066 = vpack.c.b16 %v1054, %v1053
      %v1067 = vpack.c.b16 %v1056, %v1055
      %v1068 = vpack.c.b16 %v1058, %v1057
      %v1069 = vpack.c.b16 %v1060, %v1059
      %v1070 = vpack.c.b16 %v1062, %v1061
      %1079 = vmatprep.subr.bf16.mxu0 0
      %1080 = vmatpush1.bf16.msra.mxu0 %v1063
      %1081 = vmatprep.subr.bf16.mxu0 0
      %1082 = vmatpush1.bf16.msra.mxu0 %v1064
      %1083 = vmatprep.subr.bf16.mxu0 0
      %1084 = vmatpush1.bf16.msra.mxu0 %v1065
      %1085 = vmatprep.subr.bf16.mxu0 0
      %1086 = vmatpush1.bf16.msra.mxu0 %v1066
      %1087 = vmatprep.subr.bf16.mxu0 0
      %1088 = vmatpush1.bf16.msra.mxu0 %v1067
      %1089 = vmatprep.subr.bf16.mxu0 0
      %1090 = vmatpush1.bf16.msra.mxu0 %v1068
      %1091 = vmatprep.subr.bf16.mxu0 0
      %1092 = vmatpush1.bf16.msra.mxu0 %v1069
      %1093 = vmatprep.subr.bf16.mxu0 0
      %1094 = vmatpush1.bf16.msra.mxu0 %v1070
      %1095 = vmatprep.subr.bf16.mxu0 0
      %1096 = vmatpush1.bf16.msra.mxu0 0
      %1097 = vmatprep.subr.bf16.mxu0 0
      %1098 = vmatpush1.bf16.msra.mxu0 0
      %1099 = vmatprep.subr.bf16.mxu0 0
      %1100 = vmatpush1.bf16.msra.mxu0 0
      %1101 = vmatprep.subr.bf16.mxu0 0
      %1102 = vmatpush1.bf16.msra.mxu0 0
      %1103 = vmatprep.subr.bf16.mxu0 0
      %1104 = vmatpush1.bf16.msra.mxu0 0
      %1105 = vmatprep.subr.bf16.mxu0 0
      %1106 = vmatpush1.bf16.msra.mxu0 0
      %1107 = vmatprep.subr.bf16.mxu0 0
      %1108 = vmatpush1.bf16.msra.mxu0 0
      %1109 = vmatprep.subr.bf16.mxu0 0
      %1110 = vmatpush1.bf16.msra.mxu0 0
      %1111 = vmatprep.mubr.bf16.mxu0 0
      %1112 = vmatmul.mubr.bf16.gmra.mrb[0].mxu0 %v1010
      %v1113 = vpop.f32.mrb[0].mxu0
      %v1114 = vadd.f32 0.0, %v1113
      %v1115 = vpop.f32.mrb[0].mxu0
      %v1116 = vpop.f32.mrb[0].mxu0
      %v1117 = vadd.f32 0.0, %v1116
      %v1118 = vpop.f32.mrb[0].mxu0
      %1119 = vmatprep.mubr.bf16.mxu0 0
      %1120 = vmatmul.mubr.bf16.gmra.mrb[0].mxu0 %v1011
      %v1121 = vpop.f32.mrb[0].mxu0
      %v1122 = vadd.f32 0.0, %v1121
      %v1123 = vpop.f32.mrb[0].mxu0
      %v1124 = vpop.f32.mrb[0].mxu0
      %v1125 = vadd.f32 0.0, %v1124
      %v1126 = vpop.f32.mrb[0].mxu0
      %1127 = vmatprep.mubr.bf16.mxu0 0
      %1128 = vmatmul.mubr.bf16.gmra.mrb[0].mxu0 %v1012
      %v1129 = vpop.f32.mrb[0].mxu0
      %v1130 = vadd.f32 0.0, %v1129
      %v1131 = vpop.f32.mrb[0].mxu0
      %v1132 = vpop.f32.mrb[0].mxu0
      %v1133 = vadd.f32 0.0, %v1132
      %v1134 = vpop.f32.mrb[0].mxu0
      %1135 = vmatprep.mubr.bf16.mxu0 0
      %1136 = vmatmul.mubr.bf16.gmra.mrb[0].mxu0 %v1013
      %v1137 = vpop.f32.mrb[0].mxu0
      %v1138 = vadd.f32 0.0, %v1137
      %v1139 = vpop.f32.mrb[0].mxu0
      %v1140 = vpop.f32.mrb[0].mxu0
      %v1141 = vadd.f32 0.0, %v1140
      %v1142 = vpop.f32.mrb[0].mxu0
      %1143 = vdwg.mxu0
      %v1144 = vadd.f32 %v979, %v1114
      %v1145 = vadd.f32 %v982, %v1117
      %v1146 = vadd.f32 %v987, %v1122
      %v1147 = vadd.f32 %v990, %v1125
      %v1148 = vadd.f32 %v995, %v1130
      %v1149 = vadd.f32 %v998, %v1133
      %v1150 = vadd.f32 %v1003, %v1138
      %v1151 = vadd.f32 %v1006, %v1141
      %v1152 = vld [vmem:[%s5] sm:$0x1]
      %v1154 = vlaneseq
      %v1155 = vshrl.u32 %v1154, 7
      %v1156 = vsub.s32 0, %v1155
      %v1157 = vrot.slane %v1152, %v1156
      %v1159 = vadd.f32 %v1144, %v1157
      %v1160 = vadd.f32 %v1145, %v1157
      %v1161 = vadd.f32 %v1146, %v1157
      %v1162 = vadd.f32 %v1147, %v1157
      %v1163 = vadd.f32 %v1148, %v1157
      %v1164 = vadd.f32 %v1149, %v1157
      %v1165 = vadd.f32 %v1150, %v1157
      %v1166 = vadd.f32 %v1151, %v1157
      %v1167 = vmax.f32 %v1159, 0.0
      %v1168 = vmax.f32 %v1160, 0.0
      %v1169 = vmax.f32 %v1161, 0.0
      %v1170 = vmax.f32 %v1162, 0.0
      %v1171 = vmax.f32 %v1163, 0.0
      %v1172 = vmax.f32 %v1164, 0.0
      %v1173 = vmax.f32 %v1165, 0.0
      %v1174 = vmax.f32 %v1166, 0.0
      %v1175 = vpack.c.bf16 %v1168, %v1167
      %v1176 = vpack.c.bf16 %v1170, %v1169
      %v1177 = vpack.c.bf16 %v1172, %v1171
      %v1178 = vpack.c.bf16 %v1174, %v1173
      %v1183 = vunpack.c.l.b16 %v1175
      %v1184 = vunpack.c.h.b16 %v1175
      %v1185 = vunpack.c.l.b16 %v1176
      %v1186 = vunpack.c.h.b16 %v1176
      %v1187 = vunpack.c.l.b16 %v1177
      %v1188 = vunpack.c.h.b16 %v1177
      %v1189 = vunpack.c.l.b16 %v1178
      %v1190 = vunpack.c.h.b16 %v1178
      %v1191 = vpack.c.b16 %v1183, %v1183
      %v1192 = vpack.c.b16 %v1184, %v1184
      %v1193 = vpack.c.b16 %v1185, %v1185
      %v1194 = vpack.c.b16 %v1186, %v1186
      %v1195 = vpack.c.b16 %v1187, %v1187
      %v1196 = vpack.c.b16 %v1188, %v1188
      %v1197 = vpack.c.b16 %v1189, %v1189
      %v1198 = vpack.c.b16 %v1190, %v1190
      %1207 = vst [vmem:[%s251] sm:$0xf] %v1191
      %1208 = vst [vmem:[%s251 + $0x4] sm:$0xf] %v1192
      %1209 = vst [vmem:[%s251 + $0x8] sm:$0xf] %v1193
      %1210 = vst [vmem:[%s251 + $0xc] sm:$0xf] %v1194
      %1211 = vst [vmem:[%s251 + $0x10] sm:$0xf] %v1195
      %1212 = vst [vmem:[%s251 + $0x14] sm:$0xf] %v1196
      %1213 = vst [vmem:[%s251 + $0x18] sm:$0xf] %v1197
      %1214 = vst [vmem:[%s251 + $0x1c] sm:$0xf] %v1198
      %p1215 = scmp.lt.s32.totalorder %s17, 1
      %s1216 = scalar_select %p1215, %s17, 1
      %s1217 = smul.addr %s1216, 8
      %s1218 = smul.addr %s1217, 4
      %s1219 = scalar_lea.vmem %s6, %s1218
      // Predicated region
      $region45: #{_lambda_.16} parent=43 // pred_check
        %p1220 = pneg %p166
      $region46: #{_lambda_.16} parent=43 // pred_check_branch
        %1222 = sbr.rel (%p1220) target = $region48
      $region47: #{_lambda_.16} parent=43 // pred_region
        _
      $region48: #{_lambda_.16} parent=43 // pred_fallthru
        _
    $region44: #{_lambda_.16} parent=5 // pred_fallthru
      _
    %p1223 = scmp.le.s32.totalorder 2, %s12
    // Predicated region
    $region49: #{_lambda_.16} parent=5 // pred_check
      %p1224 = pneg %p1223
    $region50: #{_lambda_.16} parent=5 // pred_check_branch
      %1226 = sbr.rel (%p1224) target = $region52
    $region51: #{_lambda_.16} parent=5 // pred_region
      %s1227 = ssub.s32 %s12, 2
      // Predicated region
      $region53: #{_lambda_.16} parent=51 // pred_check
        %p1228 = pneg %p172
      $region54: #{_lambda_.16} parent=51 // pred_check_branch
        %1230 = sbr.rel (%p1228) target = $region56
      $region55: #{_lambda_.16} parent=51 // pred_region
        %p1231 = scmp.lt.s32.totalorder %s18, 1
        %s1232 = scalar_select %p1231, %s18, 1
        %s1233 = smul.addr %s1232, 8
        %s1234 = smul.addr %s1233, 4
        %s1235 = scalar_lea.vmem %s6, %s1234
      $region56: #{_lambda_.16} parent=51 // pred_fallthru
        _
    $region52: #{_lambda_.16} parent=5 // pred_fallthru
      _
  $region6: #{_lambda_.16} parent=0 // loop_footer
    %s16 = sadd.s32 1, %s12
  $region7: #{_lambda_.16} parent=0 // loop_footer_branch
    %11 = sbr.rel target = $region3
  $region8: #{_lambda_.16} parent=0 // loop_exit
    _

// kernel: _lambda_.21
$region0: #{_lambda_.21}
  #allocation0 [shape = 'u32[]', space=smem, size = 0x4, offset = 0x4, fixed_abs, tag = 'smem constant byte address 0x4 - core index']
  #allocation1 [shape = 'u32[144,128]{1,0:T(1,128)}', space=vmem, size = 0x12000, scoped, tag = 'internal scratch']
  %s0 = inlined_call_operand.vmem [shape: bf16[2,2,16,256], index: 0, kind: input, shape index: {}]
  %s1 = inlined_call_operand.vmem [shape: f32[256,8], index: 1, kind: input, shape index: {}]
  %s2 = inlined_call_operand.vmem [shape: f32[1,8], index: 2, kind: input, shape index: {}]
  %s3 = inlined_call_operand.hbm [shape: f32[2,1,8], index: 3, kind: output, shape index: {}]
  %s4 = sld [smem:[#allocation0]]
  $region45: #{_lambda_.21} parent=0
    _
  %s6 = ssub.s32 1, %s4
  %s7 = scalar_select 0, %s6, %s4
  $region1: #{_lambda_.21} parent=0
    #allocation2 [shape = 'u8[1024]{0}', space=vmem, size = 0x400, scoped, tag = 'output window, operand 0']
    #allocation3 [shape = 's32[2]{0}', space=sflag, size = 0x8, scoped, tag = 'scoped memory for _lambda_.21']
    %8 = vsyncpa [#allocation3], 0
    %s9 = scalar_lea.sflag [#allocation3], 1
    %10 = vsyncpa %s9, 0
    loop: start=0, step=1, limit=4
    $region2: #{_lambda_.21} parent=1 // loop_pre_header
      _
    $region3: #{_lambda_.21} parent=1 // loop_header
      %s12 = sphi 0, %s16
      %p13 = scmp.ge.s32.totalorder %s12, 4
      %s22 = sphi 0, %s24
      %s25 = sphi 0, %s22
      %s26 = sphi 0, %s25
      %s42 = sphi 0, %s26
      %s46 = sphi 0, %s46
      %s48 = sphi 0, %s46
      %s49 = sphi 0, %s48
      %s63 = sphi 0, %s49
      %s67 = sphi 0, %s67
      %s69 = sphi 0, %s67
      %s70 = sphi 0, %s69
      %s84 = sphi 0, %s70
      %s90 = sphi 0, %s92
      %s93 = sphi 0, %s90
      %s94 = sphi 0, %s93
      %s110 = sphi 0, %s94
    $region4: #{_lambda_.21} parent=1 // loop_header_branch
      %15 = sbr.rel (%p13) target = $region8
    $region5: #{_lambda_.21} parent=1 // loop_body
      %s17 = ssub.s32 %s12, 1
      %s18 = ssub.s32 %s12, 2
      %s19 = sadd.s32 %s12, 1
      %s20 = ssub.s32 %s12, %s19
      %p21 = scmp.eq.s32.totalorder %s20, 0
      %s23 = sadd.s32 %s22, 1
      %s24 = scalar_select %p21, %s22, %s23
      %p27 = pneg %p21
      %p28 = scmp.eq.s32.totalorder %s12, 1
      %p29 = por %p27, %p28
      %p30 = scmp.ne.s32.totalorder %s22, %s25
      %p31 = scmp.eq.s32.totalorder %s12, 0
      %p32 = por %p30, %p31
      %p33 = scmp.ne.s32.totalorder %s22, %s25
      %p34 = scmp.eq.s32.totalorder %s17, 1
      %p35 = por %p33, %p34
      %p36 = scmp.ne.s32.totalorder %s25, %s26
      %p37 = scmp.eq.s32.totalorder %s17, 0
      %p38 = por %p36, %p37
      %p39 = scmp.ne.s32.totalorder %s25, %s26
      %p40 = scmp.eq.s32.totalorder %s18, 1
      %p41 = por %p39, %p40
      %p43 = scmp.ne.s32.totalorder %s26, %s42
      %p44 = scmp.eq.s32.totalorder %s18, 0
      %p45 = por %p43, %p44
      %s47 = sadd.s32 %s46, 1
      %p50 = scmp.eq.s32.totalorder %s12, 1
      %p51 = scmp.ne.s32.totalorder %s46, %s48
      %p52 = scmp.eq.s32.totalorder %s12, 0
      %p53 = por %p51, %p52
      %p54 = scmp.ne.s32.totalorder %s46, %s48
      %p55 = scmp.eq.s32.totalorder %s17, 1
      %p56 = por %p54, %p55
      %p57 = scmp.ne.s32.totalorder %s48, %s49
      %p58 = scmp.eq.s32.totalorder %s17, 0
      %p59 = por %p57, %p58
      %p60 = scmp.ne.s32.totalorder %s48, %s49
      %p61 = scmp.eq.s32.totalorder %s18, 1
      %p62 = por %p60, %p61
      %p64 = scmp.ne.s32.totalorder %s49, %s63
      %p65 = scmp.eq.s32.totalorder %s18, 0
      %p66 = por %p64, %p65
      %s68 = sadd.s32 %s67, 1
      %p71 = scmp.eq.s32.totalorder %s12, 1
      %p72 = scmp.ne.s32.totalorder %s67, %s69
      %p73 = scmp.eq.s32.totalorder %s12, 0
      %p74 = por %p72, %p73
      %p75 = scmp.ne.s32.totalorder %s67, %s69
      %p76 = scmp.eq.s32.totalorder %s17, 1
      %p77 = por %p75, %p76
      %p78 = scmp.ne.s32.totalorder %s69, %s70
      %p79 = scmp.eq.s32.totalorder %s17, 0
      %p80 = por %p78, %p79
      %p81 = scmp.ne.s32.totalorder %s69, %s70
      %p82 = scmp.eq.s32.totalorder %s18, 1
      %p83 = por %p81, %p82
      %p85 = scmp.ne.s32.totalorder %s70, %s84
      %p86 = scmp.eq.s32.totalorder %s18, 0
      %p87 = por %p85, %p86
      %s88 = ssub.s32 %s12, %s19
      %p89 = scmp.eq.s32.totalorder %s88, 0
      %s91 = sadd.s32 %s90, 1
      %s92 = scalar_select %p89, %s90, %s91
      %p95 = pneg %p89
      %p96 = scmp.eq.s32.totalorder %s12, 1
      %p97 = por %p95, %p96
      %p98 = scmp.ne.s32.totalorder %s90, %s93
      %p99 = scmp.eq.s32.totalorder %s12, 0
      %p100 = por %p98, %p99
      %p101 = scmp.ne.s32.totalorder %s90, %s93
      %p102 = scmp.eq.s32.totalorder %s17, 1
      %p103 = por %p101, %p102
      %p104 = scmp.ne.s32.totalorder %s93, %s94
      %p105 = scmp.eq.s32.totalorder %s17, 0
      %p106 = por %p104, %p105
      %p107 = scmp.ne.s32.totalorder %s93, %s94
      %p108 = scmp.eq.s32.totalorder %s18, 1
      %p109 = por %p107, %p108
      %p111 = scmp.ne.s32.totalorder %s94, %s110
      %p112 = scmp.eq.s32.totalorder %s18, 0
      %p113 = por %p111, %p112
      %p114 = scmp.le.s32.totalorder 1, %s12
      %p115 = scmp.lt.s32.totalorder %s12, 3
      %p116 = pnand %p114, %p115
      %p117 = pneg %p116
      // Predicated region
      $region9: #{_lambda_.21} parent=5 // pred_check
        _
      $region10: #{_lambda_.21} parent=5 // pred_check_branch
        %119 = sbr.rel (%p116) target = $region12
      $region11: #{_lambda_.21} parent=5 // pred_region
        %s120 = ssub.s32 %s12, 1
        // Predicated region
        $region13: #{_lambda_.21} parent=11 // pred_check
          %p121 = pneg %p59
        $region14: #{_lambda_.21} parent=11 // pred_check_branch
          %123 = sbr.rel (%p121) target = $region16
        $region15: #{_lambda_.21} parent=11 // pred_region
          _
        $region16: #{_lambda_.21} parent=11 // pred_fallthru
          _
        // Predicated region
        $region17: #{_lambda_.21} parent=11 // pred_check
          %p124 = pneg %p80
        $region18: #{_lambda_.21} parent=11 // pred_check_branch
          %126 = sbr.rel (%p124) target = $region20
        $region19: #{_lambda_.21} parent=11 // pred_region
          _
        $region20: #{_lambda_.21} parent=11 // pred_fallthru
          _
      $region12: #{_lambda_.21} parent=5 // pred_fallthru
        _
      %p127 = scmp.lt.s32.totalorder %s12, 2
      // Predicated region
      $region21: #{_lambda_.21} parent=5 // pred_check
        %p128 = pneg %p127
      $region22: #{_lambda_.21} parent=5 // pred_check_branch
        %130 = sbr.rel (%p128) target = $region24
      $region23: #{_lambda_.21} parent=5 // pred_region
        // Predicated region
        $region25: #{_lambda_.21} parent=23 // pred_check
          %p131 = pneg %p32
        $region26: #{_lambda_.21} parent=23 // pred_check_branch
          %133 = sbr.rel (%p131) target = $region28
        $region27: #{_lambda_.21} parent=23 // pred_region
          %p134 = scmp.lt.s32.totalorder %s12, 1
          %s135 = scalar_select %p134, %s12, 1
          %s136 = smul.addr %s135, 8
          %s137 = smul.addr %s136, 4
          %s138 = scalar_lea.vmem %s0, %s137
        $region28: #{_lambda_.21} parent=23 // pred_fallthru
          _
      $region24: #{_lambda_.21} parent=5 // pred_fallthru
        _
      %p139 = scmp.le.s32.totalorder 1, %s12
      %p140 = scmp.lt.s32.totalorder %s12, 3
      %p141 = pnand %p139, %p140
      %p142 = pneg %p141
      // Predicated region
      $region29: #{_lambda_.21} parent=5 // pred_check
        _
      $region30: #{_lambda_.21} parent=5 // pred_check_branch
        %144 = sbr.rel (%p141) target = $region32
      $region31: #{_lambda_.21} parent=5 // pred_region
        %s145 = ssub.s32 %s12, 1
        %p146 = scmp.lt.s32.totalorder %s17, 1
        %s147 = scalar_select %p146, %s17, 1
        %s148 = smul.addr %s147, 8
        %s149 = smul.addr %s148, 4
        %s150 = scalar_lea.vmem %s0, %s149
        %p151 = pneg %p38
        %p152 = pneg %p35
        %p153 = pneg %p59
        %p154 = pneg %p56
        %p155 = pneg %p80
        %p156 = pneg %p77
        %p157 = pneg %p106
        %p158 = pneg %p103
        %s159 = sand.u32 %s93, 1
        %s160 = scalar_lea.sflag [#allocation3], %s159
        %s161 = sand.u32 %s93, 1
        %s162 = scalar_lea.vmem [#allocation2], %s161
        %p163 = scmp.lt.s32.totalorder %s17, 1
        %s164 = scalar_select %p163, %s17, 1
        %s165 = smul.addr %s164, 8
        %s166 = smul.addr %s165, 4
        %s167 = scalar_lea.vmem %s0, %s166
        %v168 = vld [vmem:[%s167] sm:$0xff]
        %v169 = vld [vmem:[%s167 + $0x8] sm:$0xff]
        %v170 = vld [vmem:[%s167 + $0x10] sm:$0xff]
        %v171 = vld [vmem:[%s167 + $0x18] sm:$0xff]
        %v172 = vunpack.c.l.bf16 %v168
        %v173 = vunpack.c.h.bf16 %v168
        %v174 = vunpack.c.l.bf16 %v169
        %v175 = vunpack.c.h.bf16 %v169
        %v176 = vunpack.c.l.bf16 %v170
        %v177 = vunpack.c.h.bf16 %v170
        %v178 = vunpack.c.l.bf16 %v171
        %v179 = vunpack.c.h.bf16 %v171
        %v180 = vadd.f32 %v172, %v176
        %v181 = vadd.f32 %v173, %v177
        %v182 = vadd.f32 %v174, %v178
        %v183 = vadd.f32 %v175, %v179
        %v184 = vadd.f32 %v180, %v182
        %v185 = vrot.slane %v184, 4
        %v186 = vadd.f32 %v184, %v185
        %v187 = vrot.slane %v186, 2
        %v188 = vadd.f32 %v186, %v187
        %v189 = vrot.slane %v188, 1
        %v190 = vadd.f32 %v188, %v189
        %v191 = vadd.f32 %v181, %v183
        %v192 = vrot.slane %v191, 4
        %v193 = vadd.f32 %v191, %v192
        %v194 = vrot.slane %v193, 2
        %v195 = vadd.f32 %v193, %v194
        %v196 = vrot.slane %v195, 1
        %v197 = vadd.f32 %v195, %v196
        %v198 = vmul.f32 %v190, 0.03125
        %v199 = vmul.f32 %v197, 0.03125
        %v200 = vld [vmem:[%s1] sm:$0xff]
        %v201 = vld [vmem:[%s1 + $0x8] sm:$0xff]
        %v202 = vld [vmem:[%s1 + $0x10] sm:$0xff]
        %v203 = vld [vmem:[%s1 + $0x18] sm:$0xff]
        %v204 = vld [vmem:[%s1 + $0x20] sm:$0xff]
        %v205 = vld [vmem:[%s1 + $0x28] sm:$0xff]
        %v206 = vld [vmem:[%s1 + $0x30] sm:$0xff]
        %v207 = vld [vmem:[%s1 + $0x38] sm:$0xff]
        %v208 = vld [vmem:[%s1 + $0x40] sm:$0xff]
        %v209 = vld [vmem:[%s1 + $0x48] sm:$0xff]
        %v210 = vld [vmem:[%s1 + $0x50] sm:$0xff]
        %v211 = vld [vmem:[%s1 + $0x58] sm:$0xff]
        %v212 = vld [vmem:[%s1 + $0x60] sm:$0xff]
        %v213 = vld [vmem:[%s1 + $0x68] sm:$0xff]
        %v214 = vld [vmem:[%s1 + $0x70] sm:$0xff]
        %v215 = vld [vmem:[%s1 + $0x78] sm:$0xff]
        %v216 = vld [vmem:[%s1 + $0x80] sm:$0xff]
        %v217 = vld [vmem:[%s1 + $0x88] sm:$0xff]
        %v218 = vld [vmem:[%s1 + $0x90] sm:$0xff]
        %v219 = vld [vmem:[%s1 + $0x98] sm:$0xff]
        %v220 = vld [vmem:[%s1 + $0xa0] sm:$0xff]
        %v221 = vld [vmem:[%s1 + $0xa8] sm:$0xff]
        %v222 = vld [vmem:[%s1 + $0xb0] sm:$0xff]
        %v223 = vld [vmem:[%s1 + $0xb8] sm:$0xff]
        %v224 = vld [vmem:[%s1 + $0xc0] sm:$0xff]
        %v225 = vld [vmem:[%s1 + $0xc8] sm:$0xff]
        %v226 = vld [vmem:[%s1 + $0xd0] sm:$0xff]
        %v227 = vld [vmem:[%s1 + $0xd8] sm:$0xff]
        %v228 = vld [vmem:[%s1 + $0xe0] sm:$0xff]
        %v229 = vld [vmem:[%s1 + $0xe8] sm:$0xff]
        %v230 = vld [vmem:[%s1 + $0xf0] sm:$0xff]
        %v231 = vld [vmem:[%s1 + $0xf8] sm:$0xff]
        %v232 = vld [vmem:[%s2] sm:$0x1]
        %233 = vmatprep.subr.mxu0 0.0
        %234 = vmatpush1.msra.mxu0 %v200
        %235 = vmatprep.subr.mxu0 0.0
        %236 = vmatpush1.msra.mxu0 %v201
        %237 = vmatprep.subr.mxu0 0.0
        %238 = vmatpush1.msra.mxu0 %v202
        %239 = vmatprep.subr.mxu0 0.0
        %240 = vmatpush1.msra.mxu0 %v203
        %241 = vmatprep.subr.mxu0 0.0
        %242 = vmatpush1.msra.mxu0 %v204
        %243 = vmatprep.subr.mxu0 0.0
        %244 = vmatpush1.msra.mxu0 %v205
        %245 = vmatprep.subr.mxu0 0.0
        %246 = vmatpush1.msra.mxu0 %v206
        %247 = vmatprep.subr.mxu0 0.0
        %248 = vmatpush1.msra.mxu0 %v207
        %249 = vmatprep.subr.mxu0 0.0
        %250 = vmatpush1.msra.mxu0 %v208
        %251 = vmatprep.subr.mxu0 0.0
        %252 = vmatpush1.msra.mxu0 %v209
        %253 = vmatprep.subr.mxu0 0.0
        %254 = vmatpush1.msra.mxu0 %v210
        %255 = vmatprep.subr.mxu0 0.0
        %256 = vmatpush1.msra.mxu0 %v211
        %257 = vmatprep.subr.mxu0 0.0
        %258 = vmatpush1.msra.mxu0 %v212
        %259 = vmatprep.subr.mxu0 0.0
        %260 = vmatpush1.msra.mxu0 %v213
        %261 = vmatprep.subr.mxu0 0.0
        %262 = vmatpush1.msra.mxu0 %v214
        %263 = vmatprep.subr.mxu0 0.0
        %264 = vmatpush1.msra.mxu0 %v215
        %265 = vmatprep.subr.mxu0 0.0
        %266 = vmatpush1.msra.mxu0 %v216
        %267 = vmatprep.subr.mxu0 0.0
        %268 = vmatpush1.msra.mxu0 %v217
        %269 = vmatprep.subr.mxu0 0.0
        %270 = vmatpush1.msra.mxu0 %v218
        %271 = vmatprep.subr.mxu0 0.0
        %272 = vmatpush1.msra.mxu0 %v219
        %273 = vmatprep.subr.mxu0 0.0
        %274 = vmatpush1.msra.mxu0 %v220
        %275 = vmatprep.subr.mxu0 0.0
        %276 = vmatpush1.msra.mxu0 %v221
        %277 = vmatprep.subr.mxu0 0.0
        %278 = vmatpush1.msra.mxu0 %v222
        %279 = vmatprep.subr.mxu0 0.0
        %280 = vmatpush1.msra.mxu0 %v223
        %281 = vmatprep.subr.mxu0 0.0
        %282 = vmatpush1.msra.mxu0 %v224
        %283 = vmatprep.subr.mxu0 0.0
        %284 = vmatpush1.msra.mxu0 %v225
        %285 = vmatprep.subr.mxu0 0.0
        %286 = vmatpush1.msra.mxu0 %v226
        %287 = vmatprep.subr.mxu0 0.0
        %288 = vmatpush1.msra.mxu0 %v227
        %289 = vmatprep.subr.mxu0 0.0
        %290 = vmatpush1.msra.mxu0 %v228
        %291 = vmatprep.subr.mxu0 0.0
        %292 = vmatpush1.msra.mxu0 %v229
        %293 = vmatprep.subr.mxu0 0.0
        %294 = vmatpush1.msra.mxu0 %v230
        %295 = vmatprep.subr.mxu0 0.0
        %296 = vmatpush1.msra.mxu0 %v231
        %297 = vmatprep.mubr.f32.mxu0 %v199
        %298 = vmatmul.mubr.f32.gmra.mrb[0].mxu0 %v198
        %v299 = vpop.f32.mrb[0].mxu0
        %v300 = vadd.f32 %v232, %v299
        %v301 = vpop.f32.mrb[0].mxu0
        %302 = vdwg.mxu0
        %vm303 = vcmask 57344
        %v304 = vsel %vm303, %v300, -inf
        %305 = vmax.xlane.f32.xlu0 %v304
        %v306 = vpop.xlane.xlu0 %305
        %v307 = vsub.f32 %v300, %v306
        %v308 = vmul.f32 %v307, 1.442695
        %v309 = vpow.pop %v308
        %v310 = vsel %vm303, %v309, 0.0
        %311 = vadd.xlane.f32.xlu0 %v310
        %v312 = vpop.xlane.xlu0 %311
        %v313 = vrcp.pop %v312
        %v314 = vmul.f32 %v309, %v313
        %315 = vst.msk [vmem:[%s162] sm:$0x1] %vm303, %v314
        %s316 = sand.u32 %s93, 1
        %s317 = scalar_lea.sflag [#allocation3], %s316
        %s318 = sand.u32 %s93, 1
        %s319 = scalar_lea.vmem [#allocation2], %s318
        // Predicated region
        $region33: #{_lambda_.21} parent=31 // pred_check
          %p320 = pneg %p103
        $region34: #{_lambda_.21} parent=31 // pred_check_branch
          %322 = sbr.rel (%p320) target = $region36
        $region35: #{_lambda_.21} parent=31 // pred_region
          %s324 = ssub.s32 16, 16
          %325 = vsyncadd %s317, %s324
          %s326 = smul.addr %s17, 16
          %s327 = scalar_lea.hbm %s3, %s326
          %s329 = sshll.u32 %s319, 4
          %s330 = int_to_ptr.vmem [resolvable:$true] %s329
          %332 = dma.vmem_to_hbm [thread:$0]  %s330, 16, %s327, %s317
        $region36: #{_lambda_.21} parent=31 // pred_fallthru
          _
      $region32: #{_lambda_.21} parent=5 // pred_fallthru
        _
      %p333 = scmp.le.s32.totalorder 2, %s12
      // Predicated region
      $region37: #{_lambda_.21} parent=5 // pred_check
        %p334 = pneg %p333
      $region38: #{_lambda_.21} parent=5 // pred_check_branch
        %336 = sbr.rel (%p334) target = $region40
      $region39: #{_lambda_.21} parent=5 // pred_region
        %s337 = ssub.s32 %s12, 2
        // Predicated region
        $region41: #{_lambda_.21} parent=39 // pred_check
          %p338 = pneg %p109
        $region42: #{_lambda_.21} parent=39 // pred_check_branch
          %340 = sbr.rel (%p338) target = $region44
        $region43: #{_lambda_.21} parent=39 // pred_region
          %s341 = sand.u32 %s94, 1
          %s342 = scalar_lea.sflag [#allocation3], %s341
          %s343 = sand.u32 %s94, 1
          %s344 = scalar_lea.vmem [#allocation2], %s343
          %345 = dma.done %s342, 16
        $region44: #{_lambda_.21} parent=39 // pred_fallthru
          _
      $region40: #{_lambda_.21} parent=5 // pred_fallthru
        _
    $region6: #{_lambda_.21} parent=1 // loop_footer
      %s16 = sadd.s32 1, %s12
    $region7: #{_lambda_.21} parent=1 // loop_footer_branch
      %11 = sbr.rel target = $region3
    $region8: #{_lambda_.21} parent=1 // loop_exit
      _
    %346 = vsyncpa [#allocation3], 1
    %s347 = scalar_lea.sflag [#allocation3], 1
    %348 = vsyncpa %s347, 1

// kernel: _lambda_.18
$region0: #{_lambda_.18}
  #allocation0 [shape = 'u32[]', space=smem, size = 0x4, offset = 0x4, fixed_abs, tag = 'smem constant byte address 0x4 - core index']
  #allocation1 [shape = 'u32[144,128]{1,0:T(1,128)}', space=vmem, size = 0x12000, scoped, tag = 'internal scratch']
  #allocation2 [shape = 'bf16[6,16,256]{2,1,0:T(16,128)(2,1)}', space=vmem, size = 0xc000, scoped, tag = 'scratch operand']
  %s0 = inlined_call_operand.vmem [shape: bf16[2,4,16,128], index: 0, kind: input, shape index: {}]
  %s1 = inlined_call_operand.vmem [shape: bf16[1,128,256], index: 1, kind: input, shape index: {}]
  %s2 = inlined_call_operand.vmem [shape: f32[1,1,256], index: 2, kind: input, shape index: {}]
  %s3 = inlined_call_operand.vmem [shape: f32[1,16,16], index: 3, kind: input, shape index: {}]
  %s4 = inlined_call_operand.vmem [shape: bf16[3,256,256], index: 4, kind: input, shape index: {}]
  %s5 = inlined_call_operand.vmem [shape: f32[1,256], index: 5, kind: input, shape index: {}]
  %s6 = inlined_call_operand.vmem [shape: bf16[2,2,16,256], index: 6, kind: output, shape index: {}]
  %s7 = sld [smem:[#allocation0]]
  $region57: #{_lambda_.18} parent=0
    _
  %s9 = ssub.s32 1, %s7
  %s10 = scalar_select 0, %s9, %s7
  loop: start=0, step=1, limit=4
  $region2: #{_lambda_.18} parent=0 // loop_pre_header
    _
  $region3: #{_lambda_.18} parent=0 // loop_header
    %s12 = sphi 0, %s16
    %p13 = scmp.ge.s32.totalorder %s12, 4
    %s22 = sphi 0, %s24
    %s25 = sphi 0, %s22
    %s26 = sphi 0, %s25
    %s42 = sphi 0, %s26
    %s46 = sphi 0, %s46
    %s48 = sphi 0, %s46
    %s49 = sphi 0, %s48
    %s63 = sphi 0, %s49
    %s67 = sphi 0, %s67
    %s69 = sphi 0, %s67
    %s70 = sphi 0, %s69
    %s84 = sphi 0, %s70
    %s88 = sphi 0, %s88
    %s90 = sphi 0, %s88
    %s91 = sphi 0, %s90
    %s105 = sphi 0, %s91
    %s109 = sphi 0, %s109
    %s111 = sphi 0, %s109
    %s112 = sphi 0, %s111
    %s126 = sphi 0, %s112
    %s130 = sphi 0, %s130
    %s132 = sphi 0, %s130
    %s133 = sphi 0, %s132
    %s147 = sphi 0, %s133
    %s153 = sphi 0, %s155
    %s156 = sphi 0, %s153
    %s157 = sphi 0, %s156
    %s173 = sphi 0, %s157
  $region4: #{_lambda_.18} parent=0 // loop_header_branch
    %15 = sbr.rel (%p13) target = $region8
  $region5: #{_lambda_.18} parent=0 // loop_body
    %s17 = ssub.s32 %s12, 1
    %s18 = ssub.s32 %s12, 2
    %s19 = sadd.s32 %s12, 1
    %s20 = ssub.s32 %s12, %s19
    %p21 = scmp.eq.s32.totalorder %s20, 0
    %s23 = sadd.s32 %s22, 1
    %s24 = scalar_select %p21, %s22, %s23
    %p27 = pneg %p21
    %p28 = scmp.eq.s32.totalorder %s12, 1
    %p29 = por %p27, %p28
    %p30 = scmp.ne.s32.totalorder %s22, %s25
    %p31 = scmp.eq.s32.totalorder %s12, 0
    %p32 = por %p30, %p31
    %p33 = scmp.ne.s32.totalorder %s22, %s25
    %p34 = scmp.eq.s32.totalorder %s17, 1
    %p35 = por %p33, %p34
    %p36 = scmp.ne.s32.totalorder %s25, %s26
    %p37 = scmp.eq.s32.totalorder %s17, 0
    %p38 = por %p36, %p37
    %p39 = scmp.ne.s32.totalorder %s25, %s26
    %p40 = scmp.eq.s32.totalorder %s18, 1
    %p41 = por %p39, %p40
    %p43 = scmp.ne.s32.totalorder %s26, %s42
    %p44 = scmp.eq.s32.totalorder %s18, 0
    %p45 = por %p43, %p44
    %s47 = sadd.s32 %s46, 1
    %p50 = scmp.eq.s32.totalorder %s12, 1
    %p51 = scmp.ne.s32.totalorder %s46, %s48
    %p52 = scmp.eq.s32.totalorder %s12, 0
    %p53 = por %p51, %p52
    %p54 = scmp.ne.s32.totalorder %s46, %s48
    %p55 = scmp.eq.s32.totalorder %s17, 1
    %p56 = por %p54, %p55
    %p57 = scmp.ne.s32.totalorder %s48, %s49
    %p58 = scmp.eq.s32.totalorder %s17, 0
    %p59 = por %p57, %p58
    %p60 = scmp.ne.s32.totalorder %s48, %s49
    %p61 = scmp.eq.s32.totalorder %s18, 1
    %p62 = por %p60, %p61
    %p64 = scmp.ne.s32.totalorder %s49, %s63
    %p65 = scmp.eq.s32.totalorder %s18, 0
    %p66 = por %p64, %p65
    %s68 = sadd.s32 %s67, 1
    %p71 = scmp.eq.s32.totalorder %s12, 1
    %p72 = scmp.ne.s32.totalorder %s67, %s69
    %p73 = scmp.eq.s32.totalorder %s12, 0
    %p74 = por %p72, %p73
    %p75 = scmp.ne.s32.totalorder %s67, %s69
    %p76 = scmp.eq.s32.totalorder %s17, 1
    %p77 = por %p75, %p76
    %p78 = scmp.ne.s32.totalorder %s69, %s70
    %p79 = scmp.eq.s32.totalorder %s17, 0
    %p80 = por %p78, %p79
    %p81 = scmp.ne.s32.totalorder %s69, %s70
    %p82 = scmp.eq.s32.totalorder %s18, 1
    %p83 = por %p81, %p82
    %p85 = scmp.ne.s32.totalorder %s70, %s84
    %p86 = scmp.eq.s32.totalorder %s18, 0
    %p87 = por %p85, %p86
    %s89 = sadd.s32 %s88, 1
    %p92 = scmp.eq.s32.totalorder %s12, 1
    %p93 = scmp.ne.s32.totalorder %s88, %s90
    %p94 = scmp.eq.s32.totalorder %s12, 0
    %p95 = por %p93, %p94
    %p96 = scmp.ne.s32.totalorder %s88, %s90
    %p97 = scmp.eq.s32.totalorder %s17, 1
    %p98 = por %p96, %p97
    %p99 = scmp.ne.s32.totalorder %s90, %s91
    %p100 = scmp.eq.s32.totalorder %s17, 0
    %p101 = por %p99, %p100
    %p102 = scmp.ne.s32.totalorder %s90, %s91
    %p103 = scmp.eq.s32.totalorder %s18, 1
    %p104 = por %p102, %p103
    %p106 = scmp.ne.s32.totalorder %s91, %s105
    %p107 = scmp.eq.s32.totalorder %s18, 0
    %p108 = por %p106, %p107
    %s110 = sadd.s32 %s109, 1
    %p113 = scmp.eq.s32.totalorder %s12, 1
    %p114 = scmp.ne.s32.totalorder %s109, %s111
    %p115 = scmp.eq.s32.totalorder %s12, 0
    %p116 = por %p114, %p115
    %p117 = scmp.ne.s32.totalorder %s109, %s111
    %p118 = scmp.eq.s32.totalorder %s17, 1
    %p119 = por %p117, %p118
    %p120 = scmp.ne.s32.totalorder %s111, %s112
    %p121 = scmp.eq.s32.totalorder %s17, 0
    %p122 = por %p120, %p121
    %p123 = scmp.ne.s32.totalorder %s111, %s112
    %p124 = scmp.eq.s32.totalorder %s18, 1
    %p125 = por %p123, %p124
    %p127 = scmp.ne.s32.totalorder %s112, %s126
    %p128 = scmp.eq.s32.totalorder %s18, 0
    %p129 = por %p127, %p128
    %s131 = sadd.s32 %s130, 1
    %p134 = scmp.eq.s32.totalorder %s12, 1
    %p135 = scmp.ne.s32.totalorder %s130, %s132
    %p136 = scmp.eq.s32.totalorder %s12, 0
    %p137 = por %p135, %p136
    %p138 = scmp.ne.s32.totalorder %s130, %s132
    %p139 = scmp.eq.s32.totalorder %s17, 1
    %p140 = por %p138, %p139
    %p141 = scmp.ne.s32.totalorder %s132, %s133
    %p142 = scmp.eq.s32.totalorder %s17, 0
    %p143 = por %p141, %p142
    %p144 = scmp.ne.s32.totalorder %s132, %s133
    %p145 = scmp.eq.s32.totalorder %s18, 1
    %p146 = por %p144, %p145
    %p148 = scmp.ne.s32.totalorder %s133, %s147
    %p149 = scmp.eq.s32.totalorder %s18, 0
    %p150 = por %p148, %p149
    %s151 = ssub.s32 %s12, %s19
    %p152 = scmp.eq.s32.totalorder %s151, 0
    %s154 = sadd.s32 %s153, 1
    %s155 = scalar_select %p152, %s153, %s154
    %p158 = pneg %p152
    %p159 = scmp.eq.s32.totalorder %s12, 1
    %p160 = por %p158, %p159
    %p161 = scmp.ne.s32.totalorder %s153, %s156
    %p162 = scmp.eq.s32.totalorder %s12, 0
    %p163 = por %p161, %p162
    %p164 = scmp.ne.s32.totalorder %s153, %s156
    %p165 = scmp.eq.s32.totalorder %s17, 1
    %p166 = por %p164, %p165
    %p167 = scmp.ne.s32.totalorder %s156, %s157
    %p168 = scmp.eq.s32.totalorder %s17, 0
    %p169 = por %p167, %p168
    %p170 = scmp.ne.s32.totalorder %s156, %s157
    %p171 = scmp.eq.s32.totalorder %s18, 1
    %p172 = por %p170, %p171
    %p174 = scmp.ne.s32.totalorder %s157, %s173
    %p175 = scmp.eq.s32.totalorder %s18, 0
    %p176 = por %p174, %p175
    %p177 = scmp.le.s32.totalorder 1, %s12
    %p178 = scmp.lt.s32.totalorder %s12, 3
    %p179 = pnand %p177, %p178
    %p180 = pneg %p179
    // Predicated region
    $region9: #{_lambda_.18} parent=5 // pred_check
      _
    $region10: #{_lambda_.18} parent=5 // pred_check_branch
      %182 = sbr.rel (%p179) target = $region12
    $region11: #{_lambda_.18} parent=5 // pred_region
      %s183 = ssub.s32 %s12, 1
      // Predicated region
      $region13: #{_lambda_.18} parent=11 // pred_check
        %p184 = pneg %p59
      $region14: #{_lambda_.18} parent=11 // pred_check_branch
        %186 = sbr.rel (%p184) target = $region16
      $region15: #{_lambda_.18} parent=11 // pred_region
        _
      $region16: #{_lambda_.18} parent=11 // pred_fallthru
        _
      // Predicated region
      $region17: #{_lambda_.18} parent=11 // pred_check
        %p187 = pneg %p80
      $region18: #{_lambda_.18} parent=11 // pred_check_branch
        %189 = sbr.rel (%p187) target = $region20
      $region19: #{_lambda_.18} parent=11 // pred_region
        _
      $region20: #{_lambda_.18} parent=11 // pred_fallthru
        _
      // Predicated region
      $region21: #{_lambda_.18} parent=11 // pred_check
        %p190 = pneg %p101
      $region22: #{_lambda_.18} parent=11 // pred_check_branch
        %192 = sbr.rel (%p190) target = $region24
      $region23: #{_lambda_.18} parent=11 // pred_region
        _
      $region24: #{_lambda_.18} parent=11 // pred_fallthru
        _
      // Predicated region
      $region25: #{_lambda_.18} parent=11 // pred_check
        %p193 = pneg %p122
      $region26: #{_lambda_.18} parent=11 // pred_check_branch
        %195 = sbr.rel (%p193) target = $region28
      $region27: #{_lambda_.18} parent=11 // pred_region
        _
      $region28: #{_lambda_.18} parent=11 // pred_fallthru
        _
      // Predicated region
      $region29: #{_lambda_.18} parent=11 // pred_check
        %p196 = pneg %p143
      $region30: #{_lambda_.18} parent=11 // pred_check_branch
        %198 = sbr.rel (%p196) target = $region32
      $region31: #{_lambda_.18} parent=11 // pred_region
        _
      $region32: #{_lambda_.18} parent=11 // pred_fallthru
        _
    $region12: #{_lambda_.18} parent=5 // pred_fallthru
      _
    %p199 = scmp.lt.s32.totalorder %s12, 2
    // Predicated region
    $region33: #{_lambda_.18} parent=5 // pred_check
      %p200 = pneg %p199
    $region34: #{_lambda_.18} parent=5 // pred_check_branch
      %202 = sbr.rel (%p200) target = $region36
    $region35: #{_lambda_.18} parent=5 // pred_region
      // Predicated region
      $region37: #{_lambda_.18} parent=35 // pred_check
        %p203 = pneg %p32
      $region38: #{_lambda_.18} parent=35 // pred_check_branch
        %205 = sbr.rel (%p203) target = $region40
      $region39: #{_lambda_.18} parent=35 // pred_region
        %p206 = scmp.lt.s32.totalorder %s12, 1
        %s207 = scalar_select %p206, %s12, 1
        %s208 = smul.addr %s207, 8
        %s209 = smul.addr %s208, 4
        %s210 = scalar_lea.vmem %s0, %s209
      $region40: #{_lambda_.18} parent=35 // pred_fallthru
        _
    $region36: #{_lambda_.18} parent=5 // pred_fallthru
      _
    %p211 = scmp.le.s32.totalorder 1, %s12
    %p212 = scmp.lt.s32.totalorder %s12, 3
    %p213 = pnand %p211, %p212
    %p214 = pneg %p213
    // Predicated region
    $region41: #{_lambda_.18} parent=5 // pred_check
      _
    $region42: #{_lambda_.18} parent=5 // pred_check_branch
      %216 = sbr.rel (%p213) target = $region44
    $region43: #{_lambda_.18} parent=5 // pred_region
      %s217 = ssub.s32 %s12, 1
      %p218 = scmp.lt.s32.totalorder %s17, 1
      %s219 = scalar_select %p218, %s17, 1
      %s220 = smul.addr %s219, 8
      %s221 = smul.addr %s220, 4
      %s222 = scalar_lea.vmem %s0, %s221
      %p223 = pneg %p38
      %p224 = pneg %p35
      %p225 = pneg %p59
      %p226 = pneg %p56
      %p227 = pneg %p80
      %p228 = pneg %p77
      %p229 = pneg %p101
      %p230 = pneg %p98
      %p231 = pneg %p122
      %p232 = pneg %p119
      %p233 = pneg %p143
      %p234 = pneg %p140
      %p235 = pneg %p169
      %p236 = pneg %p166
      %p237 = scmp.lt.s32.totalorder %s17, 1
      %s238 = scalar_select %p237, %s17, 1
      %s239 = smul.addr %s238, 8
      %s240 = smul.addr %s239, 4
      %s241 = scalar_lea.vmem %s6, %s240
      %p242 = scmp.lt.s32.totalorder %s17, 1
      %s243 = scalar_select %p242, %s17, 1
      %s244 = smul.addr %s243, 8
      %s245 = smul.addr %s244, 4
      %s246 = scalar_lea.vmem %s0, %s245
      %p247 = scmp.lt.s32.totalorder %s17, 1
      %s248 = scalar_select %p247, %s17, 1
      %s249 = smul.addr %s248, 8
      %s250 = smul.addr %s249, 4
      %s251 = scalar_lea.vmem %s6, %s250
      %v253 = vld [vmem:[%s246] sm:$0xf]
      %v254 = vld [vmem:[%s246 + $0x4] sm:$0xf]
      %v255 = vld [vmem:[%s246 + $0x8] sm:$0xf]
      %v256 = vld [vmem:[%s246 + $0xc] sm:$0xf]
      %v257 = vld [vmem:[%s246 + $0x10] sm:$0xf]
      %v258 = vld [vmem:[%s246 + $0x14] sm:$0xf]
      %v259 = vld [vmem:[%s246 + $0x18] sm:$0xf]
      %v260 = vld [vmem:[%s246 + $0x1c] sm:$0xf]
      %v261 = vld [vmem:[%s1] sm:$0xff]
      %v262 = vld [vmem:[%s1 + $0x8] sm:$0xff]
      %v263 = vld [vmem:[%s1 + $0x10] sm:$0xff]
      %v264 = vld [vmem:[%s1 + $0x18] sm:$0xff]
      %v265 = vld [vmem:[%s1 + $0x20] sm:$0xff]
      %v266 = vld [vmem:[%s1 + $0x28] sm:$0xff]
      %v267 = vld [vmem:[%s1 + $0x30] sm:$0xff]
      %v268 = vld [vmem:[%s1 + $0x38] sm:$0xff]
      %v269 = vld [vmem:[%s1 + $0x40] sm:$0xff]
      %v270 = vld [vmem:[%s1 + $0x48] sm:$0xff]
      %v271 = vld [vmem:[%s1 + $0x50] sm:$0xff]
      %v272 = vld [vmem:[%s1 + $0x58] sm:$0xff]
      %v273 = vld [vmem:[%s1 + $0x60] sm:$0xff]
      %v274 = vld [vmem:[%s1 + $0x68] sm:$0xff]
      %v275 = vld [vmem:[%s1 + $0x70] sm:$0xff]
      %v276 = vld [vmem:[%s1 + $0x78] sm:$0xff]
      %v277 = vld [vmem:[%s2] sm:$0x3]
      %v279 = vlaneseq
      %v280 = vshrl.u32 %v279, 7
      %v281 = vsub.s32 0, %v280
      %v282 = vrot.slane %v277, %v281
      %v283 = vlaneseq
      %v284 = vshrl.u32 %v283, 7
      %v285 = vsub.s32 1, %v284
      %v286 = vrot.slane %v277, %v285
      %v297 = vunpack.c.l.b16 %v253
      %v298 = vunpack.c.l.b16 %v254
      %v299 = vunpack.c.l.b16 %v255
      %v300 = vunpack.c.l.b16 %v256
      %v301 = vunpack.c.l.b16 %v257
      %v302 = vunpack.c.l.b16 %v258
      %v303 = vunpack.c.l.b16 %v259
      %v304 = vunpack.c.l.b16 %v260
      %v305 = vpack.c.b16 %v298, %v297
      %v306 = vpack.c.b16 %v300, %v299
      %v307 = vpack.c.b16 %v302, %v301
      %v308 = vpack.c.b16 %v304, %v303
      %v329 = vunpack.c.l.b16 %v261
      %v330 = vunpack.c.h.b16 %v261
      %v331 = vunpack.c.l.b16 %v262
      %v332 = vunpack.c.h.b16 %v262
      %v333 = vunpack.c.l.b16 %v263
      %v334 = vunpack.c.h.b16 %v263
      %v335 = vunpack.c.l.b16 %v264
      %v336 = vunpack.c.h.b16 %v264
      %v337 = vunpack.c.l.b16 %v265
      %v338 = vunpack.c.h.b16 %v265
      %v339 = vunpack.c.l.b16 %v266
      %v340 = vunpack.c.h.b16 %v266
      %v341 = vunpack.c.l.b16 %v267
      %v342 = vunpack.c.h.b16 %v267
      %v343 = vunpack.c.l.b16 %v268
      %v344 = vunpack.c.h.b16 %v268
      %v345 = vunpack.c.l.b16 %v269
      %v346 = vunpack.c.h.b16 %v269
      %v347 = vunpack.c.l.b16 %v270
      %v348 = vunpack.c.h.b16 %v270
      %v349 = vunpack.c.l.b16 %v271
      %v350 = vunpack.c.h.b16 %v271
      %v351 = vunpack.c.l.b16 %v272
      %v352 = vunpack.c.h.b16 %v272
      %v353 = vunpack.c.l.b16 %v273
      %v354 = vunpack.c.h.b16 %v273
      %v355 = vunpack.c.l.b16 %v274
      %v356 = vunpack.c.h.b16 %v274
      %v357 = vunpack.c.l.b16 %v275
      %v358 = vunpack.c.h.b16 %v275
      %v359 = vunpack.c.l.b16 %v276
      %v360 = vunpack.c.h.b16 %v276
      %v361 = vpack.c.b16 %v331, %v329
      %v362 = vpack.c.b16 %v332, %v330
      %v363 = vpack.c.b16 %v335, %v333
      %v364 = vpack.c.b16 %v336, %v334
      %v365 = vpack.c.b16 %v339, %v337
      %v366 = vpack.c.b16 %v340, %v338
      %v367 = vpack.c.b16 %v343, %v341
      %v368 = vpack.c.b16 %v344, %v342
      %v369 = vpack.c.b16 %v347, %v345
      %v370 = vpack.c.b16 %v348, %v346
      %v371 = vpack.c.b16 %v351, %v349
      %v372 = vpack.c.b16 %v352, %v350
      %v373 = vpack.c.b16 %v355, %v353
      %v374 = vpack.c.b16 %v356, %v354
      %v375 = vpack.c.b16 %v359, %v357
      %v376 = vpack.c.b16 %v360, %v358
      %393 = vmatprep.subr.bf16.mxu0 %v362
      %394 = vmatpush1.bf16.msra.mxu0 %v361
      %395 = vmatprep.subr.bf16.mxu0 %v364
      %396 = vmatpush1.bf16.msra.mxu0 %v363
      %397 = vmatprep.subr.bf16.mxu0 %v366
      %398 = vmatpush1.bf16.msra.mxu0 %v365
      %399 = vmatprep.subr.bf16.mxu0 %v368
      %400 = vmatpush1.bf16.msra.mxu0 %v367
      %401 = vmatprep.subr.bf16.mxu0 %v370
      %402 = vmatpush1.bf16.msra.mxu0 %v369
      %403 = vmatprep.subr.bf16.mxu0 %v372
      %404 = vmatpush1.bf16.msra.mxu0 %v371
      %405 = vmatprep.subr.bf16.mxu0 %v374
      %406 = vmatpush1.bf16.msra.mxu0 %v373
      %407 = vmatprep.subr.bf16.mxu0 %v376
      %408 = vmatpush1.bf16.msra.mxu0 %v375
      %409 = vmatprep.subr.bf16.mxu0 0
      %410 = vmatpush1.bf16.msra.mxu0 0
      %411 = vmatprep.subr.bf16.mxu0 0
      %412 = vmatpush1.bf16.msra.mxu0 0
      %413 = vmatprep.subr.bf16.mxu0 0
      %414 = vmatpush1.bf16.msra.mxu0 0
      %415 = vmatprep.subr.bf16.mxu0 0
      %416 = vmatpush1.bf16.msra.mxu0 0
      %417 = vmatprep.subr.bf16.mxu0 0
      %418 = vmatpush1.bf16.msra.mxu0 0
      %419 = vmatprep.subr.bf16.mxu0 0
      %420 = vmatpush1.bf16.msra.mxu0 0
      %421 = vmatprep.subr.bf16.mxu0 0
      %422 = vmatpush1.bf16.msra.mxu0 0
      %423 = vmatprep.subr.bf16.mxu0 0
      %424 = vmatpush1.bf16.msra.mxu0 0
      %425 = vmatprep.mubr.bf16.mxu0 0
      %426 = vmatmul.mubr.bf16.gmra.mrb[0].mxu0 %v305
      %v427 = vpop.f32.mrb[0].mxu0
      %v428 = vadd.f32 %v282, %v427
      %v429 = vpop.f32.mrb[0].mxu0
      %v430 = vadd.f32 %v286, %v429
      %v431 = vpop.f32.mrb[0].mxu0
      %v432 = vadd.f32 %v282, %v431
      %v433 = vpop.f32.mrb[0].mxu0
      %v434 = vadd.f32 %v286, %v433
      %435 = vmatprep.mubr.bf16.mxu0 0
      %436 = vmatmul.mubr.bf16.gmra.mrb[0].mxu0 %v306
      %v437 = vpop.f32.mrb[0].mxu0
      %v438 = vadd.f32 %v282, %v437
      %v439 = vpop.f32.mrb[0].mxu0
      %v440 = vadd.f32 %v286, %v439
      %v441 = vpop.f32.mrb[0].mxu0
      %v442 = vadd.f32 %v282, %v441
      %v443 = vpop.f32.mrb[0].mxu0
      %v444 = vadd.f32 %v286, %v443
      %445 = vmatprep.mubr.bf16.mxu0 0
      %446 = vmatmul.mubr.bf16.gmra.mrb[0].mxu0 %v307
      %v447 = vpop.f32.mrb[0].mxu0
      %v448 = vadd.f32 %v282, %v447
      %v449 = vpop.f32.mrb[0].mxu0
      %v450 = vadd.f32 %v286, %v449
      %v451 = vpop.f32.mrb[0].mxu0
      %v452 = vadd.f32 %v282, %v451
      %v453 = vpop.f32.mrb[0].mxu0
      %v454 = vadd.f32 %v286, %v453
      %455 = vmatprep.mubr.bf16.mxu0 0
      %456 = vmatmul.mubr.bf16.gmra.mrb[0].mxu0 %v308
      %v457 = vpop.f32.mrb[0].mxu0
      %v458 = vadd.f32 %v282, %v457
      %v459 = vpop.f32.mrb[0].mxu0
      %v460 = vadd.f32 %v286, %v459
      %v461 = vpop.f32.mrb[0].mxu0
      %v462 = vadd.f32 %v282, %v461
      %v463 = vpop.f32.mrb[0].mxu0
      %v464 = vadd.f32 %v286, %v463
      %465 = vdwg.mxu0
      %v466 = vld [vmem:[%s3] sm:$0xff]
      %v467 = vld [vmem:[%s3 + $0x8] sm:$0xff]
      %vm468 = vcmask 130048
      %v470 = vsel %vm468, %v466, 0
      %v473 = vsel %vm468, %v467, 0
      %475 = vmatprep.subr.mxu0 %v430
      %476 = vmatpush1.msra.mxu0 %v428
      %477 = vmatprep.subr.mxu0 %v434
      %478 = vmatpush1.msra.mxu0 %v432
      %479 = vmatprep.subr.mxu0 0.0
      %480 = vmatpush1.msra.mxu0 0.0
      %481 = vmatprep.subr.mxu0 0.0
      %482 = vmatpush1.msra.mxu0 0.0
      %483 = vmatprep.subr.mxu0 0.0
      %484 = vmatpush1.msra.mxu0 0.0
      %485 = vmatprep.subr.mxu0 0.0
      %486 = vmatpush1.msra.mxu0 0.0
      %487 = vmatprep.subr.mxu0 0.0
      %488 = vmatpush1.msra.mxu0 0.0
      %489 = vmatprep.subr.mxu0 0.0
      %490 = vmatpush1.msra.mxu0 0.0
      %491 = vmatprep.subr.mxu0 0.0
      %492 = vmatpush1.msra.mxu0 0.0
      %493 = vmatprep.subr.mxu0 0.0
      %494 = vmatpush1.msra.mxu0 0.0
      %495 = vmatprep.subr.mxu0 0.0
      %496 = vmatpush1.msra.mxu0 0.0
      %497 = vmatprep.subr.mxu0 0.0
      %498 = vmatpush1.msra.mxu0 0.0
      %499 = vmatprep.subr.mxu0 0.0
      %500 = vmatpush1.msra.mxu0 0.0
      %501 = vmatprep.subr.mxu0 0.0
      %502 = vmatpush1.msra.mxu0 0.0
      %503 = vmatprep.subr.mxu0 0.0
      %504 = vmatpush1.msra.mxu0 0.0
      %505 = vmatprep.subr.mxu0 0.0
      %506 = vmatpush1.msra.mxu0 0.0
      %507 = vmatprep.subr.mxu0 0.0
      %508 = vmatpush1.msra.mxu0 0.0
      %509 = vmatprep.subr.mxu0 0.0
      %510 = vmatpush1.msra.mxu0 0.0
      %511 = vmatprep.subr.mxu0 0.0
      %512 = vmatpush1.msra.mxu0 0.0
      %513 = vmatprep.subr.mxu0 0.0
      %514 = vmatpush1.msra.mxu0 0.0
      %515 = vmatprep.subr.mxu0 0.0
      %516 = vmatpush1.msra.mxu0 0.0
      %517 = vmatprep.subr.mxu0 0.0
      %518 = vmatpush1.msra.mxu0 0.0
      %519 = vmatprep.subr.mxu0 0.0
      %520 = vmatpush1.msra.mxu0 0.0
      %521 = vmatprep.subr.mxu0 0.0
      %522 = vmatpush1.msra.mxu0 0.0
      %523 = vmatprep.subr.mxu0 0.0
      %524 = vmatpush1.msra.mxu0 0.0
      %525 = vmatprep.subr.mxu0 0.0
      %526 = vmatpush1.msra.mxu0 0.0
      %527 = vmatprep.subr.mxu0 0.0
      %528 = vmatpush1.msra.mxu0 0.0
      %529 = vmatprep.subr.mxu0 0.0
      %530 = vmatpush1.msra.mxu0 0.0
      %531 = vmatprep.subr.mxu0 0.0
      %532 = vmatpush1.msra.mxu0 0.0
      %533 = vmatprep.subr.mxu0 0.0
      %534 = vmatpush1.msra.mxu0 0.0
      %535 = vmatprep.subr.mxu0 0.0
      %536 = vmatpush1.msra.mxu0 0.0
      %537 = vmatprep.subr.mxu0 0.0
      %538 = vmatpush1.msra.mxu0 0.0
      %539 = vmatprep.mubr.f32.mxu0 0.0
      %540 = vmatmul.mubr.f32.gmra.mrb[0].mxu0 %v470
      %v541 = vpop.f32.mrb[0].mxu0
      %v542 = vadd.f32 0.0, %v541
      %v543 = vpop.f32.mrb[0].mxu0
      %v544 = vadd.f32 0.0, %v543
      %545 = vmatprep.mubr.f32.mxu0 0.0
      %546 = vmatmul.mubr.f32.gmra.mrb[0].mxu0 %v473
      %v547 = vpop.f32.mrb[0].mxu0
      %v548 = vadd.f32 0.0, %v547
      %v549 = vpop.f32.mrb[0].mxu0
      %v550 = vadd.f32 0.0, %v549
      %551 = vdwg.mxu0
      %552 = vmatprep.subr.mxu0 %v440
      %553 = vmatpush1.msra.mxu0 %v438
      %554 = vmatprep.subr.mxu0 %v444
      %555 = vmatpush1.msra.mxu0 %v442
      %556 = vmatprep.subr.mxu0 0.0
      %557 = vmatpush1.msra.mxu0 0.0
      %558 = vmatprep.subr.mxu0 0.0
      %559 = vmatpush1.msra.mxu0 0.0
      %560 = vmatprep.subr.mxu0 0.0
      %561 = vmatpush1.msra.mxu0 0.0
      %562 = vmatprep.subr.mxu0 0.0
      %563 = vmatpush1.msra.mxu0 0.0
      %564 = vmatprep.subr.mxu0 0.0
      %565 = vmatpush1.msra.mxu0 0.0
      %566 = vmatprep.subr.mxu0 0.0
      %567 = vmatpush1.msra.mxu0 0.0
      %568 = vmatprep.subr.mxu0 0.0
      %569 = vmatpush1.msra.mxu0 0.0
      %570 = vmatprep.subr.mxu0 0.0
      %571 = vmatpush1.msra.mxu0 0.0
      %572 = vmatprep.subr.mxu0 0.0
      %573 = vmatpush1.msra.mxu0 0.0
      %574 = vmatprep.subr.mxu0 0.0
      %575 = vmatpush1.msra.mxu0 0.0
      %576 = vmatprep.subr.mxu0 0.0
      %577 = vmatpush1.msra.mxu0 0.0
      %578 = vmatprep.subr.mxu0 0.0
      %579 = vmatpush1.msra.mxu0 0.0
      %580 = vmatprep.subr.mxu0 0.0
      %581 = vmatpush1.msra.mxu0 0.0
      %582 = vmatprep.subr.mxu0 0.0
      %583 = vmatpush1.msra.mxu0 0.0
      %584 = vmatprep.subr.mxu0 0.0
      %585 = vmatpush1.msra.mxu0 0.0
      %586 = vmatprep.subr.mxu0 0.0
      %587 = vmatpush1.msra.mxu0 0.0
      %588 = vmatprep.subr.mxu0 0.0
      %589 = vmatpush1.msra.mxu0 0.0
      %590 = vmatprep.subr.mxu0 0.0
      %591 = vmatpush1.msra.mxu0 0.0
      %592 = vmatprep.subr.mxu0 0.0
      %593 = vmatpush1.msra.mxu0 0.0
      %594 = vmatprep.subr.mxu0 0.0
      %595 = vmatpush1.msra.mxu0 0.0
      %596 = vmatprep.subr.mxu0 0.0
      %597 = vmatpush1.msra.mxu0 0.0
      %598 = vmatprep.subr.mxu0 0.0
      %599 = vmatpush1.msra.mxu0 0.0
      %600 = vmatprep.subr.mxu0 0.0
      %601 = vmatpush1.msra.mxu0 0.0
      %602 = vmatprep.subr.mxu0 0.0
      %603 = vmatpush1.msra.mxu0 0.0
      %604 = vmatprep.subr.mxu0 0.0
      %605 = vmatpush1.msra.mxu0 0.0
      %606 = vmatprep.subr.mxu0 0.0
      %607 = vmatpush1.msra.mxu0 0.0
      %608 = vmatprep.subr.mxu0 0.0
      %609 = vmatpush1.msra.mxu0 0.0
      %610 = vmatprep.subr.mxu0 0.0
      %611 = vmatpush1.msra.mxu0 0.0
      %612 = vmatprep.subr.mxu0 0.0
      %613 = vmatpush1.msra.mxu0 0.0
      %614 = vmatprep.subr.mxu0 0.0
      %615 = vmatpush1.msra.mxu0 0.0
      %616 = vmatprep.mubr.f32.mxu0 0.0
      %617 = vmatmul.mubr.f32.gmra.mrb[0].mxu0 %v470
      %v618 = vpop.f32.mrb[0].mxu0
      %v619 = vadd.f32 0.0, %v618
      %v620 = vpop.f32.mrb[0].mxu0
      %v621 = vadd.f32 0.0, %v620
      %622 = vmatprep.mubr.f32.mxu0 0.0
      %623 = vmatmul.mubr.f32.gmra.mrb[0].mxu0 %v473
      %v624 = vpop.f32.mrb[0].mxu0
      %v625 = vadd.f32 0.0, %v624
      %v626 = vpop.f32.mrb[0].mxu0
      %v627 = vadd.f32 0.0, %v626
      %628 = vdwg.mxu0
      %629 = vmatprep.subr.mxu0 %v450
      %630 = vmatpush1.msra.mxu0 %v448
      %631 = vmatprep.subr.mxu0 %v454
      %632 = vmatpush1.msra.mxu0 %v452
      %633 = vmatprep.subr.mxu0 0.0
      %634 = vmatpush1.msra.mxu0 0.0
      %635 = vmatprep.subr.mxu0 0.0
      %636 = vmatpush1.msra.mxu0 0.0
      %637 = vmatprep.subr.mxu0 0.0
      %638 = vmatpush1.msra.mxu0 0.0
      %639 = vmatprep.subr.mxu0 0.0
      %640 = vmatpush1.msra.mxu0 0.0
      %641 = vmatprep.subr.mxu0 0.0
      %642 = vmatpush1.msra.mxu0 0.0
      %643 = vmatprep.subr.mxu0 0.0
      %644 = vmatpush1.msra.mxu0 0.0
      %645 = vmatprep.subr.mxu0 0.0
      %646 = vmatpush1.msra.mxu0 0.0
      %647 = vmatprep.subr.mxu0 0.0
      %648 = vmatpush1.msra.mxu0 0.0
      %649 = vmatprep.subr.mxu0 0.0
      %650 = vmatpush1.msra.mxu0 0.0
      %651 = vmatprep.subr.mxu0 0.0
      %652 = vmatpush1.msra.mxu0 0.0
      %653 = vmatprep.subr.mxu0 0.0
      %654 = vmatpush1.msra.mxu0 0.0
      %655 = vmatprep.subr.mxu0 0.0
      %656 = vmatpush1.msra.mxu0 0.0
      %657 = vmatprep.subr.mxu0 0.0
      %658 = vmatpush1.msra.mxu0 0.0
      %659 = vmatprep.subr.mxu0 0.0
      %660 = vmatpush1.msra.mxu0 0.0
      %661 = vmatprep.subr.mxu0 0.0
      %662 = vmatpush1.msra.mxu0 0.0
      %663 = vmatprep.subr.mxu0 0.0
      %664 = vmatpush1.msra.mxu0 0.0
      %665 = vmatprep.subr.mxu0 0.0
      %666 = vmatpush1.msra.mxu0 0.0
      %667 = vmatprep.subr.mxu0 0.0
      %668 = vmatpush1.msra.mxu0 0.0
      %669 = vmatprep.subr.mxu0 0.0
      %670 = vmatpush1.msra.mxu0 0.0
      %671 = vmatprep.subr.mxu0 0.0
      %672 = vmatpush1.msra.mxu0 0.0
      %673 = vmatprep.subr.mxu0 0.0
      %674 = vmatpush1.msra.mxu0 0.0
      %675 = vmatprep.subr.mxu0 0.0
      %676 = vmatpush1.msra.mxu0 0.0
      %677 = vmatprep.subr.mxu0 0.0
      %678 = vmatpush1.msra.mxu0 0.0
      %679 = vmatprep.subr.mxu0 0.0
      %680 = vmatpush1.msra.mxu0 0.0
      %681 = vmatprep.subr.mxu0 0.0
      %682 = vmatpush1.msra.mxu0 0.0
      %683 = vmatprep.subr.mxu0 0.0
      %684 = vmatpush1.msra.mxu0 0.0
      %685 = vmatprep.subr.mxu0 0.0
      %686 = vmatpush1.msra.mxu0 0.0
      %687 = vmatprep.subr.mxu0 0.0
      %688 = vmatpush1.msra.mxu0 0.0
      %689 = vmatprep.subr.mxu0 0.0
      %690 = vmatpush1.msra.mxu0 0.0
      %691 = vmatprep.subr.mxu0 0.0
      %692 = vmatpush1.msra.mxu0 0.0
      %693 = vmatprep.mubr.f32.mxu0 0.0
      %694 = vmatmul.mubr.f32.gmra.mrb[0].mxu0 %v470
      %v695 = vpop.f32.mrb[0].mxu0
      %v696 = vadd.f32 0.0, %v695
      %v697 = vpop.f32.mrb[0].mxu0
      %v698 = vadd.f32 0.0, %v697
      %699 = vmatprep.mubr.f32.mxu0 0.0
      %700 = vmatmul.mubr.f32.gmra.mrb[0].mxu0 %v473
      %v701 = vpop.f32.mrb[0].mxu0
      %v702 = vadd.f32 0.0, %v701
      %v703 = vpop.f32.mrb[0].mxu0
      %v704 = vadd.f32 0.0, %v703
      %705 = vdwg.mxu0
      %706 = vmatprep.subr.mxu0 %v460
      %707 = vmatpush1.msra.mxu0 %v458
      %708 = vmatprep.subr.mxu0 %v464
      %709 = vmatpush1.msra.mxu0 %v462
      %710 = vmatprep.subr.mxu0 0.0
      %711 = vmatpush1.msra.mxu0 0.0
      %712 = vmatprep.subr.mxu0 0.0
      %713 = vmatpush1.msra.mxu0 0.0
      %714 = vmatprep.subr.mxu0 0.0
      %715 = vmatpush1.msra.mxu0 0.0
      %716 = vmatprep.subr.mxu0 0.0
      %717 = vmatpush1.msra.mxu0 0.0
      %718 = vmatprep.subr.mxu0 0.0
      %719 = vmatpush1.msra.mxu0 0.0
      %720 = vmatprep.subr.mxu0 0.0
      %721 = vmatpush1.msra.mxu0 0.0
      %722 = vmatprep.subr.mxu0 0.0
      %723 = vmatpush1.msra.mxu0 0.0
      %724 = vmatprep.subr.mxu0 0.0
      %725 = vmatpush1.msra.mxu0 0.0
      %726 = vmatprep.subr.mxu0 0.0
      %727 = vmatpush1.msra.mxu0 0.0
      %728 = vmatprep.subr.mxu0 0.0
      %729 = vmatpush1.msra.mxu0 0.0
      %730 = vmatprep.subr.mxu0 0.0
      %731 = vmatpush1.msra.mxu0 0.0
      %732 = vmatprep.subr.mxu0 0.0
      %733 = vmatpush1.msra.mxu0 0.0
      %734 = vmatprep.subr.mxu0 0.0
      %735 = vmatpush1.msra.mxu0 0.0
      %736 = vmatprep.subr.mxu0 0.0
      %737 = vmatpush1.msra.mxu0 0.0
      %738 = vmatprep.subr.mxu0 0.0
      %739 = vmatpush1.msra.mxu0 0.0
      %740 = vmatprep.subr.mxu0 0.0
      %741 = vmatpush1.msra.mxu0 0.0
      %742 = vmatprep.subr.mxu0 0.0
      %743 = vmatpush1.msra.mxu0 0.0
      %744 = vmatprep.subr.mxu0 0.0
      %745 = vmatpush1.msra.mxu0 0.0
      %746 = vmatprep.subr.mxu0 0.0
      %747 = vmatpush1.msra.mxu0 0.0
      %748 = vmatprep.subr.mxu0 0.0
      %749 = vmatpush1.msra.mxu0 0.0
      %750 = vmatprep.subr.mxu0 0.0
      %751 = vmatpush1.msra.mxu0 0.0
      %752 = vmatprep.subr.mxu0 0.0
      %753 = vmatpush1.msra.mxu0 0.0
      %754 = vmatprep.subr.mxu0 0.0
      %755 = vmatpush1.msra.mxu0 0.0
      %756 = vmatprep.subr.mxu0 0.0
      %757 = vmatpush1.msra.mxu0 0.0
      %758 = vmatprep.subr.mxu0 0.0
      %759 = vmatpush1.msra.mxu0 0.0
      %760 = vmatprep.subr.mxu0 0.0
      %761 = vmatpush1.msra.mxu0 0.0
      %762 = vmatprep.subr.mxu0 0.0
      %763 = vmatpush1.msra.mxu0 0.0
      %764 = vmatprep.subr.mxu0 0.0
      %765 = vmatpush1.msra.mxu0 0.0
      %766 = vmatprep.subr.mxu0 0.0
      %767 = vmatpush1.msra.mxu0 0.0
      %768 = vmatprep.subr.mxu0 0.0
      %769 = vmatpush1.msra.mxu0 0.0
      %770 = vmatprep.mubr.f32.mxu0 0.0
      %771 = vmatmul.mubr.f32.gmra.mrb[0].mxu0 %v470
      %v772 = vpop.f32.mrb[0].mxu0
      %v773 = vadd.f32 0.0, %v772
      %v774 = vpop.f32.mrb[0].mxu0
      %v775 = vadd.f32 0.0, %v774
      %776 = vmatprep.mubr.f32.mxu0 0.0
      %777 = vmatmul.mubr.f32.gmra.mrb[0].mxu0 %v473
      %v778 = vpop.f32.mrb[0].mxu0
      %v779 = vadd.f32 0.0, %v778
      %v780 = vpop.f32.mrb[0].mxu0
      %v781 = vadd.f32 0.0, %v780
      %782 = vdwg.mxu0
      %783 = vst [vmem:[#allocation2] sm:$0xff] 0
      %784 = vst [vmem:[#allocation2 + $0x8] sm:$0xff] 0
      %s785 = scalar_lea.vmem [#allocation2], 80
      %786 = vst [vmem:[%s785] sm:$0xff] 0
      %787 = vst [vmem:[%s785 + $0x8] sm:$0xff] 0
      %v788 = vpack.c.bf16 %v548, %v542
      %v789 = vpack.c.bf16 %v550, %v544
      %v790 = vpack.c.bf16 %v625, %v619
      %v791 = vpack.c.bf16 %v627, %v621
      %v792 = vpack.c.bf16 %v702, %v696
      %v793 = vpack.c.bf16 %v704, %v698
      %v794 = vpack.c.bf16 %v779, %v773
      %v795 = vpack.c.bf16 %v781, %v775
      %s796 = scalar_lea.vmem [#allocation2], 16
      %797 = vst [vmem:[%s796] sm:$0xff] %v788
      %798 = vst [vmem:[%s796 + $0x8] sm:$0xff] %v789
      %799 = vst [vmem:[%s796 + $0x10] sm:$0xff] %v790
      %800 = vst [vmem:[%s796 + $0x18] sm:$0xff] %v791
      %801 = vst [vmem:[%s796 + $0x20] sm:$0xff] %v792
      %802 = vst [vmem:[%s796 + $0x28] sm:$0xff] %v793
      %803 = vst [vmem:[%s796 + $0x30] sm:$0xff] %v794
      %804 = vst [vmem:[%s796 + $0x38] sm:$0xff] %v795
      %v805 = vld [vmem:[#allocation2] sm:$0xff]
      %v806 = vld [vmem:[#allocation2 + $0x8] sm:$0xff]
      %v807 = vld [vmem:[#allocation2 + $0x10] sm:$0xff]
      %v808 = vld [vmem:[#allocation2 + $0x18] sm:$0xff]
      %v809 = vld [vmem:[#allocation2 + $0x20] sm:$0xff]
      %v810 = vld [vmem:[#allocation2 + $0x28] sm:$0xff]
      %v811 = vld [vmem:[#allocation2 + $0x30] sm:$0xff]
      %v812 = vld [vmem:[#allocation2 + $0x38] sm:$0xff]
      %v813 = vld [vmem:[#allocation2 + $0x40] sm:$0xff]
      %v814 = vld [vmem:[#allocation2 + $0x48] sm:$0xff]
      %v815 = vld [vmem:[%s4] sm:$0xff]
      %v816 = vld [vmem:[%s4 + $0x8] sm:$0xff]
      %v817 = vld [vmem:[%s4 + $0x10] sm:$0xff]
      %v818 = vld [vmem:[%s4 + $0x18] sm:$0xff]
      %v819 = vld [vmem:[%s4 + $0x20] sm:$0xff]
      %v820 = vld [vmem:[%s4 + $0x28] sm:$0xff]
      %v821 = vld [vmem:[%s4 + $0x30] sm:$0xff]
      %v822 = vld [vmem:[%s4 + $0x38] sm:$0xff]
      %v823 = vld [vmem:[%s4 + $0x40] sm:$0xff]
      %v824 = vld [vmem:[%s4 + $0x48] sm:$0xff]
      %v825 = vld [vmem:[%s4 + $0x50] sm:$0xff]
      %v826 = vld [vmem:[%s4 + $0x58] sm:$0xff]
      %v827 = vld [vmem:[%s4 + $0x60] sm:$0xff]
      %v828 = vld [vmem:[%s4 + $0x68] sm:$0xff]
      %v829 = vld [vmem:[%s4 + $0x70] sm:$0xff]
      %v830 = vld [vmem:[%s4 + $0x78] sm:$0xff]
      %v831 = vld [vmem:[%s4 + $0x80] sm:$0xff]
      %v832 = vld [vmem:[%s4 + $0x88] sm:$0xff]
      %v833 = vld [vmem:[%s4 + $0x90] sm:$0xff]
      %v834 = vld [vmem:[%s4 + $0x98] sm:$0xff]
      %v835 = vld [vmem:[%s4 + $0xa0] sm:$0xff]
      %v836 = vld [vmem:[%s4 + $0xa8] sm:$0xff]
      %v837 = vld [vmem:[%s4 + $0xb0] sm:$0xff]
      %v838 = vld [vmem:[%s4 + $0xb8] sm:$0xff]
      %v839 = vld [vmem:[%s4 + $0xc0] sm:$0xff]
      %v840 = vld [vmem:[%s4 + $0xc8] sm:$0xff]
      %v841 = vld [vmem:[%s4 + $0xd0] sm:$0xff]
      %v842 = vld [vmem:[%s4 + $0xd8] sm:$0xff]
      %v843 = vld [vmem:[%s4 + $0xe0] sm:$0xff]
      %v844 = vld [vmem:[%s4 + $0xe8] sm:$0xff]
      %v845 = vld [vmem:[%s4 + $0xf0] sm:$0xff]
      %v846 = vld [vmem:[%s4 + $0xf8] sm:$0xff]
      %s847 = scalar_lea.vmem %s4, 256
      %v848 = vld [vmem:[%s847] sm:$0xff]
      %v849 = vld [vmem:[%s847 + $0x8] sm:$0xff]
      %v850 = vld [vmem:[%s847 + $0x10] sm:$0xff]
      %v851 = vld [vmem:[%s847 + $0x18] sm:$0xff]
      %v852 = vld [vmem:[%s847 + $0x20] sm:$0xff]
      %v853 = vld [vmem:[%s847 + $0x28] sm:$0xff]
      %v854 = vld [vmem:[%s847 + $0x30] sm:$0xff]
      %v855 = vld [vmem:[%s847 + $0x38] sm:$0xff]
      %v856 = vld [vmem:[%s847 + $0x40] sm:$0xff]
      %v857 = vld [vmem:[%s847 + $0x48] sm:$0xff]
      %v858 = vld [vmem:[%s847 + $0x50] sm:$0xff]
      %v859 = vld [vmem:[%s847 + $0x58] sm:$0xff]
      %v860 = vld [vmem:[%s847 + $0x60] sm:$0xff]
      %v861 = vld [vmem:[%s847 + $0x68] sm:$0xff]
      %v862 = vld [vmem:[%s847 + $0x70] sm:$0xff]
      %v863 = vld [vmem:[%s847 + $0x78] sm:$0xff]
      %v864 = vld [vmem:[%s847 + $0x80] sm:$0xff]
      %v865 = vld [vmem:[%s847 + $0x88] sm:$0xff]
      %v866 = vld [vmem:[%s847 + $0x90] sm:$0xff]
      %v867 = vld [vmem:[%s847 + $0x98] sm:$0xff]
      %v868 = vld [vmem:[%s847 + $0xa0] sm:$0xff]
      %v869 = vld [vmem:[%s847 + $0xa8] sm:$0xff]
      %v870 = vld [vmem:[%s847 + $0xb0] sm:$0xff]
      %v871 = vld [vmem:[%s847 + $0xb8] sm:$0xff]
      %v872 = vld [vmem:[%s847 + $0xc0] sm:$0xff]
      %v873 = vld [vmem:[%s847 + $0xc8] sm:$0xff]
      %v874 = vld [vmem:[%s847 + $0xd0] sm:$0xff]
      %v875 = vld [vmem:[%s847 + $0xd8] sm:$0xff]
      %v876 = vld [vmem:[%s847 + $0xe0] sm:$0xff]
      %v877 = vld [vmem:[%s847 + $0xe8] sm:$0xff]
      %v878 = vld [vmem:[%s847 + $0xf0] sm:$0xff]
      %v879 = vld [vmem:[%s847 + $0xf8] sm:$0xff]
      %v912 = vunpack.c.l.b16 %v848
      %v913 = vunpack.c.h.b16 %v848
      %v914 = vunpack.c.l.b16 %v849
      %v915 = vunpack.c.h.b16 %v849
      %v916 = vunpack.c.l.b16 %v850
      %v917 = vunpack.c.h.b16 %v850
      %v918 = vunpack.c.l.b16 %v851
      %v919 = vunpack.c.h.b16 %v851
      %v920 = vunpack.c.l.b16 %v852
      %v921 = vunpack.c.h.b16 %v852
      %v922 = vunpack.c.l.b16 %v853
      %v923 = vunpack.c.h.b16 %v853
      %v924 = vunpack.c.l.b16 %v854
      %v925 = vunpack.c.h.b16 %v854
      %v926 = vunpack.c.l.b16 %v855
      %v927 = vunpack.c.h.b16 %v855
      %v928 = vunpack.c.l.b16 %v856
      %v929 = vunpack.c.h.b16 %v856
      %v930 = vunpack.c.l.b16 %v857
      %v931 = vunpack.c.h.b16 %v857
      %v932 = vunpack.c.l.b16 %v858
      %v933 = vunpack.c.h.b16 %v858
      %v934 = vunpack.c.l.b16 %v859
      %v935 = vunpack.c.h.b16 %v859
      %v936 = vunpack.c.l.b16 %v860
      %v937 = vunpack.c.h.b16 %v860
      %v938 = vunpack.c.l.b16 %v861
      %v939 = vunpack.c.h.b16 %v861
      %v940 = vunpack.c.l.b16 %v862
      %v941 = vunpack.c.h.b16 %v862
      %v942 = vunpack.c.l.b16 %v863
      %v943 = vunpack.c.h.b16 %v863
      %v944 = vunpack.c.l.b16 %v864
      %v945 = vunpack.c.h.b16 %v864
      %v946 = vunpack.c.l.b16 %v865
      %v947 = vunpack.c.h.b16 %v865
      %v948 = vunpack.c.l.b16 %v866
      %v949 = vunpack.c.h.b16 %v866
      %v950 = vunpack.c.l.b16 %v867
      %v951 = vunpack.c.h.b16 %v867
      %v952 = vunpack.c.l.b16 %v868
      %v953 = vunpack.c.h.b16 %v868
      %v954 = vunpack.c.l.b16 %v869
      %v955 = vunpack.c.h.b16 %v869
      %v956 = vunpack.c.l.b16 %v870
      %v957 = vunpack.c.h.b16 %v870
      %v958 = vunpack.c.l.b16 %v871
      %v959 = vunpack.c.h.b16 %v871
      %v960 = vunpack.c.l.b16 %v872
      %v961 = vunpack.c.h.b16 %v872
      %v962 = vunpack.c.l.b16 %v873
      %v963 = vunpack.c.h.b16 %v873
      %v964 = vunpack.c.l.b16 %v874
      %v965 = vunpack.c.h.b16 %v874
      %v966 = vunpack.c.l.b16 %v875
      %v967 = vunpack.c.h.b16 %v875
      %v968 = vunpack.c.l.b16 %v876
      %v969 = vunpack.c.h.b16 %v876
      %v970 = vunpack.c.l.b16 %v877
      %v971 = vunpack.c.h.b16 %v877
      %v972 = vunpack.c.l.b16 %v878
      %v973 = vunpack.c.h.b16 %v878
      %v974 = vunpack.c.l.b16 %v879
      %v975 = vunpack.c.h.b16 %v879
      %v976 = vpack.c.b16 %v914, %v912
      %v977 = vpack.c.b16 %v915, %v913
      %v978 = vpack.c.b16 %v918, %v916
      %v979 = vpack.c.b16 %v919, %v917
      %v980 = vpack.c.b16 %v922, %v920
      %v981 = vpack.c.b16 %v923, %v921
      %v982 = vpack.c.b16 %v926, %v924
      %v983 = vpack.c.b16 %v927, %v925
      %v984 = vpack.c.b16 %v930, %v928
      %v985 = vpack.c.b16 %v931, %v929
      %v986 = vpack.c.b16 %v934, %v932
      %v987 = vpack.c.b16 %v935, %v933
      %v988 = vpack.c.b16 %v938, %v936
      %v989 = vpack.c.b16 %v939, %v937
      %v990 = vpack.c.b16 %v942, %v940
      %v991 = vpack.c.b16 %v943, %v941
      %v992 = vpack.c.b16 %v946, %v944
      %v993 = vpack.c.b16 %v947, %v945
      %v994 = vpack.c.b16 %v950, %v948
      %v995 = vpack.c.b16 %v951, %v949
      %v996 = vpack.c.b16 %v954, %v952
      %v997 = vpack.c.b16 %v955, %v953
      %v998 = vpack.c.b16 %v958, %v956
      %v999 = vpack.c.b16 %v959, %v957
      %v1000 = vpack.c.b16 %v962, %v960
      %v1001 = vpack.c.b16 %v963, %v961
      %v1002 = vpack.c.b16 %v966, %v964
      %v1003 = vpack.c.b16 %v967, %v965
      %v1004 = vpack.c.b16 %v970, %v968
      %v1005 = vpack.c.b16 %v971, %v969
      %v1006 = vpack.c.b16 %v974, %v972
      %v1007 = vpack.c.b16 %v975, %v973
      %1040 = vmatprep.subr.bf16.mxu0 %v977
      %1041 = vmatpush1.bf16.msra.mxu0 %v976
      %1042 = vmatprep.subr.bf16.mxu0 %v979
      %1043 = vmatpush1.bf16.msra.mxu0 %v978
      %1044 = vmatprep.subr.bf16.mxu0 %v981
      %1045 = vmatpush1.bf16.msra.mxu0 %v980
      %1046 = vmatprep.subr.bf16.mxu0 %v983
      %1047 = vmatpush1.bf16.msra.mxu0 %v982
      %1048 = vmatprep.subr.bf16.mxu0 %v985
      %1049 = vmatpush1.bf16.msra.mxu0 %v984
      %1050 = vmatprep.subr.bf16.mxu0 %v987
      %1051 = vmatpush1.bf16.msra.mxu0 %v986
      %1052 = vmatprep.subr.bf16.mxu0 %v989
      %1053 = vmatpush1.bf16.msra.mxu0 %v988
      %1054 = vmatprep.subr.bf16.mxu0 %v991
      %1055 = vmatpush1.bf16.msra.mxu0 %v990
      %1056 = vmatprep.subr.bf16.mxu0 %v993
      %1057 = vmatpush1.bf16.msra.mxu0 %v992
      %1058 = vmatprep.subr.bf16.mxu0 %v995
      %1059 = vmatpush1.bf16.msra.mxu0 %v994
      %1060 = vmatprep.subr.bf16.mxu0 %v997
      %1061 = vmatpush1.bf16.msra.mxu0 %v996
      %1062 = vmatprep.subr.bf16.mxu0 %v999
      %1063 = vmatpush1.bf16.msra.mxu0 %v998
      %1064 = vmatprep.subr.bf16.mxu0 %v1001
      %1065 = vmatpush1.bf16.msra.mxu0 %v1000
      %1066 = vmatprep.subr.bf16.mxu0 %v1003
      %1067 = vmatpush1.bf16.msra.mxu0 %v1002
      %1068 = vmatprep.subr.bf16.mxu0 %v1005
      %1069 = vmatpush1.bf16.msra.mxu0 %v1004
      %1070 = vmatprep.subr.bf16.mxu0 %v1007
      %1071 = vmatpush1.bf16.msra.mxu0 %v1006
      %1072 = vmatprep.mubr.bf16.mxu0 %v808
      %1073 = vmatmul.mubr.bf16.gmra.mrb[0].mxu0 %v807
      %v1074 = vpop.f32.mrb[0].mxu0
      %v1075 = vadd.f32 0.0, %v1074
      %v1076 = vpop.f32.mrb[0].mxu0
      %v1077 = vadd.f32 0.0, %v1076
      %v1078 = vpop.f32.mrb[0].mxu0
      %v1079 = vadd.f32 0.0, %v1078
      %v1080 = vpop.f32.mrb[0].mxu0
      %v1081 = vadd.f32 0.0, %v1080
      %1082 = vmatprep.mubr.bf16.mxu0 %v812
      %1083 = vmatmul.mubr.bf16.gmra.mrb[0].mxu0 %v811
      %v1084 = vpop.f32.mrb[0].mxu0
      %v1085 = vadd.f32 0.0, %v1084
      %v1086 = vpop.f32.mrb[0].mxu0
      %v1087 = vadd.f32 0.0, %v1086
      %v1088 = vpop.f32.mrb[0].mxu0
      %v1089 = vadd.f32 0.0, %v1088
      %v1090 = vpop.f32.mrb[0].mxu0
      %v1091 = vadd.f32 0.0, %v1090
      %1092 = vdwg.mxu0
      %v1125 = vunpack.c.l.b16 %v815
      %v1126 = vunpack.c.h.b16 %v815
      %v1127 = vunpack.c.l.b16 %v816
      %v1128 = vunpack.c.h.b16 %v816
      %v1129 = vunpack.c.l.b16 %v817
      %v1130 = vunpack.c.h.b16 %v817
      %v1131 = vunpack.c.l.b16 %v818
      %v1132 = vunpack.c.h.b16 %v818
      %v1133 = vunpack.c.l.b16 %v819
      %v1134 = vunpack.c.h.b16 %v819
      %v1135 = vunpack.c.l.b16 %v820
      %v1136 = vunpack.c.h.b16 %v820
      %v1137 = vunpack.c.l.b16 %v821
      %v1138 = vunpack.c.h.b16 %v821
      %v1139 = vunpack.c.l.b16 %v822
      %v1140 = vunpack.c.h.b16 %v822
      %v1141 = vunpack.c.l.b16 %v823
      %v1142 = vunpack.c.h.b16 %v823
      %v1143 = vunpack.c.l.b16 %v824
      %v1144 = vunpack.c.h.b16 %v824
      %v1145 = vunpack.c.l.b16 %v825
      %v1146 = vunpack.c.h.b16 %v825
      %v1147 = vunpack.c.l.b16 %v826
      %v1148 = vunpack.c.h.b16 %v826
      %v1149 = vunpack.c.l.b16 %v827
      %v1150 = vunpack.c.h.b16 %v827
      %v1151 = vunpack.c.l.b16 %v828
      %v1152 = vunpack.c.h.b16 %v828
      %v1153 = vunpack.c.l.b16 %v829
      %v1154 = vunpack.c.h.b16 %v829
      %v1155 = vunpack.c.l.b16 %v830
      %v1156 = vunpack.c.h.b16 %v830
      %v1157 = vunpack.c.l.b16 %v831
      %v1158 = vunpack.c.h.b16 %v831
      %v1159 = vunpack.c.l.b16 %v832
      %v1160 = vunpack.c.h.b16 %v832
      %v1161 = vunpack.c.l.b16 %v833
      %v1162 = vunpack.c.h.b16 %v833
      %v1163 = vunpack.c.l.b16 %v834
      %v1164 = vunpack.c.h.b16 %v834
      %v1165 = vunpack.c.l.b16 %v835
      %v1166 = vunpack.c.h.b16 %v835
      %v1167 = vunpack.c.l.b16 %v836
      %v1168 = vunpack.c.h.b16 %v836
      %v1169 = vunpack.c.l.b16 %v837
      %v1170 = vunpack.c.h.b16 %v837
      %v1171 = vunpack.c.l.b16 %v838
      %v1172 = vunpack.c.h.b16 %v838
      %v1173 = vunpack.c.l.b16 %v839
      %v1174 = vunpack.c.h.b16 %v839
      %v1175 = vunpack.c.l.b16 %v840
      %v1176 = vunpack.c.h.b16 %v840
      %v1177 = vunpack.c.l.b16 %v841
      %v1178 = vunpack.c.h.b16 %v841
      %v1179 = vunpack.c.l.b16 %v842
      %v1180 = vunpack.c.h.b16 %v842
      %v1181 = vunpack.c.l.b16 %v843
      %v1182 = vunpack.c.h.b16 %v843
      %v1183 = vunpack.c.l.b16 %v844
      %v1184 = vunpack.c.h.b16 %v844
      %v1185 = vunpack.c.l.b16 %v845
      %v1186 = vunpack.c.h.b16 %v845
      %v1187 = vunpack.c.l.b16 %v846
      %v1188 = vunpack.c.h.b16 %v846
      %v1189 = vpack.c.b16 %v1127, %v1125
      %v1190 = vpack.c.b16 %v1128, %v1126
      %v1191 = vpack.c.b16 %v1131, %v1129
      %v1192 = vpack.c.b16 %v1132, %v1130
      %v1193 = vpack.c.b16 %v1135, %v1133
      %v1194 = vpack.c.b16 %v1136, %v1134
      %v1195 = vpack.c.b16 %v1139, %v1137
      %v1196 = vpack.c.b16 %v1140, %v1138
      %v1197 = vpack.c.b16 %v1143, %v1141
      %v1198 = vpack.c.b16 %v1144, %v1142
      %v1199 = vpack.c.b16 %v1147, %v1145
      %v1200 = vpack.c.b16 %v1148, %v1146
      %v1201 = vpack.c.b16 %v1151, %v1149
      %v1202 = vpack.c.b16 %v1152, %v1150
      %v1203 = vpack.c.b16 %v1155, %v1153
      %v1204 = vpack.c.b16 %v1156, %v1154
      %v1205 = vpack.c.b16 %v1159, %v1157
      %v1206 = vpack.c.b16 %v1160, %v1158
      %v1207 = vpack.c.b16 %v1163, %v1161
      %v1208 = vpack.c.b16 %v1164, %v1162
      %v1209 = vpack.c.b16 %v1167, %v1165
      %v1210 = vpack.c.b16 %v1168, %v1166
      %v1211 = vpack.c.b16 %v1171, %v1169
      %v1212 = vpack.c.b16 %v1172, %v1170
      %v1213 = vpack.c.b16 %v1175, %v1173
      %v1214 = vpack.c.b16 %v1176, %v1174
      %v1215 = vpack.c.b16 %v1179, %v1177
      %v1216 = vpack.c.b16 %v1180, %v1178
      %v1217 = vpack.c.b16 %v1183, %v1181
      %v1218 = vpack.c.b16 %v1184, %v1182
      %v1219 = vpack.c.b16 %v1187, %v1185
      %v1220 = vpack.c.b16 %v1188, %v1186
      %1253 = vmatprep.subr.bf16.mxu0 %v1190
      %1254 = vmatpush1.bf16.msra.mxu0 %v1189
      %1255 = vmatprep.subr.bf16.mxu0 %v1192
      %1256 = vmatpush1.bf16.msra.mxu0 %v1191
      %1257 = vmatprep.subr.bf16.mxu0 %v1194
      %1258 = vmatpush1.bf16.msra.mxu0 %v1193
      %1259 = vmatprep.subr.bf16.mxu0 %v1196
      %1260 = vmatpush1.bf16.msra.mxu0 %v1195
      %1261 = vmatprep.subr.bf16.mxu0 %v1198
      %1262 = vmatpush1.bf16.msra.mxu0 %v1197
      %1263 = vmatprep.subr.bf16.mxu0 %v1200
      %1264 = vmatpush1.bf16.msra.mxu0 %v1199
      %1265 = vmatprep.subr.bf16.mxu0 %v1202
      %1266 = vmatpush1.bf16.msra.mxu0 %v1201
      %1267 = vmatprep.subr.bf16.mxu0 %v1204
      %1268 = vmatpush1.bf16.msra.mxu0 %v1203
      %1269 = vmatprep.subr.bf16.mxu0 %v1206
      %1270 = vmatpush1.bf16.msra.mxu0 %v1205
      %1271 = vmatprep.subr.bf16.mxu0 %v1208
      %1272 = vmatpush1.bf16.msra.mxu0 %v1207
      %1273 = vmatprep.subr.bf16.mxu0 %v1210
      %1274 = vmatpush1.bf16.msra.mxu0 %v1209
      %1275 = vmatprep.subr.bf16.mxu0 %v1212
      %1276 = vmatpush1.bf16.msra.mxu0 %v1211
      %1277 = vmatprep.subr.bf16.mxu0 %v1214
      %1278 = vmatpush1.bf16.msra.mxu0 %v1213
      %1279 = vmatprep.subr.bf16.mxu0 %v1216
      %1280 = vmatpush1.bf16.msra.mxu0 %v1215
      %1281 = vmatprep.subr.bf16.mxu0 %v1218
      %1282 = vmatpush1.bf16.msra.mxu0 %v1217
      %1283 = vmatprep.subr.bf16.mxu0 %v1220
      %1284 = vmatpush1.bf16.msra.mxu0 %v1219
      %1285 = vmatprep.mubr.bf16.mxu0 %v806
      %1286 = vmatmul.mubr.bf16.gmra.mrb[0].mxu0 %v805
      %v1287 = vpop.f32.mrb[0].mxu0
      %v1288 = vadd.f32 %v1075, %v1287
      %v1289 = vpop.f32.mrb[0].mxu0
      %v1290 = vadd.f32 %v1077, %v1289
      %v1291 = vpop.f32.mrb[0].mxu0
      %v1292 = vadd.f32 %v1079, %v1291
      %v1293 = vpop.f32.mrb[0].mxu0
      %v1294 = vadd.f32 %v1081, %v1293
      %1295 = vmatprep.mubr.bf16.mxu0 %v810
      %1296 = vmatmul.mubr.bf16.gmra.mrb[0].mxu0 %v809
      %v1297 = vpop.f32.mrb[0].mxu0
      %v1298 = vadd.f32 %v1085, %v1297
      %v1299 = vpop.f32.mrb[0].mxu0
      %v1300 = vadd.f32 %v1087, %v1299
      %v1301 = vpop.f32.mrb[0].mxu0
      %v1302 = vadd.f32 %v1089, %v1301
      %v1303 = vpop.f32.mrb[0].mxu0
      %v1304 = vadd.f32 %v1091, %v1303
      %1305 = vdwg.mxu0
      %s1306 = scalar_lea.vmem %s4, 512
      %v1307 = vld [vmem:[%s1306] sm:$0xff]
      %v1308 = vld [vmem:[%s1306 + $0x8] sm:$0xff]
      %v1309 = vld [vmem:[%s1306 + $0x10] sm:$0xff]
      %v1310 = vld [vmem:[%s1306 + $0x18] sm:$0xff]
      %v1311 = vld [vmem:[%s1306 + $0x20] sm:$0xff]
      %v1312 = vld [vmem:[%s1306 + $0x28] sm:$0xff]
      %v1313 = vld [vmem:[%s1306 + $0x30] sm:$0xff]
      %v1314 = vld [vmem:[%s1306 + $0x38] sm:$0xff]
      %v1315 = vld [vmem:[%s1306 + $0x40] sm:$0xff]
      %v1316 = vld [vmem:[%s1306 + $0x48] sm:$0xff]
      %v1317 = vld [vmem:[%s1306 + $0x50] sm:$0xff]
      %v1318 = vld [vmem:[%s1306 + $0x58] sm:$0xff]
      %v1319 = vld [vmem:[%s1306 + $0x60] sm:$0xff]
      %v1320 = vld [vmem:[%s1306 + $0x68] sm:$0xff]
      %v1321 = vld [vmem:[%s1306 + $0x70] sm:$0xff]
      %v1322 = vld [vmem:[%s1306 + $0x78] sm:$0xff]
      %v1323 = vld [vmem:[%s1306 + $0x80] sm:$0xff]
      %v1324 = vld [vmem:[%s1306 + $0x88] sm:$0xff]
      %v1325 = vld [vmem:[%s1306 + $0x90] sm:$0xff]
      %v1326 = vld [vmem:[%s1306 + $0x98] sm:$0xff]
      %v1327 = vld [vmem:[%s1306 + $0xa0] sm:$0xff]
      %v1328 = vld [vmem:[%s1306 + $0xa8] sm:$0xff]
      %v1329 = vld [vmem:[%s1306 + $0xb0] sm:$0xff]
      %v1330 = vld [vmem:[%s1306 + $0xb8] sm:$0xff]
      %v1331 = vld [vmem:[%s1306 + $0xc0] sm:$0xff]
      %v1332 = vld [vmem:[%s1306 + $0xc8] sm:$0xff]
      %v1333 = vld [vmem:[%s1306 + $0xd0] sm:$0xff]
      %v1334 = vld [vmem:[%s1306 + $0xd8] sm:$0xff]
      %v1335 = vld [vmem:[%s1306 + $0xe0] sm:$0xff]
      %v1336 = vld [vmem:[%s1306 + $0xe8] sm:$0xff]
      %v1337 = vld [vmem:[%s1306 + $0xf0] sm:$0xff]
      %v1338 = vld [vmem:[%s1306 + $0xf8] sm:$0xff]
      %v1371 = vunpack.c.l.b16 %v1307
      %v1372 = vunpack.c.h.b16 %v1307
      %v1373 = vunpack.c.l.b16 %v1308
      %v1374 = vunpack.c.h.b16 %v1308
      %v1375 = vunpack.c.l.b16 %v1309
      %v1376 = vunpack.c.h.b16 %v1309
      %v1377 = vunpack.c.l.b16 %v1310
      %v1378 = vunpack.c.h.b16 %v1310
      %v1379 = vunpack.c.l.b16 %v1311
      %v1380 = vunpack.c.h.b16 %v1311
      %v1381 = vunpack.c.l.b16 %v1312
      %v1382 = vunpack.c.h.b16 %v1312
      %v1383 = vunpack.c.l.b16 %v1313
      %v1384 = vunpack.c.h.b16 %v1313
      %v1385 = vunpack.c.l.b16 %v1314
      %v1386 = vunpack.c.h.b16 %v1314
      %v1387 = vunpack.c.l.b16 %v1315
      %v1388 = vunpack.c.h.b16 %v1315
      %v1389 = vunpack.c.l.b16 %v1316
      %v1390 = vunpack.c.h.b16 %v1316
      %v1391 = vunpack.c.l.b16 %v1317
      %v1392 = vunpack.c.h.b16 %v1317
      %v1393 = vunpack.c.l.b16 %v1318
      %v1394 = vunpack.c.h.b16 %v1318
      %v1395 = vunpack.c.l.b16 %v1319
      %v1396 = vunpack.c.h.b16 %v1319
      %v1397 = vunpack.c.l.b16 %v1320
      %v1398 = vunpack.c.h.b16 %v1320
      %v1399 = vunpack.c.l.b16 %v1321
      %v1400 = vunpack.c.h.b16 %v1321
      %v1401 = vunpack.c.l.b16 %v1322
      %v1402 = vunpack.c.h.b16 %v1322
      %v1403 = vunpack.c.l.b16 %v1323
      %v1404 = vunpack.c.h.b16 %v1323
      %v1405 = vunpack.c.l.b16 %v1324
      %v1406 = vunpack.c.h.b16 %v1324
      %v1407 = vunpack.c.l.b16 %v1325
      %v1408 = vunpack.c.h.b16 %v1325
      %v1409 = vunpack.c.l.b16 %v1326
      %v1410 = vunpack.c.h.b16 %v1326
      %v1411 = vunpack.c.l.b16 %v1327
      %v1412 = vunpack.c.h.b16 %v1327
      %v1413 = vunpack.c.l.b16 %v1328
      %v1414 = vunpack.c.h.b16 %v1328
      %v1415 = vunpack.c.l.b16 %v1329
      %v1416 = vunpack.c.h.b16 %v1329
      %v1417 = vunpack.c.l.b16 %v1330
      %v1418 = vunpack.c.h.b16 %v1330
      %v1419 = vunpack.c.l.b16 %v1331
      %v1420 = vunpack.c.h.b16 %v1331
      %v1421 = vunpack.c.l.b16 %v1332
      %v1422 = vunpack.c.h.b16 %v1332
      %v1423 = vunpack.c.l.b16 %v1333
      %v1424 = vunpack.c.h.b16 %v1333
      %v1425 = vunpack.c.l.b16 %v1334
      %v1426 = vunpack.c.h.b16 %v1334
      %v1427 = vunpack.c.l.b16 %v1335
      %v1428 = vunpack.c.h.b16 %v1335
      %v1429 = vunpack.c.l.b16 %v1336
      %v1430 = vunpack.c.h.b16 %v1336
      %v1431 = vunpack.c.l.b16 %v1337
      %v1432 = vunpack.c.h.b16 %v1337
      %v1433 = vunpack.c.l.b16 %v1338
      %v1434 = vunpack.c.h.b16 %v1338
      %v1435 = vpack.c.b16 %v1373, %v1371
      %v1436 = vpack.c.b16 %v1374, %v1372
      %v1437 = vpack.c.b16 %v1377, %v1375
      %v1438 = vpack.c.b16 %v1378, %v1376
      %v1439 = vpack.c.b16 %v1381, %v1379
      %v1440 = vpack.c.b16 %v1382, %v1380
      %v1441 = vpack.c.b16 %v1385, %v1383
      %v1442 = vpack.c.b16 %v1386, %v1384
      %v1443 = vpack.c.b16 %v1389, %v1387
      %v1444 = vpack.c.b16 %v1390, %v1388
      %v1445 = vpack.c.b16 %v1393, %v1391
      %v1446 = vpack.c.b16 %v1394, %v1392
      %v1447 = vpack.c.b16 %v1397, %v1395
      %v1448 = vpack.c.b16 %v1398, %v1396
      %v1449 = vpack.c.b16 %v1401, %v1399
      %v1450 = vpack.c.b16 %v1402, %v1400
      %v1451 = vpack.c.b16 %v1405, %v1403
      %v1452 = vpack.c.b16 %v1406, %v1404
      %v1453 = vpack.c.b16 %v1409, %v1407
      %v1454 = vpack.c.b16 %v1410, %v1408
      %v1455 = vpack.c.b16 %v1413, %v1411
      %v1456 = vpack.c.b16 %v1414, %v1412
      %v1457 = vpack.c.b16 %v1417, %v1415
      %v1458 = vpack.c.b16 %v1418, %v1416
      %v1459 = vpack.c.b16 %v1421, %v1419
      %v1460 = vpack.c.b16 %v1422, %v1420
      %v1461 = vpack.c.b16 %v1425, %v1423
      %v1462 = vpack.c.b16 %v1426, %v1424
      %v1463 = vpack.c.b16 %v1429, %v1427
      %v1464 = vpack.c.b16 %v1430, %v1428
      %v1465 = vpack.c.b16 %v1433, %v1431
      %v1466 = vpack.c.b16 %v1434, %v1432
      %1499 = vmatprep.subr.bf16.mxu0 %v1436
      %1500 = vmatpush1.bf16.msra.mxu0 %v1435
      %1501 = vmatprep.subr.bf16.mxu0 %v1438
      %1502 = vmatpush1.bf16.msra.mxu0 %v1437
      %1503 = vmatprep.subr.bf16.mxu0 %v1440
      %1504 = vmatpush1.bf16.msra.mxu0 %v1439
      %1505 = vmatprep.subr.bf16.mxu0 %v1442
      %1506 = vmatpush1.bf16.msra.mxu0 %v1441
      %1507 = vmatprep.subr.bf16.mxu0 %v1444
      %1508 = vmatpush1.bf16.msra.mxu0 %v1443
      %1509 = vmatprep.subr.bf16.mxu0 %v1446
      %1510 = vmatpush1.bf16.msra.mxu0 %v1445
      %1511 = vmatprep.subr.bf16.mxu0 %v1448
      %1512 = vmatpush1.bf16.msra.mxu0 %v1447
      %1513 = vmatprep.subr.bf16.mxu0 %v1450
      %1514 = vmatpush1.bf16.msra.mxu0 %v1449
      %1515 = vmatprep.subr.bf16.mxu0 %v1452
      %1516 = vmatpush1.bf16.msra.mxu0 %v1451
      %1517 = vmatprep.subr.bf16.mxu0 %v1454
      %1518 = vmatpush1.bf16.msra.mxu0 %v1453
      %1519 = vmatprep.subr.bf16.mxu0 %v1456
      %1520 = vmatpush1.bf16.msra.mxu0 %v1455
      %1521 = vmatprep.subr.bf16.mxu0 %v1458
      %1522 = vmatpush1.bf16.msra.mxu0 %v1457
      %1523 = vmatprep.subr.bf16.mxu0 %v1460
      %1524 = vmatpush1.bf16.msra.mxu0 %v1459
      %1525 = vmatprep.subr.bf16.mxu0 %v1462
      %1526 = vmatpush1.bf16.msra.mxu0 %v1461
      %1527 = vmatprep.subr.bf16.mxu0 %v1464
      %1528 = vmatpush1.bf16.msra.mxu0 %v1463
      %1529 = vmatprep.subr.bf16.mxu0 %v1466
      %1530 = vmatpush1.bf16.msra.mxu0 %v1465
      %1531 = vmatprep.mubr.bf16.mxu0 %v810
      %1532 = vmatmul.mubr.bf16.gmra.mrb[0].mxu0 %v809
      %v1533 = vpop.f32.mrb[0].mxu0
      %v1534 = vadd.f32 0.0, %v1533
      %v1535 = vpop.f32.mrb[0].mxu0
      %v1536 = vadd.f32 0.0, %v1535
      %v1537 = vpop.f32.mrb[0].mxu0
      %v1538 = vadd.f32 0.0, %v1537
      %v1539 = vpop.f32.mrb[0].mxu0
      %v1540 = vadd.f32 0.0, %v1539
      %1541 = vmatprep.mubr.bf16.mxu0 %v814
      %1542 = vmatmul.mubr.bf16.gmra.mrb[0].mxu0 %v813
      %v1543 = vpop.f32.mrb[0].mxu0
      %v1544 = vadd.f32 0.0, %v1543
      %v1545 = vpop.f32.mrb[0].mxu0
      %v1546 = vadd.f32 0.0, %v1545
      %v1547 = vpop.f32.mrb[0].mxu0
      %v1548 = vadd.f32 0.0, %v1547
      %v1549 = vpop.f32.mrb[0].mxu0
      %v1550 = vadd.f32 0.0, %v1549
      %1551 = vdwg.mxu0
      %v1552 = vadd.f32 %v1288, %v1534
      %v1553 = vadd.f32 %v1290, %v1536
      %v1554 = vadd.f32 %v1292, %v1538
      %v1555 = vadd.f32 %v1294, %v1540
      %v1556 = vadd.f32 %v1298, %v1544
      %v1557 = vadd.f32 %v1300, %v1546
      %v1558 = vadd.f32 %v1302, %v1548
      %v1559 = vadd.f32 %v1304, %v1550
      %v1560 = vld [vmem:[%s5] sm:$0x3]
      %v1562 = vlaneseq
      %v1563 = vshrl.u32 %v1562, 7
      %v1564 = vsub.s32 0, %v1563
      %v1565 = vrot.slane %v1560, %v1564
      %v1566 = vlaneseq
      %v1567 = vshrl.u32 %v1566, 7
      %v1568 = vsub.s32 1, %v1567
      %v1569 = vrot.slane %v1560, %v1568
      %v1572 = vadd.f32 %v1552, %v1565
      %v1573 = vadd.f32 %v1553, %v1569
      %v1574 = vadd.f32 %v1554, %v1565
      %v1575 = vadd.f32 %v1555, %v1569
      %v1576 = vadd.f32 %v1556, %v1565
      %v1577 = vadd.f32 %v1557, %v1569
      %v1578 = vadd.f32 %v1558, %v1565
      %v1579 = vadd.f32 %v1559, %v1569
      %v1580 = vmax.f32 %v1572, 0.0
      %v1581 = vmax.f32 %v1573, 0.0
      %v1582 = vmax.f32 %v1574, 0.0
      %v1583 = vmax.f32 %v1575, 0.0
      %v1584 = vmax.f32 %v1576, 0.0
      %v1585 = vmax.f32 %v1577, 0.0
      %v1586 = vmax.f32 %v1578, 0.0
      %v1587 = vmax.f32 %v1579, 0.0
      %v1588 = vpack.c.bf16 %v1582, %v1580
      %v1589 = vpack.c.bf16 %v1583, %v1581
      %v1590 = vpack.c.bf16 %v1586, %v1584
      %v1591 = vpack.c.bf16 %v1587, %v1585
      %v1596 = vunpack.c.l.b16 %v1588
      %v1597 = vunpack.c.l.b16 %v1589
      %v1598 = vunpack.c.h.b16 %v1588
      %v1599 = vunpack.c.h.b16 %v1589
      %v1600 = vunpack.c.l.b16 %v1590
      %v1601 = vunpack.c.l.b16 %v1591
      %v1602 = vunpack.c.h.b16 %v1590
      %v1603 = vunpack.c.h.b16 %v1591
      %v1604 = vpack.c.b16 %v1597, %v1596
      %v1605 = vpack.c.b16 %v1599, %v1598
      %v1606 = vpack.c.b16 %v1601, %v1600
      %v1607 = vpack.c.b16 %v1603, %v1602
      %1612 = vst [vmem:[%s251] sm:$0xff] %v1604
      %1613 = vst [vmem:[%s251 + $0x8] sm:$0xff] %v1605
      %1614 = vst [vmem:[%s251 + $0x10] sm:$0xff] %v1606
      %1615 = vst [vmem:[%s251 + $0x18] sm:$0xff] %v1607
      %p1616 = scmp.lt.s32.totalorder %s17, 1
      %s1617 = scalar_select %p1616, %s17, 1
      %s1618 = smul.addr %s1617, 8
      %s1619 = smul.addr %s1618, 4
      %s1620 = scalar_lea.vmem %s6, %s1619
      // Predicated region
      $region45: #{_lambda_.18} parent=43 // pred_check
        %p1621 = pneg %p166
      $region46: #{_lambda_.18} parent=43 // pred_check_branch
        %1623 = sbr.rel (%p1621) target = $region48
      $region47: #{_lambda_.18} parent=43 // pred_region
        _
      $region48: #{_lambda_.18} parent=43 // pred_fallthru
        _
    $region44: #{_lambda_.18} parent=5 // pred_fallthru
      _
    %p1624 = scmp.le.s32.totalorder 2, %s12
    // Predicated region
    $region49: #{_lambda_.18} parent=5 // pred_check
      %p1625 = pneg %p1624
    $region50: #{_lambda_.18} parent=5 // pred_check_branch
      %1627 = sbr.rel (%p1625) target = $region52
    $region51: #{_lambda_.18} parent=5 // pred_region
      %s1628 = ssub.s32 %s12, 2
      // Predicated region
      $region53: #{_lambda_.18} parent=51 // pred_check
        %p1629 = pneg %p172
      $region54: #{_lambda_.18} parent=51 // pred_check_branch
        %1631 = sbr.rel (%p1629) target = $region56
      $region55: #{_lambda_.18} parent=51 // pred_region
        %p1632 = scmp.lt.s32.totalorder %s18, 1
        %s1633 = scalar_select %p1632, %s18, 1
        %s1634 = smul.addr %s1633, 8
        %s1635 = smul.addr %s1634, 4
        %s1636 = scalar_lea.vmem %s6, %s1635
      $region56: #{_lambda_.18} parent=51 // pred_fallthru
        _
    $region52: #{_lambda_.18} parent=5 // pred_fallthru
      _
  $region6: #{_lambda_.18} parent=0 // loop_footer
    %s16 = sadd.s32 1, %s12
  $region7: #{_lambda_.18} parent=0 // loop_footer_branch
    %11 = sbr.rel target = $region3
  $region8: #{_lambda_.18} parent=0 // loop_exit
    _

// kernel: _lambda_.19
$region0: #{_lambda_.19}
  #allocation0 [shape = 'u32[]', space=smem, size = 0x4, offset = 0x4, fixed_abs, tag = 'smem constant byte address 0x4 - core index']
  #allocation1 [shape = 'u32[144,128]{1,0:T(1,128)}', space=vmem, size = 0x12000, scoped, tag = 'internal scratch']
  #allocation2 [shape = 'bf16[4,16,256]{2,1,0:T(16,128)(2,1)}', space=vmem, size = 0x8000, scoped, tag = 'scratch operand']
  %s0 = inlined_call_operand.vmem [shape: bf16[2,2,16,256], index: 0, kind: input, shape index: {}]
  %s1 = inlined_call_operand.vmem [shape: bf16[1,256,256], index: 1, kind: input, shape index: {}]
  %s2 = inlined_call_operand.vmem [shape: f32[1,1,256], index: 2, kind: input, shape index: {}]
  %s3 = inlined_call_operand.vmem [shape: f32[1,16,16], index: 3, kind: input, shape index: {}]
  %s4 = inlined_call_operand.vmem [shape: bf16[3,256,256], index: 4, kind: input, shape index: {}]
  %s5 = inlined_call_operand.vmem [shape: f32[1,256], index: 5, kind: input, shape index: {}]
  %s6 = inlined_call_operand.vmem [shape: bf16[2,2,16,256], index: 6, kind: output, shape index: {}]
  %s7 = sld [smem:[#allocation0]]
  $region57: #{_lambda_.19} parent=0
    _
  %s9 = ssub.s32 1, %s7
  %s10 = scalar_select 0, %s9, %s7
  loop: start=0, step=1, limit=4
  $region2: #{_lambda_.19} parent=0 // loop_pre_header
    _
  $region3: #{_lambda_.19} parent=0 // loop_header
    %s12 = sphi 0, %s16
    %p13 = scmp.ge.s32.totalorder %s12, 4
    %s22 = sphi 0, %s24
    %s25 = sphi 0, %s22
    %s26 = sphi 0, %s25
    %s42 = sphi 0, %s26
    %s46 = sphi 0, %s46
    %s48 = sphi 0, %s46
    %s49 = sphi 0, %s48
    %s63 = sphi 0, %s49
    %s67 = sphi 0, %s67
    %s69 = sphi 0, %s67
    %s70 = sphi 0, %s69
    %s84 = sphi 0, %s70
    %s88 = sphi 0, %s88
    %s90 = sphi 0, %s88
    %s91 = sphi 0, %s90
    %s105 = sphi 0, %s91
    %s109 = sphi 0, %s109
    %s111 = sphi 0, %s109
    %s112 = sphi 0, %s111
    %s126 = sphi 0, %s112
    %s130 = sphi 0, %s130
    %s132 = sphi 0, %s130
    %s133 = sphi 0, %s132
    %s147 = sphi 0, %s133
    %s153 = sphi 0, %s155
    %s156 = sphi 0, %s153
    %s157 = sphi 0, %s156
    %s173 = sphi 0, %s157
  $region4: #{_lambda_.19} parent=0 // loop_header_branch
    %15 = sbr.rel (%p13) target = $region8
  $region5: #{_lambda_.19} parent=0 // loop_body
    %s17 = ssub.s32 %s12, 1
    %s18 = ssub.s32 %s12, 2
    %s19 = sadd.s32 %s12, 1
    %s20 = ssub.s32 %s12, %s19
    %p21 = scmp.eq.s32.totalorder %s20, 0
    %s23 = sadd.s32 %s22, 1
    %s24 = scalar_select %p21, %s22, %s23
    %p27 = pneg %p21
    %p28 = scmp.eq.s32.totalorder %s12, 1
    %p29 = por %p27, %p28
    %p30 = scmp.ne.s32.totalorder %s22, %s25
    %p31 = scmp.eq.s32.totalorder %s12, 0
    %p32 = por %p30, %p31
    %p33 = scmp.ne.s32.totalorder %s22, %s25
    %p34 = scmp.eq.s32.totalorder %s17, 1
    %p35 = por %p33, %p34
    %p36 = scmp.ne.s32.totalorder %s25, %s26
    %p37 = scmp.eq.s32.totalorder %s17, 0
    %p38 = por %p36, %p37
    %p39 = scmp.ne.s32.totalorder %s25, %s26
    %p40 = scmp.eq.s32.totalorder %s18, 1
    %p41 = por %p39, %p40
    %p43 = scmp.ne.s32.totalorder %s26, %s42
    %p44 = scmp.eq.s32.totalorder %s18, 0
    %p45 = por %p43, %p44
    %s47 = sadd.s32 %s46, 1
    %p50 = scmp.eq.s32.totalorder %s12, 1
    %p51 = scmp.ne.s32.totalorder %s46, %s48
    %p52 = scmp.eq.s32.totalorder %s12, 0
    %p53 = por %p51, %p52
    %p54 = scmp.ne.s32.totalorder %s46, %s48
    %p55 = scmp.eq.s32.totalorder %s17, 1
    %p56 = por %p54, %p55
    %p57 = scmp.ne.s32.totalorder %s48, %s49
    %p58 = scmp.eq.s32.totalorder %s17, 0
    %p59 = por %p57, %p58
    %p60 = scmp.ne.s32.totalorder %s48, %s49
    %p61 = scmp.eq.s32.totalorder %s18, 1
    %p62 = por %p60, %p61
    %p64 = scmp.ne.s32.totalorder %s49, %s63
    %p65 = scmp.eq.s32.totalorder %s18, 0
    %p66 = por %p64, %p65
    %s68 = sadd.s32 %s67, 1
    %p71 = scmp.eq.s32.totalorder %s12, 1
    %p72 = scmp.ne.s32.totalorder %s67, %s69
    %p73 = scmp.eq.s32.totalorder %s12, 0
    %p74 = por %p72, %p73
    %p75 = scmp.ne.s32.totalorder %s67, %s69
    %p76 = scmp.eq.s32.totalorder %s17, 1
    %p77 = por %p75, %p76
    %p78 = scmp.ne.s32.totalorder %s69, %s70
    %p79 = scmp.eq.s32.totalorder %s17, 0
    %p80 = por %p78, %p79
    %p81 = scmp.ne.s32.totalorder %s69, %s70
    %p82 = scmp.eq.s32.totalorder %s18, 1
    %p83 = por %p81, %p82
    %p85 = scmp.ne.s32.totalorder %s70, %s84
    %p86 = scmp.eq.s32.totalorder %s18, 0
    %p87 = por %p85, %p86
    %s89 = sadd.s32 %s88, 1
    %p92 = scmp.eq.s32.totalorder %s12, 1
    %p93 = scmp.ne.s32.totalorder %s88, %s90
    %p94 = scmp.eq.s32.totalorder %s12, 0
    %p95 = por %p93, %p94
    %p96 = scmp.ne.s32.totalorder %s88, %s90
    %p97 = scmp.eq.s32.totalorder %s17, 1
    %p98 = por %p96, %p97
    %p99 = scmp.ne.s32.totalorder %s90, %s91
    %p100 = scmp.eq.s32.totalorder %s17, 0
    %p101 = por %p99, %p100
    %p102 = scmp.ne.s32.totalorder %s90, %s91
    %p103 = scmp.eq.s32.totalorder %s18, 1
    %p104 = por %p102, %p103
    %p106 = scmp.ne.s32.totalorder %s91, %s105
    %p107 = scmp.eq.s32.totalorder %s18, 0
    %p108 = por %p106, %p107
    %s110 = sadd.s32 %s109, 1
    %p113 = scmp.eq.s32.totalorder %s12, 1
    %p114 = scmp.ne.s32.totalorder %s109, %s111
    %p115 = scmp.eq.s32.totalorder %s12, 0
    %p116 = por %p114, %p115
    %p117 = scmp.ne.s32.totalorder %s109, %s111
    %p118 = scmp.eq.s32.totalorder %s17, 1
    %p119 = por %p117, %p118
    %p120 = scmp.ne.s32.totalorder %s111, %s112
    %p121 = scmp.eq.s32.totalorder %s17, 0
    %p122 = por %p120, %p121
    %p123 = scmp.ne.s32.totalorder %s111, %s112
    %p124 = scmp.eq.s32.totalorder %s18, 1
    %p125 = por %p123, %p124
    %p127 = scmp.ne.s32.totalorder %s112, %s126
    %p128 = scmp.eq.s32.totalorder %s18, 0
    %p129 = por %p127, %p128
    %s131 = sadd.s32 %s130, 1
    %p134 = scmp.eq.s32.totalorder %s12, 1
    %p135 = scmp.ne.s32.totalorder %s130, %s132
    %p136 = scmp.eq.s32.totalorder %s12, 0
    %p137 = por %p135, %p136
    %p138 = scmp.ne.s32.totalorder %s130, %s132
    %p139 = scmp.eq.s32.totalorder %s17, 1
    %p140 = por %p138, %p139
    %p141 = scmp.ne.s32.totalorder %s132, %s133
    %p142 = scmp.eq.s32.totalorder %s17, 0
    %p143 = por %p141, %p142
    %p144 = scmp.ne.s32.totalorder %s132, %s133
    %p145 = scmp.eq.s32.totalorder %s18, 1
    %p146 = por %p144, %p145
    %p148 = scmp.ne.s32.totalorder %s133, %s147
    %p149 = scmp.eq.s32.totalorder %s18, 0
    %p150 = por %p148, %p149
    %s151 = ssub.s32 %s12, %s19
    %p152 = scmp.eq.s32.totalorder %s151, 0
    %s154 = sadd.s32 %s153, 1
    %s155 = scalar_select %p152, %s153, %s154
    %p158 = pneg %p152
    %p159 = scmp.eq.s32.totalorder %s12, 1
    %p160 = por %p158, %p159
    %p161 = scmp.ne.s32.totalorder %s153, %s156
    %p162 = scmp.eq.s32.totalorder %s12, 0
    %p163 = por %p161, %p162
    %p164 = scmp.ne.s32.totalorder %s153, %s156
    %p165 = scmp.eq.s32.totalorder %s17, 1
    %p166 = por %p164, %p165
    %p167 = scmp.ne.s32.totalorder %s156, %s157
    %p168 = scmp.eq.s32.totalorder %s17, 0
    %p169 = por %p167, %p168
    %p170 = scmp.ne.s32.totalorder %s156, %s157
    %p171 = scmp.eq.s32.totalorder %s18, 1
    %p172 = por %p170, %p171
    %p174 = scmp.ne.s32.totalorder %s157, %s173
    %p175 = scmp.eq.s32.totalorder %s18, 0
    %p176 = por %p174, %p175
    %p177 = scmp.le.s32.totalorder 1, %s12
    %p178 = scmp.lt.s32.totalorder %s12, 3
    %p179 = pnand %p177, %p178
    %p180 = pneg %p179
    // Predicated region
    $region9: #{_lambda_.19} parent=5 // pred_check
      _
    $region10: #{_lambda_.19} parent=5 // pred_check_branch
      %182 = sbr.rel (%p179) target = $region12
    $region11: #{_lambda_.19} parent=5 // pred_region
      %s183 = ssub.s32 %s12, 1
      // Predicated region
      $region13: #{_lambda_.19} parent=11 // pred_check
        %p184 = pneg %p59
      $region14: #{_lambda_.19} parent=11 // pred_check_branch
        %186 = sbr.rel (%p184) target = $region16
      $region15: #{_lambda_.19} parent=11 // pred_region
        _
      $region16: #{_lambda_.19} parent=11 // pred_fallthru
        _
      // Predicated region
      $region17: #{_lambda_.19} parent=11 // pred_check
        %p187 = pneg %p80
      $region18: #{_lambda_.19} parent=11 // pred_check_branch
        %189 = sbr.rel (%p187) target = $region20
      $region19: #{_lambda_.19} parent=11 // pred_region
        _
      $region20: #{_lambda_.19} parent=11 // pred_fallthru
        _
      // Predicated region
      $region21: #{_lambda_.19} parent=11 // pred_check
        %p190 = pneg %p101
      $region22: #{_lambda_.19} parent=11 // pred_check_branch
        %192 = sbr.rel (%p190) target = $region24
      $region23: #{_lambda_.19} parent=11 // pred_region
        _
      $region24: #{_lambda_.19} parent=11 // pred_fallthru
        _
      // Predicated region
      $region25: #{_lambda_.19} parent=11 // pred_check
        %p193 = pneg %p122
      $region26: #{_lambda_.19} parent=11 // pred_check_branch
        %195 = sbr.rel (%p193) target = $region28
      $region27: #{_lambda_.19} parent=11 // pred_region
        _
      $region28: #{_lambda_.19} parent=11 // pred_fallthru
        _
      // Predicated region
      $region29: #{_lambda_.19} parent=11 // pred_check
        %p196 = pneg %p143
      $region30: #{_lambda_.19} parent=11 // pred_check_branch
        %198 = sbr.rel (%p196) target = $region32
      $region31: #{_lambda_.19} parent=11 // pred_region
        _
      $region32: #{_lambda_.19} parent=11 // pred_fallthru
        _
    $region12: #{_lambda_.19} parent=5 // pred_fallthru
      _
    %p199 = scmp.lt.s32.totalorder %s12, 2
    // Predicated region
    $region33: #{_lambda_.19} parent=5 // pred_check
      %p200 = pneg %p199
    $region34: #{_lambda_.19} parent=5 // pred_check_branch
      %202 = sbr.rel (%p200) target = $region36
    $region35: #{_lambda_.19} parent=5 // pred_region
      // Predicated region
      $region37: #{_lambda_.19} parent=35 // pred_check
        %p203 = pneg %p32
      $region38: #{_lambda_.19} parent=35 // pred_check_branch
        %205 = sbr.rel (%p203) target = $region40
      $region39: #{_lambda_.19} parent=35 // pred_region
        %p206 = scmp.lt.s32.totalorder %s12, 1
        %s207 = scalar_select %p206, %s12, 1
        %s208 = smul.addr %s207, 8
        %s209 = smul.addr %s208, 4
        %s210 = scalar_lea.vmem %s0, %s209
      $region40: #{_lambda_.19} parent=35 // pred_fallthru
        _
    $region36: #{_lambda_.19} parent=5 // pred_fallthru
      _
    %p211 = scmp.le.s32.totalorder 1, %s12
    %p212 = scmp.lt.s32.totalorder %s12, 3
    %p213 = pnand %p211, %p212
    %p214 = pneg %p213
    // Predicated region
    $region41: #{_lambda_.19} parent=5 // pred_check
      _
    $region42: #{_lambda_.19} parent=5 // pred_check_branch
      %216 = sbr.rel (%p213) target = $region44
    $region43: #{_lambda_.19} parent=5 // pred_region
      %s217 = ssub.s32 %s12, 1
      %p218 = scmp.lt.s32.totalorder %s17, 1
      %s219 = scalar_select %p218, %s17, 1
      %s220 = smul.addr %s219, 8
      %s221 = smul.addr %s220, 4
      %s222 = scalar_lea.vmem %s0, %s221
      %p223 = pneg %p38
      %p224 = pneg %p35
      %p225 = pneg %p59
      %p226 = pneg %p56
      %p227 = pneg %p80
      %p228 = pneg %p77
      %p229 = pneg %p101
      %p230 = pneg %p98
      %p231 = pneg %p122
      %p232 = pneg %p119
      %p233 = pneg %p143
      %p234 = pneg %p140
      %p235 = pneg %p169
      %p236 = pneg %p166
      %p237 = scmp.lt.s32.totalorder %s17, 1
      %s238 = scalar_select %p237, %s17, 1
      %s239 = smul.addr %s238, 8
      %s240 = smul.addr %s239, 4
      %s241 = scalar_lea.vmem %s6, %s240
      %p242 = scmp.lt.s32.totalorder %s17, 1
      %s243 = scalar_select %p242, %s17, 1
      %s244 = smul.addr %s243, 8
      %s245 = smul.addr %s244, 4
      %s246 = scalar_lea.vmem %s0, %s245
      %p247 = scmp.lt.s32.totalorder %s17, 1
      %s248 = scalar_select %p247, %s17, 1
      %s249 = smul.addr %s248, 8
      %s250 = smul.addr %s249, 4
      %s251 = scalar_lea.vmem %s6, %s250
      %v253 = vld [vmem:[%s246] sm:$0xff]
      %v254 = vld [vmem:[%s246 + $0x8] sm:$0xff]
      %v255 = vld [vmem:[%s246 + $0x10] sm:$0xff]
      %v256 = vld [vmem:[%s246 + $0x18] sm:$0xff]
      %v257 = vld [vmem:[%s1] sm:$0xff]
      %v258 = vld [vmem:[%s1 + $0x8] sm:$0xff]
      %v259 = vld [vmem:[%s1 + $0x10] sm:$0xff]
      %v260 = vld [vmem:[%s1 + $0x18] sm:$0xff]
      %v261 = vld [vmem:[%s1 + $0x20] sm:$0xff]
      %v262 = vld [vmem:[%s1 + $0x28] sm:$0xff]
      %v263 = vld [vmem:[%s1 + $0x30] sm:$0xff]
      %v264 = vld [vmem:[%s1 + $0x38] sm:$0xff]
      %v265 = vld [vmem:[%s1 + $0x40] sm:$0xff]
      %v266 = vld [vmem:[%s1 + $0x48] sm:$0xff]
      %v267 = vld [vmem:[%s1 + $0x50] sm:$0xff]
      %v268 = vld [vmem:[%s1 + $0x58] sm:$0xff]
      %v269 = vld [vmem:[%s1 + $0x60] sm:$0xff]
      %v270 = vld [vmem:[%s1 + $0x68] sm:$0xff]
      %v271 = vld [vmem:[%s1 + $0x70] sm:$0xff]
      %v272 = vld [vmem:[%s1 + $0x78] sm:$0xff]
      %v273 = vld [vmem:[%s1 + $0x80] sm:$0xff]
      %v274 = vld [vmem:[%s1 + $0x88] sm:$0xff]
      %v275 = vld [vmem:[%s1 + $0x90] sm:$0xff]
      %v276 = vld [vmem:[%s1 + $0x98] sm:$0xff]
      %v277 = vld [vmem:[%s1 + $0xa0] sm:$0xff]
      %v278 = vld [vmem:[%s1 + $0xa8] sm:$0xff]
      %v279 = vld [vmem:[%s1 + $0xb0] sm:$0xff]
      %v280 = vld [vmem:[%s1 + $0xb8] sm:$0xff]
      %v281 = vld [vmem:[%s1 + $0xc0] sm:$0xff]
      %v282 = vld [vmem:[%s1 + $0xc8] sm:$0xff]
      %v283 = vld [vmem:[%s1 + $0xd0] sm:$0xff]
      %v284 = vld [vmem:[%s1 + $0xd8] sm:$0xff]
      %v285 = vld [vmem:[%s1 + $0xe0] sm:$0xff]
      %v286 = vld [vmem:[%s1 + $0xe8] sm:$0xff]
      %v287 = vld [vmem:[%s1 + $0xf0] sm:$0xff]
      %v288 = vld [vmem:[%s1 + $0xf8] sm:$0xff]
      %v289 = vld [vmem:[%s2] sm:$0x3]
      %v291 = vlaneseq
      %v292 = vshrl.u32 %v291, 7
      %v293 = vsub.s32 0, %v292
      %v294 = vrot.slane %v289, %v293
      %v295 = vlaneseq
      %v296 = vshrl.u32 %v295, 7
      %v297 = vsub.s32 1, %v296
      %v298 = vrot.slane %v289, %v297
      %v305 = vunpack.c.l.b16 %v253
      %v306 = vunpack.c.h.b16 %v253
      %v307 = vunpack.c.l.b16 %v254
      %v308 = vunpack.c.h.b16 %v254
      %v309 = vunpack.c.l.b16 %v255
      %v310 = vunpack.c.h.b16 %v255
      %v311 = vunpack.c.l.b16 %v256
      %v312 = vunpack.c.h.b16 %v256
      %v313 = vpack.c.b16 %v307, %v305
      %v314 = vpack.c.b16 %v308, %v306
      %v315 = vpack.c.b16 %v311, %v309
      %v316 = vpack.c.b16 %v312, %v310
      %v353 = vunpack.c.l.b16 %v257
      %v354 = vunpack.c.h.b16 %v257
      %v355 = vunpack.c.l.b16 %v258
      %v356 = vunpack.c.h.b16 %v258
      %v357 = vunpack.c.l.b16 %v259
      %v358 = vunpack.c.h.b16 %v259
      %v359 = vunpack.c.l.b16 %v260
      %v360 = vunpack.c.h.b16 %v260
      %v361 = vunpack.c.l.b16 %v261
      %v362 = vunpack.c.h.b16 %v261
      %v363 = vunpack.c.l.b16 %v262
      %v364 = vunpack.c.h.b16 %v262
      %v365 = vunpack.c.l.b16 %v263
      %v366 = vunpack.c.h.b16 %v263
      %v367 = vunpack.c.l.b16 %v264
      %v368 = vunpack.c.h.b16 %v264
      %v369 = vunpack.c.l.b16 %v265
      %v370 = vunpack.c.h.b16 %v265
      %v371 = vunpack.c.l.b16 %v266
      %v372 = vunpack.c.h.b16 %v266
      %v373 = vunpack.c.l.b16 %v267
      %v374 = vunpack.c.h.b16 %v267
      %v375 = vunpack.c.l.b16 %v268
      %v376 = vunpack.c.h.b16 %v268
      %v377 = vunpack.c.l.b16 %v269
      %v378 = vunpack.c.h.b16 %v269
      %v379 = vunpack.c.l.b16 %v270
      %v380 = vunpack.c.h.b16 %v270
      %v381 = vunpack.c.l.b16 %v271
      %v382 = vunpack.c.h.b16 %v271
      %v383 = vunpack.c.l.b16 %v272
      %v384 = vunpack.c.h.b16 %v272
      %v385 = vunpack.c.l.b16 %v273
      %v386 = vunpack.c.h.b16 %v273
      %v387 = vunpack.c.l.b16 %v274
      %v388 = vunpack.c.h.b16 %v274
      %v389 = vunpack.c.l.b16 %v275
      %v390 = vunpack.c.h.b16 %v275
      %v391 = vunpack.c.l.b16 %v276
      %v392 = vunpack.c.h.b16 %v276
      %v393 = vunpack.c.l.b16 %v277
      %v394 = vunpack.c.h.b16 %v277
      %v395 = vunpack.c.l.b16 %v278
      %v396 = vunpack.c.h.b16 %v278
      %v397 = vunpack.c.l.b16 %v279
      %v398 = vunpack.c.h.b16 %v279
      %v399 = vunpack.c.l.b16 %v280
      %v400 = vunpack.c.h.b16 %v280
      %v401 = vunpack.c.l.b16 %v281
      %v402 = vunpack.c.h.b16 %v281
      %v403 = vunpack.c.l.b16 %v282
      %v404 = vunpack.c.h.b16 %v282
      %v405 = vunpack.c.l.b16 %v283
      %v406 = vunpack.c.h.b16 %v283
      %v407 = vunpack.c.l.b16 %v284
      %v408 = vunpack.c.h.b16 %v284
      %v409 = vunpack.c.l.b16 %v285
      %v410 = vunpack.c.h.b16 %v285
      %v411 = vunpack.c.l.b16 %v286
      %v412 = vunpack.c.h.b16 %v286
      %v413 = vunpack.c.l.b16 %v287
      %v414 = vunpack.c.h.b16 %v287
      %v415 = vunpack.c.l.b16 %v288
      %v416 = vunpack.c.h.b16 %v288
      %v417 = vpack.c.b16 %v355, %v353
      %v418 = vpack.c.b16 %v356, %v354
      %v419 = vpack.c.b16 %v359, %v357
      %v420 = vpack.c.b16 %v360, %v358
      %v421 = vpack.c.b16 %v363, %v361
      %v422 = vpack.c.b16 %v364, %v362
      %v423 = vpack.c.b16 %v367, %v365
      %v424 = vpack.c.b16 %v368, %v366
      %v425 = vpack.c.b16 %v371, %v369
      %v426 = vpack.c.b16 %v372, %v370
      %v427 = vpack.c.b16 %v375, %v373
      %v428 = vpack.c.b16 %v376, %v374
      %v429 = vpack.c.b16 %v379, %v377
      %v430 = vpack.c.b16 %v380, %v378
      %v431 = vpack.c.b16 %v383, %v381
      %v432 = vpack.c.b16 %v384, %v382
      %v433 = vpack.c.b16 %v387, %v385
      %v434 = vpack.c.b16 %v388, %v386
      %v435 = vpack.c.b16 %v391, %v389
      %v436 = vpack.c.b16 %v392, %v390
      %v437 = vpack.c.b16 %v395, %v393
      %v438 = vpack.c.b16 %v396, %v394
      %v439 = vpack.c.b16 %v399, %v397
      %v440 = vpack.c.b16 %v400, %v398
      %v441 = vpack.c.b16 %v403, %v401
      %v442 = vpack.c.b16 %v404, %v402
      %v443 = vpack.c.b16 %v407, %v405
      %v444 = vpack.c.b16 %v408, %v406
      %v445 = vpack.c.b16 %v411, %v409
      %v446 = vpack.c.b16 %v412, %v410
      %v447 = vpack.c.b16 %v415, %v413
      %v448 = vpack.c.b16 %v416, %v414
      %481 = vmatprep.subr.bf16.mxu0 %v418
      %482 = vmatpush1.bf16.msra.mxu0 %v417
      %483 = vmatprep.subr.bf16.mxu0 %v420
      %484 = vmatpush1.bf16.msra.mxu0 %v419
      %485 = vmatprep.subr.bf16.mxu0 %v422
      %486 = vmatpush1.bf16.msra.mxu0 %v421
      %487 = vmatprep.subr.bf16.mxu0 %v424
      %488 = vmatpush1.bf16.msra.mxu0 %v423
      %489 = vmatprep.subr.bf16.mxu0 %v426
      %490 = vmatpush1.bf16.msra.mxu0 %v425
      %491 = vmatprep.subr.bf16.mxu0 %v428
      %492 = vmatpush1.bf16.msra.mxu0 %v427
      %493 = vmatprep.subr.bf16.mxu0 %v430
      %494 = vmatpush1.bf16.msra.mxu0 %v429
      %495 = vmatprep.subr.bf16.mxu0 %v432
      %496 = vmatpush1.bf16.msra.mxu0 %v431
      %497 = vmatprep.subr.bf16.mxu0 %v434
      %498 = vmatpush1.bf16.msra.mxu0 %v433
      %499 = vmatprep.subr.bf16.mxu0 %v436
      %500 = vmatpush1.bf16.msra.mxu0 %v435
      %501 = vmatprep.subr.bf16.mxu0 %v438
      %502 = vmatpush1.bf16.msra.mxu0 %v437
      %503 = vmatprep.subr.bf16.mxu0 %v440
      %504 = vmatpush1.bf16.msra.mxu0 %v439
      %505 = vmatprep.subr.bf16.mxu0 %v442
      %506 = vmatpush1.bf16.msra.mxu0 %v441
      %507 = vmatprep.subr.bf16.mxu0 %v444
      %508 = vmatpush1.bf16.msra.mxu0 %v443
      %509 = vmatprep.subr.bf16.mxu0 %v446
      %510 = vmatpush1.bf16.msra.mxu0 %v445
      %511 = vmatprep.subr.bf16.mxu0 %v448
      %512 = vmatpush1.bf16.msra.mxu0 %v447
      %513 = vmatprep.mubr.bf16.mxu0 %v314
      %514 = vmatmul.mubr.bf16.gmra.mrb[0].mxu0 %v313
      %v515 = vpop.f32.mrb[0].mxu0
      %v516 = vadd.f32 %v294, %v515
      %v517 = vpop.f32.mrb[0].mxu0
      %v518 = vadd.f32 %v298, %v517
      %v519 = vpop.f32.mrb[0].mxu0
      %v520 = vadd.f32 %v294, %v519
      %v521 = vpop.f32.mrb[0].mxu0
      %v522 = vadd.f32 %v298, %v521
      %523 = vmatprep.mubr.bf16.mxu0 %v316
      %524 = vmatmul.mubr.bf16.gmra.mrb[0].mxu0 %v315
      %v525 = vpop.f32.mrb[0].mxu0
      %v526 = vadd.f32 %v294, %v525
      %v527 = vpop.f32.mrb[0].mxu0
      %v528 = vadd.f32 %v298, %v527
      %v529 = vpop.f32.mrb[0].mxu0
      %v530 = vadd.f32 %v294, %v529
      %v531 = vpop.f32.mrb[0].mxu0
      %v532 = vadd.f32 %v298, %v531
      %533 = vdwg.mxu0
      %v534 = vld [vmem:[%s3] sm:$0xff]
      %v535 = vld [vmem:[%s3 + $0x8] sm:$0xff]
      %vm536 = vcmask 130048
      %v538 = vsel %vm536, %v534, 0
      %v541 = vsel %vm536, %v535, 0
      %543 = vmatprep.subr.mxu0 %v518
      %544 = vmatpush1.msra.mxu0 %v516
      %545 = vmatprep.subr.mxu0 %v522
      %546 = vmatpush1.msra.mxu0 %v520
      %547 = vmatprep.subr.mxu0 0.0
      %548 = vmatpush1.msra.mxu0 0.0
      %549 = vmatprep.subr.mxu0 0.0
      %550 = vmatpush1.msra.mxu0 0.0
      %551 = vmatprep.subr.mxu0 0.0
      %552 = vmatpush1.msra.mxu0 0.0
      %553 = vmatprep.subr.mxu0 0.0
      %554 = vmatpush1.msra.mxu0 0.0
      %555 = vmatprep.subr.mxu0 0.0
      %556 = vmatpush1.msra.mxu0 0.0
      %557 = vmatprep.subr.mxu0 0.0
      %558 = vmatpush1.msra.mxu0 0.0
      %559 = vmatprep.subr.mxu0 0.0
      %560 = vmatpush1.msra.mxu0 0.0
      %561 = vmatprep.subr.mxu0 0.0
      %562 = vmatpush1.msra.mxu0 0.0
      %563 = vmatprep.subr.mxu0 0.0
      %564 = vmatpush1.msra.mxu0 0.0
      %565 = vmatprep.subr.mxu0 0.0
      %566 = vmatpush1.msra.mxu0 0.0
      %567 = vmatprep.subr.mxu0 0.0
      %568 = vmatpush1.msra.mxu0 0.0
      %569 = vmatprep.subr.mxu0 0.0
      %570 = vmatpush1.msra.mxu0 0.0
      %571 = vmatprep.subr.mxu0 0.0
      %572 = vmatpush1.msra.mxu0 0.0
      %573 = vmatprep.subr.mxu0 0.0
      %574 = vmatpush1.msra.mxu0 0.0
      %575 = vmatprep.subr.mxu0 0.0
      %576 = vmatpush1.msra.mxu0 0.0
      %577 = vmatprep.subr.mxu0 0.0
      %578 = vmatpush1.msra.mxu0 0.0
      %579 = vmatprep.subr.mxu0 0.0
      %580 = vmatpush1.msra.mxu0 0.0
      %581 = vmatprep.subr.mxu0 0.0
      %582 = vmatpush1.msra.mxu0 0.0
      %583 = vmatprep.subr.mxu0 0.0
      %584 = vmatpush1.msra.mxu0 0.0
      %585 = vmatprep.subr.mxu0 0.0
      %586 = vmatpush1.msra.mxu0 0.0
      %587 = vmatprep.subr.mxu0 0.0
      %588 = vmatpush1.msra.mxu0 0.0
      %589 = vmatprep.subr.mxu0 0.0
      %590 = vmatpush1.msra.mxu0 0.0
      %591 = vmatprep.subr.mxu0 0.0
      %592 = vmatpush1.msra.mxu0 0.0
      %593 = vmatprep.subr.mxu0 0.0
      %594 = vmatpush1.msra.mxu0 0.0
      %595 = vmatprep.subr.mxu0 0.0
      %596 = vmatpush1.msra.mxu0 0.0
      %597 = vmatprep.subr.mxu0 0.0
      %598 = vmatpush1.msra.mxu0 0.0
      %599 = vmatprep.subr.mxu0 0.0
      %600 = vmatpush1.msra.mxu0 0.0
      %601 = vmatprep.subr.mxu0 0.0
      %602 = vmatpush1.msra.mxu0 0.0
      %603 = vmatprep.subr.mxu0 0.0
      %604 = vmatpush1.msra.mxu0 0.0
      %605 = vmatprep.subr.mxu0 0.0
      %606 = vmatpush1.msra.mxu0 0.0
      %607 = vmatprep.mubr.f32.mxu0 0.0
      %608 = vmatmul.mubr.f32.gmra.mrb[0].mxu0 %v538
      %v609 = vpop.f32.mrb[0].mxu0
      %v610 = vadd.f32 0.0, %v609
      %v611 = vpop.f32.mrb[0].mxu0
      %v612 = vadd.f32 0.0, %v611
      %613 = vmatprep.mubr.f32.mxu0 0.0
      %614 = vmatmul.mubr.f32.gmra.mrb[0].mxu0 %v541
      %v615 = vpop.f32.mrb[0].mxu0
      %v616 = vadd.f32 0.0, %v615
      %v617 = vpop.f32.mrb[0].mxu0
      %v618 = vadd.f32 0.0, %v617
      %619 = vdwg.mxu0
      %620 = vmatprep.subr.mxu0 %v528
      %621 = vmatpush1.msra.mxu0 %v526
      %622 = vmatprep.subr.mxu0 %v532
      %623 = vmatpush1.msra.mxu0 %v530
      %624 = vmatprep.subr.mxu0 0.0
      %625 = vmatpush1.msra.mxu0 0.0
      %626 = vmatprep.subr.mxu0 0.0
      %627 = vmatpush1.msra.mxu0 0.0
      %628 = vmatprep.subr.mxu0 0.0
      %629 = vmatpush1.msra.mxu0 0.0
      %630 = vmatprep.subr.mxu0 0.0
      %631 = vmatpush1.msra.mxu0 0.0
      %632 = vmatprep.subr.mxu0 0.0
      %633 = vmatpush1.msra.mxu0 0.0
      %634 = vmatprep.subr.mxu0 0.0
      %635 = vmatpush1.msra.mxu0 0.0
      %636 = vmatprep.subr.mxu0 0.0
      %637 = vmatpush1.msra.mxu0 0.0
      %638 = vmatprep.subr.mxu0 0.0
      %639 = vmatpush1.msra.mxu0 0.0
      %640 = vmatprep.subr.mxu0 0.0
      %641 = vmatpush1.msra.mxu0 0.0
      %642 = vmatprep.subr.mxu0 0.0
      %643 = vmatpush1.msra.mxu0 0.0
      %644 = vmatprep.subr.mxu0 0.0
      %645 = vmatpush1.msra.mxu0 0.0
      %646 = vmatprep.subr.mxu0 0.0
      %647 = vmatpush1.msra.mxu0 0.0
      %648 = vmatprep.subr.mxu0 0.0
      %649 = vmatpush1.msra.mxu0 0.0
      %650 = vmatprep.subr.mxu0 0.0
      %651 = vmatpush1.msra.mxu0 0.0
      %652 = vmatprep.subr.mxu0 0.0
      %653 = vmatpush1.msra.mxu0 0.0
      %654 = vmatprep.subr.mxu0 0.0
      %655 = vmatpush1.msra.mxu0 0.0
      %656 = vmatprep.subr.mxu0 0.0
      %657 = vmatpush1.msra.mxu0 0.0
      %658 = vmatprep.subr.mxu0 0.0
      %659 = vmatpush1.msra.mxu0 0.0
      %660 = vmatprep.subr.mxu0 0.0
      %661 = vmatpush1.msra.mxu0 0.0
      %662 = vmatprep.subr.mxu0 0.0
      %663 = vmatpush1.msra.mxu0 0.0
      %664 = vmatprep.subr.mxu0 0.0
      %665 = vmatpush1.msra.mxu0 0.0
      %666 = vmatprep.subr.mxu0 0.0
      %667 = vmatpush1.msra.mxu0 0.0
      %668 = vmatprep.subr.mxu0 0.0
      %669 = vmatpush1.msra.mxu0 0.0
      %670 = vmatprep.subr.mxu0 0.0
      %671 = vmatpush1.msra.mxu0 0.0
      %672 = vmatprep.subr.mxu0 0.0
      %673 = vmatpush1.msra.mxu0 0.0
      %674 = vmatprep.subr.mxu0 0.0
      %675 = vmatpush1.msra.mxu0 0.0
      %676 = vmatprep.subr.mxu0 0.0
      %677 = vmatpush1.msra.mxu0 0.0
      %678 = vmatprep.subr.mxu0 0.0
      %679 = vmatpush1.msra.mxu0 0.0
      %680 = vmatprep.subr.mxu0 0.0
      %681 = vmatpush1.msra.mxu0 0.0
      %682 = vmatprep.subr.mxu0 0.0
      %683 = vmatpush1.msra.mxu0 0.0
      %684 = vmatprep.mubr.f32.mxu0 0.0
      %685 = vmatmul.mubr.f32.gmra.mrb[0].mxu0 %v538
      %v686 = vpop.f32.mrb[0].mxu0
      %v687 = vadd.f32 0.0, %v686
      %v688 = vpop.f32.mrb[0].mxu0
      %v689 = vadd.f32 0.0, %v688
      %690 = vmatprep.mubr.f32.mxu0 0.0
      %691 = vmatmul.mubr.f32.gmra.mrb[0].mxu0 %v541
      %v692 = vpop.f32.mrb[0].mxu0
      %v693 = vadd.f32 0.0, %v692
      %v694 = vpop.f32.mrb[0].mxu0
      %v695 = vadd.f32 0.0, %v694
      %696 = vdwg.mxu0
      %697 = vst [vmem:[#allocation2] sm:$0xff] 0
      %698 = vst [vmem:[#allocation2 + $0x8] sm:$0xff] 0
      %s699 = scalar_lea.vmem [#allocation2], 48
      %700 = vst [vmem:[%s699] sm:$0xff] 0
      %701 = vst [vmem:[%s699 + $0x8] sm:$0xff] 0
      %v702 = vpack.c.bf16 %v616, %v610
      %v703 = vpack.c.bf16 %v618, %v612
      %v704 = vpack.c.bf16 %v693, %v687
      %v705 = vpack.c.bf16 %v695, %v689
      %s706 = scalar_lea.vmem [#allocation2], 16
      %707 = vst [vmem:[%s706] sm:$0xff] %v702
      %708 = vst [vmem:[%s706 + $0x8] sm:$0xff] %v703
      %709 = vst [vmem:[%s706 + $0x10] sm:$0xff] %v704
      %710 = vst [vmem:[%s706 + $0x18] sm:$0xff] %v705
      %v711 = vld [vmem:[#allocation2] sm:$0xff]
      %v712 = vld [vmem:[#allocation2 + $0x8] sm:$0xff]
      %v713 = vld [vmem:[#allocation2 + $0x10] sm:$0xff]
      %v714 = vld [vmem:[#allocation2 + $0x18] sm:$0xff]
      %v715 = vld [vmem:[%s4] sm:$0xff]
      %v716 = vld [vmem:[%s4 + $0x8] sm:$0xff]
      %v717 = vld [vmem:[%s4 + $0x10] sm:$0xff]
      %v718 = vld [vmem:[%s4 + $0x18] sm:$0xff]
      %v719 = vld [vmem:[%s4 + $0x20] sm:$0xff]
      %v720 = vld [vmem:[%s4 + $0x28] sm:$0xff]
      %v721 = vld [vmem:[%s4 + $0x30] sm:$0xff]
      %v722 = vld [vmem:[%s4 + $0x38] sm:$0xff]
      %v723 = vld [vmem:[%s4 + $0x40] sm:$0xff]
      %v724 = vld [vmem:[%s4 + $0x48] sm:$0xff]
      %v725 = vld [vmem:[%s4 + $0x50] sm:$0xff]
      %v726 = vld [vmem:[%s4 + $0x58] sm:$0xff]
      %v727 = vld [vmem:[%s4 + $0x60] sm:$0xff]
      %v728 = vld [vmem:[%s4 + $0x68] sm:$0xff]
      %v729 = vld [vmem:[%s4 + $0x70] sm:$0xff]
      %v730 = vld [vmem:[%s4 + $0x78] sm:$0xff]
      %v731 = vld [vmem:[%s4 + $0x80] sm:$0xff]
      %v732 = vld [vmem:[%s4 + $0x88] sm:$0xff]
      %v733 = vld [vmem:[%s4 + $0x90] sm:$0xff]
      %v734 = vld [vmem:[%s4 + $0x98] sm:$0xff]
      %v735 = vld [vmem:[%s4 + $0xa0] sm:$0xff]
      %v736 = vld [vmem:[%s4 + $0xa8] sm:$0xff]
      %v737 = vld [vmem:[%s4 + $0xb0] sm:$0xff]
      %v738 = vld [vmem:[%s4 + $0xb8] sm:$0xff]
      %v739 = vld [vmem:[%s4 + $0xc0] sm:$0xff]
      %v740 = vld [vmem:[%s4 + $0xc8] sm:$0xff]
      %v741 = vld [vmem:[%s4 + $0xd0] sm:$0xff]
      %v742 = vld [vmem:[%s4 + $0xd8] sm:$0xff]
      %v743 = vld [vmem:[%s4 + $0xe0] sm:$0xff]
      %v744 = vld [vmem:[%s4 + $0xe8] sm:$0xff]
      %v745 = vld [vmem:[%s4 + $0xf0] sm:$0xff]
      %v746 = vld [vmem:[%s4 + $0xf8] sm:$0xff]
      %v747 = vld [vmem:[%s706] sm:$0xff]
      %v748 = vld [vmem:[%s706 + $0x8] sm:$0xff]
      %v749 = vld [vmem:[%s706 + $0x10] sm:$0xff]
      %v750 = vld [vmem:[%s706 + $0x18] sm:$0xff]
      %s751 = scalar_lea.vmem %s4, 256
      %v752 = vld [vmem:[%s751] sm:$0xff]
      %v753 = vld [vmem:[%s751 + $0x8] sm:$0xff]
      %v754 = vld [vmem:[%s751 + $0x10] sm:$0xff]
      %v755 = vld [vmem:[%s751 + $0x18] sm:$0xff]
      %v756 = vld [vmem:[%s751 + $0x20] sm:$0xff]
      %v757 = vld [vmem:[%s751 + $0x28] sm:$0xff]
      %v758 = vld [vmem:[%s751 + $0x30] sm:$0xff]
      %v759 = vld [vmem:[%s751 + $0x38] sm:$0xff]
      %v760 = vld [vmem:[%s751 + $0x40] sm:$0xff]
      %v761 = vld [vmem:[%s751 + $0x48] sm:$0xff]
      %v762 = vld [vmem:[%s751 + $0x50] sm:$0xff]
      %v763 = vld [vmem:[%s751 + $0x58] sm:$0xff]
      %v764 = vld [vmem:[%s751 + $0x60] sm:$0xff]
      %v765 = vld [vmem:[%s751 + $0x68] sm:$0xff]
      %v766 = vld [vmem:[%s751 + $0x70] sm:$0xff]
      %v767 = vld [vmem:[%s751 + $0x78] sm:$0xff]
      %v768 = vld [vmem:[%s751 + $0x80] sm:$0xff]
      %v769 = vld [vmem:[%s751 + $0x88] sm:$0xff]
      %v770 = vld [vmem:[%s751 + $0x90] sm:$0xff]
      %v771 = vld [vmem:[%s751 + $0x98] sm:$0xff]
      %v772 = vld [vmem:[%s751 + $0xa0] sm:$0xff]
      %v773 = vld [vmem:[%s751 + $0xa8] sm:$0xff]
      %v774 = vld [vmem:[%s751 + $0xb0] sm:$0xff]
      %v775 = vld [vmem:[%s751 + $0xb8] sm:$0xff]
      %v776 = vld [vmem:[%s751 + $0xc0] sm:$0xff]
      %v777 = vld [vmem:[%s751 + $0xc8] sm:$0xff]
      %v778 = vld [vmem:[%s751 + $0xd0] sm:$0xff]
      %v779 = vld [vmem:[%s751 + $0xd8] sm:$0xff]
      %v780 = vld [vmem:[%s751 + $0xe0] sm:$0xff]
      %v781 = vld [vmem:[%s751 + $0xe8] sm:$0xff]
      %v782 = vld [vmem:[%s751 + $0xf0] sm:$0xff]
      %v783 = vld [vmem:[%s751 + $0xf8] sm:$0xff]
      %v816 = vunpack.c.l.b16 %v752
      %v817 = vunpack.c.h.b16 %v752
      %v818 = vunpack.c.l.b16 %v753
      %v819 = vunpack.c.h.b16 %v753
      %v820 = vunpack.c.l.b16 %v754
      %v821 = vunpack.c.h.b16 %v754
      %v822 = vunpack.c.l.b16 %v755
      %v823 = vunpack.c.h.b16 %v755
      %v824 = vunpack.c.l.b16 %v756
      %v825 = vunpack.c.h.b16 %v756
      %v826 = vunpack.c.l.b16 %v757
      %v827 = vunpack.c.h.b16 %v757
      %v828 = vunpack.c.l.b16 %v758
      %v829 = vunpack.c.h.b16 %v758
      %v830 = vunpack.c.l.b16 %v759
      %v831 = vunpack.c.h.b16 %v759
      %v832 = vunpack.c.l.b16 %v760
      %v833 = vunpack.c.h.b16 %v760
      %v834 = vunpack.c.l.b16 %v761
      %v835 = vunpack.c.h.b16 %v761
      %v836 = vunpack.c.l.b16 %v762
      %v837 = vunpack.c.h.b16 %v762
      %v838 = vunpack.c.l.b16 %v763
      %v839 = vunpack.c.h.b16 %v763
      %v840 = vunpack.c.l.b16 %v764
      %v841 = vunpack.c.h.b16 %v764
      %v842 = vunpack.c.l.b16 %v765
      %v843 = vunpack.c.h.b16 %v765
      %v844 = vunpack.c.l.b16 %v766
      %v845 = vunpack.c.h.b16 %v766
      %v846 = vunpack.c.l.b16 %v767
      %v847 = vunpack.c.h.b16 %v767
      %v848 = vunpack.c.l.b16 %v768
      %v849 = vunpack.c.h.b16 %v768
      %v850 = vunpack.c.l.b16 %v769
      %v851 = vunpack.c.h.b16 %v769
      %v852 = vunpack.c.l.b16 %v770
      %v853 = vunpack.c.h.b16 %v770
      %v854 = vunpack.c.l.b16 %v771
      %v855 = vunpack.c.h.b16 %v771
      %v856 = vunpack.c.l.b16 %v772
      %v857 = vunpack.c.h.b16 %v772
      %v858 = vunpack.c.l.b16 %v773
      %v859 = vunpack.c.h.b16 %v773
      %v860 = vunpack.c.l.b16 %v774
      %v861 = vunpack.c.h.b16 %v774
      %v862 = vunpack.c.l.b16 %v775
      %v863 = vunpack.c.h.b16 %v775
      %v864 = vunpack.c.l.b16 %v776
      %v865 = vunpack.c.h.b16 %v776
      %v866 = vunpack.c.l.b16 %v777
      %v867 = vunpack.c.h.b16 %v777
      %v868 = vunpack.c.l.b16 %v778
      %v869 = vunpack.c.h.b16 %v778
      %v870 = vunpack.c.l.b16 %v779
      %v871 = vunpack.c.h.b16 %v779
      %v872 = vunpack.c.l.b16 %v780
      %v873 = vunpack.c.h.b16 %v780
      %v874 = vunpack.c.l.b16 %v781
      %v875 = vunpack.c.h.b16 %v781
      %v876 = vunpack.c.l.b16 %v782
      %v877 = vunpack.c.h.b16 %v782
      %v878 = vunpack.c.l.b16 %v783
      %v879 = vunpack.c.h.b16 %v783
      %v880 = vpack.c.b16 %v818, %v816
      %v881 = vpack.c.b16 %v819, %v817
      %v882 = vpack.c.b16 %v822, %v820
      %v883 = vpack.c.b16 %v823, %v821
      %v884 = vpack.c.b16 %v826, %v824
      %v885 = vpack.c.b16 %v827, %v825
      %v886 = vpack.c.b16 %v830, %v828
      %v887 = vpack.c.b16 %v831, %v829
      %v888 = vpack.c.b16 %v834, %v832
      %v889 = vpack.c.b16 %v835, %v833
      %v890 = vpack.c.b16 %v838, %v836
      %v891 = vpack.c.b16 %v839, %v837
      %v892 = vpack.c.b16 %v842, %v840
      %v893 = vpack.c.b16 %v843, %v841
      %v894 = vpack.c.b16 %v846, %v844
      %v895 = vpack.c.b16 %v847, %v845
      %v896 = vpack.c.b16 %v850, %v848
      %v897 = vpack.c.b16 %v851, %v849
      %v898 = vpack.c.b16 %v854, %v852
      %v899 = vpack.c.b16 %v855, %v853
      %v900 = vpack.c.b16 %v858, %v856
      %v901 = vpack.c.b16 %v859, %v857
      %v902 = vpack.c.b16 %v862, %v860
      %v903 = vpack.c.b16 %v863, %v861
      %v904 = vpack.c.b16 %v866, %v864
      %v905 = vpack.c.b16 %v867, %v865
      %v906 = vpack.c.b16 %v870, %v868
      %v907 = vpack.c.b16 %v871, %v869
      %v908 = vpack.c.b16 %v874, %v872
      %v909 = vpack.c.b16 %v875, %v873
      %v910 = vpack.c.b16 %v878, %v876
      %v911 = vpack.c.b16 %v879, %v877
      %944 = vmatprep.subr.bf16.mxu0 %v881
      %945 = vmatpush1.bf16.msra.mxu0 %v880
      %946 = vmatprep.subr.bf16.mxu0 %v883
      %947 = vmatpush1.bf16.msra.mxu0 %v882
      %948 = vmatprep.subr.bf16.mxu0 %v885
      %949 = vmatpush1.bf16.msra.mxu0 %v884
      %950 = vmatprep.subr.bf16.mxu0 %v887
      %951 = vmatpush1.bf16.msra.mxu0 %v886
      %952 = vmatprep.subr.bf16.mxu0 %v889
      %953 = vmatpush1.bf16.msra.mxu0 %v888
      %954 = vmatprep.subr.bf16.mxu0 %v891
      %955 = vmatpush1.bf16.msra.mxu0 %v890
      %956 = vmatprep.subr.bf16.mxu0 %v893
      %957 = vmatpush1.bf16.msra.mxu0 %v892
      %958 = vmatprep.subr.bf16.mxu0 %v895
      %959 = vmatpush1.bf16.msra.mxu0 %v894
      %960 = vmatprep.subr.bf16.mxu0 %v897
      %961 = vmatpush1.bf16.msra.mxu0 %v896
      %962 = vmatprep.subr.bf16.mxu0 %v899
      %963 = vmatpush1.bf16.msra.mxu0 %v898
      %964 = vmatprep.subr.bf16.mxu0 %v901
      %965 = vmatpush1.bf16.msra.mxu0 %v900
      %966 = vmatprep.subr.bf16.mxu0 %v903
      %967 = vmatpush1.bf16.msra.mxu0 %v902
      %968 = vmatprep.subr.bf16.mxu0 %v905
      %969 = vmatpush1.bf16.msra.mxu0 %v904
      %970 = vmatprep.subr.bf16.mxu0 %v907
      %971 = vmatpush1.bf16.msra.mxu0 %v906
      %972 = vmatprep.subr.bf16.mxu0 %v909
      %973 = vmatpush1.bf16.msra.mxu0 %v908
      %974 = vmatprep.subr.bf16.mxu0 %v911
      %975 = vmatpush1.bf16.msra.mxu0 %v910
      %976 = vmatprep.mubr.bf16.mxu0 %v748
      %977 = vmatmul.mubr.bf16.gmra.mrb[0].mxu0 %v747
      %v978 = vpop.f32.mrb[0].mxu0
      %v979 = vadd.f32 0.0, %v978
      %v980 = vpop.f32.mrb[0].mxu0
      %v981 = vadd.f32 0.0, %v980
      %v982 = vpop.f32.mrb[0].mxu0
      %v983 = vadd.f32 0.0, %v982
      %v984 = vpop.f32.mrb[0].mxu0
      %v985 = vadd.f32 0.0, %v984
      %986 = vmatprep.mubr.bf16.mxu0 %v750
      %987 = vmatmul.mubr.bf16.gmra.mrb[0].mxu0 %v749
      %v988 = vpop.f32.mrb[0].mxu0
      %v989 = vadd.f32 0.0, %v988
      %v990 = vpop.f32.mrb[0].mxu0
      %v991 = vadd.f32 0.0, %v990
      %v992 = vpop.f32.mrb[0].mxu0
      %v993 = vadd.f32 0.0, %v992
      %v994 = vpop.f32.mrb[0].mxu0
      %v995 = vadd.f32 0.0, %v994
      %996 = vdwg.mxu0
      %v1029 = vunpack.c.l.b16 %v715
      %v1030 = vunpack.c.h.b16 %v715
      %v1031 = vunpack.c.l.b16 %v716
      %v1032 = vunpack.c.h.b16 %v716
      %v1033 = vunpack.c.l.b16 %v717
      %v1034 = vunpack.c.h.b16 %v717
      %v1035 = vunpack.c.l.b16 %v718
      %v1036 = vunpack.c.h.b16 %v718
      %v1037 = vunpack.c.l.b16 %v719
      %v1038 = vunpack.c.h.b16 %v719
      %v1039 = vunpack.c.l.b16 %v720
      %v1040 = vunpack.c.h.b16 %v720
      %v1041 = vunpack.c.l.b16 %v721
      %v1042 = vunpack.c.h.b16 %v721
      %v1043 = vunpack.c.l.b16 %v722
      %v1044 = vunpack.c.h.b16 %v722
      %v1045 = vunpack.c.l.b16 %v723
      %v1046 = vunpack.c.h.b16 %v723
      %v1047 = vunpack.c.l.b16 %v724
      %v1048 = vunpack.c.h.b16 %v724
      %v1049 = vunpack.c.l.b16 %v725
      %v1050 = vunpack.c.h.b16 %v725
      %v1051 = vunpack.c.l.b16 %v726
      %v1052 = vunpack.c.h.b16 %v726
      %v1053 = vunpack.c.l.b16 %v727
      %v1054 = vunpack.c.h.b16 %v727
      %v1055 = vunpack.c.l.b16 %v728
      %v1056 = vunpack.c.h.b16 %v728
      %v1057 = vunpack.c.l.b16 %v729
      %v1058 = vunpack.c.h.b16 %v729
      %v1059 = vunpack.c.l.b16 %v730
      %v1060 = vunpack.c.h.b16 %v730
      %v1061 = vunpack.c.l.b16 %v731
      %v1062 = vunpack.c.h.b16 %v731
      %v1063 = vunpack.c.l.b16 %v732
      %v1064 = vunpack.c.h.b16 %v732
      %v1065 = vunpack.c.l.b16 %v733
      %v1066 = vunpack.c.h.b16 %v733
      %v1067 = vunpack.c.l.b16 %v734
      %v1068 = vunpack.c.h.b16 %v734
      %v1069 = vunpack.c.l.b16 %v735
      %v1070 = vunpack.c.h.b16 %v735
      %v1071 = vunpack.c.l.b16 %v736
      %v1072 = vunpack.c.h.b16 %v736
      %v1073 = vunpack.c.l.b16 %v737
      %v1074 = vunpack.c.h.b16 %v737
      %v1075 = vunpack.c.l.b16 %v738
      %v1076 = vunpack.c.h.b16 %v738
      %v1077 = vunpack.c.l.b16 %v739
      %v1078 = vunpack.c.h.b16 %v739
      %v1079 = vunpack.c.l.b16 %v740
      %v1080 = vunpack.c.h.b16 %v740
      %v1081 = vunpack.c.l.b16 %v741
      %v1082 = vunpack.c.h.b16 %v741
      %v1083 = vunpack.c.l.b16 %v742
      %v1084 = vunpack.c.h.b16 %v742
      %v1085 = vunpack.c.l.b16 %v743
      %v1086 = vunpack.c.h.b16 %v743
      %v1087 = vunpack.c.l.b16 %v744
      %v1088 = vunpack.c.h.b16 %v744
      %v1089 = vunpack.c.l.b16 %v745
      %v1090 = vunpack.c.h.b16 %v745
      %v1091 = vunpack.c.l.b16 %v746
      %v1092 = vunpack.c.h.b16 %v746
      %v1093 = vpack.c.b16 %v1031, %v1029
      %v1094 = vpack.c.b16 %v1032, %v1030
      %v1095 = vpack.c.b16 %v1035, %v1033
      %v1096 = vpack.c.b16 %v1036, %v1034
      %v1097 = vpack.c.b16 %v1039, %v1037
      %v1098 = vpack.c.b16 %v1040, %v1038
      %v1099 = vpack.c.b16 %v1043, %v1041
      %v1100 = vpack.c.b16 %v1044, %v1042
      %v1101 = vpack.c.b16 %v1047, %v1045
      %v1102 = vpack.c.b16 %v1048, %v1046
      %v1103 = vpack.c.b16 %v1051, %v1049
      %v1104 = vpack.c.b16 %v1052, %v1050
      %v1105 = vpack.c.b16 %v1055, %v1053
      %v1106 = vpack.c.b16 %v1056, %v1054
      %v1107 = vpack.c.b16 %v1059, %v1057
      %v1108 = vpack.c.b16 %v1060, %v1058
      %v1109 = vpack.c.b16 %v1063, %v1061
      %v1110 = vpack.c.b16 %v1064, %v1062
      %v1111 = vpack.c.b16 %v1067, %v1065
      %v1112 = vpack.c.b16 %v1068, %v1066
      %v1113 = vpack.c.b16 %v1071, %v1069
      %v1114 = vpack.c.b16 %v1072, %v1070
      %v1115 = vpack.c.b16 %v1075, %v1073
      %v1116 = vpack.c.b16 %v1076, %v1074
      %v1117 = vpack.c.b16 %v1079, %v1077
      %v1118 = vpack.c.b16 %v1080, %v1078
      %v1119 = vpack.c.b16 %v1083, %v1081
      %v1120 = vpack.c.b16 %v1084, %v1082
      %v1121 = vpack.c.b16 %v1087, %v1085
      %v1122 = vpack.c.b16 %v1088, %v1086
      %v1123 = vpack.c.b16 %v1091, %v1089
      %v1124 = vpack.c.b16 %v1092, %v1090
      %1157 = vmatprep.subr.bf16.mxu0 %v1094
      %1158 = vmatpush1.bf16.msra.mxu0 %v1093
      %1159 = vmatprep.subr.bf16.mxu0 %v1096
      %1160 = vmatpush1.bf16.msra.mxu0 %v1095
      %1161 = vmatprep.subr.bf16.mxu0 %v1098
      %1162 = vmatpush1.bf16.msra.mxu0 %v1097
      %1163 = vmatprep.subr.bf16.mxu0 %v1100
      %1164 = vmatpush1.bf16.msra.mxu0 %v1099
      %1165 = vmatprep.subr.bf16.mxu0 %v1102
      %1166 = vmatpush1.bf16.msra.mxu0 %v1101
      %1167 = vmatprep.subr.bf16.mxu0 %v1104
      %1168 = vmatpush1.bf16.msra.mxu0 %v1103
      %1169 = vmatprep.subr.bf16.mxu0 %v1106
      %1170 = vmatpush1.bf16.msra.mxu0 %v1105
      %1171 = vmatprep.subr.bf16.mxu0 %v1108
      %1172 = vmatpush1.bf16.msra.mxu0 %v1107
      %1173 = vmatprep.subr.bf16.mxu0 %v1110
      %1174 = vmatpush1.bf16.msra.mxu0 %v1109
      %1175 = vmatprep.subr.bf16.mxu0 %v1112
      %1176 = vmatpush1.bf16.msra.mxu0 %v1111
      %1177 = vmatprep.subr.bf16.mxu0 %v1114
      %1178 = vmatpush1.bf16.msra.mxu0 %v1113
      %1179 = vmatprep.subr.bf16.mxu0 %v1116
      %1180 = vmatpush1.bf16.msra.mxu0 %v1115
      %1181 = vmatprep.subr.bf16.mxu0 %v1118
      %1182 = vmatpush1.bf16.msra.mxu0 %v1117
      %1183 = vmatprep.subr.bf16.mxu0 %v1120
      %1184 = vmatpush1.bf16.msra.mxu0 %v1119
      %1185 = vmatprep.subr.bf16.mxu0 %v1122
      %1186 = vmatpush1.bf16.msra.mxu0 %v1121
      %1187 = vmatprep.subr.bf16.mxu0 %v1124
      %1188 = vmatpush1.bf16.msra.mxu0 %v1123
      %1189 = vmatprep.mubr.bf16.mxu0 %v712
      %1190 = vmatmul.mubr.bf16.gmra.mrb[0].mxu0 %v711
      %v1191 = vpop.f32.mrb[0].mxu0
      %v1192 = vadd.f32 %v979, %v1191
      %v1193 = vpop.f32.mrb[0].mxu0
      %v1194 = vadd.f32 %v981, %v1193
      %v1195 = vpop.f32.mrb[0].mxu0
      %v1196 = vadd.f32 %v983, %v1195
      %v1197 = vpop.f32.mrb[0].mxu0
      %v1198 = vadd.f32 %v985, %v1197
      %1199 = vmatprep.mubr.bf16.mxu0 %v714
      %1200 = vmatmul.mubr.bf16.gmra.mrb[0].mxu0 %v713
      %v1201 = vpop.f32.mrb[0].mxu0
      %v1202 = vadd.f32 %v989, %v1201
      %v1203 = vpop.f32.mrb[0].mxu0
      %v1204 = vadd.f32 %v991, %v1203
      %v1205 = vpop.f32.mrb[0].mxu0
      %v1206 = vadd.f32 %v993, %v1205
      %v1207 = vpop.f32.mrb[0].mxu0
      %v1208 = vadd.f32 %v995, %v1207
      %1209 = vdwg.mxu0
      %s1210 = scalar_lea.vmem [#allocation2], 32
      %v1211 = vld [vmem:[%s1210] sm:$0xff]
      %v1212 = vld [vmem:[%s1210 + $0x8] sm:$0xff]
      %v1213 = vld [vmem:[%s1210 + $0x10] sm:$0xff]
      %v1214 = vld [vmem:[%s1210 + $0x18] sm:$0xff]
      %s1215 = scalar_lea.vmem %s4, 512
      %v1216 = vld [vmem:[%s1215] sm:$0xff]
      %v1217 = vld [vmem:[%s1215 + $0x8] sm:$0xff]
      %v1218 = vld [vmem:[%s1215 + $0x10] sm:$0xff]
      %v1219 = vld [vmem:[%s1215 + $0x18] sm:$0xff]
      %v1220 = vld [vmem:[%s1215 + $0x20] sm:$0xff]
      %v1221 = vld [vmem:[%s1215 + $0x28] sm:$0xff]
      %v1222 = vld [vmem:[%s1215 + $0x30] sm:$0xff]
      %v1223 = vld [vmem:[%s1215 + $0x38] sm:$0xff]
      %v1224 = vld [vmem:[%s1215 + $0x40] sm:$0xff]
      %v1225 = vld [vmem:[%s1215 + $0x48] sm:$0xff]
      %v1226 = vld [vmem:[%s1215 + $0x50] sm:$0xff]
      %v1227 = vld [vmem:[%s1215 + $0x58] sm:$0xff]
      %v1228 = vld [vmem:[%s1215 + $0x60] sm:$0xff]
      %v1229 = vld [vmem:[%s1215 + $0x68] sm:$0xff]
      %v1230 = vld [vmem:[%s1215 + $0x70] sm:$0xff]
      %v1231 = vld [vmem:[%s1215 + $0x78] sm:$0xff]
      %v1232 = vld [vmem:[%s1215 + $0x80] sm:$0xff]
      %v1233 = vld [vmem:[%s1215 + $0x88] sm:$0xff]
      %v1234 = vld [vmem:[%s1215 + $0x90] sm:$0xff]
      %v1235 = vld [vmem:[%s1215 + $0x98] sm:$0xff]
      %v1236 = vld [vmem:[%s1215 + $0xa0] sm:$0xff]
      %v1237 = vld [vmem:[%s1215 + $0xa8] sm:$0xff]
      %v1238 = vld [vmem:[%s1215 + $0xb0] sm:$0xff]
      %v1239 = vld [vmem:[%s1215 + $0xb8] sm:$0xff]
      %v1240 = vld [vmem:[%s1215 + $0xc0] sm:$0xff]
      %v1241 = vld [vmem:[%s1215 + $0xc8] sm:$0xff]
      %v1242 = vld [vmem:[%s1215 + $0xd0] sm:$0xff]
      %v1243 = vld [vmem:[%s1215 + $0xd8] sm:$0xff]
      %v1244 = vld [vmem:[%s1215 + $0xe0] sm:$0xff]
      %v1245 = vld [vmem:[%s1215 + $0xe8] sm:$0xff]
      %v1246 = vld [vmem:[%s1215 + $0xf0] sm:$0xff]
      %v1247 = vld [vmem:[%s1215 + $0xf8] sm:$0xff]
      %v1280 = vunpack.c.l.b16 %v1216
      %v1281 = vunpack.c.h.b16 %v1216
      %v1282 = vunpack.c.l.b16 %v1217
      %v1283 = vunpack.c.h.b16 %v1217
      %v1284 = vunpack.c.l.b16 %v1218
      %v1285 = vunpack.c.h.b16 %v1218
      %v1286 = vunpack.c.l.b16 %v1219
      %v1287 = vunpack.c.h.b16 %v1219
      %v1288 = vunpack.c.l.b16 %v1220
      %v1289 = vunpack.c.h.b16 %v1220
      %v1290 = vunpack.c.l.b16 %v1221
      %v1291 = vunpack.c.h.b16 %v1221
      %v1292 = vunpack.c.l.b16 %v1222
      %v1293 = vunpack.c.h.b16 %v1222
      %v1294 = vunpack.c.l.b16 %v1223
      %v1295 = vunpack.c.h.b16 %v1223
      %v1296 = vunpack.c.l.b16 %v1224
      %v1297 = vunpack.c.h.b16 %v1224
      %v1298 = vunpack.c.l.b16 %v1225
      %v1299 = vunpack.c.h.b16 %v1225
      %v1300 = vunpack.c.l.b16 %v1226
      %v1301 = vunpack.c.h.b16 %v1226
      %v1302 = vunpack.c.l.b16 %v1227
      %v1303 = vunpack.c.h.b16 %v1227
      %v1304 = vunpack.c.l.b16 %v1228
      %v1305 = vunpack.c.h.b16 %v1228
      %v1306 = vunpack.c.l.b16 %v1229
      %v1307 = vunpack.c.h.b16 %v1229
      %v1308 = vunpack.c.l.b16 %v1230
      %v1309 = vunpack.c.h.b16 %v1230
      %v1310 = vunpack.c.l.b16 %v1231
      %v1311 = vunpack.c.h.b16 %v1231
      %v1312 = vunpack.c.l.b16 %v1232
      %v1313 = vunpack.c.h.b16 %v1232
      %v1314 = vunpack.c.l.b16 %v1233
      %v1315 = vunpack.c.h.b16 %v1233
      %v1316 = vunpack.c.l.b16 %v1234
      %v1317 = vunpack.c.h.b16 %v1234
      %v1318 = vunpack.c.l.b16 %v1235
      %v1319 = vunpack.c.h.b16 %v1235
      %v1320 = vunpack.c.l.b16 %v1236
      %v1321 = vunpack.c.h.b16 %v1236
      %v1322 = vunpack.c.l.b16 %v1237
      %v1323 = vunpack.c.h.b16 %v1237
      %v1324 = vunpack.c.l.b16 %v1238
      %v1325 = vunpack.c.h.b16 %v1238
      %v1326 = vunpack.c.l.b16 %v1239
      %v1327 = vunpack.c.h.b16 %v1239
      %v1328 = vunpack.c.l.b16 %v1240
      %v1329 = vunpack.c.h.b16 %v1240
      %v1330 = vunpack.c.l.b16 %v1241
      %v1331 = vunpack.c.h.b16 %v1241
      %v1332 = vunpack.c.l.b16 %v1242
      %v1333 = vunpack.c.h.b16 %v1242
      %v1334 = vunpack.c.l.b16 %v1243
      %v1335 = vunpack.c.h.b16 %v1243
      %v1336 = vunpack.c.l.b16 %v1244
      %v1337 = vunpack.c.h.b16 %v1244
      %v1338 = vunpack.c.l.b16 %v1245
      %v1339 = vunpack.c.h.b16 %v1245
      %v1340 = vunpack.c.l.b16 %v1246
      %v1341 = vunpack.c.h.b16 %v1246
      %v1342 = vunpack.c.l.b16 %v1247
      %v1343 = vunpack.c.h.b16 %v1247
      %v1344 = vpack.c.b16 %v1282, %v1280
      %v1345 = vpack.c.b16 %v1283, %v1281
      %v1346 = vpack.c.b16 %v1286, %v1284
      %v1347 = vpack.c.b16 %v1287, %v1285
      %v1348 = vpack.c.b16 %v1290, %v1288
      %v1349 = vpack.c.b16 %v1291, %v1289
      %v1350 = vpack.c.b16 %v1294, %v1292
      %v1351 = vpack.c.b16 %v1295, %v1293
      %v1352 = vpack.c.b16 %v1298, %v1296
      %v1353 = vpack.c.b16 %v1299, %v1297
      %v1354 = vpack.c.b16 %v1302, %v1300
      %v1355 = vpack.c.b16 %v1303, %v1301
      %v1356 = vpack.c.b16 %v1306, %v1304
      %v1357 = vpack.c.b16 %v1307, %v1305
      %v1358 = vpack.c.b16 %v1310, %v1308
      %v1359 = vpack.c.b16 %v1311, %v1309
      %v1360 = vpack.c.b16 %v1314, %v1312
      %v1361 = vpack.c.b16 %v1315, %v1313
      %v1362 = vpack.c.b16 %v1318, %v1316
      %v1363 = vpack.c.b16 %v1319, %v1317
      %v1364 = vpack.c.b16 %v1322, %v1320
      %v1365 = vpack.c.b16 %v1323, %v1321
      %v1366 = vpack.c.b16 %v1326, %v1324
      %v1367 = vpack.c.b16 %v1327, %v1325
      %v1368 = vpack.c.b16 %v1330, %v1328
      %v1369 = vpack.c.b16 %v1331, %v1329
      %v1370 = vpack.c.b16 %v1334, %v1332
      %v1371 = vpack.c.b16 %v1335, %v1333
      %v1372 = vpack.c.b16 %v1338, %v1336
      %v1373 = vpack.c.b16 %v1339, %v1337
      %v1374 = vpack.c.b16 %v1342, %v1340
      %v1375 = vpack.c.b16 %v1343, %v1341
      %1408 = vmatprep.subr.bf16.mxu0 %v1345
      %1409 = vmatpush1.bf16.msra.mxu0 %v1344
      %1410 = vmatprep.subr.bf16.mxu0 %v1347
      %1411 = vmatpush1.bf16.msra.mxu0 %v1346
      %1412 = vmatprep.subr.bf16.mxu0 %v1349
      %1413 = vmatpush1.bf16.msra.mxu0 %v1348
      %1414 = vmatprep.subr.bf16.mxu0 %v1351
      %1415 = vmatpush1.bf16.msra.mxu0 %v1350
      %1416 = vmatprep.subr.bf16.mxu0 %v1353
      %1417 = vmatpush1.bf16.msra.mxu0 %v1352
      %1418 = vmatprep.subr.bf16.mxu0 %v1355
      %1419 = vmatpush1.bf16.msra.mxu0 %v1354
      %1420 = vmatprep.subr.bf16.mxu0 %v1357
      %1421 = vmatpush1.bf16.msra.mxu0 %v1356
      %1422 = vmatprep.subr.bf16.mxu0 %v1359
      %1423 = vmatpush1.bf16.msra.mxu0 %v1358
      %1424 = vmatprep.subr.bf16.mxu0 %v1361
      %1425 = vmatpush1.bf16.msra.mxu0 %v1360
      %1426 = vmatprep.subr.bf16.mxu0 %v1363
      %1427 = vmatpush1.bf16.msra.mxu0 %v1362
      %1428 = vmatprep.subr.bf16.mxu0 %v1365
      %1429 = vmatpush1.bf16.msra.mxu0 %v1364
      %1430 = vmatprep.subr.bf16.mxu0 %v1367
      %1431 = vmatpush1.bf16.msra.mxu0 %v1366
      %1432 = vmatprep.subr.bf16.mxu0 %v1369
      %1433 = vmatpush1.bf16.msra.mxu0 %v1368
      %1434 = vmatprep.subr.bf16.mxu0 %v1371
      %1435 = vmatpush1.bf16.msra.mxu0 %v1370
      %1436 = vmatprep.subr.bf16.mxu0 %v1373
      %1437 = vmatpush1.bf16.msra.mxu0 %v1372
      %1438 = vmatprep.subr.bf16.mxu0 %v1375
      %1439 = vmatpush1.bf16.msra.mxu0 %v1374
      %1440 = vmatprep.mubr.bf16.mxu0 %v1212
      %1441 = vmatmul.mubr.bf16.gmra.mrb[0].mxu0 %v1211
      %v1442 = vpop.f32.mrb[0].mxu0
      %v1443 = vadd.f32 0.0, %v1442
      %v1444 = vpop.f32.mrb[0].mxu0
      %v1445 = vadd.f32 0.0, %v1444
      %v1446 = vpop.f32.mrb[0].mxu0
      %v1447 = vadd.f32 0.0, %v1446
      %v1448 = vpop.f32.mrb[0].mxu0
      %v1449 = vadd.f32 0.0, %v1448
      %1450 = vmatprep.mubr.bf16.mxu0 %v1214
      %1451 = vmatmul.mubr.bf16.gmra.mrb[0].mxu0 %v1213
      %v1452 = vpop.f32.mrb[0].mxu0
      %v1453 = vadd.f32 0.0, %v1452
      %v1454 = vpop.f32.mrb[0].mxu0
      %v1455 = vadd.f32 0.0, %v1454
      %v1456 = vpop.f32.mrb[0].mxu0
      %v1457 = vadd.f32 0.0, %v1456
      %v1458 = vpop.f32.mrb[0].mxu0
      %v1459 = vadd.f32 0.0, %v1458
      %1460 = vdwg.mxu0
      %v1461 = vadd.f32 %v1192, %v1443
      %v1462 = vadd.f32 %v1194, %v1445
      %v1463 = vadd.f32 %v1196, %v1447
      %v1464 = vadd.f32 %v1198, %v1449
      %v1465 = vadd.f32 %v1202, %v1453
      %v1466 = vadd.f32 %v1204, %v1455
      %v1467 = vadd.f32 %v1206, %v1457
      %v1468 = vadd.f32 %v1208, %v1459
      %v1469 = vld [vmem:[%s5] sm:$0x3]
      %v1471 = vlaneseq
      %v1472 = vshrl.u32 %v1471, 7
      %v1473 = vsub.s32 0, %v1472
      %v1474 = vrot.slane %v1469, %v1473
      %v1475 = vlaneseq
      %v1476 = vshrl.u32 %v1475, 7
      %v1477 = vsub.s32 1, %v1476
      %v1478 = vrot.slane %v1469, %v1477
      %v1481 = vadd.f32 %v1461, %v1474
      %v1482 = vadd.f32 %v1462, %v1478
      %v1483 = vadd.f32 %v1463, %v1474
      %v1484 = vadd.f32 %v1464, %v1478
      %v1485 = vadd.f32 %v1465, %v1474
      %v1486 = vadd.f32 %v1466, %v1478
      %v1487 = vadd.f32 %v1467, %v1474
      %v1488 = vadd.f32 %v1468, %v1478
      %v1489 = vmax.f32 %v1481, 0.0
      %v1490 = vmax.f32 %v1482, 0.0
      %v1491 = vmax.f32 %v1483, 0.0
      %v1492 = vmax.f32 %v1484, 0.0
      %v1493 = vmax.f32 %v1485, 0.0
      %v1494 = vmax.f32 %v1486, 0.0
      %v1495 = vmax.f32 %v1487, 0.0
      %v1496 = vmax.f32 %v1488, 0.0
      %v1497 = vpack.c.bf16 %v1491, %v1489
      %v1498 = vpack.c.bf16 %v1492, %v1490
      %v1499 = vpack.c.bf16 %v1495, %v1493
      %v1500 = vpack.c.bf16 %v1496, %v1494
      %v1505 = vunpack.c.l.b16 %v1497
      %v1506 = vunpack.c.l.b16 %v1498
      %v1507 = vunpack.c.h.b16 %v1497
      %v1508 = vunpack.c.h.b16 %v1498
      %v1509 = vunpack.c.l.b16 %v1499
      %v1510 = vunpack.c.l.b16 %v1500
      %v1511 = vunpack.c.h.b16 %v1499
      %v1512 = vunpack.c.h.b16 %v1500
      %v1513 = vpack.c.b16 %v1506, %v1505
      %v1514 = vpack.c.b16 %v1508, %v1507
      %v1515 = vpack.c.b16 %v1510, %v1509
      %v1516 = vpack.c.b16 %v1512, %v1511
      %1521 = vst [vmem:[%s251] sm:$0xff] %v1513
      %1522 = vst [vmem:[%s251 + $0x8] sm:$0xff] %v1514
      %1523 = vst [vmem:[%s251 + $0x10] sm:$0xff] %v1515
      %1524 = vst [vmem:[%s251 + $0x18] sm:$0xff] %v1516
      %p1525 = scmp.lt.s32.totalorder %s17, 1
      %s1526 = scalar_select %p1525, %s17, 1
      %s1527 = smul.addr %s1526, 8
      %s1528 = smul.addr %s1527, 4
      %s1529 = scalar_lea.vmem %s6, %s1528
      // Predicated region
      $region45: #{_lambda_.19} parent=43 // pred_check
        %p1530 = pneg %p166
      $region46: #{_lambda_.19} parent=43 // pred_check_branch
        %1532 = sbr.rel (%p1530) target = $region48
      $region47: #{_lambda_.19} parent=43 // pred_region
        _
      $region48: #{_lambda_.19} parent=43 // pred_fallthru
        _
    $region44: #{_lambda_.19} parent=5 // pred_fallthru
      _
    %p1533 = scmp.le.s32.totalorder 2, %s12
    // Predicated region
    $region49: #{_lambda_.19} parent=5 // pred_check
      %p1534 = pneg %p1533
    $region50: #{_lambda_.19} parent=5 // pred_check_branch
      %1536 = sbr.rel (%p1534) target = $region52
    $region51: #{_lambda_.19} parent=5 // pred_region
      %s1537 = ssub.s32 %s12, 2
      // Predicated region
      $region53: #{_lambda_.19} parent=51 // pred_check
        %p1538 = pneg %p172
      $region54: #{_lambda_.19} parent=51 // pred_check_branch
        %1540 = sbr.rel (%p1538) target = $region56
      $region55: #{_lambda_.19} parent=51 // pred_region
        %p1541 = scmp.lt.s32.totalorder %s18, 1
        %s1542 = scalar_select %p1541, %s18, 1
        %s1543 = smul.addr %s1542, 8
        %s1544 = smul.addr %s1543, 4
        %s1545 = scalar_lea.vmem %s6, %s1544
      $region56: #{_lambda_.19} parent=51 // pred_fallthru
        _
    $region52: #{_lambda_.19} parent=5 // pred_fallthru
      _
  $region6: #{_lambda_.19} parent=0 // loop_footer
    %s16 = sadd.s32 1, %s12
  $region7: #{_lambda_.19} parent=0 // loop_footer_branch
    %11 = sbr.rel target = $region3
  $region8: #{_lambda_.19} parent=0 // loop_exit
    _

</llo_original>
